<compile_context>
chip_gen: v5e
topology: v5e:2x2
jax: 0.10.0
libtpu: 0.0.40
codegen_flags: <defaults>
</compile_context>

<pallas_src>
from functools import partial

import jax
import jax.numpy as jnp
from jax.experimental import pallas as pl
from jax.experimental.pallas import tpu as pltpu

BN_EPS = 1e-5


# ----------------------------------------------------------------------------
# BN / activation helpers
# ----------------------------------------------------------------------------
def _bn_scale_shift(s, s2, gamma_ref, beta_ref, inv_p):
    """Fold training-mode BatchNorm1d (biased variance) into per-channel
    scale/shift.  s, s2: (1, C) f32 sums of x and x^2 over all P points."""
    mean = s * inv_p
    var = jnp.maximum(s2 * inv_p - mean * mean, 0.0)
    # TODO(synk): single-pass E[x^2]-E[x]^2 can cancel when |mean| >> std; a
    # Welford / two-pass accumulation is the robust fix for extreme scales.
    scale = gamma_ref[...] * jax.lax.rsqrt(var + BN_EPS)   # EUP rsqrt
    shift = beta_ref[...] - mean * scale
    return scale, shift


def _affine(scale, shift, bf16_vpu):
    """Cast scale/shift once per layer to the elementwise compute dtype."""
    dt = jnp.bfloat16 if bf16_vpu else jnp.float32
    return scale.astype(dt), shift.astype(dt)


def _norm_relu(h, scale_a, shift_a):
    """BN affine + ReLU with the bf16 downcast fused into the write.
    Elementwise math runs in scale_a.dtype (bf16 on v6e/v7x, f32 on v5e)."""
    y = jnp.maximum(h.astype(scale_a.dtype) * scale_a + shift_a, 0)
    return y.astype(jnp.bfloat16)


def _fused_layer(in_chunks, scale_a, shift_a, w_ref, g_ref, b_ref, inv_p):
    """One Conv1d(k=1)+BN layer, chunked: normalize previous layer's chunk
    (VPU) -> matmul (MXU, f32 accumulate) -> accumulate BN sums (f32) -> store
    chunk as bf16.  Returns (bf16 pre-BN chunks, scale, shift)."""
    w = w_ref[...]
    out_chunks = []
    s = s2 = None
    for hc in in_chunks:
        a = hc if scale_a is None else _norm_relu(hc, scale_a, shift_a)
        h = jnp.dot(a.astype(w.dtype), w, preferred_element_type=jnp.float32)
        cs = jnp.sum(h, axis=0, keepdims=True)
        cq = jnp.sum(h * h, axis=0, keepdims=True)
        s = cs if s is None else s + cs
        s2 = cq if s2 is None else s2 + cq
        out_chunks.append(h.astype(jnp.bfloat16))
    scale, shift = _bn_scale_shift(s, s2, g_ref, b_ref, inv_p)
    return out_chunks, scale, shift


# ----------------------------------------------------------------------------
# Kernel
# ----------------------------------------------------------------------------
def _est_coord_kernel(B, N, bc, bf16_vpu, *refs):
    (pc_ref, coord_ref,
     ew1, eg1, et1,
     ew2, eg2, et2,
     ew3, eg3, et3,
     ew4, eg4, et4,
     ew5, eg5, et5,
     dw1x, dw1g, dg1, dt1,
     dw2, dg2, dt2,
     dw3, dg3, dt3,
     dw4, db4,
     loss_ref) = refs

    P = B * N
    R = bc * N                       # rows per (batch-aligned) chunk
    nchunks = B // bc
    inv_p = 1.0 / float(P)

    # Input chunks (f32, tiny) -- also reused by decoder layer 1's x-branch.
    x_chunks = [pc_ref[c * R:(c + 1) * R, :] for c in range(nchunks)]

    # ---- encoder layers 1-4: 3 -> 64 -> 128 -> 256 -> 512 -------------------
    # TODO(synk): on v7x, shard this chunk loop across the two TensorCores with
    # a cross-core reduction of the BN partial sums (VMEM_SHARED + barrier).
    h, sc, sh = _fused_layer(x_chunks, None, None, ew1, eg1, et1, inv_p)
    sa, ta = _affine(sc, sh, bf16_vpu)
    h, sc, sh = _fused_layer(h, sa, ta, ew2, eg2, et2, inv_p)
    sa, ta = _affine(sc, sh, bf16_vpu)
    h, sc, sh = _fused_layer(h, sa, ta, ew3, eg3, et3, inv_p)
    sa, ta = _affine(sc, sh, bf16_vpu)
    h, sc, sh = _fused_layer(h, sa, ta, ew4, eg4, et4, inv_p)
    sa, ta = _affine(sc, sh, bf16_vpu)

    # ---- encoder layer 5 (512 -> 1024): per-point output never stored -------
    # Only per-channel BN sums and per-batch running max/min of the raw matmul
    # output are kept; max_n ReLU(scale*h+shift) is recovered from max/min
    # because the affine and ReLU are monotone per channel.
    w5 = ew5[...]
    s5 = q5 = None
    maxs, mins = [], []
    for c in range(nchunks):
        a = _norm_relu(h[c], sa, ta)
        g = jnp.dot(a, w5, preferred_element_type=jnp.float32)     # (R, 1024)
        cs = jnp.sum(g, axis=0, keepdims=True)
        cq = jnp.sum(g * g, axis=0, keepdims=True)
        s5 = cs if s5 is None else s5 + cs
        q5 = cq if q5 is None else q5 + cq
        g3 = g.reshape(bc, N, 1024)                # free relayout (N % 8 == 0)
        maxs.append(jnp.max(g3, axis=1))
        mins.append(jnp.min(g3, axis=1))
    sc5, sh5 = _bn_scale_shift(s5, q5, eg5, et5, inv_p)
    max_h = maxs[0] if nchunks == 1 else jnp.concatenate(maxs, axis=0)
    min_h = mins[0] if nchunks == 1 else jnp.concatenate(mins, axis=0)
    pooled = jnp.maximum(
        jnp.where(sc5 >= 0.0, sc5 * max_h, sc5 * min_h) + sh5, 0.0)  # (B,1024)

    # ---- global-feature projection at batch granularity ---------------------
    gproj = jnp.dot(pooled.astype(jnp.bfloat16), dw1g[...],
                    preferred_element_type=jnp.float32)              # (B, 512)

    # ---- decoder layer 1: Conv1d(1024+3 -> 512) = W[:, :3]@x + W[:, 3:]@g ---
    s1 = q1 = None
    d_chunks = []
    w1x = dw1x[...]
    for c in range(nchunks):
        d = jnp.dot(x_chunks[c], w1x, preferred_element_type=jnp.float32)
        gpc = gproj[c * bc:(c + 1) * bc]                             # (bc, 512)
        d = (d.reshape(bc, N, 512) + gpc[:, None, :]).reshape(R, 512)
        cs = jnp.sum(d, axis=0, keepdims=True)
        cq = jnp.sum(d * d, axis=0, keepdims=True)
        s1 = cs if s1 is None else s1 + cs
        q1 = cq if q1 is None else q1 + cq
        d_chunks.append(d.astype(jnp.bfloat16))
    sc1, sh1 = _bn_scale_shift(s1, q1, dg1, dt1, inv_p)
    sa, ta = _affine(sc1, sh1, bf16_vpu)

    # ---- decoder layers 2, 3: 512 -> 256 -> 128 -----------------------------
    d_chunks, sc2, sh2 = _fused_layer(d_chunks, sa, ta, dw2, dg2, dt2, inv_p)
    sa, ta = _affine(sc2, sh2, bf16_vpu)
    d_chunks, sc3, sh3 = _fused_layer(d_chunks, sa, ta, dw3, dg3, dt3, inv_p)
    sa, ta = _affine(sc3, sh3, bf16_vpu)

    # ---- final layer (128 -> 3, bias kept) + fused mean-MSE -----------------
    w4 = dw4[...]
    b4 = db4[...]
    acc = None
    for c in range(nchunks):
        a = _norm_relu(d_chunks[c], sa, ta)
        pred = jnp.dot(a, w4, preferred_element_type=jnp.float32) + b4
        diff = pred - coord_ref[c * R:(c + 1) * R, :]
        ce = jnp.sum(diff * diff, axis=(0, 1), keepdims=True)
        acc = ce if acc is None else acc + ce
    loss_ref[...] = acc * (1.0 / float(P * 3))


# ----------------------------------------------------------------------------
# Wrapper
# ----------------------------------------------------------------------------
def _has_bf16_vpu():
    """v6e / v7x have bf16 VALUs; v5e/v5p do not (bf16 elementwise would be
    unpacked and slower there)."""
    try:
        kind = jax.devices()[0].device_kind.lower()
    except Exception:
        return False
    return ("v6" in kind) or ("v7" in kind) or ("trillium" in kind)


def _vmem_limit_bytes():
    """Request ~3/4 of physical VMEM: 96 MiB on 128-MiB v5e/v6e parts,
    48 MiB on v7x's 64-MiB parts.  No fixed 64-MiB clamp."""
    try:
        cap = int(pltpu.get_tpu_info().vmem_capacity_bytes)
    except Exception:
        cap = 128 * 1024 * 1024
    return int(cap * 3 // 4)


def _batches_per_chunk(B, N):
    """Largest divisor of B with chunk rows (bc*N) <= 1024 (at least 1), so
    chunks are batch-aligned (max-pool / gproj broadcast stay local)."""
    bc = 1
    for d in range(1, B + 1):
        if B % d == 0 and d * N <= 1024:
            bc = d
    return bc


def _cost_estimate(B, N, flat_inputs):
    P = B * N
    dims = [(3, 64), (64, 128), (128, 256), (256, 512), (512, 1024),
            (3, 512), (512, 256), (256, 128), (128, 3)]
    flops = 2 * P * sum(ci * co for ci, co in dims) + 2 * B * 1024 * 512
    transcendentals = 64 + 128 + 256 + 512 + 1024 + 512 + 256 + 128  # BN rsqrt
    bytes_accessed = sum(int(x.size) * x.dtype.itemsize for x in flat_inputs) + 4
    return pl.CostEstimate(flops=flops, transcendentals=transcendentals,
                           bytes_accessed=bytes_accessed)


def est_coord_forward(pc, coord, params):
    """Pallas implementation of EstCoordNet.forward.

    pc:    (B, N, 3) float32 point cloud in camera frame
    coord: (B, N, 3) float32 ground-truth object-frame coordinates
    returns (loss, {"loss": loss})
    """
    B, N, _ = pc.shape
    assert N % 8 == 0, "Pallas fast path assumes N % 8 == 0 (free (B,N,C) relayouts)"
    P = B * N
    bc = _batches_per_chunk(B, N)
    flat_inputs = (pc.reshape(P, 3), coord.reshape(P, 3)) + tuple(params)
    loss = pl.pallas_call(
        partial(_est_coord_kernel, B, N, bc, _has_bf16_vpu()),
        out_shape=jax.ShapeDtypeStruct((1, 1), jnp.float32),
        in_specs=[pl.BlockSpec(memory_space=pltpu.MemorySpace.VMEM)] * len(flat_inputs),
        out_specs=pl.BlockSpec(memory_space=pltpu.MemorySpace.VMEM),
        compiler_params=pltpu.CompilerParams(vmem_limit_bytes=_vmem_limit_bytes()),
        cost_estimate=_cost_estimate(B, N, flat_inputs),
    )(*flat_inputs)
    loss = loss[0, 0]
    return loss, {"loss": loss}


def init_params(key):
    """Deterministic init mirroring EstCoordNet._init_weights:
       Conv1d: kaiming_normal_(fan_in, relu) -> std = sqrt(2 / Cin); bias = 0.
       BatchNorm1d: weight = 1, bias = 0.
       Weights stored transposed as (Cin, Cout); conv biases feeding BN layers
       omitted (exactly cancelled by BN).  Big-layer weights bf16 for the MXU
       fast path; the two K=3 weights stay f32."""
    params = []
    keys = jax.random.split(key, 16)
    ki = 0

    def kaiming(k, cin, cout, dtype):
        w = jax.random.normal(k, (cin, cout), jnp.float32) * ((2.0 / cin) ** 0.5)
        return w.astype(dtype)

    # encoder
    enc_shapes = [(3, 64), (64, 128), (128, 256), (256, 512), (512, 1024)]
    for li, (cin, cout) in enumerate(enc_shapes):
        wdt = jnp.float32 if li == 0 else jnp.bfloat16
        params += [kaiming(keys[ki], cin, cout, wdt),
                   jnp.ones((1, cout), jnp.float32),
                   jnp.zeros((1, cout), jnp.float32)]
        ki += 1

    # decoder layer 1: Conv1d(1027 -> 512); split into x-part and global-part
    w_full = kaiming(keys[ki], 1027, 512, jnp.float32); ki += 1
    params += [w_full[:3],                               # (3, 512)    f32
               w_full[3:].astype(jnp.bfloat16),          # (1024, 512) bf16
               jnp.ones((1, 512), jnp.float32),
               jnp.zeros((1, 512), jnp.float32)]

    # decoder layers 2, 3 (with BN) and final layer 4 (no BN -> keep bias)
    for cin, cout in [(512, 256), (256, 128)]:
        params += [kaiming(keys[ki], cin, cout, jnp.bfloat16),
                   jnp.ones((1, cout), jnp.float32),
                   jnp.zeros((1, cout), jnp.float32)]
        ki += 1
    params += [kaiming(keys[ki], 128, 3, jnp.bfloat16),
               jnp.zeros((1, 3), jnp.float32)]
    ki += 1
    return params


# TODO(synk): EstCoordNet.est() (RANSAC sampling loop + torch.linalg.svd rigid
# fit) is host-side, data-dependent control flow with SVD; not implemented as
# a Pallas kernel.  BatchNorm running_mean/running_var buffer updates (a
# training-mode side effect) are likewise not materialized.

if __name__ == "__main__":
    key = jax.random.PRNGKey(0)
    k_param, k_pc, k_coord = jax.random.split(key, 3)

    B, N = 2, 64
    pc = jax.random.normal(k_pc, (B, N, 3), jnp.float32)
    coord = jax.random.normal(k_coord, (B, N, 3), jnp.float32)
    params = init_params(k_param)

    fwd = jax.jit(lambda p, c: est_coord_forward(p, c, params))
    loss, metric = fwd(pc, coord)
    jax.block_until_ready(loss)
    print("KERNEL_OK")
</pallas_src>

<mosaic_0001>
module attributes {stable_mosaic.version = 11 : i64} {
  func.func @_est_coord_kernel(%arg0: memref<128x3xf32, #tpu.memory_space<vmem>>, %arg1: memref<128x3xf32, #tpu.memory_space<vmem>>, %arg2: memref<3x64xf32, #tpu.memory_space<vmem>>, %arg3: memref<1x64xf32, #tpu.memory_space<vmem>>, %arg4: memref<1x64xf32, #tpu.memory_space<vmem>>, %arg5: memref<64x128xbf16, #tpu.memory_space<vmem>>, %arg6: memref<1x128xf32, #tpu.memory_space<vmem>>, %arg7: memref<1x128xf32, #tpu.memory_space<vmem>>, %arg8: memref<128x256xbf16, #tpu.memory_space<vmem>>, %arg9: memref<1x256xf32, #tpu.memory_space<vmem>>, %arg10: memref<1x256xf32, #tpu.memory_space<vmem>>, %arg11: memref<256x512xbf16, #tpu.memory_space<vmem>>, %arg12: memref<1x512xf32, #tpu.memory_space<vmem>>, %arg13: memref<1x512xf32, #tpu.memory_space<vmem>>, %arg14: memref<512x1024xbf16, #tpu.memory_space<vmem>>, %arg15: memref<1x1024xf32, #tpu.memory_space<vmem>>, %arg16: memref<1x1024xf32, #tpu.memory_space<vmem>>, %arg17: memref<3x512xf32, #tpu.memory_space<vmem>>, %arg18: memref<1024x512xbf16, #tpu.memory_space<vmem>>, %arg19: memref<1x512xf32, #tpu.memory_space<vmem>>, %arg20: memref<1x512xf32, #tpu.memory_space<vmem>>, %arg21: memref<512x256xbf16, #tpu.memory_space<vmem>>, %arg22: memref<1x256xf32, #tpu.memory_space<vmem>>, %arg23: memref<1x256xf32, #tpu.memory_space<vmem>>, %arg24: memref<256x128xbf16, #tpu.memory_space<vmem>>, %arg25: memref<1x128xf32, #tpu.memory_space<vmem>>, %arg26: memref<1x128xf32, #tpu.memory_space<vmem>>, %arg27: memref<128x3xbf16, #tpu.memory_space<vmem>>, %arg28: memref<1x3xf32, #tpu.memory_space<vmem>>, %arg29: memref<1x1xf32, #tpu.memory_space<vmem>>) attributes {dimension_semantics = [], scalar_prefetch = 0 : i64, scratch_operands = 0 : i64, tpu.core_type = #tpu.core_type<tc>} {
    %c0 = arith.constant 0 : index
    %c0_0 = arith.constant 0 : index
    %0 = vector.load %arg0[%c0, %c0_0] : memref<128x3xf32, #tpu.memory_space<vmem>>, vector<128x3xf32>
    %c0_1 = arith.constant 0 : index
    %c0_2 = arith.constant 0 : index
    %1 = vector.load %arg2[%c0_1, %c0_2] : memref<3x64xf32, #tpu.memory_space<vmem>>, vector<3x64xf32>
    %cst = arith.constant dense<0.000000e+00> : vector<128x64xf32>
    %2 = tpu.matmul %0, %1, %cst {dimension_numbers = #tpu.dot_dimension_numbers<[1], [0], [0], [1], [0, 0, 1, 1], [], []>} : vector<128x3xf32>, vector<3x64xf32>, vector<128x64xf32> -> vector<128x64xf32>
    %cst_3 = arith.constant dense<0.000000e+00> : vector<64xf32>
    %3 = vector.multi_reduction <add>, %2, %cst_3 [0] : vector<128x64xf32> to vector<64xf32>
    %4 = vector.shape_cast %3 : vector<64xf32> to vector<1x64xf32>
    %5 = arith.mulf %2, %2 : vector<128x64xf32>
    %cst_4 = arith.constant dense<0.000000e+00> : vector<64xf32>
    %6 = vector.multi_reduction <add>, %5, %cst_4 [0] : vector<128x64xf32> to vector<64xf32>
    %7 = vector.shape_cast %6 : vector<64xf32> to vector<1x64xf32>
    %8 = arith.truncf %2 : vector<128x64xf32> to vector<128x64xbf16>
    %cst_5 = arith.constant 7.812500e-03 : f32
    %9 = vector.broadcast %cst_5 : f32 to vector<1x64xf32>
    %10 = arith.mulf %4, %9 : vector<1x64xf32>
    %cst_6 = arith.constant 7.812500e-03 : f32
    %11 = vector.broadcast %cst_6 : f32 to vector<1x64xf32>
    %12 = arith.mulf %7, %11 : vector<1x64xf32>
    %13 = arith.mulf %10, %10 : vector<1x64xf32>
    %14 = arith.subf %12, %13 : vector<1x64xf32>
    %cst_7 = arith.constant 0.000000e+00 : f32
    %15 = vector.broadcast %cst_7 : f32 to vector<1x64xf32>
    %16 = arith.maximumf %14, %15 : vector<1x64xf32>
    %c0_8 = arith.constant 0 : index
    %c0_9 = arith.constant 0 : index
    %17 = vector.load %arg3[%c0_8, %c0_9] : memref<1x64xf32, #tpu.memory_space<vmem>>, vector<1x64xf32>
    %cst_10 = arith.constant 9.99999974E-6 : f32
    %18 = vector.broadcast %cst_10 : f32 to vector<1x64xf32>
    %19 = arith.addf %16, %18 : vector<1x64xf32>
    %20 = math.rsqrt %19 : vector<1x64xf32>
    %21 = arith.mulf %17, %20 : vector<1x64xf32>
    %c0_11 = arith.constant 0 : index
    %c0_12 = arith.constant 0 : index
    %22 = vector.load %arg4[%c0_11, %c0_12] : memref<1x64xf32, #tpu.memory_space<vmem>>, vector<1x64xf32>
    %23 = arith.mulf %10, %21 : vector<1x64xf32>
    %24 = arith.subf %22, %23 : vector<1x64xf32>
    %c0_13 = arith.constant 0 : index
    %c0_14 = arith.constant 0 : index
    %25 = vector.load %arg5[%c0_13, %c0_14] : memref<64x128xbf16, #tpu.memory_space<vmem>>, vector<64x128xbf16>
    %26 = arith.extf %8 : vector<128x64xbf16> to vector<128x64xf32>
    %27 = vector.broadcast %21 : vector<1x64xf32> to vector<128x64xf32>
    %28 = arith.mulf %26, %27 : vector<128x64xf32>
    %29 = vector.broadcast %24 : vector<1x64xf32> to vector<128x64xf32>
    %30 = arith.addf %28, %29 : vector<128x64xf32>
    %cst_15 = arith.constant 0.000000e+00 : f32
    %31 = vector.broadcast %cst_15 : f32 to vector<128x64xf32>
    %32 = arith.maximumf %30, %31 : vector<128x64xf32>
    %33 = arith.truncf %32 : vector<128x64xf32> to vector<128x64xbf16>
    %cst_16 = arith.constant dense<0.000000e+00> : vector<128x128xf32>
    %34 = tpu.matmul %33, %25, %cst_16 {dimension_numbers = #tpu.dot_dimension_numbers<[1], [0], [0], [1], [0, 0, 1, 1], [], []>} : vector<128x64xbf16>, vector<64x128xbf16>, vector<128x128xf32> -> vector<128x128xf32>
    %cst_17 = arith.constant dense<0.000000e+00> : vector<128xf32>
    %35 = vector.multi_reduction <add>, %34, %cst_17 [0] : vector<128x128xf32> to vector<128xf32>
    %36 = vector.shape_cast %35 : vector<128xf32> to vector<1x128xf32>
    %37 = arith.mulf %34, %34 : vector<128x128xf32>
    %cst_18 = arith.constant dense<0.000000e+00> : vector<128xf32>
    %38 = vector.multi_reduction <add>, %37, %cst_18 [0] : vector<128x128xf32> to vector<128xf32>
    %39 = vector.shape_cast %38 : vector<128xf32> to vector<1x128xf32>
    %40 = arith.truncf %34 : vector<128x128xf32> to vector<128x128xbf16>
    %cst_19 = arith.constant 7.812500e-03 : f32
    %41 = vector.broadcast %cst_19 : f32 to vector<1x128xf32>
    %42 = arith.mulf %36, %41 : vector<1x128xf32>
    %cst_20 = arith.constant 7.812500e-03 : f32
    %43 = vector.broadcast %cst_20 : f32 to vector<1x128xf32>
    %44 = arith.mulf %39, %43 : vector<1x128xf32>
    %45 = arith.mulf %42, %42 : vector<1x128xf32>
    %46 = arith.subf %44, %45 : vector<1x128xf32>
    %cst_21 = arith.constant 0.000000e+00 : f32
    %47 = vector.broadcast %cst_21 : f32 to vector<1x128xf32>
    %48 = arith.maximumf %46, %47 : vector<1x128xf32>
    %c0_22 = arith.constant 0 : index
    %c0_23 = arith.constant 0 : index
    %49 = vector.load %arg6[%c0_22, %c0_23] : memref<1x128xf32, #tpu.memory_space<vmem>>, vector<1x128xf32>
    %cst_24 = arith.constant 9.99999974E-6 : f32
    %50 = vector.broadcast %cst_24 : f32 to vector<1x128xf32>
    %51 = arith.addf %48, %50 : vector<1x128xf32>
    %52 = math.rsqrt %51 : vector<1x128xf32>
    %53 = arith.mulf %49, %52 : vector<1x128xf32>
    %c0_25 = arith.constant 0 : index
    %c0_26 = arith.constant 0 : index
    %54 = vector.load %arg7[%c0_25, %c0_26] : memref<1x128xf32, #tpu.memory_space<vmem>>, vector<1x128xf32>
    %55 = arith.mulf %42, %53 : vector<1x128xf32>
    %56 = arith.subf %54, %55 : vector<1x128xf32>
    %c0_27 = arith.constant 0 : index
    %c0_28 = arith.constant 0 : index
    %57 = vector.load %arg8[%c0_27, %c0_28] : memref<128x256xbf16, #tpu.memory_space<vmem>>, vector<128x256xbf16>
    %58 = arith.extf %40 : vector<128x128xbf16> to vector<128x128xf32>
    %59 = vector.broadcast %53 : vector<1x128xf32> to vector<128x128xf32>
    %60 = arith.mulf %58, %59 : vector<128x128xf32>
    %61 = vector.broadcast %56 : vector<1x128xf32> to vector<128x128xf32>
    %62 = arith.addf %60, %61 : vector<128x128xf32>
    %cst_29 = arith.constant 0.000000e+00 : f32
    %63 = vector.broadcast %cst_29 : f32 to vector<128x128xf32>
    %64 = arith.maximumf %62, %63 : vector<128x128xf32>
    %65 = arith.truncf %64 : vector<128x128xf32> to vector<128x128xbf16>
    %cst_30 = arith.constant dense<0.000000e+00> : vector<128x256xf32>
    %66 = tpu.matmul %65, %57, %cst_30 {dimension_numbers = #tpu.dot_dimension_numbers<[1], [0], [0], [1], [0, 0, 1, 1], [], []>} : vector<128x128xbf16>, vector<128x256xbf16>, vector<128x256xf32> -> vector<128x256xf32>
    %cst_31 = arith.constant dense<0.000000e+00> : vector<256xf32>
    %67 = vector.multi_reduction <add>, %66, %cst_31 [0] : vector<128x256xf32> to vector<256xf32>
    %68 = vector.shape_cast %67 : vector<256xf32> to vector<1x256xf32>
    %69 = arith.mulf %66, %66 : vector<128x256xf32>
    %cst_32 = arith.constant dense<0.000000e+00> : vector<256xf32>
    %70 = vector.multi_reduction <add>, %69, %cst_32 [0] : vector<128x256xf32> to vector<256xf32>
    %71 = vector.shape_cast %70 : vector<256xf32> to vector<1x256xf32>
    %72 = arith.truncf %66 : vector<128x256xf32> to vector<128x256xbf16>
    %cst_33 = arith.constant 7.812500e-03 : f32
    %73 = vector.broadcast %cst_33 : f32 to vector<1x256xf32>
    %74 = arith.mulf %68, %73 : vector<1x256xf32>
    %cst_34 = arith.constant 7.812500e-03 : f32
    %75 = vector.broadcast %cst_34 : f32 to vector<1x256xf32>
    %76 = arith.mulf %71, %75 : vector<1x256xf32>
    %77 = arith.mulf %74, %74 : vector<1x256xf32>
    %78 = arith.subf %76, %77 : vector<1x256xf32>
    %cst_35 = arith.constant 0.000000e+00 : f32
    %79 = vector.broadcast %cst_35 : f32 to vector<1x256xf32>
    %80 = arith.maximumf %78, %79 : vector<1x256xf32>
    %c0_36 = arith.constant 0 : index
    %c0_37 = arith.constant 0 : index
    %81 = vector.load %arg9[%c0_36, %c0_37] : memref<1x256xf32, #tpu.memory_space<vmem>>, vector<1x256xf32>
    %cst_38 = arith.constant 9.99999974E-6 : f32
    %82 = vector.broadcast %cst_38 : f32 to vector<1x256xf32>
    %83 = arith.addf %80, %82 : vector<1x256xf32>
    %84 = math.rsqrt %83 : vector<1x256xf32>
    %85 = arith.mulf %81, %84 : vector<1x256xf32>
    %c0_39 = arith.constant 0 : index
    %c0_40 = arith.constant 0 : index
    %86 = vector.load %arg10[%c0_39, %c0_40] : memref<1x256xf32, #tpu.memory_space<vmem>>, vector<1x256xf32>
    %87 = arith.mulf %74, %85 : vector<1x256xf32>
    %88 = arith.subf %86, %87 : vector<1x256xf32>
    %c0_41 = arith.constant 0 : index
    %c0_42 = arith.constant 0 : index
    %89 = vector.load %arg11[%c0_41, %c0_42] : memref<256x512xbf16, #tpu.memory_space<vmem>>, vector<256x512xbf16>
    %90 = arith.extf %72 : vector<128x256xbf16> to vector<128x256xf32>
    %91 = vector.broadcast %85 : vector<1x256xf32> to vector<128x256xf32>
    %92 = arith.mulf %90, %91 : vector<128x256xf32>
    %93 = vector.broadcast %88 : vector<1x256xf32> to vector<128x256xf32>
    %94 = arith.addf %92, %93 : vector<128x256xf32>
    %cst_43 = arith.constant 0.000000e+00 : f32
    %95 = vector.broadcast %cst_43 : f32 to vector<128x256xf32>
    %96 = arith.maximumf %94, %95 : vector<128x256xf32>
    %97 = arith.truncf %96 : vector<128x256xf32> to vector<128x256xbf16>
    %cst_44 = arith.constant dense<0.000000e+00> : vector<128x512xf32>
    %98 = tpu.matmul %97, %89, %cst_44 {dimension_numbers = #tpu.dot_dimension_numbers<[1], [0], [0], [1], [0, 0, 1, 1], [], []>} : vector<128x256xbf16>, vector<256x512xbf16>, vector<128x512xf32> -> vector<128x512xf32>
    %cst_45 = arith.constant dense<0.000000e+00> : vector<512xf32>
    %99 = vector.multi_reduction <add>, %98, %cst_45 [0] : vector<128x512xf32> to vector<512xf32>
    %100 = vector.shape_cast %99 : vector<512xf32> to vector<1x512xf32>
    %101 = arith.mulf %98, %98 : vector<128x512xf32>
    %cst_46 = arith.constant dense<0.000000e+00> : vector<512xf32>
    %102 = vector.multi_reduction <add>, %101, %cst_46 [0] : vector<128x512xf32> to vector<512xf32>
    %103 = vector.shape_cast %102 : vector<512xf32> to vector<1x512xf32>
    %104 = arith.truncf %98 : vector<128x512xf32> to vector<128x512xbf16>
    %cst_47 = arith.constant 7.812500e-03 : f32
    %105 = vector.broadcast %cst_47 : f32 to vector<1x512xf32>
    %106 = arith.mulf %100, %105 : vector<1x512xf32>
    %cst_48 = arith.constant 7.812500e-03 : f32
    %107 = vector.broadcast %cst_48 : f32 to vector<1x512xf32>
    %108 = arith.mulf %103, %107 : vector<1x512xf32>
    %109 = arith.mulf %106, %106 : vector<1x512xf32>
    %110 = arith.subf %108, %109 : vector<1x512xf32>
    %cst_49 = arith.constant 0.000000e+00 : f32
    %111 = vector.broadcast %cst_49 : f32 to vector<1x512xf32>
    %112 = arith.maximumf %110, %111 : vector<1x512xf32>
    %c0_50 = arith.constant 0 : index
    %c0_51 = arith.constant 0 : index
    %113 = vector.load %arg12[%c0_50, %c0_51] : memref<1x512xf32, #tpu.memory_space<vmem>>, vector<1x512xf32>
    %cst_52 = arith.constant 9.99999974E-6 : f32
    %114 = vector.broadcast %cst_52 : f32 to vector<1x512xf32>
    %115 = arith.addf %112, %114 : vector<1x512xf32>
    %116 = math.rsqrt %115 : vector<1x512xf32>
    %117 = arith.mulf %113, %116 : vector<1x512xf32>
    %c0_53 = arith.constant 0 : index
    %c0_54 = arith.constant 0 : index
    %118 = vector.load %arg13[%c0_53, %c0_54] : memref<1x512xf32, #tpu.memory_space<vmem>>, vector<1x512xf32>
    %119 = arith.mulf %106, %117 : vector<1x512xf32>
    %120 = arith.subf %118, %119 : vector<1x512xf32>
    %c0_55 = arith.constant 0 : index
    %c0_56 = arith.constant 0 : index
    %121 = vector.load %arg14[%c0_55, %c0_56] : memref<512x1024xbf16, #tpu.memory_space<vmem>>, vector<512x1024xbf16>
    %122 = arith.extf %104 : vector<128x512xbf16> to vector<128x512xf32>
    %123 = vector.broadcast %117 : vector<1x512xf32> to vector<128x512xf32>
    %124 = arith.mulf %122, %123 : vector<128x512xf32>
    %125 = vector.broadcast %120 : vector<1x512xf32> to vector<128x512xf32>
    %126 = arith.addf %124, %125 : vector<128x512xf32>
    %cst_57 = arith.constant 0.000000e+00 : f32
    %127 = vector.broadcast %cst_57 : f32 to vector<128x512xf32>
    %128 = arith.maximumf %126, %127 : vector<128x512xf32>
    %129 = arith.truncf %128 : vector<128x512xf32> to vector<128x512xbf16>
    %cst_58 = arith.constant dense<0.000000e+00> : vector<128x1024xf32>
    %130 = tpu.matmul %129, %121, %cst_58 {dimension_numbers = #tpu.dot_dimension_numbers<[1], [0], [0], [1], [0, 0, 1, 1], [], []>} : vector<128x512xbf16>, vector<512x1024xbf16>, vector<128x1024xf32> -> vector<128x1024xf32>
    %cst_59 = arith.constant dense<0.000000e+00> : vector<1024xf32>
    %131 = vector.multi_reduction <add>, %130, %cst_59 [0] : vector<128x1024xf32> to vector<1024xf32>
    %132 = vector.shape_cast %131 : vector<1024xf32> to vector<1x1024xf32>
    %133 = arith.mulf %130, %130 : vector<128x1024xf32>
    %cst_60 = arith.constant dense<0.000000e+00> : vector<1024xf32>
    %134 = vector.multi_reduction <add>, %133, %cst_60 [0] : vector<128x1024xf32> to vector<1024xf32>
    %135 = vector.shape_cast %134 : vector<1024xf32> to vector<1x1024xf32>
    %136 = vector.shape_cast %130 : vector<128x1024xf32> to vector<2x64x1024xf32>
    %cst_61 = arith.constant dense<0xFF800000> : vector<2x1024xf32>
    %137 = vector.multi_reduction <maximumf>, %136, %cst_61 [1] : vector<2x64x1024xf32> to vector<2x1024xf32>
    %cst_62 = arith.constant dense<0x7F800000> : vector<2x1024xf32>
    %138 = vector.multi_reduction <minimumf>, %136, %cst_62 [1] : vector<2x64x1024xf32> to vector<2x1024xf32>
    %cst_63 = arith.constant 7.812500e-03 : f32
    %139 = vector.broadcast %cst_63 : f32 to vector<1x1024xf32>
    %140 = arith.mulf %132, %139 : vector<1x1024xf32>
    %cst_64 = arith.constant 7.812500e-03 : f32
    %141 = vector.broadcast %cst_64 : f32 to vector<1x1024xf32>
    %142 = arith.mulf %135, %141 : vector<1x1024xf32>
    %143 = arith.mulf %140, %140 : vector<1x1024xf32>
    %144 = arith.subf %142, %143 : vector<1x1024xf32>
    %cst_65 = arith.constant 0.000000e+00 : f32
    %145 = vector.broadcast %cst_65 : f32 to vector<1x1024xf32>
    %146 = arith.maximumf %144, %145 : vector<1x1024xf32>
    %c0_66 = arith.constant 0 : index
    %c0_67 = arith.constant 0 : index
    %147 = vector.load %arg15[%c0_66, %c0_67] : memref<1x1024xf32, #tpu.memory_space<vmem>>, vector<1x1024xf32>
    %cst_68 = arith.constant 9.99999974E-6 : f32
    %148 = vector.broadcast %cst_68 : f32 to vector<1x1024xf32>
    %149 = arith.addf %146, %148 : vector<1x1024xf32>
    %150 = math.rsqrt %149 : vector<1x1024xf32>
    %151 = arith.mulf %147, %150 : vector<1x1024xf32>
    %c0_69 = arith.constant 0 : index
    %c0_70 = arith.constant 0 : index
    %152 = vector.load %arg16[%c0_69, %c0_70] : memref<1x1024xf32, #tpu.memory_space<vmem>>, vector<1x1024xf32>
    %153 = arith.mulf %140, %151 : vector<1x1024xf32>
    %154 = arith.subf %152, %153 : vector<1x1024xf32>
    %cst_71 = arith.constant 0.000000e+00 : f32
    %155 = vector.broadcast %cst_71 : f32 to vector<1x1024xf32>
    %156 = arith.cmpf oge, %151, %155 : vector<1x1024xf32>
    %157 = vector.broadcast %151 : vector<1x1024xf32> to vector<2x1024xf32>
    %158 = arith.mulf %157, %137 : vector<2x1024xf32>
    %159 = vector.broadcast %151 : vector<1x1024xf32> to vector<2x1024xf32>
    %160 = arith.mulf %159, %138 : vector<2x1024xf32>
    %161 = vector.shape_cast %156 : vector<1x1024xi1> to vector<1x1024xi1>
    %162 = vector.broadcast %161 : vector<1x1024xi1> to vector<2x1024xi1>
    %163 = arith.select %162, %158, %160 : vector<2x1024xi1>, vector<2x1024xf32>
    %164 = vector.broadcast %154 : vector<1x1024xf32> to vector<2x1024xf32>
    %165 = arith.addf %163, %164 : vector<2x1024xf32>
    %cst_72 = arith.constant 0.000000e+00 : f32
    %166 = vector.broadcast %cst_72 : f32 to vector<2x1024xf32>
    %167 = arith.maximumf %165, %166 : vector<2x1024xf32>
    %168 = arith.truncf %167 : vector<2x1024xf32> to vector<2x1024xbf16>
    %c0_73 = arith.constant 0 : index
    %c0_74 = arith.constant 0 : index
    %169 = vector.load %arg18[%c0_73, %c0_74] : memref<1024x512xbf16, #tpu.memory_space<vmem>>, vector<1024x512xbf16>
    %cst_75 = arith.constant dense<0.000000e+00> : vector<2x512xf32>
    %170 = tpu.matmul %168, %169, %cst_75 {dimension_numbers = #tpu.dot_dimension_numbers<[1], [0], [0], [1], [0, 0, 1, 1], [], []>} : vector<2x1024xbf16>, vector<1024x512xbf16>, vector<2x512xf32> -> vector<2x512xf32>
    %c0_76 = arith.constant 0 : index
    %c0_77 = arith.constant 0 : index
    %171 = vector.load %arg17[%c0_76, %c0_77] : memref<3x512xf32, #tpu.memory_space<vmem>>, vector<3x512xf32>
    %cst_78 = arith.constant dense<0.000000e+00> : vector<128x512xf32>
    %172 = tpu.matmul %0, %171, %cst_78 {dimension_numbers = #tpu.dot_dimension_numbers<[1], [0], [0], [1], [0, 0, 1, 1], [], []>} : vector<128x3xf32>, vector<3x512xf32>, vector<128x512xf32> -> vector<128x512xf32>
    %173 = vector.shape_cast %172 : vector<128x512xf32> to vector<2x64x512xf32>
    %174 = vector.shape_cast %170 : vector<2x512xf32> to vector<2x1x512xf32>
    %175 = vector.broadcast %174 : vector<2x1x512xf32> to vector<2x64x512xf32>
    %176 = arith.addf %173, %175 : vector<2x64x512xf32>
    %177 = vector.shape_cast %176 : vector<2x64x512xf32> to vector<128x512xf32>
    %cst_79 = arith.constant dense<0.000000e+00> : vector<512xf32>
    %178 = vector.multi_reduction <add>, %177, %cst_79 [0] : vector<128x512xf32> to vector<512xf32>
    %179 = vector.shape_cast %178 : vector<512xf32> to vector<1x512xf32>
    %180 = arith.mulf %177, %177 : vector<128x512xf32>
    %cst_80 = arith.constant dense<0.000000e+00> : vector<512xf32>
    %181 = vector.multi_reduction <add>, %180, %cst_80 [0] : vector<128x512xf32> to vector<512xf32>
    %182 = vector.shape_cast %181 : vector<512xf32> to vector<1x512xf32>
    %183 = arith.truncf %177 : vector<128x512xf32> to vector<128x512xbf16>
    %cst_81 = arith.constant 7.812500e-03 : f32
    %184 = vector.broadcast %cst_81 : f32 to vector<1x512xf32>
    %185 = arith.mulf %179, %184 : vector<1x512xf32>
    %cst_82 = arith.constant 7.812500e-03 : f32
    %186 = vector.broadcast %cst_82 : f32 to vector<1x512xf32>
    %187 = arith.mulf %182, %186 : vector<1x512xf32>
    %188 = arith.mulf %185, %185 : vector<1x512xf32>
    %189 = arith.subf %187, %188 : vector<1x512xf32>
    %cst_83 = arith.constant 0.000000e+00 : f32
    %190 = vector.broadcast %cst_83 : f32 to vector<1x512xf32>
    %191 = arith.maximumf %189, %190 : vector<1x512xf32>
    %c0_84 = arith.constant 0 : index
    %c0_85 = arith.constant 0 : index
    %192 = vector.load %arg19[%c0_84, %c0_85] : memref<1x512xf32, #tpu.memory_space<vmem>>, vector<1x512xf32>
    %cst_86 = arith.constant 9.99999974E-6 : f32
    %193 = vector.broadcast %cst_86 : f32 to vector<1x512xf32>
    %194 = arith.addf %191, %193 : vector<1x512xf32>
    %195 = math.rsqrt %194 : vector<1x512xf32>
    %196 = arith.mulf %192, %195 : vector<1x512xf32>
    %c0_87 = arith.constant 0 : index
    %c0_88 = arith.constant 0 : index
    %197 = vector.load %arg20[%c0_87, %c0_88] : memref<1x512xf32, #tpu.memory_space<vmem>>, vector<1x512xf32>
    %198 = arith.mulf %185, %196 : vector<1x512xf32>
    %199 = arith.subf %197, %198 : vector<1x512xf32>
    %c0_89 = arith.constant 0 : index
    %c0_90 = arith.constant 0 : index
    %200 = vector.load %arg21[%c0_89, %c0_90] : memref<512x256xbf16, #tpu.memory_space<vmem>>, vector<512x256xbf16>
    %201 = arith.extf %183 : vector<128x512xbf16> to vector<128x512xf32>
    %202 = vector.broadcast %196 : vector<1x512xf32> to vector<128x512xf32>
    %203 = arith.mulf %201, %202 : vector<128x512xf32>
    %204 = vector.broadcast %199 : vector<1x512xf32> to vector<128x512xf32>
    %205 = arith.addf %203, %204 : vector<128x512xf32>
    %cst_91 = arith.constant 0.000000e+00 : f32
    %206 = vector.broadcast %cst_91 : f32 to vector<128x512xf32>
    %207 = arith.maximumf %205, %206 : vector<128x512xf32>
    %208 = arith.truncf %207 : vector<128x512xf32> to vector<128x512xbf16>
    %cst_92 = arith.constant dense<0.000000e+00> : vector<128x256xf32>
    %209 = tpu.matmul %208, %200, %cst_92 {dimension_numbers = #tpu.dot_dimension_numbers<[1], [0], [0], [1], [0, 0, 1, 1], [], []>} : vector<128x512xbf16>, vector<512x256xbf16>, vector<128x256xf32> -> vector<128x256xf32>
    %cst_93 = arith.constant dense<0.000000e+00> : vector<256xf32>
    %210 = vector.multi_reduction <add>, %209, %cst_93 [0] : vector<128x256xf32> to vector<256xf32>
    %211 = vector.shape_cast %210 : vector<256xf32> to vector<1x256xf32>
    %212 = arith.mulf %209, %209 : vector<128x256xf32>
    %cst_94 = arith.constant dense<0.000000e+00> : vector<256xf32>
    %213 = vector.multi_reduction <add>, %212, %cst_94 [0] : vector<128x256xf32> to vector<256xf32>
    %214 = vector.shape_cast %213 : vector<256xf32> to vector<1x256xf32>
    %215 = arith.truncf %209 : vector<128x256xf32> to vector<128x256xbf16>
    %cst_95 = arith.constant 7.812500e-03 : f32
    %216 = vector.broadcast %cst_95 : f32 to vector<1x256xf32>
    %217 = arith.mulf %211, %216 : vector<1x256xf32>
    %cst_96 = arith.constant 7.812500e-03 : f32
    %218 = vector.broadcast %cst_96 : f32 to vector<1x256xf32>
    %219 = arith.mulf %214, %218 : vector<1x256xf32>
    %220 = arith.mulf %217, %217 : vector<1x256xf32>
    %221 = arith.subf %219, %220 : vector<1x256xf32>
    %cst_97 = arith.constant 0.000000e+00 : f32
    %222 = vector.broadcast %cst_97 : f32 to vector<1x256xf32>
    %223 = arith.maximumf %221, %222 : vector<1x256xf32>
    %c0_98 = arith.constant 0 : index
    %c0_99 = arith.constant 0 : index
    %224 = vector.load %arg22[%c0_98, %c0_99] : memref<1x256xf32, #tpu.memory_space<vmem>>, vector<1x256xf32>
    %cst_100 = arith.constant 9.99999974E-6 : f32
    %225 = vector.broadcast %cst_100 : f32 to vector<1x256xf32>
    %226 = arith.addf %223, %225 : vector<1x256xf32>
    %227 = math.rsqrt %226 : vector<1x256xf32>
    %228 = arith.mulf %224, %227 : vector<1x256xf32>
    %c0_101 = arith.constant 0 : index
    %c0_102 = arith.constant 0 : index
    %229 = vector.load %arg23[%c0_101, %c0_102] : memref<1x256xf32, #tpu.memory_space<vmem>>, vector<1x256xf32>
    %230 = arith.mulf %217, %228 : vector<1x256xf32>
    %231 = arith.subf %229, %230 : vector<1x256xf32>
    %c0_103 = arith.constant 0 : index
    %c0_104 = arith.constant 0 : index
    %232 = vector.load %arg24[%c0_103, %c0_104] : memref<256x128xbf16, #tpu.memory_space<vmem>>, vector<256x128xbf16>
    %233 = arith.extf %215 : vector<128x256xbf16> to vector<128x256xf32>
    %234 = vector.broadcast %228 : vector<1x256xf32> to vector<128x256xf32>
    %235 = arith.mulf %233, %234 : vector<128x256xf32>
    %236 = vector.broadcast %231 : vector<1x256xf32> to vector<128x256xf32>
    %237 = arith.addf %235, %236 : vector<128x256xf32>
    %cst_105 = arith.constant 0.000000e+00 : f32
    %238 = vector.broadcast %cst_105 : f32 to vector<128x256xf32>
    %239 = arith.maximumf %237, %238 : vector<128x256xf32>
    %240 = arith.truncf %239 : vector<128x256xf32> to vector<128x256xbf16>
    %cst_106 = arith.constant dense<0.000000e+00> : vector<128x128xf32>
    %241 = tpu.matmul %240, %232, %cst_106 {dimension_numbers = #tpu.dot_dimension_numbers<[1], [0], [0], [1], [0, 0, 1, 1], [], []>} : vector<128x256xbf16>, vector<256x128xbf16>, vector<128x128xf32> -> vector<128x128xf32>
    %cst_107 = arith.constant dense<0.000000e+00> : vector<128xf32>
    %242 = vector.multi_reduction <add>, %241, %cst_107 [0] : vector<128x128xf32> to vector<128xf32>
    %243 = vector.shape_cast %242 : vector<128xf32> to vector<1x128xf32>
    %244 = arith.mulf %241, %241 : vector<128x128xf32>
    %cst_108 = arith.constant dense<0.000000e+00> : vector<128xf32>
    %245 = vector.multi_reduction <add>, %244, %cst_108 [0] : vector<128x128xf32> to vector<128xf32>
    %246 = vector.shape_cast %245 : vector<128xf32> to vector<1x128xf32>
    %247 = arith.truncf %241 : vector<128x128xf32> to vector<128x128xbf16>
    %cst_109 = arith.constant 7.812500e-03 : f32
    %248 = vector.broadcast %cst_109 : f32 to vector<1x128xf32>
    %249 = arith.mulf %243, %248 : vector<1x128xf32>
    %cst_110 = arith.constant 7.812500e-03 : f32
    %250 = vector.broadcast %cst_110 : f32 to vector<1x128xf32>
    %251 = arith.mulf %246, %250 : vector<1x128xf32>
    %252 = arith.mulf %249, %249 : vector<1x128xf32>
    %253 = arith.subf %251, %252 : vector<1x128xf32>
    %cst_111 = arith.constant 0.000000e+00 : f32
    %254 = vector.broadcast %cst_111 : f32 to vector<1x128xf32>
    %255 = arith.maximumf %253, %254 : vector<1x128xf32>
    %c0_112 = arith.constant 0 : index
    %c0_113 = arith.constant 0 : index
    %256 = vector.load %arg25[%c0_112, %c0_113] : memref<1x128xf32, #tpu.memory_space<vmem>>, vector<1x128xf32>
    %cst_114 = arith.constant 9.99999974E-6 : f32
    %257 = vector.broadcast %cst_114 : f32 to vector<1x128xf32>
    %258 = arith.addf %255, %257 : vector<1x128xf32>
    %259 = math.rsqrt %258 : vector<1x128xf32>
    %260 = arith.mulf %256, %259 : vector<1x128xf32>
    %c0_115 = arith.constant 0 : index
    %c0_116 = arith.constant 0 : index
    %261 = vector.load %arg26[%c0_115, %c0_116] : memref<1x128xf32, #tpu.memory_space<vmem>>, vector<1x128xf32>
    %262 = arith.mulf %249, %260 : vector<1x128xf32>
    %263 = arith.subf %261, %262 : vector<1x128xf32>
    %c0_117 = arith.constant 0 : index
    %c0_118 = arith.constant 0 : index
    %264 = vector.load %arg27[%c0_117, %c0_118] : memref<128x3xbf16, #tpu.memory_space<vmem>>, vector<128x3xbf16>
    %c0_119 = arith.constant 0 : index
    %c0_120 = arith.constant 0 : index
    %265 = vector.load %arg28[%c0_119, %c0_120] : memref<1x3xf32, #tpu.memory_space<vmem>>, vector<1x3xf32>
    %266 = arith.extf %247 : vector<128x128xbf16> to vector<128x128xf32>
    %267 = vector.broadcast %260 : vector<1x128xf32> to vector<128x128xf32>
    %268 = arith.mulf %266, %267 : vector<128x128xf32>
    %269 = vector.broadcast %263 : vector<1x128xf32> to vector<128x128xf32>
    %270 = arith.addf %268, %269 : vector<128x128xf32>
    %cst_121 = arith.constant 0.000000e+00 : f32
    %271 = vector.broadcast %cst_121 : f32 to vector<128x128xf32>
    %272 = arith.maximumf %270, %271 : vector<128x128xf32>
    %273 = arith.truncf %272 : vector<128x128xf32> to vector<128x128xbf16>
    %cst_122 = arith.constant dense<0.000000e+00> : vector<128x3xf32>
    %274 = tpu.matmul %273, %264, %cst_122 {dimension_numbers = #tpu.dot_dimension_numbers<[1], [0], [0], [1], [0, 0, 1, 1], [], []>} : vector<128x128xbf16>, vector<128x3xbf16>, vector<128x3xf32> -> vector<128x3xf32>
    %275 = vector.broadcast %265 : vector<1x3xf32> to vector<128x3xf32>
    %276 = arith.addf %274, %275 : vector<128x3xf32>
    %c0_123 = arith.constant 0 : index
    %c0_124 = arith.constant 0 : index
    %277 = vector.load %arg1[%c0_123, %c0_124] : memref<128x3xf32, #tpu.memory_space<vmem>>, vector<128x3xf32>
    %278 = arith.subf %276, %277 : vector<128x3xf32>
    %279 = arith.mulf %278, %278 : vector<128x3xf32>
    %280 = vector.shape_cast %279 : vector<128x3xf32> to vector<1x128x3xf32>
    %cst_125 = arith.constant dense<0.000000e+00> : vector<1xf32>
    %281 = vector.multi_reduction <add>, %280, %cst_125 [1, 2] : vector<1x128x3xf32> to vector<1xf32>
    %282 = vector.shape_cast %281 : vector<1xf32> to vector<1x1x1xf32>
    %283 = vector.extract %282[0, 0, 0] : f32 from vector<1x1x1xf32>
    %284 = vector.broadcast %283 : f32 to vector<1x1xf32>
    %cst_126 = arith.constant 0.00260416674 : f32
    %285 = vector.broadcast %cst_126 : f32 to vector<1x1xf32>
    %286 = arith.mulf %284, %285 : vector<1x1xf32>
    %c0_127 = arith.constant 0 : index
    %c0_128 = arith.constant 0 : index
    %287 = vector.load %arg29[%c0_127, %c0_128] : memref<1x1xf32, #tpu.memory_space<vmem>>, vector<1x1xf32>
    tpu.vector_store %arg29[%c0_127, %c0_128], %286 {strides = array<i32>} : memref<1x1xf32, #tpu.memory_space<vmem>>, vector<1x1xf32>,
    return
  }
}

</mosaic_0001>

<llo_original>
// kernel: _lambda_.1
$region0: #{_lambda_.1}
  #allocation0 [shape = 'u32[]', space=smem, size = 0x4, offset = 0x4, fixed_abs, tag = 'smem constant byte address 0x4 - core index']
  #allocation1 [shape = 'u32[72,128]{1,0:T(1,128)}', space=vmem, size = 0x9000, scoped, tag = 'internal scratch']
  %s0 = inlined_call_operand.smem [shape: u32[30], index: -1, kind: input, shape index: {}]
  %s1 = sld [smem:[%s0]]
  %s2 = scalar_lea.smem %s0, 1
  %s3 = sld [smem:[%s2]]
  %s4 = scalar_lea.smem %s0, 2
  %s5 = sld [smem:[%s4]]
  %s6 = scalar_lea.smem %s0, 3
  %s7 = sld [smem:[%s6]]
  %s8 = scalar_lea.smem %s0, 4
  %s9 = sld [smem:[%s8]]
  %s10 = scalar_lea.smem %s0, 5
  %s11 = sld [smem:[%s10]]
  %s12 = scalar_lea.smem %s0, 6
  %s13 = sld [smem:[%s12]]
  %s14 = scalar_lea.smem %s0, 7
  %s15 = sld [smem:[%s14]]
  %s16 = scalar_lea.smem %s0, 8
  %s17 = sld [smem:[%s16]]
  %s18 = scalar_lea.smem %s0, 9
  %s19 = sld [smem:[%s18]]
  %s20 = scalar_lea.smem %s0, 10
  %s21 = sld [smem:[%s20]]
  %s22 = scalar_lea.smem %s0, 11
  %s23 = sld [smem:[%s22]]
  %s24 = scalar_lea.smem %s0, 12
  %s25 = sld [smem:[%s24]]
  %s26 = scalar_lea.smem %s0, 13
  %s27 = sld [smem:[%s26]]
  %s28 = scalar_lea.smem %s0, 14
  %s29 = sld [smem:[%s28]]
  %s30 = scalar_lea.smem %s0, 15
  %s31 = sld [smem:[%s30]]
  %s32 = scalar_lea.smem %s0, 16
  %s33 = sld [smem:[%s32]]
  %s34 = scalar_lea.smem %s0, 17
  %s35 = sld [smem:[%s34]]
  %s36 = scalar_lea.smem %s0, 18
  %s37 = sld [smem:[%s36]]
  %s38 = scalar_lea.smem %s0, 19
  %s39 = sld [smem:[%s38]]
  %s40 = scalar_lea.smem %s0, 20
  %s41 = sld [smem:[%s40]]
  %s42 = scalar_lea.smem %s0, 21
  %s43 = sld [smem:[%s42]]
  %s44 = scalar_lea.smem %s0, 22
  %s45 = sld [smem:[%s44]]
  %s46 = scalar_lea.smem %s0, 23
  %s47 = sld [smem:[%s46]]
  %s48 = scalar_lea.smem %s0, 24
  %s49 = sld [smem:[%s48]]
  %s50 = scalar_lea.smem %s0, 25
  %s51 = sld [smem:[%s50]]
  %s52 = scalar_lea.smem %s0, 26
  %s53 = sld [smem:[%s52]]
  %s54 = scalar_lea.smem %s0, 27
  %s55 = sld [smem:[%s54]]
  %s56 = scalar_lea.smem %s0, 28
  %s57 = sld [smem:[%s56]]
  %s58 = scalar_lea.smem %s0, 29
  %s59 = sld [smem:[%s58]]
  %s60 = sld [smem:[#allocation0]]
  $region154: #{_lambda_.1} parent=0
    _
  %s62 = ssub.s32 1, %s60
  %s63 = scalar_select 0, %s62, %s60
  $region1: #{_lambda_.1} parent=0
    #allocation2 [shape = 'u8[2048]{0}', space=vmem, size = 0x800, scoped, tag = 'input window, operand 2, single buffered']
    #allocation3 [shape = 's32[1]{0}', space=sflag, size = 0x4, scoped, tag = 'scoped memory for _lambda_.1']
    #allocation4 [shape = 's32[1]{0}', space=sflag, size = 0x4, scoped, tag = 'scoped memory for _lambda_.1']
    #allocation5 [shape = 'u8[16384]{0}', space=vmem, size = 0x4000, scoped, tag = 'input window, operand 5, single buffered']
    #allocation6 [shape = 's32[1]{0}', space=sflag, size = 0x4, scoped, tag = 'scoped memory for _lambda_.1']
    #allocation7 [shape = 'u8[262144]{0}', space=vmem, size = 0x40000, scoped, tag = 'input window, operand 11, single buffered']
    #allocation8 [shape = 'u8[1048576]{0}', space=vmem, size = 0x100000, scoped, tag = 'input window, operand 14, single buffered']
    #allocation9 [shape = 's32[1]{0}', space=sflag, size = 0x4, scoped, tag = 'scoped memory for _lambda_.1']
    #allocation10 [shape = 'u8[8192]{0}', space=vmem, size = 0x2000, scoped, tag = 'input window, operand 17, single buffered']
    #allocation11 [shape = 'u8[1048576]{0}', space=vmem, size = 0x100000, scoped, tag = 'input window, operand 18, single buffered']
    #allocation12 [shape = 's32[1]{0}', space=sflag, size = 0x4, scoped, tag = 'scoped memory for _lambda_.1']
    #allocation13 [shape = 'u8[262144]{0}', space=vmem, size = 0x40000, scoped, tag = 'input window, operand 21, single buffered']
    #allocation14 [shape = 'u8[512]{0}', space=vmem, size = 0x400, scoped, tag = 'output window, operand 0, single buffered']
    %64 = vsyncpa [#allocation3], 0
    %65 = vsyncpa [#allocation6], 0
    %66 = vsyncpa [#allocation9], 0
    %67 = vsyncpa [#allocation12], 0
    %68 = vsyncpa [#allocation4], 0
    // Predicated region
    $region2: #{_lambda_.1} parent=1 // pred_check
      _
    $region3: #{_lambda_.1} parent=1 // pred_check_branch
      %70 = sbr.rel (0) target = $region5
    $region4: #{_lambda_.1} parent=1 // pred_region
      _
    $region5: #{_lambda_.1} parent=1 // pred_fallthru
      _
    // Predicated region
    $region6: #{_lambda_.1} parent=1 // pred_check
      _
    $region7: #{_lambda_.1} parent=1 // pred_check_branch
      %72 = sbr.rel (0) target = $region9
    $region8: #{_lambda_.1} parent=1 // pred_region
      _
    $region9: #{_lambda_.1} parent=1 // pred_fallthru
      _
    // Predicated region
    $region10: #{_lambda_.1} parent=1 // pred_check
      _
    $region11: #{_lambda_.1} parent=1 // pred_check_branch
      %74 = sbr.rel (0) target = $region13
    $region12: #{_lambda_.1} parent=1 // pred_region
      %76 = vsyncadd [#allocation3], 0
      %s78 = sshll.u32 %s5, 4
      %s79 = int_to_ptr.hbm [resolvable:$true] %s78
      %s80 = sshll.u32 [#allocation2], 4
      %s81 = int_to_ptr.vmem [resolvable:$true] %s80
      %83 = dma.hbm_to_vmem [thread:$0]  %s79, 64, %s81, [#allocation3]
    $region13: #{_lambda_.1} parent=1 // pred_fallthru
      _
    // Predicated region
    $region14: #{_lambda_.1} parent=1 // pred_check
      _
    $region15: #{_lambda_.1} parent=1 // pred_check_branch
      %85 = sbr.rel (0) target = $region17
    $region16: #{_lambda_.1} parent=1 // pred_region
      _
    $region17: #{_lambda_.1} parent=1 // pred_fallthru
      _
    // Predicated region
    $region18: #{_lambda_.1} parent=1 // pred_check
      _
    $region19: #{_lambda_.1} parent=1 // pred_check_branch
      %87 = sbr.rel (0) target = $region21
    $region20: #{_lambda_.1} parent=1 // pred_region
      _
    $region21: #{_lambda_.1} parent=1 // pred_fallthru
      _
    // Predicated region
    $region22: #{_lambda_.1} parent=1 // pred_check
      _
    $region23: #{_lambda_.1} parent=1 // pred_check_branch
      %89 = sbr.rel (0) target = $region25
    $region24: #{_lambda_.1} parent=1 // pred_region
      %91 = vsyncadd [#allocation6], 0
      %s92 = sshll.u32 %s11, 4
      %s93 = int_to_ptr.hbm [resolvable:$true] %s92
      %s94 = sshll.u32 [#allocation5], 4
      %s95 = int_to_ptr.vmem [resolvable:$true] %s94
      %100 = dma.hbm_to_vmem [thread:$0]  %s93, 512, %s95, [#allocation6], 64, 64, 4
    $region25: #{_lambda_.1} parent=1 // pred_fallthru
      _
    // Predicated region
    $region26: #{_lambda_.1} parent=1 // pred_check
      _
    $region27: #{_lambda_.1} parent=1 // pred_check_branch
      %102 = sbr.rel (0) target = $region29
    $region28: #{_lambda_.1} parent=1 // pred_region
      _
    $region29: #{_lambda_.1} parent=1 // pred_fallthru
      _
    // Predicated region
    $region30: #{_lambda_.1} parent=1 // pred_check
      _
    $region31: #{_lambda_.1} parent=1 // pred_check_branch
      %104 = sbr.rel (0) target = $region33
    $region32: #{_lambda_.1} parent=1 // pred_region
      _
    $region33: #{_lambda_.1} parent=1 // pred_fallthru
      _
    // Predicated region
    $region34: #{_lambda_.1} parent=1 // pred_check
      _
    $region35: #{_lambda_.1} parent=1 // pred_check_branch
      %106 = sbr.rel (0) target = $region37
    $region36: #{_lambda_.1} parent=1 // pred_region
      _
    $region37: #{_lambda_.1} parent=1 // pred_fallthru
      _
    // Predicated region
    $region38: #{_lambda_.1} parent=1 // pred_check
      _
    $region39: #{_lambda_.1} parent=1 // pred_check_branch
      %108 = sbr.rel (0) target = $region41
    $region40: #{_lambda_.1} parent=1 // pred_region
      _
    $region41: #{_lambda_.1} parent=1 // pred_fallthru
      _
    // Predicated region
    $region42: #{_lambda_.1} parent=1 // pred_check
      _
    $region43: #{_lambda_.1} parent=1 // pred_check_branch
      %110 = sbr.rel (0) target = $region45
    $region44: #{_lambda_.1} parent=1 // pred_region
      _
    $region45: #{_lambda_.1} parent=1 // pred_fallthru
      _
    // Predicated region
    $region46: #{_lambda_.1} parent=1 // pred_check
      _
    $region47: #{_lambda_.1} parent=1 // pred_check_branch
      %112 = sbr.rel (0) target = $region49
    $region48: #{_lambda_.1} parent=1 // pred_region
      %114 = vsyncadd [#allocation6], 0
      %s115 = sshll.u32 %s23, 4
      %s116 = int_to_ptr.hbm [resolvable:$true] %s115
      %s117 = sshll.u32 [#allocation7], 4
      %s118 = int_to_ptr.vmem [resolvable:$true] %s117
      %123 = dma.hbm_to_vmem [thread:$0]  %s116, 8192, %s118, [#allocation6], 256, 256, 16
    $region49: #{_lambda_.1} parent=1 // pred_fallthru
      _
    // Predicated region
    $region50: #{_lambda_.1} parent=1 // pred_check
      _
    $region51: #{_lambda_.1} parent=1 // pred_check_branch
      %125 = sbr.rel (0) target = $region53
    $region52: #{_lambda_.1} parent=1 // pred_region
      _
    $region53: #{_lambda_.1} parent=1 // pred_fallthru
      _
    // Predicated region
    $region54: #{_lambda_.1} parent=1 // pred_check
      _
    $region55: #{_lambda_.1} parent=1 // pred_check_branch
      %127 = sbr.rel (0) target = $region57
    $region56: #{_lambda_.1} parent=1 // pred_region
      _
    $region57: #{_lambda_.1} parent=1 // pred_fallthru
      _
    // Predicated region
    $region58: #{_lambda_.1} parent=1 // pred_check
      _
    $region59: #{_lambda_.1} parent=1 // pred_check_branch
      %129 = sbr.rel (0) target = $region61
    $region60: #{_lambda_.1} parent=1 // pred_region
      %131 = vsyncadd [#allocation9], 0
      %s132 = sshll.u32 %s29, 4
      %s133 = int_to_ptr.hbm [resolvable:$true] %s132
      %s134 = sshll.u32 [#allocation8], 4
      %s135 = int_to_ptr.vmem [resolvable:$true] %s134
      %140 = dma.hbm_to_vmem [thread:$0]  %s133, 32768, %s135, [#allocation9], 512, 512, 32
    $region61: #{_lambda_.1} parent=1 // pred_fallthru
      _
    // Predicated region
    $region62: #{_lambda_.1} parent=1 // pred_check
      _
    $region63: #{_lambda_.1} parent=1 // pred_check_branch
      %142 = sbr.rel (0) target = $region65
    $region64: #{_lambda_.1} parent=1 // pred_region
      _
    $region65: #{_lambda_.1} parent=1 // pred_fallthru
      _
    // Predicated region
    $region66: #{_lambda_.1} parent=1 // pred_check
      _
    $region67: #{_lambda_.1} parent=1 // pred_check_branch
      %144 = sbr.rel (0) target = $region69
    $region68: #{_lambda_.1} parent=1 // pred_region
      _
    $region69: #{_lambda_.1} parent=1 // pred_fallthru
      _
    // Predicated region
    $region70: #{_lambda_.1} parent=1 // pred_check
      _
    $region71: #{_lambda_.1} parent=1 // pred_check_branch
      %146 = sbr.rel (0) target = $region73
    $region72: #{_lambda_.1} parent=1 // pred_region
      %148 = vsyncadd [#allocation9], 0
      %s150 = sshll.u32 %s35, 4
      %s151 = int_to_ptr.hbm [resolvable:$true] %s150
      %s152 = sshll.u32 [#allocation10], 4
      %s153 = int_to_ptr.vmem [resolvable:$true] %s152
      %155 = dma.hbm_to_vmem [thread:$0]  %s151, 256, %s153, [#allocation9]
    $region73: #{_lambda_.1} parent=1 // pred_fallthru
      _
    // Predicated region
    $region74: #{_lambda_.1} parent=1 // pred_check
      _
    $region75: #{_lambda_.1} parent=1 // pred_check_branch
      %157 = sbr.rel (0) target = $region77
    $region76: #{_lambda_.1} parent=1 // pred_region
      %159 = vsyncadd [#allocation12], 0
      %s160 = sshll.u32 %s37, 4
      %s161 = int_to_ptr.hbm [resolvable:$true] %s160
      %s162 = sshll.u32 [#allocation11], 4
      %s163 = int_to_ptr.vmem [resolvable:$true] %s162
      %168 = dma.hbm_to_vmem [thread:$0]  %s161, 32768, %s163, [#allocation12], 256, 256, 16
    $region77: #{_lambda_.1} parent=1 // pred_fallthru
      _
    // Predicated region
    $region78: #{_lambda_.1} parent=1 // pred_check
      _
    $region79: #{_lambda_.1} parent=1 // pred_check_branch
      %170 = sbr.rel (0) target = $region81
    $region80: #{_lambda_.1} parent=1 // pred_region
      _
    $region81: #{_lambda_.1} parent=1 // pred_fallthru
      _
    // Predicated region
    $region82: #{_lambda_.1} parent=1 // pred_check
      _
    $region83: #{_lambda_.1} parent=1 // pred_check_branch
      %172 = sbr.rel (0) target = $region85
    $region84: #{_lambda_.1} parent=1 // pred_region
      _
    $region85: #{_lambda_.1} parent=1 // pred_fallthru
      _
    // Predicated region
    $region86: #{_lambda_.1} parent=1 // pred_check
      _
    $region87: #{_lambda_.1} parent=1 // pred_check_branch
      %174 = sbr.rel (0) target = $region89
    $region88: #{_lambda_.1} parent=1 // pred_region
      %176 = vsyncadd [#allocation12], 0
      %s177 = sshll.u32 %s43, 4
      %s178 = int_to_ptr.hbm [resolvable:$true] %s177
      %s179 = sshll.u32 [#allocation13], 4
      %s180 = int_to_ptr.vmem [resolvable:$true] %s179
      %185 = dma.hbm_to_vmem [thread:$0]  %s178, 8192, %s180, [#allocation12], 128, 128, 8
    $region89: #{_lambda_.1} parent=1 // pred_fallthru
      _
    // Predicated region
    $region90: #{_lambda_.1} parent=1 // pred_check
      _
    $region91: #{_lambda_.1} parent=1 // pred_check_branch
      %187 = sbr.rel (0) target = $region93
    $region92: #{_lambda_.1} parent=1 // pred_region
      _
    $region93: #{_lambda_.1} parent=1 // pred_fallthru
      _
    // Predicated region
    $region94: #{_lambda_.1} parent=1 // pred_check
      _
    $region95: #{_lambda_.1} parent=1 // pred_check_branch
      %189 = sbr.rel (0) target = $region97
    $region96: #{_lambda_.1} parent=1 // pred_region
      _
    $region97: #{_lambda_.1} parent=1 // pred_fallthru
      _
    // Predicated region
    $region98: #{_lambda_.1} parent=1 // pred_check
      _
    $region99: #{_lambda_.1} parent=1 // pred_check_branch
      %191 = sbr.rel (0) target = $region101
    $region100: #{_lambda_.1} parent=1 // pred_region
      _
    $region101: #{_lambda_.1} parent=1 // pred_fallthru
      _
    // Predicated region
    $region102: #{_lambda_.1} parent=1 // pred_check
      _
    $region103: #{_lambda_.1} parent=1 // pred_check_branch
      %193 = sbr.rel (0) target = $region105
    $region104: #{_lambda_.1} parent=1 // pred_region
      _
    $region105: #{_lambda_.1} parent=1 // pred_fallthru
      _
    // Predicated region
    $region106: #{_lambda_.1} parent=1 // pred_check
      _
    $region107: #{_lambda_.1} parent=1 // pred_check_branch
      %195 = sbr.rel (0) target = $region109
    $region108: #{_lambda_.1} parent=1 // pred_region
      _
    $region109: #{_lambda_.1} parent=1 // pred_fallthru
      _
    // Predicated region
    $region110: #{_lambda_.1} parent=1 // pred_check
      _
    $region111: #{_lambda_.1} parent=1 // pred_check_branch
      %197 = sbr.rel (0) target = $region113
    $region112: #{_lambda_.1} parent=1 // pred_region
      _
    $region113: #{_lambda_.1} parent=1 // pred_fallthru
      _
    // Predicated region
    $region114: #{_lambda_.1} parent=1 // pred_check
      _
    $region115: #{_lambda_.1} parent=1 // pred_check_branch
      %199 = sbr.rel (0) target = $region117
    $region116: #{_lambda_.1} parent=1 // pred_region
      _
    $region117: #{_lambda_.1} parent=1 // pred_fallthru
      _
    // Predicated region
    $region118: #{_lambda_.1} parent=1 // pred_check
      _
    $region119: #{_lambda_.1} parent=1 // pred_check_branch
      %201 = sbr.rel (0) target = $region121
    $region120: #{_lambda_.1} parent=1 // pred_region
      %203 = dma.done [#allocation3], 64
    $region121: #{_lambda_.1} parent=1 // pred_fallthru
      _
    // Predicated region
    $region122: #{_lambda_.1} parent=1 // pred_check
      _
    $region123: #{_lambda_.1} parent=1 // pred_check_branch
      %205 = sbr.rel (0) target = $region125
    $region124: #{_lambda_.1} parent=1 // pred_region
      %207 = dma.done [#allocation6], 512
    $region125: #{_lambda_.1} parent=1 // pred_fallthru
      _
    // Predicated region
    $region126: #{_lambda_.1} parent=1 // pred_check
      _
    $region127: #{_lambda_.1} parent=1 // pred_check_branch
      %209 = sbr.rel (0) target = $region129
    $region128: #{_lambda_.1} parent=1 // pred_region
      %211 = dma.done [#allocation6], 8192
    $region129: #{_lambda_.1} parent=1 // pred_fallthru
      _
    // Predicated region
    $region130: #{_lambda_.1} parent=1 // pred_check
      _
    $region131: #{_lambda_.1} parent=1 // pred_check_branch
      %213 = sbr.rel (0) target = $region133
    $region132: #{_lambda_.1} parent=1 // pred_region
      %215 = dma.done [#allocation9], 32768
    $region133: #{_lambda_.1} parent=1 // pred_fallthru
      _
    // Predicated region
    $region134: #{_lambda_.1} parent=1 // pred_check
      _
    $region135: #{_lambda_.1} parent=1 // pred_check_branch
      %217 = sbr.rel (0) target = $region137
    $region136: #{_lambda_.1} parent=1 // pred_region
      %219 = dma.done [#allocation9], 256
    $region137: #{_lambda_.1} parent=1 // pred_fallthru
      _
    // Predicated region
    $region138: #{_lambda_.1} parent=1 // pred_check
      _
    $region139: #{_lambda_.1} parent=1 // pred_check_branch
      %221 = sbr.rel (0) target = $region141
    $region140: #{_lambda_.1} parent=1 // pred_region
      %223 = dma.done [#allocation12], 32768
    $region141: #{_lambda_.1} parent=1 // pred_fallthru
      _
    // Predicated region
    $region142: #{_lambda_.1} parent=1 // pred_check
      _
    $region143: #{_lambda_.1} parent=1 // pred_check_branch
      %225 = sbr.rel (0) target = $region145
    $region144: #{_lambda_.1} parent=1 // pred_region
      %227 = dma.done [#allocation12], 8192
    $region145: #{_lambda_.1} parent=1 // pred_fallthru
      _
    %v229 = vld [vmem:[%s1] sm:$0xff]
    %v230 = vld [vmem:[%s1 + $0x8] sm:$0xff]
    %v231 = vld [vmem:[%s1 + $0x10] sm:$0xff]
    %v232 = vld [vmem:[%s1 + $0x18] sm:$0xff]
    %v233 = vld [vmem:[%s1 + $0x20] sm:$0xff]
    %v234 = vld [vmem:[%s1 + $0x28] sm:$0xff]
    %v235 = vld [vmem:[%s1 + $0x30] sm:$0xff]
    %v236 = vld [vmem:[%s1 + $0x38] sm:$0xff]
    %v237 = vld [vmem:[%s1 + $0x40] sm:$0xff]
    %v238 = vld [vmem:[%s1 + $0x48] sm:$0xff]
    %v239 = vld [vmem:[%s1 + $0x50] sm:$0xff]
    %v240 = vld [vmem:[%s1 + $0x58] sm:$0xff]
    %v241 = vld [vmem:[%s1 + $0x60] sm:$0xff]
    %v242 = vld [vmem:[%s1 + $0x68] sm:$0xff]
    %v243 = vld [vmem:[%s1 + $0x70] sm:$0xff]
    %v244 = vld [vmem:[%s1 + $0x78] sm:$0xff]
    %v245 = vld [vmem:[#allocation2] sm:$0x7]
    %vm246 = vcmask 23552
    %v248 = vsel %vm246, %v229, 0
    %v251 = vsel %vm246, %v230, 0
    %v254 = vsel %vm246, %v231, 0
    %v257 = vsel %vm246, %v232, 0
    %v260 = vsel %vm246, %v233, 0
    %v263 = vsel %vm246, %v234, 0
    %v266 = vsel %vm246, %v235, 0
    %v269 = vsel %vm246, %v236, 0
    %v272 = vsel %vm246, %v237, 0
    %v275 = vsel %vm246, %v238, 0
    %v278 = vsel %vm246, %v239, 0
    %v281 = vsel %vm246, %v240, 0
    %v284 = vsel %vm246, %v241, 0
    %v287 = vsel %vm246, %v242, 0
    %v290 = vsel %vm246, %v243, 0
    %v293 = vsel %vm246, %v244, 0
    %vm295 = vcmask 1042432
    %v297 = vsel %vm295, %v245, 0
    %299 = vmatpush.msra.mxu0 0.0
    %300 = vmatpush.msra.mxu0 0.0
    %301 = vmatpush.msra.mxu0 0.0
    %302 = vmatpush.msra.mxu0 0.0
    %303 = vmatpush.msra.mxu0 0.0
    %304 = vmatpush.msra.mxu0 0.0
    %305 = vmatpush.msra.mxu0 0.0
    %306 = vmatpush.msra.mxu0 0.0
    %307 = vmatpush.msra.mxu0 0.0
    %308 = vmatpush.msra.mxu0 0.0
    %309 = vmatpush.msra.mxu0 0.0
    %310 = vmatpush.msra.mxu0 0.0
    %311 = vmatpush.msra.mxu0 0.0
    %312 = vmatpush.msra.mxu0 0.0
    %313 = vmatpush.msra.mxu0 0.0
    %314 = vmatpush.msra.mxu0 %v297
    %315 = vmatmul.f32.gmra.mxu0 %v248
    %v316 = vpop.f32.mrf.mxu0
    %v317 = vadd.f32 0.0, %v316
    %318 = vmatmul.f32.gmra.mxu0 %v251
    %v319 = vpop.f32.mrf.mxu0
    %v320 = vadd.f32 0.0, %v319
    %321 = vmatmul.f32.gmra.mxu0 %v254
    %v322 = vpop.f32.mrf.mxu0
    %v323 = vadd.f32 0.0, %v322
    %324 = vmatmul.f32.gmra.mxu0 %v257
    %v325 = vpop.f32.mrf.mxu0
    %v326 = vadd.f32 0.0, %v325
    %327 = vmatmul.f32.gmra.mxu0 %v260
    %v328 = vpop.f32.mrf.mxu0
    %v329 = vadd.f32 0.0, %v328
    %330 = vmatmul.f32.gmra.mxu0 %v263
    %v331 = vpop.f32.mrf.mxu0
    %v332 = vadd.f32 0.0, %v331
    %333 = vmatmul.f32.gmra.mxu0 %v266
    %v334 = vpop.f32.mrf.mxu0
    %v335 = vadd.f32 0.0, %v334
    %336 = vmatmul.f32.gmra.mxu0 %v269
    %v337 = vpop.f32.mrf.mxu0
    %v338 = vadd.f32 0.0, %v337
    %339 = vmatmul.f32.gmra.mxu0 %v272
    %v340 = vpop.f32.mrf.mxu0
    %v341 = vadd.f32 0.0, %v340
    %342 = vmatmul.f32.gmra.mxu0 %v275
    %v343 = vpop.f32.mrf.mxu0
    %v344 = vadd.f32 0.0, %v343
    %345 = vmatmul.f32.gmra.mxu0 %v278
    %v346 = vpop.f32.mrf.mxu0
    %v347 = vadd.f32 0.0, %v346
    %348 = vmatmul.f32.gmra.mxu0 %v281
    %v349 = vpop.f32.mrf.mxu0
    %v350 = vadd.f32 0.0, %v349
    %351 = vmatmul.f32.gmra.mxu0 %v284
    %v352 = vpop.f32.mrf.mxu0
    %v353 = vadd.f32 0.0, %v352
    %354 = vmatmul.f32.gmra.mxu0 %v287
    %v355 = vpop.f32.mrf.mxu0
    %v356 = vadd.f32 0.0, %v355
    %357 = vmatmul.f32.gmra.mxu0 %v290
    %v358 = vpop.f32.mrf.mxu0
    %v359 = vadd.f32 0.0, %v358
    %360 = vmatmul.f32.gmra.mxu0 %v293
    %v361 = vpop.f32.mrf.mxu0
    %v362 = vadd.f32 0.0, %v361
    %363 = vdwg.mxu0
    %vm364 = vcmask 523264
    %v365 = vsel %vm364, %v317, 0.0
    %v366 = vsel %vm364, %v320, 0.0
    %v367 = vadd.f32 %v365, %v366
    %v368 = vsel %vm364, %v323, 0.0
    %v369 = vadd.f32 %v367, %v368
    %v370 = vsel %vm364, %v326, 0.0
    %v371 = vadd.f32 %v369, %v370
    %v372 = vsel %vm364, %v329, 0.0
    %v373 = vadd.f32 %v371, %v372
    %v374 = vsel %vm364, %v332, 0.0
    %v375 = vadd.f32 %v373, %v374
    %v376 = vsel %vm364, %v335, 0.0
    %v377 = vadd.f32 %v375, %v376
    %v378 = vsel %vm364, %v338, 0.0
    %v379 = vadd.f32 %v377, %v378
    %v380 = vsel %vm364, %v341, 0.0
    %v381 = vadd.f32 %v379, %v380
    %v382 = vsel %vm364, %v344, 0.0
    %v383 = vadd.f32 %v381, %v382
    %v384 = vsel %vm364, %v347, 0.0
    %v385 = vadd.f32 %v383, %v384
    %v386 = vsel %vm364, %v350, 0.0
    %v387 = vadd.f32 %v385, %v386
    %v388 = vsel %vm364, %v353, 0.0
    %v389 = vadd.f32 %v387, %v388
    %v390 = vsel %vm364, %v356, 0.0
    %v391 = vadd.f32 %v389, %v390
    %v392 = vsel %vm364, %v359, 0.0
    %v393 = vadd.f32 %v391, %v392
    %v394 = vsel %vm364, %v362, 0.0
    %v395 = vadd.f32 %v393, %v394
    %v396 = vrot.slane %v395, 4
    %v397 = vadd.f32 %v395, %v396
    %v398 = vrot.slane %v397, 2
    %v399 = vadd.f32 %v397, %v398
    %v400 = vrot.slane %v399, 1
    %v401 = vadd.f32 %v399, %v400
    %v402 = vmul.f32 %v317, %v317
    %v403 = vmul.f32 %v320, %v320
    %v404 = vmul.f32 %v323, %v323
    %v405 = vmul.f32 %v326, %v326
    %v406 = vmul.f32 %v329, %v329
    %v407 = vmul.f32 %v332, %v332
    %v408 = vmul.f32 %v335, %v335
    %v409 = vmul.f32 %v338, %v338
    %v410 = vmul.f32 %v341, %v341
    %v411 = vmul.f32 %v344, %v344
    %v412 = vmul.f32 %v347, %v347
    %v413 = vmul.f32 %v350, %v350
    %v414 = vmul.f32 %v353, %v353
    %v415 = vmul.f32 %v356, %v356
    %v416 = vmul.f32 %v359, %v359
    %v417 = vmul.f32 %v362, %v362
    %v418 = vsel %vm364, %v402, 0.0
    %v419 = vsel %vm364, %v403, 0.0
    %v420 = vadd.f32 %v418, %v419
    %v421 = vsel %vm364, %v404, 0.0
    %v422 = vadd.f32 %v420, %v421
    %v423 = vsel %vm364, %v405, 0.0
    %v424 = vadd.f32 %v422, %v423
    %v425 = vsel %vm364, %v406, 0.0
    %v426 = vadd.f32 %v424, %v425
    %v427 = vsel %vm364, %v407, 0.0
    %v428 = vadd.f32 %v426, %v427
    %v429 = vsel %vm364, %v408, 0.0
    %v430 = vadd.f32 %v428, %v429
    %v431 = vsel %vm364, %v409, 0.0
    %v432 = vadd.f32 %v430, %v431
    %v433 = vsel %vm364, %v410, 0.0
    %v434 = vadd.f32 %v432, %v433
    %v435 = vsel %vm364, %v411, 0.0
    %v436 = vadd.f32 %v434, %v435
    %v437 = vsel %vm364, %v412, 0.0
    %v438 = vadd.f32 %v436, %v437
    %v439 = vsel %vm364, %v413, 0.0
    %v440 = vadd.f32 %v438, %v439
    %v441 = vsel %vm364, %v414, 0.0
    %v442 = vadd.f32 %v440, %v441
    %v443 = vsel %vm364, %v415, 0.0
    %v444 = vadd.f32 %v442, %v443
    %v445 = vsel %vm364, %v416, 0.0
    %v446 = vadd.f32 %v444, %v445
    %v447 = vsel %vm364, %v417, 0.0
    %v448 = vadd.f32 %v446, %v447
    %v449 = vrot.slane %v448, 4
    %v450 = vadd.f32 %v448, %v449
    %v451 = vrot.slane %v450, 2
    %v452 = vadd.f32 %v450, %v451
    %v453 = vrot.slane %v452, 1
    %v454 = vadd.f32 %v452, %v453
    %v455 = vpack.c.bf16 %v317, %v317
    %v456 = vpack.c.bf16 %v320, %v320
    %v457 = vpack.c.bf16 %v323, %v323
    %v458 = vpack.c.bf16 %v326, %v326
    %v459 = vpack.c.bf16 %v329, %v329
    %v460 = vpack.c.bf16 %v332, %v332
    %v461 = vpack.c.bf16 %v335, %v335
    %v462 = vpack.c.bf16 %v338, %v338
    %v463 = vpack.c.bf16 %v341, %v341
    %v464 = vpack.c.bf16 %v344, %v344
    %v465 = vpack.c.bf16 %v347, %v347
    %v466 = vpack.c.bf16 %v350, %v350
    %v467 = vpack.c.bf16 %v353, %v353
    %v468 = vpack.c.bf16 %v356, %v356
    %v469 = vpack.c.bf16 %v359, %v359
    %v470 = vpack.c.bf16 %v362, %v362
    %v471 = vmul.f32 %v401, 0.0078125
    %v472 = vmul.f32 %v454, 0.0078125
    %v473 = vmul.f32 %v471, %v471
    %v474 = vsub.f32 %v472, %v473
    %v475 = vmax.f32 %v474, 0.0
    %v476 = vld [vmem:[%s7] sm:$0x1]
    %v477 = vadd.f32 %v475, 1e-05
    %v478 = vrsqrt.pop %v477
    %v479 = vmul.f32 %v478, %v477
    %v480 = vmul.f32 %v479, %v478
    %v481 = vmul.f32 0.5, %v480
    %v482 = vsub.f32 1.5, %v481
    %v483 = vmul.f32 %v478, %v482
    %vm484 = vweird.f32 %v477
    %vm485 = vweird.f32 %v478
    %vm486 = vmor %vm484, %vm485
    %v487 = vsel %vm486, %v478, %v483
    %v488 = vmul.f32 %v476, %v487
    %v489 = vld [vmem:[%s9] sm:$0x1]
    %v490 = vmul.f32 %v471, %v488
    %v491 = vsub.f32 %v489, %v490
    %v492 = vld [vmem:[#allocation5] sm:$0xf]
    %v493 = vld [vmem:[#allocation5 + $0x4] sm:$0xf]
    %v494 = vld [vmem:[#allocation5 + $0x8] sm:$0xf]
    %v495 = vld [vmem:[#allocation5 + $0xc] sm:$0xf]
    %v496 = vld [vmem:[#allocation5 + $0x10] sm:$0xf]
    %v497 = vld [vmem:[#allocation5 + $0x14] sm:$0xf]
    %v498 = vld [vmem:[#allocation5 + $0x18] sm:$0xf]
    %v499 = vld [vmem:[#allocation5 + $0x1c] sm:$0xf]
    %v500 = vunpack.c.l.bf16 %v455
    %v501 = vunpack.c.l.bf16 %v456
    %v502 = vunpack.c.l.bf16 %v457
    %v503 = vunpack.c.l.bf16 %v458
    %v504 = vunpack.c.l.bf16 %v459
    %v505 = vunpack.c.l.bf16 %v460
    %v506 = vunpack.c.l.bf16 %v461
    %v507 = vunpack.c.l.bf16 %v462
    %v508 = vunpack.c.l.bf16 %v463
    %v509 = vunpack.c.l.bf16 %v464
    %v510 = vunpack.c.l.bf16 %v465
    %v511 = vunpack.c.l.bf16 %v466
    %v512 = vunpack.c.l.bf16 %v467
    %v513 = vunpack.c.l.bf16 %v468
    %v514 = vunpack.c.l.bf16 %v469
    %v515 = vunpack.c.l.bf16 %v470
    %v517 = vperm.slane %v488, 0
    %v519 = vmul.f32 %v500, %v517
    %v520 = vmul.f32 %v501, %v517
    %v521 = vmul.f32 %v502, %v517
    %v522 = vmul.f32 %v503, %v517
    %v523 = vmul.f32 %v504, %v517
    %v524 = vmul.f32 %v505, %v517
    %v525 = vmul.f32 %v506, %v517
    %v526 = vmul.f32 %v507, %v517
    %v527 = vmul.f32 %v508, %v517
    %v528 = vmul.f32 %v509, %v517
    %v529 = vmul.f32 %v510, %v517
    %v530 = vmul.f32 %v511, %v517
    %v531 = vmul.f32 %v512, %v517
    %v532 = vmul.f32 %v513, %v517
    %v533 = vmul.f32 %v514, %v517
    %v534 = vmul.f32 %v515, %v517
    %v536 = vperm.slane %v491, 0
    %v538 = vadd.f32 %v519, %v536
    %v539 = vadd.f32 %v520, %v536
    %v540 = vadd.f32 %v521, %v536
    %v541 = vadd.f32 %v522, %v536
    %v542 = vadd.f32 %v523, %v536
    %v543 = vadd.f32 %v524, %v536
    %v544 = vadd.f32 %v525, %v536
    %v545 = vadd.f32 %v526, %v536
    %v546 = vadd.f32 %v527, %v536
    %v547 = vadd.f32 %v528, %v536
    %v548 = vadd.f32 %v529, %v536
    %v549 = vadd.f32 %v530, %v536
    %v550 = vadd.f32 %v531, %v536
    %v551 = vadd.f32 %v532, %v536
    %v552 = vadd.f32 %v533, %v536
    %v553 = vadd.f32 %v534, %v536
    %v554 = vmax.f32 %v538, 0.0
    %v555 = vmax.f32 %v539, 0.0
    %v556 = vmax.f32 %v540, 0.0
    %v557 = vmax.f32 %v541, 0.0
    %v558 = vmax.f32 %v542, 0.0
    %v559 = vmax.f32 %v543, 0.0
    %v560 = vmax.f32 %v544, 0.0
    %v561 = vmax.f32 %v545, 0.0
    %v562 = vmax.f32 %v546, 0.0
    %v563 = vmax.f32 %v547, 0.0
    %v564 = vmax.f32 %v548, 0.0
    %v565 = vmax.f32 %v549, 0.0
    %v566 = vmax.f32 %v550, 0.0
    %v567 = vmax.f32 %v551, 0.0
    %v568 = vmax.f32 %v552, 0.0
    %v569 = vmax.f32 %v553, 0.0
    %v570 = vpack.c.bf16 %v555, %v554
    %v571 = vpack.c.bf16 %v557, %v556
    %v572 = vpack.c.bf16 %v559, %v558
    %v573 = vpack.c.bf16 %v561, %v560
    %v574 = vpack.c.bf16 %v563, %v562
    %v575 = vpack.c.bf16 %v565, %v564
    %v576 = vpack.c.bf16 %v567, %v566
    %v577 = vpack.c.bf16 %v569, %v568
    %v586 = vunpack.c.l.b16 %v492
    %v587 = vunpack.c.l.b16 %v493
    %v588 = vunpack.c.l.b16 %v494
    %v589 = vunpack.c.l.b16 %v495
    %v590 = vunpack.c.l.b16 %v496
    %v591 = vunpack.c.l.b16 %v497
    %v592 = vunpack.c.l.b16 %v498
    %v593 = vunpack.c.l.b16 %v499
    %v594 = vpack.c.b16 %v587, %v586
    %v595 = vpack.c.b16 %v589, %v588
    %v596 = vpack.c.b16 %v591, %v590
    %v597 = vpack.c.b16 %v593, %v592
    %v603 = vsel %vm364, %v570, 0
    %v606 = vsel %vm364, %v571, 0
    %v609 = vsel %vm364, %v572, 0
    %v612 = vsel %vm364, %v573, 0
    %v615 = vsel %vm364, %v574, 0
    %v618 = vsel %vm364, %v575, 0
    %v621 = vsel %vm364, %v576, 0
    %v624 = vsel %vm364, %v577, 0
    %626 = vmatpush.bf16.msra.mxu0 0
    %627 = vmatpush.bf16.msra.mxu0 0
    %628 = vmatpush.bf16.msra.mxu0 0
    %629 = vmatpush.bf16.msra.mxu0 0
    %630 = vmatpush.bf16.msra.mxu0 %v597
    %631 = vmatpush.bf16.msra.mxu0 %v596
    %632 = vmatpush.bf16.msra.mxu0 %v595
    %633 = vmatpush.bf16.msra.mxu0 %v594
    %634 = vmatmul.bf16.gmra.mxu0 %v603
    %v635 = vpop.f32.mrf.mxu0
    %v636 = vadd.f32 0.0, %v635
    %v637 = vpop.f32.mrf.mxu0
    %v638 = vadd.f32 0.0, %v637
    %639 = vmatmul.bf16.gmra.mxu0 %v606
    %v640 = vpop.f32.mrf.mxu0
    %v641 = vadd.f32 0.0, %v640
    %v642 = vpop.f32.mrf.mxu0
    %v643 = vadd.f32 0.0, %v642
    %644 = vmatmul.bf16.gmra.mxu0 %v609
    %v645 = vpop.f32.mrf.mxu0
    %v646 = vadd.f32 0.0, %v645
    %v647 = vpop.f32.mrf.mxu0
    %v648 = vadd.f32 0.0, %v647
    %649 = vmatmul.bf16.gmra.mxu0 %v612
    %v650 = vpop.f32.mrf.mxu0
    %v651 = vadd.f32 0.0, %v650
    %v652 = vpop.f32.mrf.mxu0
    %v653 = vadd.f32 0.0, %v652
    %654 = vmatmul.bf16.gmra.mxu0 %v615
    %v655 = vpop.f32.mrf.mxu0
    %v656 = vadd.f32 0.0, %v655
    %v657 = vpop.f32.mrf.mxu0
    %v658 = vadd.f32 0.0, %v657
    %659 = vmatmul.bf16.gmra.mxu0 %v618
    %v660 = vpop.f32.mrf.mxu0
    %v661 = vadd.f32 0.0, %v660
    %v662 = vpop.f32.mrf.mxu0
    %v663 = vadd.f32 0.0, %v662
    %664 = vmatmul.bf16.gmra.mxu0 %v621
    %v665 = vpop.f32.mrf.mxu0
    %v666 = vadd.f32 0.0, %v665
    %v667 = vpop.f32.mrf.mxu0
    %v668 = vadd.f32 0.0, %v667
    %669 = vmatmul.bf16.gmra.mxu0 %v624
    %v670 = vpop.f32.mrf.mxu0
    %v671 = vadd.f32 0.0, %v670
    %v672 = vpop.f32.mrf.mxu0
    %v673 = vadd.f32 0.0, %v672
    %674 = vdwg.mxu0
    %v675 = vadd.f32 %v636, %v638
    %v676 = vadd.f32 %v675, %v641
    %v677 = vadd.f32 %v676, %v643
    %v678 = vadd.f32 %v677, %v646
    %v679 = vadd.f32 %v678, %v648
    %v680 = vadd.f32 %v679, %v651
    %v681 = vadd.f32 %v680, %v653
    %v682 = vadd.f32 %v681, %v656
    %v683 = vadd.f32 %v682, %v658
    %v684 = vadd.f32 %v683, %v661
    %v685 = vadd.f32 %v684, %v663
    %v686 = vadd.f32 %v685, %v666
    %v687 = vadd.f32 %v686, %v668
    %v688 = vadd.f32 %v687, %v671
    %v689 = vadd.f32 %v688, %v673
    %v690 = vrot.slane %v689, 4
    %v691 = vadd.f32 %v689, %v690
    %v692 = vrot.slane %v691, 2
    %v693 = vadd.f32 %v691, %v692
    %v694 = vrot.slane %v693, 1
    %v695 = vadd.f32 %v693, %v694
    %v696 = vmul.f32 %v636, %v636
    %v697 = vmul.f32 %v638, %v638
    %v698 = vmul.f32 %v641, %v641
    %v699 = vmul.f32 %v643, %v643
    %v700 = vmul.f32 %v646, %v646
    %v701 = vmul.f32 %v648, %v648
    %v702 = vmul.f32 %v651, %v651
    %v703 = vmul.f32 %v653, %v653
    %v704 = vmul.f32 %v656, %v656
    %v705 = vmul.f32 %v658, %v658
    %v706 = vmul.f32 %v661, %v661
    %v707 = vmul.f32 %v663, %v663
    %v708 = vmul.f32 %v666, %v666
    %v709 = vmul.f32 %v668, %v668
    %v710 = vmul.f32 %v671, %v671
    %v711 = vmul.f32 %v673, %v673
    %v712 = vadd.f32 %v696, %v697
    %v713 = vadd.f32 %v712, %v698
    %v714 = vadd.f32 %v713, %v699
    %v715 = vadd.f32 %v714, %v700
    %v716 = vadd.f32 %v715, %v701
    %v717 = vadd.f32 %v716, %v702
    %v718 = vadd.f32 %v717, %v703
    %v719 = vadd.f32 %v718, %v704
    %v720 = vadd.f32 %v719, %v705
    %v721 = vadd.f32 %v720, %v706
    %v722 = vadd.f32 %v721, %v707
    %v723 = vadd.f32 %v722, %v708
    %v724 = vadd.f32 %v723, %v709
    %v725 = vadd.f32 %v724, %v710
    %v726 = vadd.f32 %v725, %v711
    %v727 = vrot.slane %v726, 4
    %v728 = vadd.f32 %v726, %v727
    %v729 = vrot.slane %v728, 2
    %v730 = vadd.f32 %v728, %v729
    %v731 = vrot.slane %v730, 1
    %v732 = vadd.f32 %v730, %v731
    %v733 = vpack.c.bf16 %v636, %v636
    %v734 = vpack.c.bf16 %v638, %v638
    %v735 = vpack.c.bf16 %v641, %v641
    %v736 = vpack.c.bf16 %v643, %v643
    %v737 = vpack.c.bf16 %v646, %v646
    %v738 = vpack.c.bf16 %v648, %v648
    %v739 = vpack.c.bf16 %v651, %v651
    %v740 = vpack.c.bf16 %v653, %v653
    %v741 = vpack.c.bf16 %v656, %v656
    %v742 = vpack.c.bf16 %v658, %v658
    %v743 = vpack.c.bf16 %v661, %v661
    %v744 = vpack.c.bf16 %v663, %v663
    %v745 = vpack.c.bf16 %v666, %v666
    %v746 = vpack.c.bf16 %v668, %v668
    %v747 = vpack.c.bf16 %v671, %v671
    %v748 = vpack.c.bf16 %v673, %v673
    %v749 = vmul.f32 %v695, 0.0078125
    %v750 = vmul.f32 %v732, 0.0078125
    %v751 = vmul.f32 %v749, %v749
    %v752 = vsub.f32 %v750, %v751
    %v753 = vmax.f32 %v752, 0.0
    %v754 = vld [vmem:[%s13] sm:$0x1]
    %v755 = vadd.f32 %v753, 1e-05
    %v756 = vrsqrt.pop %v755
    %v757 = vmul.f32 %v756, %v755
    %v758 = vmul.f32 %v757, %v756
    %v759 = vmul.f32 0.5, %v758
    %v760 = vsub.f32 1.5, %v759
    %v761 = vmul.f32 %v756, %v760
    %vm762 = vweird.f32 %v755
    %vm763 = vweird.f32 %v756
    %vm764 = vmor %vm762, %vm763
    %v765 = vsel %vm764, %v756, %v761
    %v766 = vmul.f32 %v754, %v765
    %v767 = vld [vmem:[%s15] sm:$0x1]
    %v768 = vmul.f32 %v749, %v766
    %v769 = vsub.f32 %v767, %v768
    %v770 = vld [vmem:[%s17] sm:$0xff]
    %v771 = vld [vmem:[%s17 + $0x8] sm:$0xff]
    %v772 = vld [vmem:[%s17 + $0x10] sm:$0xff]
    %v773 = vld [vmem:[%s17 + $0x18] sm:$0xff]
    %v774 = vld [vmem:[%s17 + $0x20] sm:$0xff]
    %v775 = vld [vmem:[%s17 + $0x28] sm:$0xff]
    %v776 = vld [vmem:[%s17 + $0x30] sm:$0xff]
    %v777 = vld [vmem:[%s17 + $0x38] sm:$0xff]
    %v778 = vld [vmem:[%s17 + $0x40] sm:$0xff]
    %v779 = vld [vmem:[%s17 + $0x48] sm:$0xff]
    %v780 = vld [vmem:[%s17 + $0x50] sm:$0xff]
    %v781 = vld [vmem:[%s17 + $0x58] sm:$0xff]
    %v782 = vld [vmem:[%s17 + $0x60] sm:$0xff]
    %v783 = vld [vmem:[%s17 + $0x68] sm:$0xff]
    %v784 = vld [vmem:[%s17 + $0x70] sm:$0xff]
    %v785 = vld [vmem:[%s17 + $0x78] sm:$0xff]
    %v786 = vunpack.c.l.bf16 %v733
    %v787 = vunpack.c.l.bf16 %v734
    %v788 = vunpack.c.l.bf16 %v735
    %v789 = vunpack.c.l.bf16 %v736
    %v790 = vunpack.c.l.bf16 %v737
    %v791 = vunpack.c.l.bf16 %v738
    %v792 = vunpack.c.l.bf16 %v739
    %v793 = vunpack.c.l.bf16 %v740
    %v794 = vunpack.c.l.bf16 %v741
    %v795 = vunpack.c.l.bf16 %v742
    %v796 = vunpack.c.l.bf16 %v743
    %v797 = vunpack.c.l.bf16 %v744
    %v798 = vunpack.c.l.bf16 %v745
    %v799 = vunpack.c.l.bf16 %v746
    %v800 = vunpack.c.l.bf16 %v747
    %v801 = vunpack.c.l.bf16 %v748
    %v803 = vperm.slane %v766, 0
    %v805 = vmul.f32 %v786, %v803
    %v806 = vmul.f32 %v787, %v803
    %v807 = vmul.f32 %v788, %v803
    %v808 = vmul.f32 %v789, %v803
    %v809 = vmul.f32 %v790, %v803
    %v810 = vmul.f32 %v791, %v803
    %v811 = vmul.f32 %v792, %v803
    %v812 = vmul.f32 %v793, %v803
    %v813 = vmul.f32 %v794, %v803
    %v814 = vmul.f32 %v795, %v803
    %v815 = vmul.f32 %v796, %v803
    %v816 = vmul.f32 %v797, %v803
    %v817 = vmul.f32 %v798, %v803
    %v818 = vmul.f32 %v799, %v803
    %v819 = vmul.f32 %v800, %v803
    %v820 = vmul.f32 %v801, %v803
    %v822 = vperm.slane %v769, 0
    %v824 = vadd.f32 %v805, %v822
    %v825 = vadd.f32 %v806, %v822
    %v826 = vadd.f32 %v807, %v822
    %v827 = vadd.f32 %v808, %v822
    %v828 = vadd.f32 %v809, %v822
    %v829 = vadd.f32 %v810, %v822
    %v830 = vadd.f32 %v811, %v822
    %v831 = vadd.f32 %v812, %v822
    %v832 = vadd.f32 %v813, %v822
    %v833 = vadd.f32 %v814, %v822
    %v834 = vadd.f32 %v815, %v822
    %v835 = vadd.f32 %v816, %v822
    %v836 = vadd.f32 %v817, %v822
    %v837 = vadd.f32 %v818, %v822
    %v838 = vadd.f32 %v819, %v822
    %v839 = vadd.f32 %v820, %v822
    %v840 = vmax.f32 %v824, 0.0
    %v841 = vmax.f32 %v825, 0.0
    %v842 = vmax.f32 %v826, 0.0
    %v843 = vmax.f32 %v827, 0.0
    %v844 = vmax.f32 %v828, 0.0
    %v845 = vmax.f32 %v829, 0.0
    %v846 = vmax.f32 %v830, 0.0
    %v847 = vmax.f32 %v831, 0.0
    %v848 = vmax.f32 %v832, 0.0
    %v849 = vmax.f32 %v833, 0.0
    %v850 = vmax.f32 %v834, 0.0
    %v851 = vmax.f32 %v835, 0.0
    %v852 = vmax.f32 %v836, 0.0
    %v853 = vmax.f32 %v837, 0.0
    %v854 = vmax.f32 %v838, 0.0
    %v855 = vmax.f32 %v839, 0.0
    %v856 = vpack.c.bf16 %v841, %v840
    %v857 = vpack.c.bf16 %v843, %v842
    %v858 = vpack.c.bf16 %v845, %v844
    %v859 = vpack.c.bf16 %v847, %v846
    %v860 = vpack.c.bf16 %v849, %v848
    %v861 = vpack.c.bf16 %v851, %v850
    %v862 = vpack.c.bf16 %v853, %v852
    %v863 = vpack.c.bf16 %v855, %v854
    %v880 = vunpack.c.l.b16 %v770
    %v881 = vunpack.c.h.b16 %v770
    %v882 = vunpack.c.l.b16 %v771
    %v883 = vunpack.c.h.b16 %v771
    %v884 = vunpack.c.l.b16 %v772
    %v885 = vunpack.c.h.b16 %v772
    %v886 = vunpack.c.l.b16 %v773
    %v887 = vunpack.c.h.b16 %v773
    %v888 = vunpack.c.l.b16 %v774
    %v889 = vunpack.c.h.b16 %v774
    %v890 = vunpack.c.l.b16 %v775
    %v891 = vunpack.c.h.b16 %v775
    %v892 = vunpack.c.l.b16 %v776
    %v893 = vunpack.c.h.b16 %v776
    %v894 = vunpack.c.l.b16 %v777
    %v895 = vunpack.c.h.b16 %v777
    %v896 = vunpack.c.l.b16 %v778
    %v897 = vunpack.c.h.b16 %v778
    %v898 = vunpack.c.l.b16 %v779
    %v899 = vunpack.c.h.b16 %v779
    %v900 = vunpack.c.l.b16 %v780
    %v901 = vunpack.c.h.b16 %v780
    %v902 = vunpack.c.l.b16 %v781
    %v903 = vunpack.c.h.b16 %v781
    %v904 = vunpack.c.l.b16 %v782
    %v905 = vunpack.c.h.b16 %v782
    %v906 = vunpack.c.l.b16 %v783
    %v907 = vunpack.c.h.b16 %v783
    %v908 = vunpack.c.l.b16 %v784
    %v909 = vunpack.c.h.b16 %v784
    %v910 = vunpack.c.l.b16 %v785
    %v911 = vunpack.c.h.b16 %v785
    %v912 = vpack.c.b16 %v882, %v880
    %v913 = vpack.c.b16 %v883, %v881
    %v914 = vpack.c.b16 %v886, %v884
    %v915 = vpack.c.b16 %v887, %v885
    %v916 = vpack.c.b16 %v890, %v888
    %v917 = vpack.c.b16 %v891, %v889
    %v918 = vpack.c.b16 %v894, %v892
    %v919 = vpack.c.b16 %v895, %v893
    %v920 = vpack.c.b16 %v898, %v896
    %v921 = vpack.c.b16 %v899, %v897
    %v922 = vpack.c.b16 %v902, %v900
    %v923 = vpack.c.b16 %v903, %v901
    %v924 = vpack.c.b16 %v906, %v904
    %v925 = vpack.c.b16 %v907, %v905
    %v926 = vpack.c.b16 %v910, %v908
    %v927 = vpack.c.b16 %v911, %v909
    %944 = vmatpush.bf16.msra.mxu0 %v926
    %945 = vmatpush.bf16.msra.mxu0 %v924
    %946 = vmatpush.bf16.msra.mxu0 %v922
    %947 = vmatpush.bf16.msra.mxu0 %v920
    %948 = vmatpush.bf16.msra.mxu0 %v918
    %949 = vmatpush.bf16.msra.mxu0 %v916
    %950 = vmatpush.bf16.msra.mxu0 %v914
    %951 = vmatpush.bf16.msra.mxu0 %v912
    %952 = vmatmul.bf16.gmra.mxu0 %v856
    %v953 = vpop.f32.mrf.mxu0
    %v954 = vadd.f32 0.0, %v953
    %v955 = vpop.f32.mrf.mxu0
    %v956 = vadd.f32 0.0, %v955
    %957 = vmatmul.bf16.gmra.mxu0 %v857
    %v958 = vpop.f32.mrf.mxu0
    %v959 = vadd.f32 0.0, %v958
    %v960 = vpop.f32.mrf.mxu0
    %v961 = vadd.f32 0.0, %v960
    %962 = vmatmul.bf16.gmra.mxu0 %v858
    %v963 = vpop.f32.mrf.mxu0
    %v964 = vadd.f32 0.0, %v963
    %v965 = vpop.f32.mrf.mxu0
    %v966 = vadd.f32 0.0, %v965
    %967 = vmatmul.bf16.gmra.mxu0 %v859
    %v968 = vpop.f32.mrf.mxu0
    %v969 = vadd.f32 0.0, %v968
    %v970 = vpop.f32.mrf.mxu0
    %v971 = vadd.f32 0.0, %v970
    %972 = vmatmul.bf16.gmra.mxu0 %v860
    %v973 = vpop.f32.mrf.mxu0
    %v974 = vadd.f32 0.0, %v973
    %v975 = vpop.f32.mrf.mxu0
    %v976 = vadd.f32 0.0, %v975
    %977 = vmatmul.bf16.gmra.mxu0 %v861
    %v978 = vpop.f32.mrf.mxu0
    %v979 = vadd.f32 0.0, %v978
    %v980 = vpop.f32.mrf.mxu0
    %v981 = vadd.f32 0.0, %v980
    %982 = vmatmul.bf16.gmra.mxu0 %v862
    %v983 = vpop.f32.mrf.mxu0
    %v984 = vadd.f32 0.0, %v983
    %v985 = vpop.f32.mrf.mxu0
    %v986 = vadd.f32 0.0, %v985
    %987 = vmatmul.bf16.gmra.mxu0 %v863
    %v988 = vpop.f32.mrf.mxu0
    %v989 = vadd.f32 0.0, %v988
    %v990 = vpop.f32.mrf.mxu0
    %v991 = vadd.f32 0.0, %v990
    %992 = vdwg.mxu0
    %993 = vmatpush.bf16.msra.mxu0 %v927
    %994 = vmatpush.bf16.msra.mxu0 %v925
    %995 = vmatpush.bf16.msra.mxu0 %v923
    %996 = vmatpush.bf16.msra.mxu0 %v921
    %997 = vmatpush.bf16.msra.mxu0 %v919
    %998 = vmatpush.bf16.msra.mxu0 %v917
    %999 = vmatpush.bf16.msra.mxu0 %v915
    %1000 = vmatpush.bf16.msra.mxu0 %v913
    %1001 = vmatmul.bf16.gmra.mxu0 %v856
    %v1002 = vpop.f32.mrf.mxu0
    %v1003 = vadd.f32 0.0, %v1002
    %v1004 = vpop.f32.mrf.mxu0
    %v1005 = vadd.f32 0.0, %v1004
    %1006 = vmatmul.bf16.gmra.mxu0 %v857
    %v1007 = vpop.f32.mrf.mxu0
    %v1008 = vadd.f32 0.0, %v1007
    %v1009 = vpop.f32.mrf.mxu0
    %v1010 = vadd.f32 0.0, %v1009
    %1011 = vmatmul.bf16.gmra.mxu0 %v858
    %v1012 = vpop.f32.mrf.mxu0
    %v1013 = vadd.f32 0.0, %v1012
    %v1014 = vpop.f32.mrf.mxu0
    %v1015 = vadd.f32 0.0, %v1014
    %1016 = vmatmul.bf16.gmra.mxu0 %v859
    %v1017 = vpop.f32.mrf.mxu0
    %v1018 = vadd.f32 0.0, %v1017
    %v1019 = vpop.f32.mrf.mxu0
    %v1020 = vadd.f32 0.0, %v1019
    %1021 = vmatmul.bf16.gmra.mxu0 %v860
    %v1022 = vpop.f32.mrf.mxu0
    %v1023 = vadd.f32 0.0, %v1022
    %v1024 = vpop.f32.mrf.mxu0
    %v1025 = vadd.f32 0.0, %v1024
    %1026 = vmatmul.bf16.gmra.mxu0 %v861
    %v1027 = vpop.f32.mrf.mxu0
    %v1028 = vadd.f32 0.0, %v1027
    %v1029 = vpop.f32.mrf.mxu0
    %v1030 = vadd.f32 0.0, %v1029
    %1031 = vmatmul.bf16.gmra.mxu0 %v862
    %v1032 = vpop.f32.mrf.mxu0
    %v1033 = vadd.f32 0.0, %v1032
    %v1034 = vpop.f32.mrf.mxu0
    %v1035 = vadd.f32 0.0, %v1034
    %1036 = vmatmul.bf16.gmra.mxu0 %v863
    %v1037 = vpop.f32.mrf.mxu0
    %v1038 = vadd.f32 0.0, %v1037
    %v1039 = vpop.f32.mrf.mxu0
    %v1040 = vadd.f32 0.0, %v1039
    %1041 = vdwg.mxu0
    %v1042 = vadd.f32 %v954, %v956
    %v1043 = vadd.f32 %v1042, %v959
    %v1044 = vadd.f32 %v1043, %v961
    %v1045 = vadd.f32 %v1044, %v964
    %v1046 = vadd.f32 %v1045, %v966
    %v1047 = vadd.f32 %v1046, %v969
    %v1048 = vadd.f32 %v1047, %v971
    %v1049 = vadd.f32 %v1048, %v974
    %v1050 = vadd.f32 %v1049, %v976
    %v1051 = vadd.f32 %v1050, %v979
    %v1052 = vadd.f32 %v1051, %v981
    %v1053 = vadd.f32 %v1052, %v984
    %v1054 = vadd.f32 %v1053, %v986
    %v1055 = vadd.f32 %v1054, %v989
    %v1056 = vadd.f32 %v1055, %v991
    %v1057 = vrot.slane %v1056, 4
    %v1058 = vadd.f32 %v1056, %v1057
    %v1059 = vrot.slane %v1058, 2
    %v1060 = vadd.f32 %v1058, %v1059
    %v1061 = vrot.slane %v1060, 1
    %v1062 = vadd.f32 %v1060, %v1061
    %v1063 = vadd.f32 %v1003, %v1005
    %v1064 = vadd.f32 %v1063, %v1008
    %v1065 = vadd.f32 %v1064, %v1010
    %v1066 = vadd.f32 %v1065, %v1013
    %v1067 = vadd.f32 %v1066, %v1015
    %v1068 = vadd.f32 %v1067, %v1018
    %v1069 = vadd.f32 %v1068, %v1020
    %v1070 = vadd.f32 %v1069, %v1023
    %v1071 = vadd.f32 %v1070, %v1025
    %v1072 = vadd.f32 %v1071, %v1028
    %v1073 = vadd.f32 %v1072, %v1030
    %v1074 = vadd.f32 %v1073, %v1033
    %v1075 = vadd.f32 %v1074, %v1035
    %v1076 = vadd.f32 %v1075, %v1038
    %v1077 = vadd.f32 %v1076, %v1040
    %v1078 = vrot.slane %v1077, 4
    %v1079 = vadd.f32 %v1077, %v1078
    %v1080 = vrot.slane %v1079, 2
    %v1081 = vadd.f32 %v1079, %v1080
    %v1082 = vrot.slane %v1081, 1
    %v1083 = vadd.f32 %v1081, %v1082
    %v1084 = vmul.f32 %v954, %v954
    %v1085 = vmul.f32 %v1003, %v1003
    %v1086 = vmul.f32 %v956, %v956
    %v1087 = vmul.f32 %v1005, %v1005
    %v1088 = vmul.f32 %v959, %v959
    %v1089 = vmul.f32 %v1008, %v1008
    %v1090 = vmul.f32 %v961, %v961
    %v1091 = vmul.f32 %v1010, %v1010
    %v1092 = vmul.f32 %v964, %v964
    %v1093 = vmul.f32 %v1013, %v1013
    %v1094 = vmul.f32 %v966, %v966
    %v1095 = vmul.f32 %v1015, %v1015
    %v1096 = vmul.f32 %v969, %v969
    %v1097 = vmul.f32 %v1018, %v1018
    %v1098 = vmul.f32 %v971, %v971
    %v1099 = vmul.f32 %v1020, %v1020
    %v1100 = vmul.f32 %v974, %v974
    %v1101 = vmul.f32 %v1023, %v1023
    %v1102 = vmul.f32 %v976, %v976
    %v1103 = vmul.f32 %v1025, %v1025
    %v1104 = vmul.f32 %v979, %v979
    %v1105 = vmul.f32 %v1028, %v1028
    %v1106 = vmul.f32 %v981, %v981
    %v1107 = vmul.f32 %v1030, %v1030
    %v1108 = vmul.f32 %v984, %v984
    %v1109 = vmul.f32 %v1033, %v1033
    %v1110 = vmul.f32 %v986, %v986
    %v1111 = vmul.f32 %v1035, %v1035
    %v1112 = vmul.f32 %v989, %v989
    %v1113 = vmul.f32 %v1038, %v1038
    %v1114 = vmul.f32 %v991, %v991
    %v1115 = vmul.f32 %v1040, %v1040
    %v1116 = vadd.f32 %v1084, %v1086
    %v1117 = vadd.f32 %v1116, %v1088
    %v1118 = vadd.f32 %v1117, %v1090
    %v1119 = vadd.f32 %v1118, %v1092
    %v1120 = vadd.f32 %v1119, %v1094
    %v1121 = vadd.f32 %v1120, %v1096
    %v1122 = vadd.f32 %v1121, %v1098
    %v1123 = vadd.f32 %v1122, %v1100
    %v1124 = vadd.f32 %v1123, %v1102
    %v1125 = vadd.f32 %v1124, %v1104
    %v1126 = vadd.f32 %v1125, %v1106
    %v1127 = vadd.f32 %v1126, %v1108
    %v1128 = vadd.f32 %v1127, %v1110
    %v1129 = vadd.f32 %v1128, %v1112
    %v1130 = vadd.f32 %v1129, %v1114
    %v1131 = vrot.slane %v1130, 4
    %v1132 = vadd.f32 %v1130, %v1131
    %v1133 = vrot.slane %v1132, 2
    %v1134 = vadd.f32 %v1132, %v1133
    %v1135 = vrot.slane %v1134, 1
    %v1136 = vadd.f32 %v1134, %v1135
    %v1137 = vadd.f32 %v1085, %v1087
    %v1138 = vadd.f32 %v1137, %v1089
    %v1139 = vadd.f32 %v1138, %v1091
    %v1140 = vadd.f32 %v1139, %v1093
    %v1141 = vadd.f32 %v1140, %v1095
    %v1142 = vadd.f32 %v1141, %v1097
    %v1143 = vadd.f32 %v1142, %v1099
    %v1144 = vadd.f32 %v1143, %v1101
    %v1145 = vadd.f32 %v1144, %v1103
    %v1146 = vadd.f32 %v1145, %v1105
    %v1147 = vadd.f32 %v1146, %v1107
    %v1148 = vadd.f32 %v1147, %v1109
    %v1149 = vadd.f32 %v1148, %v1111
    %v1150 = vadd.f32 %v1149, %v1113
    %v1151 = vadd.f32 %v1150, %v1115
    %v1152 = vrot.slane %v1151, 4
    %v1153 = vadd.f32 %v1151, %v1152
    %v1154 = vrot.slane %v1153, 2
    %v1155 = vadd.f32 %v1153, %v1154
    %v1156 = vrot.slane %v1155, 1
    %v1157 = vadd.f32 %v1155, %v1156
    %v1158 = vpack.c.bf16 %v1003, %v954
    %v1159 = vpack.c.bf16 %v1005, %v956
    %v1160 = vpack.c.bf16 %v1008, %v959
    %v1161 = vpack.c.bf16 %v1010, %v961
    %v1162 = vpack.c.bf16 %v1013, %v964
    %v1163 = vpack.c.bf16 %v1015, %v966
    %v1164 = vpack.c.bf16 %v1018, %v969
    %v1165 = vpack.c.bf16 %v1020, %v971
    %v1166 = vpack.c.bf16 %v1023, %v974
    %v1167 = vpack.c.bf16 %v1025, %v976
    %v1168 = vpack.c.bf16 %v1028, %v979
    %v1169 = vpack.c.bf16 %v1030, %v981
    %v1170 = vpack.c.bf16 %v1033, %v984
    %v1171 = vpack.c.bf16 %v1035, %v986
    %v1172 = vpack.c.bf16 %v1038, %v989
    %v1173 = vpack.c.bf16 %v1040, %v991
    %v1174 = vmul.f32 %v1062, 0.0078125
    %v1175 = vmul.f32 %v1083, 0.0078125
    %v1176 = vmul.f32 %v1136, 0.0078125
    %v1177 = vmul.f32 %v1157, 0.0078125
    %v1178 = vmul.f32 %v1174, %v1174
    %v1179 = vmul.f32 %v1175, %v1175
    %v1180 = vsub.f32 %v1176, %v1178
    %v1181 = vsub.f32 %v1177, %v1179
    %v1182 = vmax.f32 %v1180, 0.0
    %v1183 = vmax.f32 %v1181, 0.0
    %v1184 = vld [vmem:[%s19] sm:$0x3]
    %v1185 = vadd.f32 %v1182, 1e-05
    %v1186 = vadd.f32 %v1183, 1e-05
    %v1187 = vrsqrt.pop %v1185
    %v1188 = vmul.f32 %v1187, %v1185
    %v1189 = vmul.f32 %v1188, %v1187
    %v1190 = vmul.f32 0.5, %v1189
    %v1191 = vsub.f32 1.5, %v1190
    %v1192 = vmul.f32 %v1187, %v1191
    %vm1193 = vweird.f32 %v1185
    %vm1194 = vweird.f32 %v1187
    %vm1195 = vmor %vm1193, %vm1194
    %v1196 = vsel %vm1195, %v1187, %v1192
    %v1197 = vrsqrt.pop %v1186
    %v1198 = vmul.f32 %v1197, %v1186
    %v1199 = vmul.f32 %v1198, %v1197
    %v1200 = vmul.f32 0.5, %v1199
    %v1201 = vsub.f32 1.5, %v1200
    %v1202 = vmul.f32 %v1197, %v1201
    %vm1203 = vweird.f32 %v1186
    %vm1204 = vweird.f32 %v1197
    %vm1205 = vmor %vm1203, %vm1204
    %v1206 = vsel %vm1205, %v1197, %v1202
    %v1209 = vrot.slane %v1206, 7
    %vm1210 = vcmask 1040384
    %v1211 = vsel %vm1210, %v1196, %v1209
    %v1213 = vmul.f32 %v1184, %v1211
    %v1214 = vld [vmem:[%s21] sm:$0x3]
    %v1216 = vperm.slane %v1213, 0
    %v1217 = vperm.slane %v1213, 1
    %v1220 = vmul.f32 %v1174, %v1216
    %v1221 = vmul.f32 %v1175, %v1217
    %v1224 = vrot.slane %v1221, 7
    %v1225 = vsel %vm1210, %v1220, %v1224
    %v1227 = vsub.f32 %v1214, %v1225
    %v1228 = vld [vmem:[#allocation7] sm:$0xff]
    %v1229 = vld [vmem:[#allocation7 + $0x8] sm:$0xff]
    %v1230 = vld [vmem:[#allocation7 + $0x10] sm:$0xff]
    %v1231 = vld [vmem:[#allocation7 + $0x18] sm:$0xff]
    %v1232 = vld [vmem:[#allocation7 + $0x20] sm:$0xff]
    %v1233 = vld [vmem:[#allocation7 + $0x28] sm:$0xff]
    %v1234 = vld [vmem:[#allocation7 + $0x30] sm:$0xff]
    %v1235 = vld [vmem:[#allocation7 + $0x38] sm:$0xff]
    %v1236 = vld [vmem:[#allocation7 + $0x40] sm:$0xff]
    %v1237 = vld [vmem:[#allocation7 + $0x48] sm:$0xff]
    %v1238 = vld [vmem:[#allocation7 + $0x50] sm:$0xff]
    %v1239 = vld [vmem:[#allocation7 + $0x58] sm:$0xff]
    %v1240 = vld [vmem:[#allocation7 + $0x60] sm:$0xff]
    %v1241 = vld [vmem:[#allocation7 + $0x68] sm:$0xff]
    %v1242 = vld [vmem:[#allocation7 + $0x70] sm:$0xff]
    %v1243 = vld [vmem:[#allocation7 + $0x78] sm:$0xff]
    %v1244 = vld [vmem:[#allocation7 + $0x80] sm:$0xff]
    %v1245 = vld [vmem:[#allocation7 + $0x88] sm:$0xff]
    %v1246 = vld [vmem:[#allocation7 + $0x90] sm:$0xff]
    %v1247 = vld [vmem:[#allocation7 + $0x98] sm:$0xff]
    %v1248 = vld [vmem:[#allocation7 + $0xa0] sm:$0xff]
    %v1249 = vld [vmem:[#allocation7 + $0xa8] sm:$0xff]
    %v1250 = vld [vmem:[#allocation7 + $0xb0] sm:$0xff]
    %v1251 = vld [vmem:[#allocation7 + $0xb8] sm:$0xff]
    %v1252 = vld [vmem:[#allocation7 + $0xc0] sm:$0xff]
    %v1253 = vld [vmem:[#allocation7 + $0xc8] sm:$0xff]
    %v1254 = vld [vmem:[#allocation7 + $0xd0] sm:$0xff]
    %v1255 = vld [vmem:[#allocation7 + $0xd8] sm:$0xff]
    %v1256 = vld [vmem:[#allocation7 + $0xe0] sm:$0xff]
    %v1257 = vld [vmem:[#allocation7 + $0xe8] sm:$0xff]
    %v1258 = vld [vmem:[#allocation7 + $0xf0] sm:$0xff]
    %v1259 = vld [vmem:[#allocation7 + $0xf8] sm:$0xff]
    %v1260 = vld [vmem:[#allocation7 + $0x100] sm:$0xff]
    %v1261 = vld [vmem:[#allocation7 + $0x108] sm:$0xff]
    %v1262 = vld [vmem:[#allocation7 + $0x110] sm:$0xff]
    %v1263 = vld [vmem:[#allocation7 + $0x118] sm:$0xff]
    %v1264 = vld [vmem:[#allocation7 + $0x120] sm:$0xff]
    %v1265 = vld [vmem:[#allocation7 + $0x128] sm:$0xff]
    %v1266 = vld [vmem:[#allocation7 + $0x130] sm:$0xff]
    %v1267 = vld [vmem:[#allocation7 + $0x138] sm:$0xff]
    %v1268 = vld [vmem:[#allocation7 + $0x140] sm:$0xff]
    %v1269 = vld [vmem:[#allocation7 + $0x148] sm:$0xff]
    %v1270 = vld [vmem:[#allocation7 + $0x150] sm:$0xff]
    %v1271 = vld [vmem:[#allocation7 + $0x158] sm:$0xff]
    %v1272 = vld [vmem:[#allocation7 + $0x160] sm:$0xff]
    %v1273 = vld [vmem:[#allocation7 + $0x168] sm:$0xff]
    %v1274 = vld [vmem:[#allocation7 + $0x170] sm:$0xff]
    %v1275 = vld [vmem:[#allocation7 + $0x178] sm:$0xff]
    %v1276 = vld [vmem:[#allocation7 + $0x180] sm:$0xff]
    %v1277 = vld [vmem:[#allocation7 + $0x188] sm:$0xff]
    %v1278 = vld [vmem:[#allocation7 + $0x190] sm:$0xff]
    %v1279 = vld [vmem:[#allocation7 + $0x198] sm:$0xff]
    %v1280 = vld [vmem:[#allocation7 + $0x1a0] sm:$0xff]
    %v1281 = vld [vmem:[#allocation7 + $0x1a8] sm:$0xff]
    %v1282 = vld [vmem:[#allocation7 + $0x1b0] sm:$0xff]
    %v1283 = vld [vmem:[#allocation7 + $0x1b8] sm:$0xff]
    %v1284 = vld [vmem:[#allocation7 + $0x1c0] sm:$0xff]
    %v1285 = vld [vmem:[#allocation7 + $0x1c8] sm:$0xff]
    %v1286 = vld [vmem:[#allocation7 + $0x1d0] sm:$0xff]
    %v1287 = vld [vmem:[#allocation7 + $0x1d8] sm:$0xff]
    %v1288 = vld [vmem:[#allocation7 + $0x1e0] sm:$0xff]
    %v1289 = vld [vmem:[#allocation7 + $0x1e8] sm:$0xff]
    %v1290 = vld [vmem:[#allocation7 + $0x1f0] sm:$0xff]
    %v1291 = vld [vmem:[#allocation7 + $0x1f8] sm:$0xff]
    %v1292 = vunpack.c.l.bf16 %v1158
    %v1293 = vunpack.c.h.bf16 %v1158
    %v1294 = vunpack.c.l.bf16 %v1159
    %v1295 = vunpack.c.h.bf16 %v1159
    %v1296 = vunpack.c.l.bf16 %v1160
    %v1297 = vunpack.c.h.bf16 %v1160
    %v1298 = vunpack.c.l.bf16 %v1161
    %v1299 = vunpack.c.h.bf16 %v1161
    %v1300 = vunpack.c.l.bf16 %v1162
    %v1301 = vunpack.c.h.bf16 %v1162
    %v1302 = vunpack.c.l.bf16 %v1163
    %v1303 = vunpack.c.h.bf16 %v1163
    %v1304 = vunpack.c.l.bf16 %v1164
    %v1305 = vunpack.c.h.bf16 %v1164
    %v1306 = vunpack.c.l.bf16 %v1165
    %v1307 = vunpack.c.h.bf16 %v1165
    %v1308 = vunpack.c.l.bf16 %v1166
    %v1309 = vunpack.c.h.bf16 %v1166
    %v1310 = vunpack.c.l.bf16 %v1167
    %v1311 = vunpack.c.h.bf16 %v1167
    %v1312 = vunpack.c.l.bf16 %v1168
    %v1313 = vunpack.c.h.bf16 %v1168
    %v1314 = vunpack.c.l.bf16 %v1169
    %v1315 = vunpack.c.h.bf16 %v1169
    %v1316 = vunpack.c.l.bf16 %v1170
    %v1317 = vunpack.c.h.bf16 %v1170
    %v1318 = vunpack.c.l.bf16 %v1171
    %v1319 = vunpack.c.h.bf16 %v1171
    %v1320 = vunpack.c.l.bf16 %v1172
    %v1321 = vunpack.c.h.bf16 %v1172
    %v1322 = vunpack.c.l.bf16 %v1173
    %v1323 = vunpack.c.h.bf16 %v1173
    %v1324 = vmul.f32 %v1292, %v1216
    %v1325 = vmul.f32 %v1293, %v1217
    %v1326 = vmul.f32 %v1294, %v1216
    %v1327 = vmul.f32 %v1295, %v1217
    %v1328 = vmul.f32 %v1296, %v1216
    %v1329 = vmul.f32 %v1297, %v1217
    %v1330 = vmul.f32 %v1298, %v1216
    %v1331 = vmul.f32 %v1299, %v1217
    %v1332 = vmul.f32 %v1300, %v1216
    %v1333 = vmul.f32 %v1301, %v1217
    %v1334 = vmul.f32 %v1302, %v1216
    %v1335 = vmul.f32 %v1303, %v1217
    %v1336 = vmul.f32 %v1304, %v1216
    %v1337 = vmul.f32 %v1305, %v1217
    %v1338 = vmul.f32 %v1306, %v1216
    %v1339 = vmul.f32 %v1307, %v1217
    %v1340 = vmul.f32 %v1308, %v1216
    %v1341 = vmul.f32 %v1309, %v1217
    %v1342 = vmul.f32 %v1310, %v1216
    %v1343 = vmul.f32 %v1311, %v1217
    %v1344 = vmul.f32 %v1312, %v1216
    %v1345 = vmul.f32 %v1313, %v1217
    %v1346 = vmul.f32 %v1314, %v1216
    %v1347 = vmul.f32 %v1315, %v1217
    %v1348 = vmul.f32 %v1316, %v1216
    %v1349 = vmul.f32 %v1317, %v1217
    %v1350 = vmul.f32 %v1318, %v1216
    %v1351 = vmul.f32 %v1319, %v1217
    %v1352 = vmul.f32 %v1320, %v1216
    %v1353 = vmul.f32 %v1321, %v1217
    %v1354 = vmul.f32 %v1322, %v1216
    %v1355 = vmul.f32 %v1323, %v1217
    %v1357 = vperm.slane %v1227, 0
    %v1358 = vperm.slane %v1227, 1
    %v1361 = vadd.f32 %v1324, %v1357
    %v1362 = vadd.f32 %v1325, %v1358
    %v1363 = vadd.f32 %v1326, %v1357
    %v1364 = vadd.f32 %v1327, %v1358
    %v1365 = vadd.f32 %v1328, %v1357
    %v1366 = vadd.f32 %v1329, %v1358
    %v1367 = vadd.f32 %v1330, %v1357
    %v1368 = vadd.f32 %v1331, %v1358
    %v1369 = vadd.f32 %v1332, %v1357
    %v1370 = vadd.f32 %v1333, %v1358
    %v1371 = vadd.f32 %v1334, %v1357
    %v1372 = vadd.f32 %v1335, %v1358
    %v1373 = vadd.f32 %v1336, %v1357
    %v1374 = vadd.f32 %v1337, %v1358
    %v1375 = vadd.f32 %v1338, %v1357
    %v1376 = vadd.f32 %v1339, %v1358
    %v1377 = vadd.f32 %v1340, %v1357
    %v1378 = vadd.f32 %v1341, %v1358
    %v1379 = vadd.f32 %v1342, %v1357
    %v1380 = vadd.f32 %v1343, %v1358
    %v1381 = vadd.f32 %v1344, %v1357
    %v1382 = vadd.f32 %v1345, %v1358
    %v1383 = vadd.f32 %v1346, %v1357
    %v1384 = vadd.f32 %v1347, %v1358
    %v1385 = vadd.f32 %v1348, %v1357
    %v1386 = vadd.f32 %v1349, %v1358
    %v1387 = vadd.f32 %v1350, %v1357
    %v1388 = vadd.f32 %v1351, %v1358
    %v1389 = vadd.f32 %v1352, %v1357
    %v1390 = vadd.f32 %v1353, %v1358
    %v1391 = vadd.f32 %v1354, %v1357
    %v1392 = vadd.f32 %v1355, %v1358
    %v1393 = vmax.f32 %v1361, 0.0
    %v1394 = vmax.f32 %v1362, 0.0
    %v1395 = vmax.f32 %v1363, 0.0
    %v1396 = vmax.f32 %v1364, 0.0
    %v1397 = vmax.f32 %v1365, 0.0
    %v1398 = vmax.f32 %v1366, 0.0
    %v1399 = vmax.f32 %v1367, 0.0
    %v1400 = vmax.f32 %v1368, 0.0
    %v1401 = vmax.f32 %v1369, 0.0
    %v1402 = vmax.f32 %v1370, 0.0
    %v1403 = vmax.f32 %v1371, 0.0
    %v1404 = vmax.f32 %v1372, 0.0
    %v1405 = vmax.f32 %v1373, 0.0
    %v1406 = vmax.f32 %v1374, 0.0
    %v1407 = vmax.f32 %v1375, 0.0
    %v1408 = vmax.f32 %v1376, 0.0
    %v1409 = vmax.f32 %v1377, 0.0
    %v1410 = vmax.f32 %v1378, 0.0
    %v1411 = vmax.f32 %v1379, 0.0
    %v1412 = vmax.f32 %v1380, 0.0
    %v1413 = vmax.f32 %v1381, 0.0
    %v1414 = vmax.f32 %v1382, 0.0
    %v1415 = vmax.f32 %v1383, 0.0
    %v1416 = vmax.f32 %v1384, 0.0
    %v1417 = vmax.f32 %v1385, 0.0
    %v1418 = vmax.f32 %v1386, 0.0
    %v1419 = vmax.f32 %v1387, 0.0
    %v1420 = vmax.f32 %v1388, 0.0
    %v1421 = vmax.f32 %v1389, 0.0
    %v1422 = vmax.f32 %v1390, 0.0
    %v1423 = vmax.f32 %v1391, 0.0
    %v1424 = vmax.f32 %v1392, 0.0
    %v1425 = vpack.c.bf16 %v1395, %v1393
    %v1426 = vpack.c.bf16 %v1396, %v1394
    %v1427 = vpack.c.bf16 %v1399, %v1397
    %v1428 = vpack.c.bf16 %v1400, %v1398
    %v1429 = vpack.c.bf16 %v1403, %v1401
    %v1430 = vpack.c.bf16 %v1404, %v1402
    %v1431 = vpack.c.bf16 %v1407, %v1405
    %v1432 = vpack.c.bf16 %v1408, %v1406
    %v1433 = vpack.c.bf16 %v1411, %v1409
    %v1434 = vpack.c.bf16 %v1412, %v1410
    %v1435 = vpack.c.bf16 %v1415, %v1413
    %v1436 = vpack.c.bf16 %v1416, %v1414
    %v1437 = vpack.c.bf16 %v1419, %v1417
    %v1438 = vpack.c.bf16 %v1420, %v1418
    %v1439 = vpack.c.bf16 %v1423, %v1421
    %v1440 = vpack.c.bf16 %v1424, %v1422
    %v1505 = vunpack.c.l.b16 %v1228
    %v1506 = vunpack.c.h.b16 %v1228
    %v1507 = vunpack.c.l.b16 %v1229
    %v1508 = vunpack.c.h.b16 %v1229
    %v1509 = vunpack.c.l.b16 %v1230
    %v1510 = vunpack.c.h.b16 %v1230
    %v1511 = vunpack.c.l.b16 %v1231
    %v1512 = vunpack.c.h.b16 %v1231
    %v1513 = vunpack.c.l.b16 %v1232
    %v1514 = vunpack.c.h.b16 %v1232
    %v1515 = vunpack.c.l.b16 %v1233
    %v1516 = vunpack.c.h.b16 %v1233
    %v1517 = vunpack.c.l.b16 %v1234
    %v1518 = vunpack.c.h.b16 %v1234
    %v1519 = vunpack.c.l.b16 %v1235
    %v1520 = vunpack.c.h.b16 %v1235
    %v1521 = vunpack.c.l.b16 %v1236
    %v1522 = vunpack.c.h.b16 %v1236
    %v1523 = vunpack.c.l.b16 %v1237
    %v1524 = vunpack.c.h.b16 %v1237
    %v1525 = vunpack.c.l.b16 %v1238
    %v1526 = vunpack.c.h.b16 %v1238
    %v1527 = vunpack.c.l.b16 %v1239
    %v1528 = vunpack.c.h.b16 %v1239
    %v1529 = vunpack.c.l.b16 %v1240
    %v1530 = vunpack.c.h.b16 %v1240
    %v1531 = vunpack.c.l.b16 %v1241
    %v1532 = vunpack.c.h.b16 %v1241
    %v1533 = vunpack.c.l.b16 %v1242
    %v1534 = vunpack.c.h.b16 %v1242
    %v1535 = vunpack.c.l.b16 %v1243
    %v1536 = vunpack.c.h.b16 %v1243
    %v1537 = vunpack.c.l.b16 %v1244
    %v1538 = vunpack.c.h.b16 %v1244
    %v1539 = vunpack.c.l.b16 %v1245
    %v1540 = vunpack.c.h.b16 %v1245
    %v1541 = vunpack.c.l.b16 %v1246
    %v1542 = vunpack.c.h.b16 %v1246
    %v1543 = vunpack.c.l.b16 %v1247
    %v1544 = vunpack.c.h.b16 %v1247
    %v1545 = vunpack.c.l.b16 %v1248
    %v1546 = vunpack.c.h.b16 %v1248
    %v1547 = vunpack.c.l.b16 %v1249
    %v1548 = vunpack.c.h.b16 %v1249
    %v1549 = vunpack.c.l.b16 %v1250
    %v1550 = vunpack.c.h.b16 %v1250
    %v1551 = vunpack.c.l.b16 %v1251
    %v1552 = vunpack.c.h.b16 %v1251
    %v1553 = vunpack.c.l.b16 %v1252
    %v1554 = vunpack.c.h.b16 %v1252
    %v1555 = vunpack.c.l.b16 %v1253
    %v1556 = vunpack.c.h.b16 %v1253
    %v1557 = vunpack.c.l.b16 %v1254
    %v1558 = vunpack.c.h.b16 %v1254
    %v1559 = vunpack.c.l.b16 %v1255
    %v1560 = vunpack.c.h.b16 %v1255
    %v1561 = vunpack.c.l.b16 %v1256
    %v1562 = vunpack.c.h.b16 %v1256
    %v1563 = vunpack.c.l.b16 %v1257
    %v1564 = vunpack.c.h.b16 %v1257
    %v1565 = vunpack.c.l.b16 %v1258
    %v1566 = vunpack.c.h.b16 %v1258
    %v1567 = vunpack.c.l.b16 %v1259
    %v1568 = vunpack.c.h.b16 %v1259
    %v1569 = vunpack.c.l.b16 %v1260
    %v1570 = vunpack.c.h.b16 %v1260
    %v1571 = vunpack.c.l.b16 %v1261
    %v1572 = vunpack.c.h.b16 %v1261
    %v1573 = vunpack.c.l.b16 %v1262
    %v1574 = vunpack.c.h.b16 %v1262
    %v1575 = vunpack.c.l.b16 %v1263
    %v1576 = vunpack.c.h.b16 %v1263
    %v1577 = vunpack.c.l.b16 %v1264
    %v1578 = vunpack.c.h.b16 %v1264
    %v1579 = vunpack.c.l.b16 %v1265
    %v1580 = vunpack.c.h.b16 %v1265
    %v1581 = vunpack.c.l.b16 %v1266
    %v1582 = vunpack.c.h.b16 %v1266
    %v1583 = vunpack.c.l.b16 %v1267
    %v1584 = vunpack.c.h.b16 %v1267
    %v1585 = vunpack.c.l.b16 %v1268
    %v1586 = vunpack.c.h.b16 %v1268
    %v1587 = vunpack.c.l.b16 %v1269
    %v1588 = vunpack.c.h.b16 %v1269
    %v1589 = vunpack.c.l.b16 %v1270
    %v1590 = vunpack.c.h.b16 %v1270
    %v1591 = vunpack.c.l.b16 %v1271
    %v1592 = vunpack.c.h.b16 %v1271
    %v1593 = vunpack.c.l.b16 %v1272
    %v1594 = vunpack.c.h.b16 %v1272
    %v1595 = vunpack.c.l.b16 %v1273
    %v1596 = vunpack.c.h.b16 %v1273
    %v1597 = vunpack.c.l.b16 %v1274
    %v1598 = vunpack.c.h.b16 %v1274
    %v1599 = vunpack.c.l.b16 %v1275
    %v1600 = vunpack.c.h.b16 %v1275
    %v1601 = vunpack.c.l.b16 %v1276
    %v1602 = vunpack.c.h.b16 %v1276
    %v1603 = vunpack.c.l.b16 %v1277
    %v1604 = vunpack.c.h.b16 %v1277
    %v1605 = vunpack.c.l.b16 %v1278
    %v1606 = vunpack.c.h.b16 %v1278
    %v1607 = vunpack.c.l.b16 %v1279
    %v1608 = vunpack.c.h.b16 %v1279
    %v1609 = vunpack.c.l.b16 %v1280
    %v1610 = vunpack.c.h.b16 %v1280
    %v1611 = vunpack.c.l.b16 %v1281
    %v1612 = vunpack.c.h.b16 %v1281
    %v1613 = vunpack.c.l.b16 %v1282
    %v1614 = vunpack.c.h.b16 %v1282
    %v1615 = vunpack.c.l.b16 %v1283
    %v1616 = vunpack.c.h.b16 %v1283
    %v1617 = vunpack.c.l.b16 %v1284
    %v1618 = vunpack.c.h.b16 %v1284
    %v1619 = vunpack.c.l.b16 %v1285
    %v1620 = vunpack.c.h.b16 %v1285
    %v1621 = vunpack.c.l.b16 %v1286
    %v1622 = vunpack.c.h.b16 %v1286
    %v1623 = vunpack.c.l.b16 %v1287
    %v1624 = vunpack.c.h.b16 %v1287
    %v1625 = vunpack.c.l.b16 %v1288
    %v1626 = vunpack.c.h.b16 %v1288
    %v1627 = vunpack.c.l.b16 %v1289
    %v1628 = vunpack.c.h.b16 %v1289
    %v1629 = vunpack.c.l.b16 %v1290
    %v1630 = vunpack.c.h.b16 %v1290
    %v1631 = vunpack.c.l.b16 %v1291
    %v1632 = vunpack.c.h.b16 %v1291
    %v1633 = vpack.c.b16 %v1509, %v1505
    %v1634 = vpack.c.b16 %v1510, %v1506
    %v1635 = vpack.c.b16 %v1511, %v1507
    %v1636 = vpack.c.b16 %v1512, %v1508
    %v1637 = vpack.c.b16 %v1517, %v1513
    %v1638 = vpack.c.b16 %v1518, %v1514
    %v1639 = vpack.c.b16 %v1519, %v1515
    %v1640 = vpack.c.b16 %v1520, %v1516
    %v1641 = vpack.c.b16 %v1525, %v1521
    %v1642 = vpack.c.b16 %v1526, %v1522
    %v1643 = vpack.c.b16 %v1527, %v1523
    %v1644 = vpack.c.b16 %v1528, %v1524
    %v1645 = vpack.c.b16 %v1533, %v1529
    %v1646 = vpack.c.b16 %v1534, %v1530
    %v1647 = vpack.c.b16 %v1535, %v1531
    %v1648 = vpack.c.b16 %v1536, %v1532
    %v1649 = vpack.c.b16 %v1541, %v1537
    %v1650 = vpack.c.b16 %v1542, %v1538
    %v1651 = vpack.c.b16 %v1543, %v1539
    %v1652 = vpack.c.b16 %v1544, %v1540
    %v1653 = vpack.c.b16 %v1549, %v1545
    %v1654 = vpack.c.b16 %v1550, %v1546
    %v1655 = vpack.c.b16 %v1551, %v1547
    %v1656 = vpack.c.b16 %v1552, %v1548
    %v1657 = vpack.c.b16 %v1557, %v1553
    %v1658 = vpack.c.b16 %v1558, %v1554
    %v1659 = vpack.c.b16 %v1559, %v1555
    %v1660 = vpack.c.b16 %v1560, %v1556
    %v1661 = vpack.c.b16 %v1565, %v1561
    %v1662 = vpack.c.b16 %v1566, %v1562
    %v1663 = vpack.c.b16 %v1567, %v1563
    %v1664 = vpack.c.b16 %v1568, %v1564
    %v1665 = vpack.c.b16 %v1573, %v1569
    %v1666 = vpack.c.b16 %v1574, %v1570
    %v1667 = vpack.c.b16 %v1575, %v1571
    %v1668 = vpack.c.b16 %v1576, %v1572
    %v1669 = vpack.c.b16 %v1581, %v1577
    %v1670 = vpack.c.b16 %v1582, %v1578
    %v1671 = vpack.c.b16 %v1583, %v1579
    %v1672 = vpack.c.b16 %v1584, %v1580
    %v1673 = vpack.c.b16 %v1589, %v1585
    %v1674 = vpack.c.b16 %v1590, %v1586
    %v1675 = vpack.c.b16 %v1591, %v1587
    %v1676 = vpack.c.b16 %v1592, %v1588
    %v1677 = vpack.c.b16 %v1597, %v1593
    %v1678 = vpack.c.b16 %v1598, %v1594
    %v1679 = vpack.c.b16 %v1599, %v1595
    %v1680 = vpack.c.b16 %v1600, %v1596
    %v1681 = vpack.c.b16 %v1605, %v1601
    %v1682 = vpack.c.b16 %v1606, %v1602
    %v1683 = vpack.c.b16 %v1607, %v1603
    %v1684 = vpack.c.b16 %v1608, %v1604
    %v1685 = vpack.c.b16 %v1613, %v1609
    %v1686 = vpack.c.b16 %v1614, %v1610
    %v1687 = vpack.c.b16 %v1615, %v1611
    %v1688 = vpack.c.b16 %v1616, %v1612
    %v1689 = vpack.c.b16 %v1621, %v1617
    %v1690 = vpack.c.b16 %v1622, %v1618
    %v1691 = vpack.c.b16 %v1623, %v1619
    %v1692 = vpack.c.b16 %v1624, %v1620
    %v1693 = vpack.c.b16 %v1629, %v1625
    %v1694 = vpack.c.b16 %v1630, %v1626
    %v1695 = vpack.c.b16 %v1631, %v1627
    %v1696 = vpack.c.b16 %v1632, %v1628
    %1761 = vmatpush.bf16.msra.mxu0 %v1661
    %1762 = vmatpush.bf16.msra.mxu0 %v1657
    %1763 = vmatpush.bf16.msra.mxu0 %v1653
    %1764 = vmatpush.bf16.msra.mxu0 %v1649
    %1765 = vmatpush.bf16.msra.mxu0 %v1645
    %1766 = vmatpush.bf16.msra.mxu0 %v1641
    %1767 = vmatpush.bf16.msra.mxu0 %v1637
    %1768 = vmatpush.bf16.msra.mxu0 %v1633
    %1769 = vmatmul.bf16.gmra.mxu0 %v1425
    %v1770 = vpop.f32.mrf.mxu0
    %v1771 = vadd.f32 0.0, %v1770
    %v1772 = vpop.f32.mrf.mxu0
    %v1773 = vadd.f32 0.0, %v1772
    %1774 = vmatmul.bf16.gmra.mxu0 %v1427
    %v1775 = vpop.f32.mrf.mxu0
    %v1776 = vadd.f32 0.0, %v1775
    %v1777 = vpop.f32.mrf.mxu0
    %v1778 = vadd.f32 0.0, %v1777
    %1779 = vmatmul.bf16.gmra.mxu0 %v1429
    %v1780 = vpop.f32.mrf.mxu0
    %v1781 = vadd.f32 0.0, %v1780
    %v1782 = vpop.f32.mrf.mxu0
    %v1783 = vadd.f32 0.0, %v1782
    %1784 = vmatmul.bf16.gmra.mxu0 %v1431
    %v1785 = vpop.f32.mrf.mxu0
    %v1786 = vadd.f32 0.0, %v1785
    %v1787 = vpop.f32.mrf.mxu0
    %v1788 = vadd.f32 0.0, %v1787
    %1789 = vmatmul.bf16.gmra.mxu0 %v1433
    %v1790 = vpop.f32.mrf.mxu0
    %v1791 = vadd.f32 0.0, %v1790
    %v1792 = vpop.f32.mrf.mxu0
    %v1793 = vadd.f32 0.0, %v1792
    %1794 = vmatmul.bf16.gmra.mxu0 %v1435
    %v1795 = vpop.f32.mrf.mxu0
    %v1796 = vadd.f32 0.0, %v1795
    %v1797 = vpop.f32.mrf.mxu0
    %v1798 = vadd.f32 0.0, %v1797
    %1799 = vmatmul.bf16.gmra.mxu0 %v1437
    %v1800 = vpop.f32.mrf.mxu0
    %v1801 = vadd.f32 0.0, %v1800
    %v1802 = vpop.f32.mrf.mxu0
    %v1803 = vadd.f32 0.0, %v1802
    %1804 = vmatmul.bf16.gmra.mxu0 %v1439
    %v1805 = vpop.f32.mrf.mxu0
    %v1806 = vadd.f32 0.0, %v1805
    %v1807 = vpop.f32.mrf.mxu0
    %v1808 = vadd.f32 0.0, %v1807
    %1809 = vdwg.mxu0
    %1810 = vmatpush.bf16.msra.mxu0 %v1693
    %1811 = vmatpush.bf16.msra.mxu0 %v1689
    %1812 = vmatpush.bf16.msra.mxu0 %v1685
    %1813 = vmatpush.bf16.msra.mxu0 %v1681
    %1814 = vmatpush.bf16.msra.mxu0 %v1677
    %1815 = vmatpush.bf16.msra.mxu0 %v1673
    %1816 = vmatpush.bf16.msra.mxu0 %v1669
    %1817 = vmatpush.bf16.msra.mxu0 %v1665
    %1818 = vmatmul.bf16.gmra.mxu0 %v1426
    %v1819 = vpop.f32.mrf.mxu0
    %v1820 = vadd.f32 %v1771, %v1819
    %v1821 = vpop.f32.mrf.mxu0
    %v1822 = vadd.f32 %v1773, %v1821
    %1823 = vmatmul.bf16.gmra.mxu0 %v1428
    %v1824 = vpop.f32.mrf.mxu0
    %v1825 = vadd.f32 %v1776, %v1824
    %v1826 = vpop.f32.mrf.mxu0
    %v1827 = vadd.f32 %v1778, %v1826
    %1828 = vmatmul.bf16.gmra.mxu0 %v1430
    %v1829 = vpop.f32.mrf.mxu0
    %v1830 = vadd.f32 %v1781, %v1829
    %v1831 = vpop.f32.mrf.mxu0
    %v1832 = vadd.f32 %v1783, %v1831
    %1833 = vmatmul.bf16.gmra.mxu0 %v1432
    %v1834 = vpop.f32.mrf.mxu0
    %v1835 = vadd.f32 %v1786, %v1834
    %v1836 = vpop.f32.mrf.mxu0
    %v1837 = vadd.f32 %v1788, %v1836
    %1838 = vmatmul.bf16.gmra.mxu0 %v1434
    %v1839 = vpop.f32.mrf.mxu0
    %v1840 = vadd.f32 %v1791, %v1839
    %v1841 = vpop.f32.mrf.mxu0
    %v1842 = vadd.f32 %v1793, %v1841
    %1843 = vmatmul.bf16.gmra.mxu0 %v1436
    %v1844 = vpop.f32.mrf.mxu0
    %v1845 = vadd.f32 %v1796, %v1844
    %v1846 = vpop.f32.mrf.mxu0
    %v1847 = vadd.f32 %v1798, %v1846
    %1848 = vmatmul.bf16.gmra.mxu0 %v1438
    %v1849 = vpop.f32.mrf.mxu0
    %v1850 = vadd.f32 %v1801, %v1849
    %v1851 = vpop.f32.mrf.mxu0
    %v1852 = vadd.f32 %v1803, %v1851
    %1853 = vmatmul.bf16.gmra.mxu0 %v1440
    %v1854 = vpop.f32.mrf.mxu0
    %v1855 = vadd.f32 %v1806, %v1854
    %v1856 = vpop.f32.mrf.mxu0
    %v1857 = vadd.f32 %v1808, %v1856
    %1858 = vdwg.mxu0
    %1859 = vmatpush.bf16.msra.mxu0 %v1662
    %1860 = vmatpush.bf16.msra.mxu0 %v1658
    %1861 = vmatpush.bf16.msra.mxu0 %v1654
    %1862 = vmatpush.bf16.msra.mxu0 %v1650
    %1863 = vmatpush.bf16.msra.mxu0 %v1646
    %1864 = vmatpush.bf16.msra.mxu0 %v1642
    %1865 = vmatpush.bf16.msra.mxu0 %v1638
    %1866 = vmatpush.bf16.msra.mxu0 %v1634
    %1867 = vmatmul.bf16.gmra.mxu0 %v1425
    %v1868 = vpop.f32.mrf.mxu0
    %v1869 = vadd.f32 0.0, %v1868
    %v1870 = vpop.f32.mrf.mxu0
    %v1871 = vadd.f32 0.0, %v1870
    %1872 = vmatmul.bf16.gmra.mxu0 %v1427
    %v1873 = vpop.f32.mrf.mxu0
    %v1874 = vadd.f32 0.0, %v1873
    %v1875 = vpop.f32.mrf.mxu0
    %v1876 = vadd.f32 0.0, %v1875
    %1877 = vmatmul.bf16.gmra.mxu0 %v1429
    %v1878 = vpop.f32.mrf.mxu0
    %v1879 = vadd.f32 0.0, %v1878
    %v1880 = vpop.f32.mrf.mxu0
    %v1881 = vadd.f32 0.0, %v1880
    %1882 = vmatmul.bf16.gmra.mxu0 %v1431
    %v1883 = vpop.f32.mrf.mxu0
    %v1884 = vadd.f32 0.0, %v1883
    %v1885 = vpop.f32.mrf.mxu0
    %v1886 = vadd.f32 0.0, %v1885
    %1887 = vmatmul.bf16.gmra.mxu0 %v1433
    %v1888 = vpop.f32.mrf.mxu0
    %v1889 = vadd.f32 0.0, %v1888
    %v1890 = vpop.f32.mrf.mxu0
    %v1891 = vadd.f32 0.0, %v1890
    %1892 = vmatmul.bf16.gmra.mxu0 %v1435
    %v1893 = vpop.f32.mrf.mxu0
    %v1894 = vadd.f32 0.0, %v1893
    %v1895 = vpop.f32.mrf.mxu0
    %v1896 = vadd.f32 0.0, %v1895
    %1897 = vmatmul.bf16.gmra.mxu0 %v1437
    %v1898 = vpop.f32.mrf.mxu0
    %v1899 = vadd.f32 0.0, %v1898
    %v1900 = vpop.f32.mrf.mxu0
    %v1901 = vadd.f32 0.0, %v1900
    %1902 = vmatmul.bf16.gmra.mxu0 %v1439
    %v1903 = vpop.f32.mrf.mxu0
    %v1904 = vadd.f32 0.0, %v1903
    %v1905 = vpop.f32.mrf.mxu0
    %v1906 = vadd.f32 0.0, %v1905
    %1907 = vdwg.mxu0
    %1908 = vmatpush.bf16.msra.mxu0 %v1694
    %1909 = vmatpush.bf16.msra.mxu0 %v1690
    %1910 = vmatpush.bf16.msra.mxu0 %v1686
    %1911 = vmatpush.bf16.msra.mxu0 %v1682
    %1912 = vmatpush.bf16.msra.mxu0 %v1678
    %1913 = vmatpush.bf16.msra.mxu0 %v1674
    %1914 = vmatpush.bf16.msra.mxu0 %v1670
    %1915 = vmatpush.bf16.msra.mxu0 %v1666
    %1916 = vmatmul.bf16.gmra.mxu0 %v1426
    %v1917 = vpop.f32.mrf.mxu0
    %v1918 = vadd.f32 %v1869, %v1917
    %v1919 = vpop.f32.mrf.mxu0
    %v1920 = vadd.f32 %v1871, %v1919
    %1921 = vmatmul.bf16.gmra.mxu0 %v1428
    %v1922 = vpop.f32.mrf.mxu0
    %v1923 = vadd.f32 %v1874, %v1922
    %v1924 = vpop.f32.mrf.mxu0
    %v1925 = vadd.f32 %v1876, %v1924
    %1926 = vmatmul.bf16.gmra.mxu0 %v1430
    %v1927 = vpop.f32.mrf.mxu0
    %v1928 = vadd.f32 %v1879, %v1927
    %v1929 = vpop.f32.mrf.mxu0
    %v1930 = vadd.f32 %v1881, %v1929
    %1931 = vmatmul.bf16.gmra.mxu0 %v1432
    %v1932 = vpop.f32.mrf.mxu0
    %v1933 = vadd.f32 %v1884, %v1932
    %v1934 = vpop.f32.mrf.mxu0
    %v1935 = vadd.f32 %v1886, %v1934
    %1936 = vmatmul.bf16.gmra.mxu0 %v1434
    %v1937 = vpop.f32.mrf.mxu0
    %v1938 = vadd.f32 %v1889, %v1937
    %v1939 = vpop.f32.mrf.mxu0
    %v1940 = vadd.f32 %v1891, %v1939
    %1941 = vmatmul.bf16.gmra.mxu0 %v1436
    %v1942 = vpop.f32.mrf.mxu0
    %v1943 = vadd.f32 %v1894, %v1942
    %v1944 = vpop.f32.mrf.mxu0
    %v1945 = vadd.f32 %v1896, %v1944
    %1946 = vmatmul.bf16.gmra.mxu0 %v1438
    %v1947 = vpop.f32.mrf.mxu0
    %v1948 = vadd.f32 %v1899, %v1947
    %v1949 = vpop.f32.mrf.mxu0
    %v1950 = vadd.f32 %v1901, %v1949
    %1951 = vmatmul.bf16.gmra.mxu0 %v1440
    %v1952 = vpop.f32.mrf.mxu0
    %v1953 = vadd.f32 %v1904, %v1952
    %v1954 = vpop.f32.mrf.mxu0
    %v1955 = vadd.f32 %v1906, %v1954
    %1956 = vdwg.mxu0
    %1957 = vmatpush.bf16.msra.mxu0 %v1663
    %1958 = vmatpush.bf16.msra.mxu0 %v1659
    %1959 = vmatpush.bf16.msra.mxu0 %v1655
    %1960 = vmatpush.bf16.msra.mxu0 %v1651
    %1961 = vmatpush.bf16.msra.mxu0 %v1647
    %1962 = vmatpush.bf16.msra.mxu0 %v1643
    %1963 = vmatpush.bf16.msra.mxu0 %v1639
    %1964 = vmatpush.bf16.msra.mxu0 %v1635
    %1965 = vmatmul.bf16.gmra.mxu0 %v1425
    %v1966 = vpop.f32.mrf.mxu0
    %v1967 = vadd.f32 0.0, %v1966
    %v1968 = vpop.f32.mrf.mxu0
    %v1969 = vadd.f32 0.0, %v1968
    %1970 = vmatmul.bf16.gmra.mxu0 %v1427
    %v1971 = vpop.f32.mrf.mxu0
    %v1972 = vadd.f32 0.0, %v1971
    %v1973 = vpop.f32.mrf.mxu0
    %v1974 = vadd.f32 0.0, %v1973
    %1975 = vmatmul.bf16.gmra.mxu0 %v1429
    %v1976 = vpop.f32.mrf.mxu0
    %v1977 = vadd.f32 0.0, %v1976
    %v1978 = vpop.f32.mrf.mxu0
    %v1979 = vadd.f32 0.0, %v1978
    %1980 = vmatmul.bf16.gmra.mxu0 %v1431
    %v1981 = vpop.f32.mrf.mxu0
    %v1982 = vadd.f32 0.0, %v1981
    %v1983 = vpop.f32.mrf.mxu0
    %v1984 = vadd.f32 0.0, %v1983
    %1985 = vmatmul.bf16.gmra.mxu0 %v1433
    %v1986 = vpop.f32.mrf.mxu0
    %v1987 = vadd.f32 0.0, %v1986
    %v1988 = vpop.f32.mrf.mxu0
    %v1989 = vadd.f32 0.0, %v1988
    %1990 = vmatmul.bf16.gmra.mxu0 %v1435
    %v1991 = vpop.f32.mrf.mxu0
    %v1992 = vadd.f32 0.0, %v1991
    %v1993 = vpop.f32.mrf.mxu0
    %v1994 = vadd.f32 0.0, %v1993
    %1995 = vmatmul.bf16.gmra.mxu0 %v1437
    %v1996 = vpop.f32.mrf.mxu0
    %v1997 = vadd.f32 0.0, %v1996
    %v1998 = vpop.f32.mrf.mxu0
    %v1999 = vadd.f32 0.0, %v1998
    %2000 = vmatmul.bf16.gmra.mxu0 %v1439
    %v2001 = vpop.f32.mrf.mxu0
    %v2002 = vadd.f32 0.0, %v2001
    %v2003 = vpop.f32.mrf.mxu0
    %v2004 = vadd.f32 0.0, %v2003
    %2005 = vdwg.mxu0
    %2006 = vmatpush.bf16.msra.mxu0 %v1695
    %2007 = vmatpush.bf16.msra.mxu0 %v1691
    %2008 = vmatpush.bf16.msra.mxu0 %v1687
    %2009 = vmatpush.bf16.msra.mxu0 %v1683
    %2010 = vmatpush.bf16.msra.mxu0 %v1679
    %2011 = vmatpush.bf16.msra.mxu0 %v1675
    %2012 = vmatpush.bf16.msra.mxu0 %v1671
    %2013 = vmatpush.bf16.msra.mxu0 %v1667
    %2014 = vmatmul.bf16.gmra.mxu0 %v1426
    %v2015 = vpop.f32.mrf.mxu0
    %v2016 = vadd.f32 %v1967, %v2015
    %v2017 = vpop.f32.mrf.mxu0
    %v2018 = vadd.f32 %v1969, %v2017
    %2019 = vmatmul.bf16.gmra.mxu0 %v1428
    %v2020 = vpop.f32.mrf.mxu0
    %v2021 = vadd.f32 %v1972, %v2020
    %v2022 = vpop.f32.mrf.mxu0
    %v2023 = vadd.f32 %v1974, %v2022
    %2024 = vmatmul.bf16.gmra.mxu0 %v1430
    %v2025 = vpop.f32.mrf.mxu0
    %v2026 = vadd.f32 %v1977, %v2025
    %v2027 = vpop.f32.mrf.mxu0
    %v2028 = vadd.f32 %v1979, %v2027
    %2029 = vmatmul.bf16.gmra.mxu0 %v1432
    %v2030 = vpop.f32.mrf.mxu0
    %v2031 = vadd.f32 %v1982, %v2030
    %v2032 = vpop.f32.mrf.mxu0
    %v2033 = vadd.f32 %v1984, %v2032
    %2034 = vmatmul.bf16.gmra.mxu0 %v1434
    %v2035 = vpop.f32.mrf.mxu0
    %v2036 = vadd.f32 %v1987, %v2035
    %v2037 = vpop.f32.mrf.mxu0
    %v2038 = vadd.f32 %v1989, %v2037
    %2039 = vmatmul.bf16.gmra.mxu0 %v1436
    %v2040 = vpop.f32.mrf.mxu0
    %v2041 = vadd.f32 %v1992, %v2040
    %v2042 = vpop.f32.mrf.mxu0
    %v2043 = vadd.f32 %v1994, %v2042
    %2044 = vmatmul.bf16.gmra.mxu0 %v1438
    %v2045 = vpop.f32.mrf.mxu0
    %v2046 = vadd.f32 %v1997, %v2045
    %v2047 = vpop.f32.mrf.mxu0
    %v2048 = vadd.f32 %v1999, %v2047
    %2049 = vmatmul.bf16.gmra.mxu0 %v1440
    %v2050 = vpop.f32.mrf.mxu0
    %v2051 = vadd.f32 %v2002, %v2050
    %v2052 = vpop.f32.mrf.mxu0
    %v2053 = vadd.f32 %v2004, %v2052
    %2054 = vdwg.mxu0
    %2055 = vmatpush.bf16.msra.mxu0 %v1664
    %2056 = vmatpush.bf16.msra.mxu0 %v1660
    %2057 = vmatpush.bf16.msra.mxu0 %v1656
    %2058 = vmatpush.bf16.msra.mxu0 %v1652
    %2059 = vmatpush.bf16.msra.mxu0 %v1648
    %2060 = vmatpush.bf16.msra.mxu0 %v1644
    %2061 = vmatpush.bf16.msra.mxu0 %v1640
    %2062 = vmatpush.bf16.msra.mxu0 %v1636
    %2063 = vmatmul.bf16.gmra.mxu0 %v1425
    %v2064 = vpop.f32.mrf.mxu0
    %v2065 = vadd.f32 0.0, %v2064
    %v2066 = vpop.f32.mrf.mxu0
    %v2067 = vadd.f32 0.0, %v2066
    %2068 = vmatmul.bf16.gmra.mxu0 %v1427
    %v2069 = vpop.f32.mrf.mxu0
    %v2070 = vadd.f32 0.0, %v2069
    %v2071 = vpop.f32.mrf.mxu0
    %v2072 = vadd.f32 0.0, %v2071
    %2073 = vmatmul.bf16.gmra.mxu0 %v1429
    %v2074 = vpop.f32.mrf.mxu0
    %v2075 = vadd.f32 0.0, %v2074
    %v2076 = vpop.f32.mrf.mxu0
    %v2077 = vadd.f32 0.0, %v2076
    %2078 = vmatmul.bf16.gmra.mxu0 %v1431
    %v2079 = vpop.f32.mrf.mxu0
    %v2080 = vadd.f32 0.0, %v2079
    %v2081 = vpop.f32.mrf.mxu0
    %v2082 = vadd.f32 0.0, %v2081
    %2083 = vmatmul.bf16.gmra.mxu0 %v1433
    %v2084 = vpop.f32.mrf.mxu0
    %v2085 = vadd.f32 0.0, %v2084
    %v2086 = vpop.f32.mrf.mxu0
    %v2087 = vadd.f32 0.0, %v2086
    %2088 = vmatmul.bf16.gmra.mxu0 %v1435
    %v2089 = vpop.f32.mrf.mxu0
    %v2090 = vadd.f32 0.0, %v2089
    %v2091 = vpop.f32.mrf.mxu0
    %v2092 = vadd.f32 0.0, %v2091
    %2093 = vmatmul.bf16.gmra.mxu0 %v1437
    %v2094 = vpop.f32.mrf.mxu0
    %v2095 = vadd.f32 0.0, %v2094
    %v2096 = vpop.f32.mrf.mxu0
    %v2097 = vadd.f32 0.0, %v2096
    %2098 = vmatmul.bf16.gmra.mxu0 %v1439
    %v2099 = vpop.f32.mrf.mxu0
    %v2100 = vadd.f32 0.0, %v2099
    %v2101 = vpop.f32.mrf.mxu0
    %v2102 = vadd.f32 0.0, %v2101
    %2103 = vdwg.mxu0
    %2104 = vmatpush.bf16.msra.mxu0 %v1696
    %2105 = vmatpush.bf16.msra.mxu0 %v1692
    %2106 = vmatpush.bf16.msra.mxu0 %v1688
    %2107 = vmatpush.bf16.msra.mxu0 %v1684
    %2108 = vmatpush.bf16.msra.mxu0 %v1680
    %2109 = vmatpush.bf16.msra.mxu0 %v1676
    %2110 = vmatpush.bf16.msra.mxu0 %v1672
    %2111 = vmatpush.bf16.msra.mxu0 %v1668
    %2112 = vmatmul.bf16.gmra.mxu0 %v1426
    %v2113 = vpop.f32.mrf.mxu0
    %v2114 = vadd.f32 %v2065, %v2113
    %v2115 = vpop.f32.mrf.mxu0
    %v2116 = vadd.f32 %v2067, %v2115
    %2117 = vmatmul.bf16.gmra.mxu0 %v1428
    %v2118 = vpop.f32.mrf.mxu0
    %v2119 = vadd.f32 %v2070, %v2118
    %v2120 = vpop.f32.mrf.mxu0
    %v2121 = vadd.f32 %v2072, %v2120
    %2122 = vmatmul.bf16.gmra.mxu0 %v1430
    %v2123 = vpop.f32.mrf.mxu0
    %v2124 = vadd.f32 %v2075, %v2123
    %v2125 = vpop.f32.mrf.mxu0
    %v2126 = vadd.f32 %v2077, %v2125
    %2127 = vmatmul.bf16.gmra.mxu0 %v1432
    %v2128 = vpop.f32.mrf.mxu0
    %v2129 = vadd.f32 %v2080, %v2128
    %v2130 = vpop.f32.mrf.mxu0
    %v2131 = vadd.f32 %v2082, %v2130
    %2132 = vmatmul.bf16.gmra.mxu0 %v1434
    %v2133 = vpop.f32.mrf.mxu0
    %v2134 = vadd.f32 %v2085, %v2133
    %v2135 = vpop.f32.mrf.mxu0
    %v2136 = vadd.f32 %v2087, %v2135
    %2137 = vmatmul.bf16.gmra.mxu0 %v1436
    %v2138 = vpop.f32.mrf.mxu0
    %v2139 = vadd.f32 %v2090, %v2138
    %v2140 = vpop.f32.mrf.mxu0
    %v2141 = vadd.f32 %v2092, %v2140
    %2142 = vmatmul.bf16.gmra.mxu0 %v1438
    %v2143 = vpop.f32.mrf.mxu0
    %v2144 = vadd.f32 %v2095, %v2143
    %v2145 = vpop.f32.mrf.mxu0
    %v2146 = vadd.f32 %v2097, %v2145
    %2147 = vmatmul.bf16.gmra.mxu0 %v1440
    %v2148 = vpop.f32.mrf.mxu0
    %v2149 = vadd.f32 %v2100, %v2148
    %v2150 = vpop.f32.mrf.mxu0
    %v2151 = vadd.f32 %v2102, %v2150
    %2152 = vdwg.mxu0
    %v2153 = vadd.f32 %v1820, %v1822
    %v2154 = vadd.f32 %v2153, %v1825
    %v2155 = vadd.f32 %v2154, %v1827
    %v2156 = vadd.f32 %v2155, %v1830
    %v2157 = vadd.f32 %v2156, %v1832
    %v2158 = vadd.f32 %v2157, %v1835
    %v2159 = vadd.f32 %v2158, %v1837
    %v2160 = vadd.f32 %v2159, %v1840
    %v2161 = vadd.f32 %v2160, %v1842
    %v2162 = vadd.f32 %v2161, %v1845
    %v2163 = vadd.f32 %v2162, %v1847
    %v2164 = vadd.f32 %v2163, %v1850
    %v2165 = vadd.f32 %v2164, %v1852
    %v2166 = vadd.f32 %v2165, %v1855
    %v2167 = vadd.f32 %v2166, %v1857
    %v2168 = vrot.slane %v2167, 4
    %v2169 = vadd.f32 %v2167, %v2168
    %v2170 = vrot.slane %v2169, 2
    %v2171 = vadd.f32 %v2169, %v2170
    %v2172 = vrot.slane %v2171, 1
    %v2173 = vadd.f32 %v2171, %v2172
    %v2174 = vadd.f32 %v1918, %v1920
    %v2175 = vadd.f32 %v2174, %v1923
    %v2176 = vadd.f32 %v2175, %v1925
    %v2177 = vadd.f32 %v2176, %v1928
    %v2178 = vadd.f32 %v2177, %v1930
    %v2179 = vadd.f32 %v2178, %v1933
    %v2180 = vadd.f32 %v2179, %v1935
    %v2181 = vadd.f32 %v2180, %v1938
    %v2182 = vadd.f32 %v2181, %v1940
    %v2183 = vadd.f32 %v2182, %v1943
    %v2184 = vadd.f32 %v2183, %v1945
    %v2185 = vadd.f32 %v2184, %v1948
    %v2186 = vadd.f32 %v2185, %v1950
    %v2187 = vadd.f32 %v2186, %v1953
    %v2188 = vadd.f32 %v2187, %v1955
    %v2189 = vrot.slane %v2188, 4
    %v2190 = vadd.f32 %v2188, %v2189
    %v2191 = vrot.slane %v2190, 2
    %v2192 = vadd.f32 %v2190, %v2191
    %v2193 = vrot.slane %v2192, 1
    %v2194 = vadd.f32 %v2192, %v2193
    %v2195 = vadd.f32 %v2016, %v2018
    %v2196 = vadd.f32 %v2195, %v2021
    %v2197 = vadd.f32 %v2196, %v2023
    %v2198 = vadd.f32 %v2197, %v2026
    %v2199 = vadd.f32 %v2198, %v2028
    %v2200 = vadd.f32 %v2199, %v2031
    %v2201 = vadd.f32 %v2200, %v2033
    %v2202 = vadd.f32 %v2201, %v2036
    %v2203 = vadd.f32 %v2202, %v2038
    %v2204 = vadd.f32 %v2203, %v2041
    %v2205 = vadd.f32 %v2204, %v2043
    %v2206 = vadd.f32 %v2205, %v2046
    %v2207 = vadd.f32 %v2206, %v2048
    %v2208 = vadd.f32 %v2207, %v2051
    %v2209 = vadd.f32 %v2208, %v2053
    %v2210 = vrot.slane %v2209, 4
    %v2211 = vadd.f32 %v2209, %v2210
    %v2212 = vrot.slane %v2211, 2
    %v2213 = vadd.f32 %v2211, %v2212
    %v2214 = vrot.slane %v2213, 1
    %v2215 = vadd.f32 %v2213, %v2214
    %v2216 = vadd.f32 %v2114, %v2116
    %v2217 = vadd.f32 %v2216, %v2119
    %v2218 = vadd.f32 %v2217, %v2121
    %v2219 = vadd.f32 %v2218, %v2124
    %v2220 = vadd.f32 %v2219, %v2126
    %v2221 = vadd.f32 %v2220, %v2129
    %v2222 = vadd.f32 %v2221, %v2131
    %v2223 = vadd.f32 %v2222, %v2134
    %v2224 = vadd.f32 %v2223, %v2136
    %v2225 = vadd.f32 %v2224, %v2139
    %v2226 = vadd.f32 %v2225, %v2141
    %v2227 = vadd.f32 %v2226, %v2144
    %v2228 = vadd.f32 %v2227, %v2146
    %v2229 = vadd.f32 %v2228, %v2149
    %v2230 = vadd.f32 %v2229, %v2151
    %v2231 = vrot.slane %v2230, 4
    %v2232 = vadd.f32 %v2230, %v2231
    %v2233 = vrot.slane %v2232, 2
    %v2234 = vadd.f32 %v2232, %v2233
    %v2235 = vrot.slane %v2234, 1
    %v2236 = vadd.f32 %v2234, %v2235
    %v2237 = vmul.f32 %v1820, %v1820
    %v2238 = vmul.f32 %v1918, %v1918
    %v2239 = vmul.f32 %v2016, %v2016
    %v2240 = vmul.f32 %v2114, %v2114
    %v2241 = vmul.f32 %v1822, %v1822
    %v2242 = vmul.f32 %v1920, %v1920
    %v2243 = vmul.f32 %v2018, %v2018
    %v2244 = vmul.f32 %v2116, %v2116
    %v2245 = vmul.f32 %v1825, %v1825
    %v2246 = vmul.f32 %v1923, %v1923
    %v2247 = vmul.f32 %v2021, %v2021
    %v2248 = vmul.f32 %v2119, %v2119
    %v2249 = vmul.f32 %v1827, %v1827
    %v2250 = vmul.f32 %v1925, %v1925
    %v2251 = vmul.f32 %v2023, %v2023
    %v2252 = vmul.f32 %v2121, %v2121
    %v2253 = vmul.f32 %v1830, %v1830
    %v2254 = vmul.f32 %v1928, %v1928
    %v2255 = vmul.f32 %v2026, %v2026
    %v2256 = vmul.f32 %v2124, %v2124
    %v2257 = vmul.f32 %v1832, %v1832
    %v2258 = vmul.f32 %v1930, %v1930
    %v2259 = vmul.f32 %v2028, %v2028
    %v2260 = vmul.f32 %v2126, %v2126
    %v2261 = vmul.f32 %v1835, %v1835
    %v2262 = vmul.f32 %v1933, %v1933
    %v2263 = vmul.f32 %v2031, %v2031
    %v2264 = vmul.f32 %v2129, %v2129
    %v2265 = vmul.f32 %v1837, %v1837
    %v2266 = vmul.f32 %v1935, %v1935
    %v2267 = vmul.f32 %v2033, %v2033
    %v2268 = vmul.f32 %v2131, %v2131
    %v2269 = vmul.f32 %v1840, %v1840
    %v2270 = vmul.f32 %v1938, %v1938
    %v2271 = vmul.f32 %v2036, %v2036
    %v2272 = vmul.f32 %v2134, %v2134
    %v2273 = vmul.f32 %v1842, %v1842
    %v2274 = vmul.f32 %v1940, %v1940
    %v2275 = vmul.f32 %v2038, %v2038
    %v2276 = vmul.f32 %v2136, %v2136
    %v2277 = vmul.f32 %v1845, %v1845
    %v2278 = vmul.f32 %v1943, %v1943
    %v2279 = vmul.f32 %v2041, %v2041
    %v2280 = vmul.f32 %v2139, %v2139
    %v2281 = vmul.f32 %v1847, %v1847
    %v2282 = vmul.f32 %v1945, %v1945
    %v2283 = vmul.f32 %v2043, %v2043
    %v2284 = vmul.f32 %v2141, %v2141
    %v2285 = vmul.f32 %v1850, %v1850
    %v2286 = vmul.f32 %v1948, %v1948
    %v2287 = vmul.f32 %v2046, %v2046
    %v2288 = vmul.f32 %v2144, %v2144
    %v2289 = vmul.f32 %v1852, %v1852
    %v2290 = vmul.f32 %v1950, %v1950
    %v2291 = vmul.f32 %v2048, %v2048
    %v2292 = vmul.f32 %v2146, %v2146
    %v2293 = vmul.f32 %v1855, %v1855
    %v2294 = vmul.f32 %v1953, %v1953
    %v2295 = vmul.f32 %v2051, %v2051
    %v2296 = vmul.f32 %v2149, %v2149
    %v2297 = vmul.f32 %v1857, %v1857
    %v2298 = vmul.f32 %v1955, %v1955
    %v2299 = vmul.f32 %v2053, %v2053
    %v2300 = vmul.f32 %v2151, %v2151
    %v2301 = vadd.f32 %v2237, %v2241
    %v2302 = vadd.f32 %v2301, %v2245
    %v2303 = vadd.f32 %v2302, %v2249
    %v2304 = vadd.f32 %v2303, %v2253
    %v2305 = vadd.f32 %v2304, %v2257
    %v2306 = vadd.f32 %v2305, %v2261
    %v2307 = vadd.f32 %v2306, %v2265
    %v2308 = vadd.f32 %v2307, %v2269
    %v2309 = vadd.f32 %v2308, %v2273
    %v2310 = vadd.f32 %v2309, %v2277
    %v2311 = vadd.f32 %v2310, %v2281
    %v2312 = vadd.f32 %v2311, %v2285
    %v2313 = vadd.f32 %v2312, %v2289
    %v2314 = vadd.f32 %v2313, %v2293
    %v2315 = vadd.f32 %v2314, %v2297
    %v2316 = vrot.slane %v2315, 4
    %v2317 = vadd.f32 %v2315, %v2316
    %v2318 = vrot.slane %v2317, 2
    %v2319 = vadd.f32 %v2317, %v2318
    %v2320 = vrot.slane %v2319, 1
    %v2321 = vadd.f32 %v2319, %v2320
    %v2322 = vadd.f32 %v2238, %v2242
    %v2323 = vadd.f32 %v2322, %v2246
    %v2324 = vadd.f32 %v2323, %v2250
    %v2325 = vadd.f32 %v2324, %v2254
    %v2326 = vadd.f32 %v2325, %v2258
    %v2327 = vadd.f32 %v2326, %v2262
    %v2328 = vadd.f32 %v2327, %v2266
    %v2329 = vadd.f32 %v2328, %v2270
    %v2330 = vadd.f32 %v2329, %v2274
    %v2331 = vadd.f32 %v2330, %v2278
    %v2332 = vadd.f32 %v2331, %v2282
    %v2333 = vadd.f32 %v2332, %v2286
    %v2334 = vadd.f32 %v2333, %v2290
    %v2335 = vadd.f32 %v2334, %v2294
    %v2336 = vadd.f32 %v2335, %v2298
    %v2337 = vrot.slane %v2336, 4
    %v2338 = vadd.f32 %v2336, %v2337
    %v2339 = vrot.slane %v2338, 2
    %v2340 = vadd.f32 %v2338, %v2339
    %v2341 = vrot.slane %v2340, 1
    %v2342 = vadd.f32 %v2340, %v2341
    %v2343 = vadd.f32 %v2239, %v2243
    %v2344 = vadd.f32 %v2343, %v2247
    %v2345 = vadd.f32 %v2344, %v2251
    %v2346 = vadd.f32 %v2345, %v2255
    %v2347 = vadd.f32 %v2346, %v2259
    %v2348 = vadd.f32 %v2347, %v2263
    %v2349 = vadd.f32 %v2348, %v2267
    %v2350 = vadd.f32 %v2349, %v2271
    %v2351 = vadd.f32 %v2350, %v2275
    %v2352 = vadd.f32 %v2351, %v2279
    %v2353 = vadd.f32 %v2352, %v2283
    %v2354 = vadd.f32 %v2353, %v2287
    %v2355 = vadd.f32 %v2354, %v2291
    %v2356 = vadd.f32 %v2355, %v2295
    %v2357 = vadd.f32 %v2356, %v2299
    %v2358 = vrot.slane %v2357, 4
    %v2359 = vadd.f32 %v2357, %v2358
    %v2360 = vrot.slane %v2359, 2
    %v2361 = vadd.f32 %v2359, %v2360
    %v2362 = vrot.slane %v2361, 1
    %v2363 = vadd.f32 %v2361, %v2362
    %v2364 = vadd.f32 %v2240, %v2244
    %v2365 = vadd.f32 %v2364, %v2248
    %v2366 = vadd.f32 %v2365, %v2252
    %v2367 = vadd.f32 %v2366, %v2256
    %v2368 = vadd.f32 %v2367, %v2260
    %v2369 = vadd.f32 %v2368, %v2264
    %v2370 = vadd.f32 %v2369, %v2268
    %v2371 = vadd.f32 %v2370, %v2272
    %v2372 = vadd.f32 %v2371, %v2276
    %v2373 = vadd.f32 %v2372, %v2280
    %v2374 = vadd.f32 %v2373, %v2284
    %v2375 = vadd.f32 %v2374, %v2288
    %v2376 = vadd.f32 %v2375, %v2292
    %v2377 = vadd.f32 %v2376, %v2296
    %v2378 = vadd.f32 %v2377, %v2300
    %v2379 = vrot.slane %v2378, 4
    %v2380 = vadd.f32 %v2378, %v2379
    %v2381 = vrot.slane %v2380, 2
    %v2382 = vadd.f32 %v2380, %v2381
    %v2383 = vrot.slane %v2382, 1
    %v2384 = vadd.f32 %v2382, %v2383
    %v2385 = vpack.c.bf16 %v1918, %v1820
    %v2386 = vpack.c.bf16 %v2114, %v2016
    %v2387 = vpack.c.bf16 %v1920, %v1822
    %v2388 = vpack.c.bf16 %v2116, %v2018
    %v2389 = vpack.c.bf16 %v1923, %v1825
    %v2390 = vpack.c.bf16 %v2119, %v2021
    %v2391 = vpack.c.bf16 %v1925, %v1827
    %v2392 = vpack.c.bf16 %v2121, %v2023
    %v2393 = vpack.c.bf16 %v1928, %v1830
    %v2394 = vpack.c.bf16 %v2124, %v2026
    %v2395 = vpack.c.bf16 %v1930, %v1832
    %v2396 = vpack.c.bf16 %v2126, %v2028
    %v2397 = vpack.c.bf16 %v1933, %v1835
    %v2398 = vpack.c.bf16 %v2129, %v2031
    %v2399 = vpack.c.bf16 %v1935, %v1837
    %v2400 = vpack.c.bf16 %v2131, %v2033
    %v2401 = vpack.c.bf16 %v1938, %v1840
    %v2402 = vpack.c.bf16 %v2134, %v2036
    %v2403 = vpack.c.bf16 %v1940, %v1842
    %v2404 = vpack.c.bf16 %v2136, %v2038
    %v2405 = vpack.c.bf16 %v1943, %v1845
    %v2406 = vpack.c.bf16 %v2139, %v2041
    %v2407 = vpack.c.bf16 %v1945, %v1847
    %v2408 = vpack.c.bf16 %v2141, %v2043
    %v2409 = vpack.c.bf16 %v1948, %v1850
    %v2410 = vpack.c.bf16 %v2144, %v2046
    %v2411 = vpack.c.bf16 %v1950, %v1852
    %v2412 = vpack.c.bf16 %v2146, %v2048
    %v2413 = vpack.c.bf16 %v1953, %v1855
    %v2414 = vpack.c.bf16 %v2149, %v2051
    %v2415 = vpack.c.bf16 %v1955, %v1857
    %v2416 = vpack.c.bf16 %v2151, %v2053
    %v2417 = vmul.f32 %v2173, 0.0078125
    %v2418 = vmul.f32 %v2194, 0.0078125
    %v2419 = vmul.f32 %v2215, 0.0078125
    %v2420 = vmul.f32 %v2236, 0.0078125
    %v2421 = vmul.f32 %v2321, 0.0078125
    %v2422 = vmul.f32 %v2342, 0.0078125
    %v2423 = vmul.f32 %v2363, 0.0078125
    %v2424 = vmul.f32 %v2384, 0.0078125
    %v2425 = vmul.f32 %v2417, %v2417
    %v2426 = vmul.f32 %v2418, %v2418
    %v2427 = vmul.f32 %v2419, %v2419
    %v2428 = vmul.f32 %v2420, %v2420
    %v2429 = vsub.f32 %v2421, %v2425
    %v2430 = vsub.f32 %v2422, %v2426
    %v2431 = vsub.f32 %v2423, %v2427
    %v2432 = vsub.f32 %v2424, %v2428
    %v2433 = vmax.f32 %v2429, 0.0
    %v2434 = vmax.f32 %v2430, 0.0
    %v2435 = vmax.f32 %v2431, 0.0
    %v2436 = vmax.f32 %v2432, 0.0
    %v2437 = vld [vmem:[%s25] sm:$0xf]
    %v2438 = vadd.f32 %v2433, 1e-05
    %v2439 = vadd.f32 %v2434, 1e-05
    %v2440 = vadd.f32 %v2435, 1e-05
    %v2441 = vadd.f32 %v2436, 1e-05
    %v2442 = vrsqrt.pop %v2438
    %v2443 = vmul.f32 %v2442, %v2438
    %v2444 = vmul.f32 %v2443, %v2442
    %v2445 = vmul.f32 0.5, %v2444
    %v2446 = vsub.f32 1.5, %v2445
    %v2447 = vmul.f32 %v2442, %v2446
    %vm2448 = vweird.f32 %v2438
    %vm2449 = vweird.f32 %v2442
    %vm2450 = vmor %vm2448, %vm2449
    %v2451 = vsel %vm2450, %v2442, %v2447
    %v2452 = vrsqrt.pop %v2439
    %v2453 = vmul.f32 %v2452, %v2439
    %v2454 = vmul.f32 %v2453, %v2452
    %v2455 = vmul.f32 0.5, %v2454
    %v2456 = vsub.f32 1.5, %v2455
    %v2457 = vmul.f32 %v2452, %v2456
    %vm2458 = vweird.f32 %v2439
    %vm2459 = vweird.f32 %v2452
    %vm2460 = vmor %vm2458, %vm2459
    %v2461 = vsel %vm2460, %v2452, %v2457
    %v2462 = vrsqrt.pop %v2440
    %v2463 = vmul.f32 %v2462, %v2440
    %v2464 = vmul.f32 %v2463, %v2462
    %v2465 = vmul.f32 0.5, %v2464
    %v2466 = vsub.f32 1.5, %v2465
    %v2467 = vmul.f32 %v2462, %v2466
    %vm2468 = vweird.f32 %v2440
    %vm2469 = vweird.f32 %v2462
    %vm2470 = vmor %vm2468, %vm2469
    %v2471 = vsel %vm2470, %v2462, %v2467
    %v2472 = vrsqrt.pop %v2441
    %v2473 = vmul.f32 %v2472, %v2441
    %v2474 = vmul.f32 %v2473, %v2472
    %v2475 = vmul.f32 0.5, %v2474
    %v2476 = vsub.f32 1.5, %v2475
    %v2477 = vmul.f32 %v2472, %v2476
    %vm2478 = vweird.f32 %v2441
    %vm2479 = vweird.f32 %v2472
    %vm2480 = vmor %vm2478, %vm2479
    %v2481 = vsel %vm2480, %v2472, %v2477
    %v2486 = vrot.slane %v2461, 7
    %v2487 = vrot.slane %v2471, 6
    %v2488 = vrot.slane %v2481, 5
    %v2489 = vsel %vm1210, %v2451, %v2486
    %vm2490 = vcmask 1042434
    %v2491 = vsel %vm2490, %v2487, %v2488
    %vm2492 = vcmask 1041408
    %v2493 = vsel %vm2492, %v2489, %v2491
    %v2495 = vmul.f32 %v2437, %v2493
    %v2496 = vld [vmem:[%s27] sm:$0xf]
    %v2498 = vperm.slane %v2495, 0
    %v2499 = vperm.slane %v2495, 1
    %v2500 = vperm.slane %v2495, 2
    %v2501 = vperm.slane %v2495, 3
    %v2506 = vmul.f32 %v2417, %v2498
    %v2507 = vmul.f32 %v2418, %v2499
    %v2508 = vmul.f32 %v2419, %v2500
    %v2509 = vmul.f32 %v2420, %v2501
    %v2514 = vrot.slane %v2507, 7
    %v2515 = vrot.slane %v2508, 6
    %v2516 = vrot.slane %v2509, 5
    %v2517 = vsel %vm1210, %v2506, %v2514
    %v2518 = vsel %vm2490, %v2515, %v2516
    %v2519 = vsel %vm2492, %v2517, %v2518
    %v2521 = vsub.f32 %v2496, %v2519
    %v2522 = vld [vmem:[#allocation8] sm:$0xff]
    %v2523 = vld [vmem:[#allocation8 + $0x8] sm:$0xff]
    %v2524 = vld [vmem:[#allocation8 + $0x10] sm:$0xff]
    %v2525 = vld [vmem:[#allocation8 + $0x18] sm:$0xff]
    %v2526 = vld [vmem:[#allocation8 + $0x20] sm:$0xff]
    %v2527 = vld [vmem:[#allocation8 + $0x28] sm:$0xff]
    %v2528 = vld [vmem:[#allocation8 + $0x30] sm:$0xff]
    %v2529 = vld [vmem:[#allocation8 + $0x38] sm:$0xff]
    %v2530 = vld [vmem:[#allocation8 + $0x40] sm:$0xff]
    %v2531 = vld [vmem:[#allocation8 + $0x48] sm:$0xff]
    %v2532 = vld [vmem:[#allocation8 + $0x50] sm:$0xff]
    %v2533 = vld [vmem:[#allocation8 + $0x58] sm:$0xff]
    %v2534 = vld [vmem:[#allocation8 + $0x60] sm:$0xff]
    %v2535 = vld [vmem:[#allocation8 + $0x68] sm:$0xff]
    %v2536 = vld [vmem:[#allocation8 + $0x70] sm:$0xff]
    %v2537 = vld [vmem:[#allocation8 + $0x78] sm:$0xff]
    %v2538 = vld [vmem:[#allocation8 + $0x80] sm:$0xff]
    %v2539 = vld [vmem:[#allocation8 + $0x88] sm:$0xff]
    %v2540 = vld [vmem:[#allocation8 + $0x90] sm:$0xff]
    %v2541 = vld [vmem:[#allocation8 + $0x98] sm:$0xff]
    %v2542 = vld [vmem:[#allocation8 + $0xa0] sm:$0xff]
    %v2543 = vld [vmem:[#allocation8 + $0xa8] sm:$0xff]
    %v2544 = vld [vmem:[#allocation8 + $0xb0] sm:$0xff]
    %v2545 = vld [vmem:[#allocation8 + $0xb8] sm:$0xff]
    %v2546 = vld [vmem:[#allocation8 + $0xc0] sm:$0xff]
    %v2547 = vld [vmem:[#allocation8 + $0xc8] sm:$0xff]
    %v2548 = vld [vmem:[#allocation8 + $0xd0] sm:$0xff]
    %v2549 = vld [vmem:[#allocation8 + $0xd8] sm:$0xff]
    %v2550 = vld [vmem:[#allocation8 + $0xe0] sm:$0xff]
    %v2551 = vld [vmem:[#allocation8 + $0xe8] sm:$0xff]
    %v2552 = vld [vmem:[#allocation8 + $0xf0] sm:$0xff]
    %v2553 = vld [vmem:[#allocation8 + $0xf8] sm:$0xff]
    %v2554 = vld [vmem:[#allocation8 + $0x100] sm:$0xff]
    %v2555 = vld [vmem:[#allocation8 + $0x108] sm:$0xff]
    %v2556 = vld [vmem:[#allocation8 + $0x110] sm:$0xff]
    %v2557 = vld [vmem:[#allocation8 + $0x118] sm:$0xff]
    %v2558 = vld [vmem:[#allocation8 + $0x120] sm:$0xff]
    %v2559 = vld [vmem:[#allocation8 + $0x128] sm:$0xff]
    %v2560 = vld [vmem:[#allocation8 + $0x130] sm:$0xff]
    %v2561 = vld [vmem:[#allocation8 + $0x138] sm:$0xff]
    %v2562 = vld [vmem:[#allocation8 + $0x140] sm:$0xff]
    %v2563 = vld [vmem:[#allocation8 + $0x148] sm:$0xff]
    %v2564 = vld [vmem:[#allocation8 + $0x150] sm:$0xff]
    %v2565 = vld [vmem:[#allocation8 + $0x158] sm:$0xff]
    %v2566 = vld [vmem:[#allocation8 + $0x160] sm:$0xff]
    %v2567 = vld [vmem:[#allocation8 + $0x168] sm:$0xff]
    %v2568 = vld [vmem:[#allocation8 + $0x170] sm:$0xff]
    %v2569 = vld [vmem:[#allocation8 + $0x178] sm:$0xff]
    %v2570 = vld [vmem:[#allocation8 + $0x180] sm:$0xff]
    %v2571 = vld [vmem:[#allocation8 + $0x188] sm:$0xff]
    %v2572 = vld [vmem:[#allocation8 + $0x190] sm:$0xff]
    %v2573 = vld [vmem:[#allocation8 + $0x198] sm:$0xff]
    %v2574 = vld [vmem:[#allocation8 + $0x1a0] sm:$0xff]
    %v2575 = vld [vmem:[#allocation8 + $0x1a8] sm:$0xff]
    %v2576 = vld [vmem:[#allocation8 + $0x1b0] sm:$0xff]
    %v2577 = vld [vmem:[#allocation8 + $0x1b8] sm:$0xff]
    %v2578 = vld [vmem:[#allocation8 + $0x1c0] sm:$0xff]
    %v2579 = vld [vmem:[#allocation8 + $0x1c8] sm:$0xff]
    %v2580 = vld [vmem:[#allocation8 + $0x1d0] sm:$0xff]
    %v2581 = vld [vmem:[#allocation8 + $0x1d8] sm:$0xff]
    %v2582 = vld [vmem:[#allocation8 + $0x1e0] sm:$0xff]
    %v2583 = vld [vmem:[#allocation8 + $0x1e8] sm:$0xff]
    %v2584 = vld [vmem:[#allocation8 + $0x1f0] sm:$0xff]
    %v2585 = vld [vmem:[#allocation8 + $0x1f8] sm:$0xff]
    %v2586 = vld [vmem:[#allocation8 + $0x200] sm:$0xff]
    %v2587 = vld [vmem:[#allocation8 + $0x208] sm:$0xff]
    %v2588 = vld [vmem:[#allocation8 + $0x210] sm:$0xff]
    %v2589 = vld [vmem:[#allocation8 + $0x218] sm:$0xff]
    %v2590 = vld [vmem:[#allocation8 + $0x220] sm:$0xff]
    %v2591 = vld [vmem:[#allocation8 + $0x228] sm:$0xff]
    %v2592 = vld [vmem:[#allocation8 + $0x230] sm:$0xff]
    %v2593 = vld [vmem:[#allocation8 + $0x238] sm:$0xff]
    %v2594 = vld [vmem:[#allocation8 + $0x240] sm:$0xff]
    %v2595 = vld [vmem:[#allocation8 + $0x248] sm:$0xff]
    %v2596 = vld [vmem:[#allocation8 + $0x250] sm:$0xff]
    %v2597 = vld [vmem:[#allocation8 + $0x258] sm:$0xff]
    %v2598 = vld [vmem:[#allocation8 + $0x260] sm:$0xff]
    %v2599 = vld [vmem:[#allocation8 + $0x268] sm:$0xff]
    %v2600 = vld [vmem:[#allocation8 + $0x270] sm:$0xff]
    %v2601 = vld [vmem:[#allocation8 + $0x278] sm:$0xff]
    %v2602 = vld [vmem:[#allocation8 + $0x280] sm:$0xff]
    %v2603 = vld [vmem:[#allocation8 + $0x288] sm:$0xff]
    %v2604 = vld [vmem:[#allocation8 + $0x290] sm:$0xff]
    %v2605 = vld [vmem:[#allocation8 + $0x298] sm:$0xff]
    %v2606 = vld [vmem:[#allocation8 + $0x2a0] sm:$0xff]
    %v2607 = vld [vmem:[#allocation8 + $0x2a8] sm:$0xff]
    %v2608 = vld [vmem:[#allocation8 + $0x2b0] sm:$0xff]
    %v2609 = vld [vmem:[#allocation8 + $0x2b8] sm:$0xff]
    %v2610 = vld [vmem:[#allocation8 + $0x2c0] sm:$0xff]
    %v2611 = vld [vmem:[#allocation8 + $0x2c8] sm:$0xff]
    %v2612 = vld [vmem:[#allocation8 + $0x2d0] sm:$0xff]
    %v2613 = vld [vmem:[#allocation8 + $0x2d8] sm:$0xff]
    %v2614 = vld [vmem:[#allocation8 + $0x2e0] sm:$0xff]
    %v2615 = vld [vmem:[#allocation8 + $0x2e8] sm:$0xff]
    %v2616 = vld [vmem:[#allocation8 + $0x2f0] sm:$0xff]
    %v2617 = vld [vmem:[#allocation8 + $0x2f8] sm:$0xff]
    %v2618 = vld [vmem:[#allocation8 + $0x300] sm:$0xff]
    %v2619 = vld [vmem:[#allocation8 + $0x308] sm:$0xff]
    %v2620 = vld [vmem:[#allocation8 + $0x310] sm:$0xff]
    %v2621 = vld [vmem:[#allocation8 + $0x318] sm:$0xff]
    %v2622 = vld [vmem:[#allocation8 + $0x320] sm:$0xff]
    %v2623 = vld [vmem:[#allocation8 + $0x328] sm:$0xff]
    %v2624 = vld [vmem:[#allocation8 + $0x330] sm:$0xff]
    %v2625 = vld [vmem:[#allocation8 + $0x338] sm:$0xff]
    %v2626 = vld [vmem:[#allocation8 + $0x340] sm:$0xff]
    %v2627 = vld [vmem:[#allocation8 + $0x348] sm:$0xff]
    %v2628 = vld [vmem:[#allocation8 + $0x350] sm:$0xff]
    %v2629 = vld [vmem:[#allocation8 + $0x358] sm:$0xff]
    %v2630 = vld [vmem:[#allocation8 + $0x360] sm:$0xff]
    %v2631 = vld [vmem:[#allocation8 + $0x368] sm:$0xff]
    %v2632 = vld [vmem:[#allocation8 + $0x370] sm:$0xff]
    %v2633 = vld [vmem:[#allocation8 + $0x378] sm:$0xff]
    %v2634 = vld [vmem:[#allocation8 + $0x380] sm:$0xff]
    %v2635 = vld [vmem:[#allocation8 + $0x388] sm:$0xff]
    %v2636 = vld [vmem:[#allocation8 + $0x390] sm:$0xff]
    %v2637 = vld [vmem:[#allocation8 + $0x398] sm:$0xff]
    %v2638 = vld [vmem:[#allocation8 + $0x3a0] sm:$0xff]
    %v2639 = vld [vmem:[#allocation8 + $0x3a8] sm:$0xff]
    %v2640 = vld [vmem:[#allocation8 + $0x3b0] sm:$0xff]
    %v2641 = vld [vmem:[#allocation8 + $0x3b8] sm:$0xff]
    %v2642 = vld [vmem:[#allocation8 + $0x3c0] sm:$0xff]
    %v2643 = vld [vmem:[#allocation8 + $0x3c8] sm:$0xff]
    %v2644 = vld [vmem:[#allocation8 + $0x3d0] sm:$0xff]
    %v2645 = vld [vmem:[#allocation8 + $0x3d8] sm:$0xff]
    %v2646 = vld [vmem:[#allocation8 + $0x3e0] sm:$0xff]
    %v2647 = vld [vmem:[#allocation8 + $0x3e8] sm:$0xff]
    %v2648 = vld [vmem:[#allocation8 + $0x3f0] sm:$0xff]
    %v2649 = vld [vmem:[#allocation8 + $0x3f8] sm:$0xff]
    %v2650 = vld [vmem:[#allocation8 + $0x400] sm:$0xff]
    %v2651 = vld [vmem:[#allocation8 + $0x408] sm:$0xff]
    %v2652 = vld [vmem:[#allocation8 + $0x410] sm:$0xff]
    %v2653 = vld [vmem:[#allocation8 + $0x418] sm:$0xff]
    %v2654 = vld [vmem:[#allocation8 + $0x420] sm:$0xff]
    %v2655 = vld [vmem:[#allocation8 + $0x428] sm:$0xff]
    %v2656 = vld [vmem:[#allocation8 + $0x430] sm:$0xff]
    %v2657 = vld [vmem:[#allocation8 + $0x438] sm:$0xff]
    %v2658 = vld [vmem:[#allocation8 + $0x440] sm:$0xff]
    %v2659 = vld [vmem:[#allocation8 + $0x448] sm:$0xff]
    %v2660 = vld [vmem:[#allocation8 + $0x450] sm:$0xff]
    %v2661 = vld [vmem:[#allocation8 + $0x458] sm:$0xff]
    %v2662 = vld [vmem:[#allocation8 + $0x460] sm:$0xff]
    %v2663 = vld [vmem:[#allocation8 + $0x468] sm:$0xff]
    %v2664 = vld [vmem:[#allocation8 + $0x470] sm:$0xff]
    %v2665 = vld [vmem:[#allocation8 + $0x478] sm:$0xff]
    %v2666 = vld [vmem:[#allocation8 + $0x480] sm:$0xff]
    %v2667 = vld [vmem:[#allocation8 + $0x488] sm:$0xff]
    %v2668 = vld [vmem:[#allocation8 + $0x490] sm:$0xff]
    %v2669 = vld [vmem:[#allocation8 + $0x498] sm:$0xff]
    %v2670 = vld [vmem:[#allocation8 + $0x4a0] sm:$0xff]
    %v2671 = vld [vmem:[#allocation8 + $0x4a8] sm:$0xff]
    %v2672 = vld [vmem:[#allocation8 + $0x4b0] sm:$0xff]
    %v2673 = vld [vmem:[#allocation8 + $0x4b8] sm:$0xff]
    %v2674 = vld [vmem:[#allocation8 + $0x4c0] sm:$0xff]
    %v2675 = vld [vmem:[#allocation8 + $0x4c8] sm:$0xff]
    %v2676 = vld [vmem:[#allocation8 + $0x4d0] sm:$0xff]
    %v2677 = vld [vmem:[#allocation8 + $0x4d8] sm:$0xff]
    %v2678 = vld [vmem:[#allocation8 + $0x4e0] sm:$0xff]
    %v2679 = vld [vmem:[#allocation8 + $0x4e8] sm:$0xff]
    %v2680 = vld [vmem:[#allocation8 + $0x4f0] sm:$0xff]
    %v2681 = vld [vmem:[#allocation8 + $0x4f8] sm:$0xff]
    %v2682 = vld [vmem:[#allocation8 + $0x500] sm:$0xff]
    %v2683 = vld [vmem:[#allocation8 + $0x508] sm:$0xff]
    %v2684 = vld [vmem:[#allocation8 + $0x510] sm:$0xff]
    %v2685 = vld [vmem:[#allocation8 + $0x518] sm:$0xff]
    %v2686 = vld [vmem:[#allocation8 + $0x520] sm:$0xff]
    %v2687 = vld [vmem:[#allocation8 + $0x528] sm:$0xff]
    %v2688 = vld [vmem:[#allocation8 + $0x530] sm:$0xff]
    %v2689 = vld [vmem:[#allocation8 + $0x538] sm:$0xff]
    %v2690 = vld [vmem:[#allocation8 + $0x540] sm:$0xff]
    %v2691 = vld [vmem:[#allocation8 + $0x548] sm:$0xff]
    %v2692 = vld [vmem:[#allocation8 + $0x550] sm:$0xff]
    %v2693 = vld [vmem:[#allocation8 + $0x558] sm:$0xff]
    %v2694 = vld [vmem:[#allocation8 + $0x560] sm:$0xff]
    %v2695 = vld [vmem:[#allocation8 + $0x568] sm:$0xff]
    %v2696 = vld [vmem:[#allocation8 + $0x570] sm:$0xff]
    %v2697 = vld [vmem:[#allocation8 + $0x578] sm:$0xff]
    %v2698 = vld [vmem:[#allocation8 + $0x580] sm:$0xff]
    %v2699 = vld [vmem:[#allocation8 + $0x588] sm:$0xff]
    %v2700 = vld [vmem:[#allocation8 + $0x590] sm:$0xff]
    %v2701 = vld [vmem:[#allocation8 + $0x598] sm:$0xff]
    %v2702 = vld [vmem:[#allocation8 + $0x5a0] sm:$0xff]
    %v2703 = vld [vmem:[#allocation8 + $0x5a8] sm:$0xff]
    %v2704 = vld [vmem:[#allocation8 + $0x5b0] sm:$0xff]
    %v2705 = vld [vmem:[#allocation8 + $0x5b8] sm:$0xff]
    %v2706 = vld [vmem:[#allocation8 + $0x5c0] sm:$0xff]
    %v2707 = vld [vmem:[#allocation8 + $0x5c8] sm:$0xff]
    %v2708 = vld [vmem:[#allocation8 + $0x5d0] sm:$0xff]
    %v2709 = vld [vmem:[#allocation8 + $0x5d8] sm:$0xff]
    %v2710 = vld [vmem:[#allocation8 + $0x5e0] sm:$0xff]
    %v2711 = vld [vmem:[#allocation8 + $0x5e8] sm:$0xff]
    %v2712 = vld [vmem:[#allocation8 + $0x5f0] sm:$0xff]
    %v2713 = vld [vmem:[#allocation8 + $0x5f8] sm:$0xff]
    %v2714 = vld [vmem:[#allocation8 + $0x600] sm:$0xff]
    %v2715 = vld [vmem:[#allocation8 + $0x608] sm:$0xff]
    %v2716 = vld [vmem:[#allocation8 + $0x610] sm:$0xff]
    %v2717 = vld [vmem:[#allocation8 + $0x618] sm:$0xff]
    %v2718 = vld [vmem:[#allocation8 + $0x620] sm:$0xff]
    %v2719 = vld [vmem:[#allocation8 + $0x628] sm:$0xff]
    %v2720 = vld [vmem:[#allocation8 + $0x630] sm:$0xff]
    %v2721 = vld [vmem:[#allocation8 + $0x638] sm:$0xff]
    %v2722 = vld [vmem:[#allocation8 + $0x640] sm:$0xff]
    %v2723 = vld [vmem:[#allocation8 + $0x648] sm:$0xff]
    %v2724 = vld [vmem:[#allocation8 + $0x650] sm:$0xff]
    %v2725 = vld [vmem:[#allocation8 + $0x658] sm:$0xff]
    %v2726 = vld [vmem:[#allocation8 + $0x660] sm:$0xff]
    %v2727 = vld [vmem:[#allocation8 + $0x668] sm:$0xff]
    %v2728 = vld [vmem:[#allocation8 + $0x670] sm:$0xff]
    %v2729 = vld [vmem:[#allocation8 + $0x678] sm:$0xff]
    %v2730 = vld [vmem:[#allocation8 + $0x680] sm:$0xff]
    %v2731 = vld [vmem:[#allocation8 + $0x688] sm:$0xff]
    %v2732 = vld [vmem:[#allocation8 + $0x690] sm:$0xff]
    %v2733 = vld [vmem:[#allocation8 + $0x698] sm:$0xff]
    %v2734 = vld [vmem:[#allocation8 + $0x6a0] sm:$0xff]
    %v2735 = vld [vmem:[#allocation8 + $0x6a8] sm:$0xff]
    %v2736 = vld [vmem:[#allocation8 + $0x6b0] sm:$0xff]
    %v2737 = vld [vmem:[#allocation8 + $0x6b8] sm:$0xff]
    %v2738 = vld [vmem:[#allocation8 + $0x6c0] sm:$0xff]
    %v2739 = vld [vmem:[#allocation8 + $0x6c8] sm:$0xff]
    %v2740 = vld [vmem:[#allocation8 + $0x6d0] sm:$0xff]
    %v2741 = vld [vmem:[#allocation8 + $0x6d8] sm:$0xff]
    %v2742 = vld [vmem:[#allocation8 + $0x6e0] sm:$0xff]
    %v2743 = vld [vmem:[#allocation8 + $0x6e8] sm:$0xff]
    %v2744 = vld [vmem:[#allocation8 + $0x6f0] sm:$0xff]
    %v2745 = vld [vmem:[#allocation8 + $0x6f8] sm:$0xff]
    %v2746 = vld [vmem:[#allocation8 + $0x700] sm:$0xff]
    %v2747 = vld [vmem:[#allocation8 + $0x708] sm:$0xff]
    %v2748 = vld [vmem:[#allocation8 + $0x710] sm:$0xff]
    %v2749 = vld [vmem:[#allocation8 + $0x718] sm:$0xff]
    %v2750 = vld [vmem:[#allocation8 + $0x720] sm:$0xff]
    %v2751 = vld [vmem:[#allocation8 + $0x728] sm:$0xff]
    %v2752 = vld [vmem:[#allocation8 + $0x730] sm:$0xff]
    %v2753 = vld [vmem:[#allocation8 + $0x738] sm:$0xff]
    %v2754 = vld [vmem:[#allocation8 + $0x740] sm:$0xff]
    %v2755 = vld [vmem:[#allocation8 + $0x748] sm:$0xff]
    %v2756 = vld [vmem:[#allocation8 + $0x750] sm:$0xff]
    %v2757 = vld [vmem:[#allocation8 + $0x758] sm:$0xff]
    %v2758 = vld [vmem:[#allocation8 + $0x760] sm:$0xff]
    %v2759 = vld [vmem:[#allocation8 + $0x768] sm:$0xff]
    %v2760 = vld [vmem:[#allocation8 + $0x770] sm:$0xff]
    %v2761 = vld [vmem:[#allocation8 + $0x778] sm:$0xff]
    %v2762 = vld [vmem:[#allocation8 + $0x780] sm:$0xff]
    %v2763 = vld [vmem:[#allocation8 + $0x788] sm:$0xff]
    %v2764 = vld [vmem:[#allocation8 + $0x790] sm:$0xff]
    %v2765 = vld [vmem:[#allocation8 + $0x798] sm:$0xff]
    %v2766 = vld [vmem:[#allocation8 + $0x7a0] sm:$0xff]
    %v2767 = vld [vmem:[#allocation8 + $0x7a8] sm:$0xff]
    %v2768 = vld [vmem:[#allocation8 + $0x7b0] sm:$0xff]
    %v2769 = vld [vmem:[#allocation8 + $0x7b8] sm:$0xff]
    %v2770 = vld [vmem:[#allocation8 + $0x7c0] sm:$0xff]
    %v2771 = vld [vmem:[#allocation8 + $0x7c8] sm:$0xff]
    %v2772 = vld [vmem:[#allocation8 + $0x7d0] sm:$0xff]
    %v2773 = vld [vmem:[#allocation8 + $0x7d8] sm:$0xff]
    %v2774 = vld [vmem:[#allocation8 + $0x7e0] sm:$0xff]
    %v2775 = vld [vmem:[#allocation8 + $0x7e8] sm:$0xff]
    %v2776 = vld [vmem:[#allocation8 + $0x7f0] sm:$0xff]
    %v2777 = vld [vmem:[#allocation8 + $0x7f8] sm:$0xff]
    %v2778 = vunpack.c.l.bf16 %v2385
    %v2779 = vunpack.c.h.bf16 %v2385
    %v2780 = vunpack.c.l.bf16 %v2386
    %v2781 = vunpack.c.h.bf16 %v2386
    %v2782 = vunpack.c.l.bf16 %v2387
    %v2783 = vunpack.c.h.bf16 %v2387
    %v2784 = vunpack.c.l.bf16 %v2388
    %v2785 = vunpack.c.h.bf16 %v2388
    %v2786 = vunpack.c.l.bf16 %v2389
    %v2787 = vunpack.c.h.bf16 %v2389
    %v2788 = vunpack.c.l.bf16 %v2390
    %v2789 = vunpack.c.h.bf16 %v2390
    %v2790 = vunpack.c.l.bf16 %v2391
    %v2791 = vunpack.c.h.bf16 %v2391
    %v2792 = vunpack.c.l.bf16 %v2392
    %v2793 = vunpack.c.h.bf16 %v2392
    %v2794 = vunpack.c.l.bf16 %v2393
    %v2795 = vunpack.c.h.bf16 %v2393
    %v2796 = vunpack.c.l.bf16 %v2394
    %v2797 = vunpack.c.h.bf16 %v2394
    %v2798 = vunpack.c.l.bf16 %v2395
    %v2799 = vunpack.c.h.bf16 %v2395
    %v2800 = vunpack.c.l.bf16 %v2396
    %v2801 = vunpack.c.h.bf16 %v2396
    %v2802 = vunpack.c.l.bf16 %v2397
    %v2803 = vunpack.c.h.bf16 %v2397
    %v2804 = vunpack.c.l.bf16 %v2398
    %v2805 = vunpack.c.h.bf16 %v2398
    %v2806 = vunpack.c.l.bf16 %v2399
    %v2807 = vunpack.c.h.bf16 %v2399
    %v2808 = vunpack.c.l.bf16 %v2400
    %v2809 = vunpack.c.h.bf16 %v2400
    %v2810 = vunpack.c.l.bf16 %v2401
    %v2811 = vunpack.c.h.bf16 %v2401
    %v2812 = vunpack.c.l.bf16 %v2402
    %v2813 = vunpack.c.h.bf16 %v2402
    %v2814 = vunpack.c.l.bf16 %v2403
    %v2815 = vunpack.c.h.bf16 %v2403
    %v2816 = vunpack.c.l.bf16 %v2404
    %v2817 = vunpack.c.h.bf16 %v2404
    %v2818 = vunpack.c.l.bf16 %v2405
    %v2819 = vunpack.c.h.bf16 %v2405
    %v2820 = vunpack.c.l.bf16 %v2406
    %v2821 = vunpack.c.h.bf16 %v2406
    %v2822 = vunpack.c.l.bf16 %v2407
    %v2823 = vunpack.c.h.bf16 %v2407
    %v2824 = vunpack.c.l.bf16 %v2408
    %v2825 = vunpack.c.h.bf16 %v2408
    %v2826 = vunpack.c.l.bf16 %v2409
    %v2827 = vunpack.c.h.bf16 %v2409
    %v2828 = vunpack.c.l.bf16 %v2410
    %v2829 = vunpack.c.h.bf16 %v2410
    %v2830 = vunpack.c.l.bf16 %v2411
    %v2831 = vunpack.c.h.bf16 %v2411
    %v2832 = vunpack.c.l.bf16 %v2412
    %v2833 = vunpack.c.h.bf16 %v2412
    %v2834 = vunpack.c.l.bf16 %v2413
    %v2835 = vunpack.c.h.bf16 %v2413
    %v2836 = vunpack.c.l.bf16 %v2414
    %v2837 = vunpack.c.h.bf16 %v2414
    %v2838 = vunpack.c.l.bf16 %v2415
    %v2839 = vunpack.c.h.bf16 %v2415
    %v2840 = vunpack.c.l.bf16 %v2416
    %v2841 = vunpack.c.h.bf16 %v2416
    %v2842 = vmul.f32 %v2778, %v2498
    %v2843 = vmul.f32 %v2779, %v2499
    %v2844 = vmul.f32 %v2780, %v2500
    %v2845 = vmul.f32 %v2781, %v2501
    %v2846 = vmul.f32 %v2782, %v2498
    %v2847 = vmul.f32 %v2783, %v2499
    %v2848 = vmul.f32 %v2784, %v2500
    %v2849 = vmul.f32 %v2785, %v2501
    %v2850 = vmul.f32 %v2786, %v2498
    %v2851 = vmul.f32 %v2787, %v2499
    %v2852 = vmul.f32 %v2788, %v2500
    %v2853 = vmul.f32 %v2789, %v2501
    %v2854 = vmul.f32 %v2790, %v2498
    %v2855 = vmul.f32 %v2791, %v2499
    %v2856 = vmul.f32 %v2792, %v2500
    %v2857 = vmul.f32 %v2793, %v2501
    %v2858 = vmul.f32 %v2794, %v2498
    %v2859 = vmul.f32 %v2795, %v2499
    %v2860 = vmul.f32 %v2796, %v2500
    %v2861 = vmul.f32 %v2797, %v2501
    %v2862 = vmul.f32 %v2798, %v2498
    %v2863 = vmul.f32 %v2799, %v2499
    %v2864 = vmul.f32 %v2800, %v2500
    %v2865 = vmul.f32 %v2801, %v2501
    %v2866 = vmul.f32 %v2802, %v2498
    %v2867 = vmul.f32 %v2803, %v2499
    %v2868 = vmul.f32 %v2804, %v2500
    %v2869 = vmul.f32 %v2805, %v2501
    %v2870 = vmul.f32 %v2806, %v2498
    %v2871 = vmul.f32 %v2807, %v2499
    %v2872 = vmul.f32 %v2808, %v2500
    %v2873 = vmul.f32 %v2809, %v2501
    %v2874 = vmul.f32 %v2810, %v2498
    %v2875 = vmul.f32 %v2811, %v2499
    %v2876 = vmul.f32 %v2812, %v2500
    %v2877 = vmul.f32 %v2813, %v2501
    %v2878 = vmul.f32 %v2814, %v2498
    %v2879 = vmul.f32 %v2815, %v2499
    %v2880 = vmul.f32 %v2816, %v2500
    %v2881 = vmul.f32 %v2817, %v2501
    %v2882 = vmul.f32 %v2818, %v2498
    %v2883 = vmul.f32 %v2819, %v2499
    %v2884 = vmul.f32 %v2820, %v2500
    %v2885 = vmul.f32 %v2821, %v2501
    %v2886 = vmul.f32 %v2822, %v2498
    %v2887 = vmul.f32 %v2823, %v2499
    %v2888 = vmul.f32 %v2824, %v2500
    %v2889 = vmul.f32 %v2825, %v2501
    %v2890 = vmul.f32 %v2826, %v2498
    %v2891 = vmul.f32 %v2827, %v2499
    %v2892 = vmul.f32 %v2828, %v2500
    %v2893 = vmul.f32 %v2829, %v2501
    %v2894 = vmul.f32 %v2830, %v2498
    %v2895 = vmul.f32 %v2831, %v2499
    %v2896 = vmul.f32 %v2832, %v2500
    %v2897 = vmul.f32 %v2833, %v2501
    %v2898 = vmul.f32 %v2834, %v2498
    %v2899 = vmul.f32 %v2835, %v2499
    %v2900 = vmul.f32 %v2836, %v2500
    %v2901 = vmul.f32 %v2837, %v2501
    %v2902 = vmul.f32 %v2838, %v2498
    %v2903 = vmul.f32 %v2839, %v2499
    %v2904 = vmul.f32 %v2840, %v2500
    %v2905 = vmul.f32 %v2841, %v2501
    %v2907 = vperm.slane %v2521, 0
    %v2908 = vperm.slane %v2521, 1
    %v2909 = vperm.slane %v2521, 2
    %v2910 = vperm.slane %v2521, 3
    %v2915 = vadd.f32 %v2842, %v2907
    %v2916 = vadd.f32 %v2843, %v2908
    %v2917 = vadd.f32 %v2844, %v2909
    %v2918 = vadd.f32 %v2845, %v2910
    %v2919 = vadd.f32 %v2846, %v2907
    %v2920 = vadd.f32 %v2847, %v2908
    %v2921 = vadd.f32 %v2848, %v2909
    %v2922 = vadd.f32 %v2849, %v2910
    %v2923 = vadd.f32 %v2850, %v2907
    %v2924 = vadd.f32 %v2851, %v2908
    %v2925 = vadd.f32 %v2852, %v2909
    %v2926 = vadd.f32 %v2853, %v2910
    %v2927 = vadd.f32 %v2854, %v2907
    %v2928 = vadd.f32 %v2855, %v2908
    %v2929 = vadd.f32 %v2856, %v2909
    %v2930 = vadd.f32 %v2857, %v2910
    %v2931 = vadd.f32 %v2858, %v2907
    %v2932 = vadd.f32 %v2859, %v2908
    %v2933 = vadd.f32 %v2860, %v2909
    %v2934 = vadd.f32 %v2861, %v2910
    %v2935 = vadd.f32 %v2862, %v2907
    %v2936 = vadd.f32 %v2863, %v2908
    %v2937 = vadd.f32 %v2864, %v2909
    %v2938 = vadd.f32 %v2865, %v2910
    %v2939 = vadd.f32 %v2866, %v2907
    %v2940 = vadd.f32 %v2867, %v2908
    %v2941 = vadd.f32 %v2868, %v2909
    %v2942 = vadd.f32 %v2869, %v2910
    %v2943 = vadd.f32 %v2870, %v2907
    %v2944 = vadd.f32 %v2871, %v2908
    %v2945 = vadd.f32 %v2872, %v2909
    %v2946 = vadd.f32 %v2873, %v2910
    %v2947 = vadd.f32 %v2874, %v2907
    %v2948 = vadd.f32 %v2875, %v2908
    %v2949 = vadd.f32 %v2876, %v2909
    %v2950 = vadd.f32 %v2877, %v2910
    %v2951 = vadd.f32 %v2878, %v2907
    %v2952 = vadd.f32 %v2879, %v2908
    %v2953 = vadd.f32 %v2880, %v2909
    %v2954 = vadd.f32 %v2881, %v2910
    %v2955 = vadd.f32 %v2882, %v2907
    %v2956 = vadd.f32 %v2883, %v2908
    %v2957 = vadd.f32 %v2884, %v2909
    %v2958 = vadd.f32 %v2885, %v2910
    %v2959 = vadd.f32 %v2886, %v2907
    %v2960 = vadd.f32 %v2887, %v2908
    %v2961 = vadd.f32 %v2888, %v2909
    %v2962 = vadd.f32 %v2889, %v2910
    %v2963 = vadd.f32 %v2890, %v2907
    %v2964 = vadd.f32 %v2891, %v2908
    %v2965 = vadd.f32 %v2892, %v2909
    %v2966 = vadd.f32 %v2893, %v2910
    %v2967 = vadd.f32 %v2894, %v2907
    %v2968 = vadd.f32 %v2895, %v2908
    %v2969 = vadd.f32 %v2896, %v2909
    %v2970 = vadd.f32 %v2897, %v2910
    %v2971 = vadd.f32 %v2898, %v2907
    %v2972 = vadd.f32 %v2899, %v2908
    %v2973 = vadd.f32 %v2900, %v2909
    %v2974 = vadd.f32 %v2901, %v2910
    %v2975 = vadd.f32 %v2902, %v2907
    %v2976 = vadd.f32 %v2903, %v2908
    %v2977 = vadd.f32 %v2904, %v2909
    %v2978 = vadd.f32 %v2905, %v2910
    %v2979 = vmax.f32 %v2915, 0.0
    %v2980 = vmax.f32 %v2916, 0.0
    %v2981 = vmax.f32 %v2917, 0.0
    %v2982 = vmax.f32 %v2918, 0.0
    %v2983 = vmax.f32 %v2919, 0.0
    %v2984 = vmax.f32 %v2920, 0.0
    %v2985 = vmax.f32 %v2921, 0.0
    %v2986 = vmax.f32 %v2922, 0.0
    %v2987 = vmax.f32 %v2923, 0.0
    %v2988 = vmax.f32 %v2924, 0.0
    %v2989 = vmax.f32 %v2925, 0.0
    %v2990 = vmax.f32 %v2926, 0.0
    %v2991 = vmax.f32 %v2927, 0.0
    %v2992 = vmax.f32 %v2928, 0.0
    %v2993 = vmax.f32 %v2929, 0.0
    %v2994 = vmax.f32 %v2930, 0.0
    %v2995 = vmax.f32 %v2931, 0.0
    %v2996 = vmax.f32 %v2932, 0.0
    %v2997 = vmax.f32 %v2933, 0.0
    %v2998 = vmax.f32 %v2934, 0.0
    %v2999 = vmax.f32 %v2935, 0.0
    %v3000 = vmax.f32 %v2936, 0.0
    %v3001 = vmax.f32 %v2937, 0.0
    %v3002 = vmax.f32 %v2938, 0.0
    %v3003 = vmax.f32 %v2939, 0.0
    %v3004 = vmax.f32 %v2940, 0.0
    %v3005 = vmax.f32 %v2941, 0.0
    %v3006 = vmax.f32 %v2942, 0.0
    %v3007 = vmax.f32 %v2943, 0.0
    %v3008 = vmax.f32 %v2944, 0.0
    %v3009 = vmax.f32 %v2945, 0.0
    %v3010 = vmax.f32 %v2946, 0.0
    %v3011 = vmax.f32 %v2947, 0.0
    %v3012 = vmax.f32 %v2948, 0.0
    %v3013 = vmax.f32 %v2949, 0.0
    %v3014 = vmax.f32 %v2950, 0.0
    %v3015 = vmax.f32 %v2951, 0.0
    %v3016 = vmax.f32 %v2952, 0.0
    %v3017 = vmax.f32 %v2953, 0.0
    %v3018 = vmax.f32 %v2954, 0.0
    %v3019 = vmax.f32 %v2955, 0.0
    %v3020 = vmax.f32 %v2956, 0.0
    %v3021 = vmax.f32 %v2957, 0.0
    %v3022 = vmax.f32 %v2958, 0.0
    %v3023 = vmax.f32 %v2959, 0.0
    %v3024 = vmax.f32 %v2960, 0.0
    %v3025 = vmax.f32 %v2961, 0.0
    %v3026 = vmax.f32 %v2962, 0.0
    %v3027 = vmax.f32 %v2963, 0.0
    %v3028 = vmax.f32 %v2964, 0.0
    %v3029 = vmax.f32 %v2965, 0.0
    %v3030 = vmax.f32 %v2966, 0.0
    %v3031 = vmax.f32 %v2967, 0.0
    %v3032 = vmax.f32 %v2968, 0.0
    %v3033 = vmax.f32 %v2969, 0.0
    %v3034 = vmax.f32 %v2970, 0.0
    %v3035 = vmax.f32 %v2971, 0.0
    %v3036 = vmax.f32 %v2972, 0.0
    %v3037 = vmax.f32 %v2973, 0.0
    %v3038 = vmax.f32 %v2974, 0.0
    %v3039 = vmax.f32 %v2975, 0.0
    %v3040 = vmax.f32 %v2976, 0.0
    %v3041 = vmax.f32 %v2977, 0.0
    %v3042 = vmax.f32 %v2978, 0.0
    %v3043 = vpack.c.bf16 %v2983, %v2979
    %v3044 = vpack.c.bf16 %v2984, %v2980
    %v3045 = vpack.c.bf16 %v2985, %v2981
    %v3046 = vpack.c.bf16 %v2986, %v2982
    %v3047 = vpack.c.bf16 %v2991, %v2987
    %v3048 = vpack.c.bf16 %v2992, %v2988
    %v3049 = vpack.c.bf16 %v2993, %v2989
    %v3050 = vpack.c.bf16 %v2994, %v2990
    %v3051 = vpack.c.bf16 %v2999, %v2995
    %v3052 = vpack.c.bf16 %v3000, %v2996
    %v3053 = vpack.c.bf16 %v3001, %v2997
    %v3054 = vpack.c.bf16 %v3002, %v2998
    %v3055 = vpack.c.bf16 %v3007, %v3003
    %v3056 = vpack.c.bf16 %v3008, %v3004
    %v3057 = vpack.c.bf16 %v3009, %v3005
    %v3058 = vpack.c.bf16 %v3010, %v3006
    %v3059 = vpack.c.bf16 %v3015, %v3011
    %v3060 = vpack.c.bf16 %v3016, %v3012
    %v3061 = vpack.c.bf16 %v3017, %v3013
    %v3062 = vpack.c.bf16 %v3018, %v3014
    %v3063 = vpack.c.bf16 %v3023, %v3019
    %v3064 = vpack.c.bf16 %v3024, %v3020
    %v3065 = vpack.c.bf16 %v3025, %v3021
    %v3066 = vpack.c.bf16 %v3026, %v3022
    %v3067 = vpack.c.bf16 %v3031, %v3027
    %v3068 = vpack.c.bf16 %v3032, %v3028
    %v3069 = vpack.c.bf16 %v3033, %v3029
    %v3070 = vpack.c.bf16 %v3034, %v3030
    %v3071 = vpack.c.bf16 %v3039, %v3035
    %v3072 = vpack.c.bf16 %v3040, %v3036
    %v3073 = vpack.c.bf16 %v3041, %v3037
    %v3074 = vpack.c.bf16 %v3042, %v3038
    %v3331 = vunpack.c.l.b16 %v2522
    %v3332 = vunpack.c.h.b16 %v2522
    %v3333 = vunpack.c.l.b16 %v2523
    %v3334 = vunpack.c.h.b16 %v2523
    %v3335 = vunpack.c.l.b16 %v2524
    %v3336 = vunpack.c.h.b16 %v2524
    %v3337 = vunpack.c.l.b16 %v2525
    %v3338 = vunpack.c.h.b16 %v2525
    %v3339 = vunpack.c.l.b16 %v2526
    %v3340 = vunpack.c.h.b16 %v2526
    %v3341 = vunpack.c.l.b16 %v2527
    %v3342 = vunpack.c.h.b16 %v2527
    %v3343 = vunpack.c.l.b16 %v2528
    %v3344 = vunpack.c.h.b16 %v2528
    %v3345 = vunpack.c.l.b16 %v2529
    %v3346 = vunpack.c.h.b16 %v2529
    %v3347 = vunpack.c.l.b16 %v2530
    %v3348 = vunpack.c.h.b16 %v2530
    %v3349 = vunpack.c.l.b16 %v2531
    %v3350 = vunpack.c.h.b16 %v2531
    %v3351 = vunpack.c.l.b16 %v2532
    %v3352 = vunpack.c.h.b16 %v2532
    %v3353 = vunpack.c.l.b16 %v2533
    %v3354 = vunpack.c.h.b16 %v2533
    %v3355 = vunpack.c.l.b16 %v2534
    %v3356 = vunpack.c.h.b16 %v2534
    %v3357 = vunpack.c.l.b16 %v2535
    %v3358 = vunpack.c.h.b16 %v2535
    %v3359 = vunpack.c.l.b16 %v2536
    %v3360 = vunpack.c.h.b16 %v2536
    %v3361 = vunpack.c.l.b16 %v2537
    %v3362 = vunpack.c.h.b16 %v2537
    %v3363 = vunpack.c.l.b16 %v2538
    %v3364 = vunpack.c.h.b16 %v2538
    %v3365 = vunpack.c.l.b16 %v2539
    %v3366 = vunpack.c.h.b16 %v2539
    %v3367 = vunpack.c.l.b16 %v2540
    %v3368 = vunpack.c.h.b16 %v2540
    %v3369 = vunpack.c.l.b16 %v2541
    %v3370 = vunpack.c.h.b16 %v2541
    %v3371 = vunpack.c.l.b16 %v2542
    %v3372 = vunpack.c.h.b16 %v2542
    %v3373 = vunpack.c.l.b16 %v2543
    %v3374 = vunpack.c.h.b16 %v2543
    %v3375 = vunpack.c.l.b16 %v2544
    %v3376 = vunpack.c.h.b16 %v2544
    %v3377 = vunpack.c.l.b16 %v2545
    %v3378 = vunpack.c.h.b16 %v2545
    %v3379 = vunpack.c.l.b16 %v2546
    %v3380 = vunpack.c.h.b16 %v2546
    %v3381 = vunpack.c.l.b16 %v2547
    %v3382 = vunpack.c.h.b16 %v2547
    %v3383 = vunpack.c.l.b16 %v2548
    %v3384 = vunpack.c.h.b16 %v2548
    %v3385 = vunpack.c.l.b16 %v2549
    %v3386 = vunpack.c.h.b16 %v2549
    %v3387 = vunpack.c.l.b16 %v2550
    %v3388 = vunpack.c.h.b16 %v2550
    %v3389 = vunpack.c.l.b16 %v2551
    %v3390 = vunpack.c.h.b16 %v2551
    %v3391 = vunpack.c.l.b16 %v2552
    %v3392 = vunpack.c.h.b16 %v2552
    %v3393 = vunpack.c.l.b16 %v2553
    %v3394 = vunpack.c.h.b16 %v2553
    %v3395 = vunpack.c.l.b16 %v2554
    %v3396 = vunpack.c.h.b16 %v2554
    %v3397 = vunpack.c.l.b16 %v2555
    %v3398 = vunpack.c.h.b16 %v2555
    %v3399 = vunpack.c.l.b16 %v2556
    %v3400 = vunpack.c.h.b16 %v2556
    %v3401 = vunpack.c.l.b16 %v2557
    %v3402 = vunpack.c.h.b16 %v2557
    %v3403 = vunpack.c.l.b16 %v2558
    %v3404 = vunpack.c.h.b16 %v2558
    %v3405 = vunpack.c.l.b16 %v2559
    %v3406 = vunpack.c.h.b16 %v2559
    %v3407 = vunpack.c.l.b16 %v2560
    %v3408 = vunpack.c.h.b16 %v2560
    %v3409 = vunpack.c.l.b16 %v2561
    %v3410 = vunpack.c.h.b16 %v2561
    %v3411 = vunpack.c.l.b16 %v2562
    %v3412 = vunpack.c.h.b16 %v2562
    %v3413 = vunpack.c.l.b16 %v2563
    %v3414 = vunpack.c.h.b16 %v2563
    %v3415 = vunpack.c.l.b16 %v2564
    %v3416 = vunpack.c.h.b16 %v2564
    %v3417 = vunpack.c.l.b16 %v2565
    %v3418 = vunpack.c.h.b16 %v2565
    %v3419 = vunpack.c.l.b16 %v2566
    %v3420 = vunpack.c.h.b16 %v2566
    %v3421 = vunpack.c.l.b16 %v2567
    %v3422 = vunpack.c.h.b16 %v2567
    %v3423 = vunpack.c.l.b16 %v2568
    %v3424 = vunpack.c.h.b16 %v2568
    %v3425 = vunpack.c.l.b16 %v2569
    %v3426 = vunpack.c.h.b16 %v2569
    %v3427 = vunpack.c.l.b16 %v2570
    %v3428 = vunpack.c.h.b16 %v2570
    %v3429 = vunpack.c.l.b16 %v2571
    %v3430 = vunpack.c.h.b16 %v2571
    %v3431 = vunpack.c.l.b16 %v2572
    %v3432 = vunpack.c.h.b16 %v2572
    %v3433 = vunpack.c.l.b16 %v2573
    %v3434 = vunpack.c.h.b16 %v2573
    %v3435 = vunpack.c.l.b16 %v2574
    %v3436 = vunpack.c.h.b16 %v2574
    %v3437 = vunpack.c.l.b16 %v2575
    %v3438 = vunpack.c.h.b16 %v2575
    %v3439 = vunpack.c.l.b16 %v2576
    %v3440 = vunpack.c.h.b16 %v2576
    %v3441 = vunpack.c.l.b16 %v2577
    %v3442 = vunpack.c.h.b16 %v2577
    %v3443 = vunpack.c.l.b16 %v2578
    %v3444 = vunpack.c.h.b16 %v2578
    %v3445 = vunpack.c.l.b16 %v2579
    %v3446 = vunpack.c.h.b16 %v2579
    %v3447 = vunpack.c.l.b16 %v2580
    %v3448 = vunpack.c.h.b16 %v2580
    %v3449 = vunpack.c.l.b16 %v2581
    %v3450 = vunpack.c.h.b16 %v2581
    %v3451 = vunpack.c.l.b16 %v2582
    %v3452 = vunpack.c.h.b16 %v2582
    %v3453 = vunpack.c.l.b16 %v2583
    %v3454 = vunpack.c.h.b16 %v2583
    %v3455 = vunpack.c.l.b16 %v2584
    %v3456 = vunpack.c.h.b16 %v2584
    %v3457 = vunpack.c.l.b16 %v2585
    %v3458 = vunpack.c.h.b16 %v2585
    %v3459 = vunpack.c.l.b16 %v2586
    %v3460 = vunpack.c.h.b16 %v2586
    %v3461 = vunpack.c.l.b16 %v2587
    %v3462 = vunpack.c.h.b16 %v2587
    %v3463 = vunpack.c.l.b16 %v2588
    %v3464 = vunpack.c.h.b16 %v2588
    %v3465 = vunpack.c.l.b16 %v2589
    %v3466 = vunpack.c.h.b16 %v2589
    %v3467 = vunpack.c.l.b16 %v2590
    %v3468 = vunpack.c.h.b16 %v2590
    %v3469 = vunpack.c.l.b16 %v2591
    %v3470 = vunpack.c.h.b16 %v2591
    %v3471 = vunpack.c.l.b16 %v2592
    %v3472 = vunpack.c.h.b16 %v2592
    %v3473 = vunpack.c.l.b16 %v2593
    %v3474 = vunpack.c.h.b16 %v2593
    %v3475 = vunpack.c.l.b16 %v2594
    %v3476 = vunpack.c.h.b16 %v2594
    %v3477 = vunpack.c.l.b16 %v2595
    %v3478 = vunpack.c.h.b16 %v2595
    %v3479 = vunpack.c.l.b16 %v2596
    %v3480 = vunpack.c.h.b16 %v2596
    %v3481 = vunpack.c.l.b16 %v2597
    %v3482 = vunpack.c.h.b16 %v2597
    %v3483 = vunpack.c.l.b16 %v2598
    %v3484 = vunpack.c.h.b16 %v2598
    %v3485 = vunpack.c.l.b16 %v2599
    %v3486 = vunpack.c.h.b16 %v2599
    %v3487 = vunpack.c.l.b16 %v2600
    %v3488 = vunpack.c.h.b16 %v2600
    %v3489 = vunpack.c.l.b16 %v2601
    %v3490 = vunpack.c.h.b16 %v2601
    %v3491 = vunpack.c.l.b16 %v2602
    %v3492 = vunpack.c.h.b16 %v2602
    %v3493 = vunpack.c.l.b16 %v2603
    %v3494 = vunpack.c.h.b16 %v2603
    %v3495 = vunpack.c.l.b16 %v2604
    %v3496 = vunpack.c.h.b16 %v2604
    %v3497 = vunpack.c.l.b16 %v2605
    %v3498 = vunpack.c.h.b16 %v2605
    %v3499 = vunpack.c.l.b16 %v2606
    %v3500 = vunpack.c.h.b16 %v2606
    %v3501 = vunpack.c.l.b16 %v2607
    %v3502 = vunpack.c.h.b16 %v2607
    %v3503 = vunpack.c.l.b16 %v2608
    %v3504 = vunpack.c.h.b16 %v2608
    %v3505 = vunpack.c.l.b16 %v2609
    %v3506 = vunpack.c.h.b16 %v2609
    %v3507 = vunpack.c.l.b16 %v2610
    %v3508 = vunpack.c.h.b16 %v2610
    %v3509 = vunpack.c.l.b16 %v2611
    %v3510 = vunpack.c.h.b16 %v2611
    %v3511 = vunpack.c.l.b16 %v2612
    %v3512 = vunpack.c.h.b16 %v2612
    %v3513 = vunpack.c.l.b16 %v2613
    %v3514 = vunpack.c.h.b16 %v2613
    %v3515 = vunpack.c.l.b16 %v2614
    %v3516 = vunpack.c.h.b16 %v2614
    %v3517 = vunpack.c.l.b16 %v2615
    %v3518 = vunpack.c.h.b16 %v2615
    %v3519 = vunpack.c.l.b16 %v2616
    %v3520 = vunpack.c.h.b16 %v2616
    %v3521 = vunpack.c.l.b16 %v2617
    %v3522 = vunpack.c.h.b16 %v2617
    %v3523 = vunpack.c.l.b16 %v2618
    %v3524 = vunpack.c.h.b16 %v2618
    %v3525 = vunpack.c.l.b16 %v2619
    %v3526 = vunpack.c.h.b16 %v2619
    %v3527 = vunpack.c.l.b16 %v2620
    %v3528 = vunpack.c.h.b16 %v2620
    %v3529 = vunpack.c.l.b16 %v2621
    %v3530 = vunpack.c.h.b16 %v2621
    %v3531 = vunpack.c.l.b16 %v2622
    %v3532 = vunpack.c.h.b16 %v2622
    %v3533 = vunpack.c.l.b16 %v2623
    %v3534 = vunpack.c.h.b16 %v2623
    %v3535 = vunpack.c.l.b16 %v2624
    %v3536 = vunpack.c.h.b16 %v2624
    %v3537 = vunpack.c.l.b16 %v2625
    %v3538 = vunpack.c.h.b16 %v2625
    %v3539 = vunpack.c.l.b16 %v2626
    %v3540 = vunpack.c.h.b16 %v2626
    %v3541 = vunpack.c.l.b16 %v2627
    %v3542 = vunpack.c.h.b16 %v2627
    %v3543 = vunpack.c.l.b16 %v2628
    %v3544 = vunpack.c.h.b16 %v2628
    %v3545 = vunpack.c.l.b16 %v2629
    %v3546 = vunpack.c.h.b16 %v2629
    %v3547 = vunpack.c.l.b16 %v2630
    %v3548 = vunpack.c.h.b16 %v2630
    %v3549 = vunpack.c.l.b16 %v2631
    %v3550 = vunpack.c.h.b16 %v2631
    %v3551 = vunpack.c.l.b16 %v2632
    %v3552 = vunpack.c.h.b16 %v2632
    %v3553 = vunpack.c.l.b16 %v2633
    %v3554 = vunpack.c.h.b16 %v2633
    %v3555 = vunpack.c.l.b16 %v2634
    %v3556 = vunpack.c.h.b16 %v2634
    %v3557 = vunpack.c.l.b16 %v2635
    %v3558 = vunpack.c.h.b16 %v2635
    %v3559 = vunpack.c.l.b16 %v2636
    %v3560 = vunpack.c.h.b16 %v2636
    %v3561 = vunpack.c.l.b16 %v2637
    %v3562 = vunpack.c.h.b16 %v2637
    %v3563 = vunpack.c.l.b16 %v2638
    %v3564 = vunpack.c.h.b16 %v2638
    %v3565 = vunpack.c.l.b16 %v2639
    %v3566 = vunpack.c.h.b16 %v2639
    %v3567 = vunpack.c.l.b16 %v2640
    %v3568 = vunpack.c.h.b16 %v2640
    %v3569 = vunpack.c.l.b16 %v2641
    %v3570 = vunpack.c.h.b16 %v2641
    %v3571 = vunpack.c.l.b16 %v2642
    %v3572 = vunpack.c.h.b16 %v2642
    %v3573 = vunpack.c.l.b16 %v2643
    %v3574 = vunpack.c.h.b16 %v2643
    %v3575 = vunpack.c.l.b16 %v2644
    %v3576 = vunpack.c.h.b16 %v2644
    %v3577 = vunpack.c.l.b16 %v2645
    %v3578 = vunpack.c.h.b16 %v2645
    %v3579 = vunpack.c.l.b16 %v2646
    %v3580 = vunpack.c.h.b16 %v2646
    %v3581 = vunpack.c.l.b16 %v2647
    %v3582 = vunpack.c.h.b16 %v2647
    %v3583 = vunpack.c.l.b16 %v2648
    %v3584 = vunpack.c.h.b16 %v2648
    %v3585 = vunpack.c.l.b16 %v2649
    %v3586 = vunpack.c.h.b16 %v2649
    %v3587 = vunpack.c.l.b16 %v2650
    %v3588 = vunpack.c.h.b16 %v2650
    %v3589 = vunpack.c.l.b16 %v2651
    %v3590 = vunpack.c.h.b16 %v2651
    %v3591 = vunpack.c.l.b16 %v2652
    %v3592 = vunpack.c.h.b16 %v2652
    %v3593 = vunpack.c.l.b16 %v2653
    %v3594 = vunpack.c.h.b16 %v2653
    %v3595 = vunpack.c.l.b16 %v2654
    %v3596 = vunpack.c.h.b16 %v2654
    %v3597 = vunpack.c.l.b16 %v2655
    %v3598 = vunpack.c.h.b16 %v2655
    %v3599 = vunpack.c.l.b16 %v2656
    %v3600 = vunpack.c.h.b16 %v2656
    %v3601 = vunpack.c.l.b16 %v2657
    %v3602 = vunpack.c.h.b16 %v2657
    %v3603 = vunpack.c.l.b16 %v2658
    %v3604 = vunpack.c.h.b16 %v2658
    %v3605 = vunpack.c.l.b16 %v2659
    %v3606 = vunpack.c.h.b16 %v2659
    %v3607 = vunpack.c.l.b16 %v2660
    %v3608 = vunpack.c.h.b16 %v2660
    %v3609 = vunpack.c.l.b16 %v2661
    %v3610 = vunpack.c.h.b16 %v2661
    %v3611 = vunpack.c.l.b16 %v2662
    %v3612 = vunpack.c.h.b16 %v2662
    %v3613 = vunpack.c.l.b16 %v2663
    %v3614 = vunpack.c.h.b16 %v2663
    %v3615 = vunpack.c.l.b16 %v2664
    %v3616 = vunpack.c.h.b16 %v2664
    %v3617 = vunpack.c.l.b16 %v2665
    %v3618 = vunpack.c.h.b16 %v2665
    %v3619 = vunpack.c.l.b16 %v2666
    %v3620 = vunpack.c.h.b16 %v2666
    %v3621 = vunpack.c.l.b16 %v2667
    %v3622 = vunpack.c.h.b16 %v2667
    %v3623 = vunpack.c.l.b16 %v2668
    %v3624 = vunpack.c.h.b16 %v2668
    %v3625 = vunpack.c.l.b16 %v2669
    %v3626 = vunpack.c.h.b16 %v2669
    %v3627 = vunpack.c.l.b16 %v2670
    %v3628 = vunpack.c.h.b16 %v2670
    %v3629 = vunpack.c.l.b16 %v2671
    %v3630 = vunpack.c.h.b16 %v2671
    %v3631 = vunpack.c.l.b16 %v2672
    %v3632 = vunpack.c.h.b16 %v2672
    %v3633 = vunpack.c.l.b16 %v2673
    %v3634 = vunpack.c.h.b16 %v2673
    %v3635 = vunpack.c.l.b16 %v2674
    %v3636 = vunpack.c.h.b16 %v2674
    %v3637 = vunpack.c.l.b16 %v2675
    %v3638 = vunpack.c.h.b16 %v2675
    %v3639 = vunpack.c.l.b16 %v2676
    %v3640 = vunpack.c.h.b16 %v2676
    %v3641 = vunpack.c.l.b16 %v2677
    %v3642 = vunpack.c.h.b16 %v2677
    %v3643 = vunpack.c.l.b16 %v2678
    %v3644 = vunpack.c.h.b16 %v2678
    %v3645 = vunpack.c.l.b16 %v2679
    %v3646 = vunpack.c.h.b16 %v2679
    %v3647 = vunpack.c.l.b16 %v2680
    %v3648 = vunpack.c.h.b16 %v2680
    %v3649 = vunpack.c.l.b16 %v2681
    %v3650 = vunpack.c.h.b16 %v2681
    %v3651 = vunpack.c.l.b16 %v2682
    %v3652 = vunpack.c.h.b16 %v2682
    %v3653 = vunpack.c.l.b16 %v2683
    %v3654 = vunpack.c.h.b16 %v2683
    %v3655 = vunpack.c.l.b16 %v2684
    %v3656 = vunpack.c.h.b16 %v2684
    %v3657 = vunpack.c.l.b16 %v2685
    %v3658 = vunpack.c.h.b16 %v2685
    %v3659 = vunpack.c.l.b16 %v2686
    %v3660 = vunpack.c.h.b16 %v2686
    %v3661 = vunpack.c.l.b16 %v2687
    %v3662 = vunpack.c.h.b16 %v2687
    %v3663 = vunpack.c.l.b16 %v2688
    %v3664 = vunpack.c.h.b16 %v2688
    %v3665 = vunpack.c.l.b16 %v2689
    %v3666 = vunpack.c.h.b16 %v2689
    %v3667 = vunpack.c.l.b16 %v2690
    %v3668 = vunpack.c.h.b16 %v2690
    %v3669 = vunpack.c.l.b16 %v2691
    %v3670 = vunpack.c.h.b16 %v2691
    %v3671 = vunpack.c.l.b16 %v2692
    %v3672 = vunpack.c.h.b16 %v2692
    %v3673 = vunpack.c.l.b16 %v2693
    %v3674 = vunpack.c.h.b16 %v2693
    %v3675 = vunpack.c.l.b16 %v2694
    %v3676 = vunpack.c.h.b16 %v2694
    %v3677 = vunpack.c.l.b16 %v2695
    %v3678 = vunpack.c.h.b16 %v2695
    %v3679 = vunpack.c.l.b16 %v2696
    %v3680 = vunpack.c.h.b16 %v2696
    %v3681 = vunpack.c.l.b16 %v2697
    %v3682 = vunpack.c.h.b16 %v2697
    %v3683 = vunpack.c.l.b16 %v2698
    %v3684 = vunpack.c.h.b16 %v2698
    %v3685 = vunpack.c.l.b16 %v2699
    %v3686 = vunpack.c.h.b16 %v2699
    %v3687 = vunpack.c.l.b16 %v2700
    %v3688 = vunpack.c.h.b16 %v2700
    %v3689 = vunpack.c.l.b16 %v2701
    %v3690 = vunpack.c.h.b16 %v2701
    %v3691 = vunpack.c.l.b16 %v2702
    %v3692 = vunpack.c.h.b16 %v2702
    %v3693 = vunpack.c.l.b16 %v2703
    %v3694 = vunpack.c.h.b16 %v2703
    %v3695 = vunpack.c.l.b16 %v2704
    %v3696 = vunpack.c.h.b16 %v2704
    %v3697 = vunpack.c.l.b16 %v2705
    %v3698 = vunpack.c.h.b16 %v2705
    %v3699 = vunpack.c.l.b16 %v2706
    %v3700 = vunpack.c.h.b16 %v2706
    %v3701 = vunpack.c.l.b16 %v2707
    %v3702 = vunpack.c.h.b16 %v2707
    %v3703 = vunpack.c.l.b16 %v2708
    %v3704 = vunpack.c.h.b16 %v2708
    %v3705 = vunpack.c.l.b16 %v2709
    %v3706 = vunpack.c.h.b16 %v2709
    %v3707 = vunpack.c.l.b16 %v2710
    %v3708 = vunpack.c.h.b16 %v2710
    %v3709 = vunpack.c.l.b16 %v2711
    %v3710 = vunpack.c.h.b16 %v2711
    %v3711 = vunpack.c.l.b16 %v2712
    %v3712 = vunpack.c.h.b16 %v2712
    %v3713 = vunpack.c.l.b16 %v2713
    %v3714 = vunpack.c.h.b16 %v2713
    %v3715 = vunpack.c.l.b16 %v2714
    %v3716 = vunpack.c.h.b16 %v2714
    %v3717 = vunpack.c.l.b16 %v2715
    %v3718 = vunpack.c.h.b16 %v2715
    %v3719 = vunpack.c.l.b16 %v2716
    %v3720 = vunpack.c.h.b16 %v2716
    %v3721 = vunpack.c.l.b16 %v2717
    %v3722 = vunpack.c.h.b16 %v2717
    %v3723 = vunpack.c.l.b16 %v2718
    %v3724 = vunpack.c.h.b16 %v2718
    %v3725 = vunpack.c.l.b16 %v2719
    %v3726 = vunpack.c.h.b16 %v2719
    %v3727 = vunpack.c.l.b16 %v2720
    %v3728 = vunpack.c.h.b16 %v2720
    %v3729 = vunpack.c.l.b16 %v2721
    %v3730 = vunpack.c.h.b16 %v2721
    %v3731 = vunpack.c.l.b16 %v2722
    %v3732 = vunpack.c.h.b16 %v2722
    %v3733 = vunpack.c.l.b16 %v2723
    %v3734 = vunpack.c.h.b16 %v2723
    %v3735 = vunpack.c.l.b16 %v2724
    %v3736 = vunpack.c.h.b16 %v2724
    %v3737 = vunpack.c.l.b16 %v2725
    %v3738 = vunpack.c.h.b16 %v2725
    %v3739 = vunpack.c.l.b16 %v2726
    %v3740 = vunpack.c.h.b16 %v2726
    %v3741 = vunpack.c.l.b16 %v2727
    %v3742 = vunpack.c.h.b16 %v2727
    %v3743 = vunpack.c.l.b16 %v2728
    %v3744 = vunpack.c.h.b16 %v2728
    %v3745 = vunpack.c.l.b16 %v2729
    %v3746 = vunpack.c.h.b16 %v2729
    %v3747 = vunpack.c.l.b16 %v2730
    %v3748 = vunpack.c.h.b16 %v2730
    %v3749 = vunpack.c.l.b16 %v2731
    %v3750 = vunpack.c.h.b16 %v2731
    %v3751 = vunpack.c.l.b16 %v2732
    %v3752 = vunpack.c.h.b16 %v2732
    %v3753 = vunpack.c.l.b16 %v2733
    %v3754 = vunpack.c.h.b16 %v2733
    %v3755 = vunpack.c.l.b16 %v2734
    %v3756 = vunpack.c.h.b16 %v2734
    %v3757 = vunpack.c.l.b16 %v2735
    %v3758 = vunpack.c.h.b16 %v2735
    %v3759 = vunpack.c.l.b16 %v2736
    %v3760 = vunpack.c.h.b16 %v2736
    %v3761 = vunpack.c.l.b16 %v2737
    %v3762 = vunpack.c.h.b16 %v2737
    %v3763 = vunpack.c.l.b16 %v2738
    %v3764 = vunpack.c.h.b16 %v2738
    %v3765 = vunpack.c.l.b16 %v2739
    %v3766 = vunpack.c.h.b16 %v2739
    %v3767 = vunpack.c.l.b16 %v2740
    %v3768 = vunpack.c.h.b16 %v2740
    %v3769 = vunpack.c.l.b16 %v2741
    %v3770 = vunpack.c.h.b16 %v2741
    %v3771 = vunpack.c.l.b16 %v2742
    %v3772 = vunpack.c.h.b16 %v2742
    %v3773 = vunpack.c.l.b16 %v2743
    %v3774 = vunpack.c.h.b16 %v2743
    %v3775 = vunpack.c.l.b16 %v2744
    %v3776 = vunpack.c.h.b16 %v2744
    %v3777 = vunpack.c.l.b16 %v2745
    %v3778 = vunpack.c.h.b16 %v2745
    %v3779 = vunpack.c.l.b16 %v2746
    %v3780 = vunpack.c.h.b16 %v2746
    %v3781 = vunpack.c.l.b16 %v2747
    %v3782 = vunpack.c.h.b16 %v2747
    %v3783 = vunpack.c.l.b16 %v2748
    %v3784 = vunpack.c.h.b16 %v2748
    %v3785 = vunpack.c.l.b16 %v2749
    %v3786 = vunpack.c.h.b16 %v2749
    %v3787 = vunpack.c.l.b16 %v2750
    %v3788 = vunpack.c.h.b16 %v2750
    %v3789 = vunpack.c.l.b16 %v2751
    %v3790 = vunpack.c.h.b16 %v2751
    %v3791 = vunpack.c.l.b16 %v2752
    %v3792 = vunpack.c.h.b16 %v2752
    %v3793 = vunpack.c.l.b16 %v2753
    %v3794 = vunpack.c.h.b16 %v2753
    %v3795 = vunpack.c.l.b16 %v2754
    %v3796 = vunpack.c.h.b16 %v2754
    %v3797 = vunpack.c.l.b16 %v2755
    %v3798 = vunpack.c.h.b16 %v2755
    %v3799 = vunpack.c.l.b16 %v2756
    %v3800 = vunpack.c.h.b16 %v2756
    %v3801 = vunpack.c.l.b16 %v2757
    %v3802 = vunpack.c.h.b16 %v2757
    %v3803 = vunpack.c.l.b16 %v2758
    %v3804 = vunpack.c.h.b16 %v2758
    %v3805 = vunpack.c.l.b16 %v2759
    %v3806 = vunpack.c.h.b16 %v2759
    %v3807 = vunpack.c.l.b16 %v2760
    %v3808 = vunpack.c.h.b16 %v2760
    %v3809 = vunpack.c.l.b16 %v2761
    %v3810 = vunpack.c.h.b16 %v2761
    %v3811 = vunpack.c.l.b16 %v2762
    %v3812 = vunpack.c.h.b16 %v2762
    %v3813 = vunpack.c.l.b16 %v2763
    %v3814 = vunpack.c.h.b16 %v2763
    %v3815 = vunpack.c.l.b16 %v2764
    %v3816 = vunpack.c.h.b16 %v2764
    %v3817 = vunpack.c.l.b16 %v2765
    %v3818 = vunpack.c.h.b16 %v2765
    %v3819 = vunpack.c.l.b16 %v2766
    %v3820 = vunpack.c.h.b16 %v2766
    %v3821 = vunpack.c.l.b16 %v2767
    %v3822 = vunpack.c.h.b16 %v2767
    %v3823 = vunpack.c.l.b16 %v2768
    %v3824 = vunpack.c.h.b16 %v2768
    %v3825 = vunpack.c.l.b16 %v2769
    %v3826 = vunpack.c.h.b16 %v2769
    %v3827 = vunpack.c.l.b16 %v2770
    %v3828 = vunpack.c.h.b16 %v2770
    %v3829 = vunpack.c.l.b16 %v2771
    %v3830 = vunpack.c.h.b16 %v2771
    %v3831 = vunpack.c.l.b16 %v2772
    %v3832 = vunpack.c.h.b16 %v2772
    %v3833 = vunpack.c.l.b16 %v2773
    %v3834 = vunpack.c.h.b16 %v2773
    %v3835 = vunpack.c.l.b16 %v2774
    %v3836 = vunpack.c.h.b16 %v2774
    %v3837 = vunpack.c.l.b16 %v2775
    %v3838 = vunpack.c.h.b16 %v2775
    %v3839 = vunpack.c.l.b16 %v2776
    %v3840 = vunpack.c.h.b16 %v2776
    %v3841 = vunpack.c.l.b16 %v2777
    %v3842 = vunpack.c.h.b16 %v2777
    %v3843 = vpack.c.b16 %v3339, %v3331
    %v3844 = vpack.c.b16 %v3340, %v3332
    %v3845 = vpack.c.b16 %v3341, %v3333
    %v3846 = vpack.c.b16 %v3342, %v3334
    %v3847 = vpack.c.b16 %v3343, %v3335
    %v3848 = vpack.c.b16 %v3344, %v3336
    %v3849 = vpack.c.b16 %v3345, %v3337
    %v3850 = vpack.c.b16 %v3346, %v3338
    %v3851 = vpack.c.b16 %v3355, %v3347
    %v3852 = vpack.c.b16 %v3356, %v3348
    %v3853 = vpack.c.b16 %v3357, %v3349
    %v3854 = vpack.c.b16 %v3358, %v3350
    %v3855 = vpack.c.b16 %v3359, %v3351
    %v3856 = vpack.c.b16 %v3360, %v3352
    %v3857 = vpack.c.b16 %v3361, %v3353
    %v3858 = vpack.c.b16 %v3362, %v3354
    %v3859 = vpack.c.b16 %v3371, %v3363
    %v3860 = vpack.c.b16 %v3372, %v3364
    %v3861 = vpack.c.b16 %v3373, %v3365
    %v3862 = vpack.c.b16 %v3374, %v3366
    %v3863 = vpack.c.b16 %v3375, %v3367
    %v3864 = vpack.c.b16 %v3376, %v3368
    %v3865 = vpack.c.b16 %v3377, %v3369
    %v3866 = vpack.c.b16 %v3378, %v3370
    %v3867 = vpack.c.b16 %v3387, %v3379
    %v3868 = vpack.c.b16 %v3388, %v3380
    %v3869 = vpack.c.b16 %v3389, %v3381
    %v3870 = vpack.c.b16 %v3390, %v3382
    %v3871 = vpack.c.b16 %v3391, %v3383
    %v3872 = vpack.c.b16 %v3392, %v3384
    %v3873 = vpack.c.b16 %v3393, %v3385
    %v3874 = vpack.c.b16 %v3394, %v3386
    %v3875 = vpack.c.b16 %v3403, %v3395
    %v3876 = vpack.c.b16 %v3404, %v3396
    %v3877 = vpack.c.b16 %v3405, %v3397
    %v3878 = vpack.c.b16 %v3406, %v3398
    %v3879 = vpack.c.b16 %v3407, %v3399
    %v3880 = vpack.c.b16 %v3408, %v3400
    %v3881 = vpack.c.b16 %v3409, %v3401
    %v3882 = vpack.c.b16 %v3410, %v3402
    %v3883 = vpack.c.b16 %v3419, %v3411
    %v3884 = vpack.c.b16 %v3420, %v3412
    %v3885 = vpack.c.b16 %v3421, %v3413
    %v3886 = vpack.c.b16 %v3422, %v3414
    %v3887 = vpack.c.b16 %v3423, %v3415
    %v3888 = vpack.c.b16 %v3424, %v3416
    %v3889 = vpack.c.b16 %v3425, %v3417
    %v3890 = vpack.c.b16 %v3426, %v3418
    %v3891 = vpack.c.b16 %v3435, %v3427
    %v3892 = vpack.c.b16 %v3436, %v3428
    %v3893 = vpack.c.b16 %v3437, %v3429
    %v3894 = vpack.c.b16 %v3438, %v3430
    %v3895 = vpack.c.b16 %v3439, %v3431
    %v3896 = vpack.c.b16 %v3440, %v3432
    %v3897 = vpack.c.b16 %v3441, %v3433
    %v3898 = vpack.c.b16 %v3442, %v3434
    %v3899 = vpack.c.b16 %v3451, %v3443
    %v3900 = vpack.c.b16 %v3452, %v3444
    %v3901 = vpack.c.b16 %v3453, %v3445
    %v3902 = vpack.c.b16 %v3454, %v3446
    %v3903 = vpack.c.b16 %v3455, %v3447
    %v3904 = vpack.c.b16 %v3456, %v3448
    %v3905 = vpack.c.b16 %v3457, %v3449
    %v3906 = vpack.c.b16 %v3458, %v3450
    %v3907 = vpack.c.b16 %v3467, %v3459
    %v3908 = vpack.c.b16 %v3468, %v3460
    %v3909 = vpack.c.b16 %v3469, %v3461
    %v3910 = vpack.c.b16 %v3470, %v3462
    %v3911 = vpack.c.b16 %v3471, %v3463
    %v3912 = vpack.c.b16 %v3472, %v3464
    %v3913 = vpack.c.b16 %v3473, %v3465
    %v3914 = vpack.c.b16 %v3474, %v3466
    %v3915 = vpack.c.b16 %v3483, %v3475
    %v3916 = vpack.c.b16 %v3484, %v3476
    %v3917 = vpack.c.b16 %v3485, %v3477
    %v3918 = vpack.c.b16 %v3486, %v3478
    %v3919 = vpack.c.b16 %v3487, %v3479
    %v3920 = vpack.c.b16 %v3488, %v3480
    %v3921 = vpack.c.b16 %v3489, %v3481
    %v3922 = vpack.c.b16 %v3490, %v3482
    %v3923 = vpack.c.b16 %v3499, %v3491
    %v3924 = vpack.c.b16 %v3500, %v3492
    %v3925 = vpack.c.b16 %v3501, %v3493
    %v3926 = vpack.c.b16 %v3502, %v3494
    %v3927 = vpack.c.b16 %v3503, %v3495
    %v3928 = vpack.c.b16 %v3504, %v3496
    %v3929 = vpack.c.b16 %v3505, %v3497
    %v3930 = vpack.c.b16 %v3506, %v3498
    %v3931 = vpack.c.b16 %v3515, %v3507
    %v3932 = vpack.c.b16 %v3516, %v3508
    %v3933 = vpack.c.b16 %v3517, %v3509
    %v3934 = vpack.c.b16 %v3518, %v3510
    %v3935 = vpack.c.b16 %v3519, %v3511
    %v3936 = vpack.c.b16 %v3520, %v3512
    %v3937 = vpack.c.b16 %v3521, %v3513
    %v3938 = vpack.c.b16 %v3522, %v3514
    %v3939 = vpack.c.b16 %v3531, %v3523
    %v3940 = vpack.c.b16 %v3532, %v3524
    %v3941 = vpack.c.b16 %v3533, %v3525
    %v3942 = vpack.c.b16 %v3534, %v3526
    %v3943 = vpack.c.b16 %v3535, %v3527
    %v3944 = vpack.c.b16 %v3536, %v3528
    %v3945 = vpack.c.b16 %v3537, %v3529
    %v3946 = vpack.c.b16 %v3538, %v3530
    %v3947 = vpack.c.b16 %v3547, %v3539
    %v3948 = vpack.c.b16 %v3548, %v3540
    %v3949 = vpack.c.b16 %v3549, %v3541
    %v3950 = vpack.c.b16 %v3550, %v3542
    %v3951 = vpack.c.b16 %v3551, %v3543
    %v3952 = vpack.c.b16 %v3552, %v3544
    %v3953 = vpack.c.b16 %v3553, %v3545
    %v3954 = vpack.c.b16 %v3554, %v3546
    %v3955 = vpack.c.b16 %v3563, %v3555
    %v3956 = vpack.c.b16 %v3564, %v3556
    %v3957 = vpack.c.b16 %v3565, %v3557
    %v3958 = vpack.c.b16 %v3566, %v3558
    %v3959 = vpack.c.b16 %v3567, %v3559
    %v3960 = vpack.c.b16 %v3568, %v3560
    %v3961 = vpack.c.b16 %v3569, %v3561
    %v3962 = vpack.c.b16 %v3570, %v3562
    %v3963 = vpack.c.b16 %v3579, %v3571
    %v3964 = vpack.c.b16 %v3580, %v3572
    %v3965 = vpack.c.b16 %v3581, %v3573
    %v3966 = vpack.c.b16 %v3582, %v3574
    %v3967 = vpack.c.b16 %v3583, %v3575
    %v3968 = vpack.c.b16 %v3584, %v3576
    %v3969 = vpack.c.b16 %v3585, %v3577
    %v3970 = vpack.c.b16 %v3586, %v3578
    %v3971 = vpack.c.b16 %v3595, %v3587
    %v3972 = vpack.c.b16 %v3596, %v3588
    %v3973 = vpack.c.b16 %v3597, %v3589
    %v3974 = vpack.c.b16 %v3598, %v3590
    %v3975 = vpack.c.b16 %v3599, %v3591
    %v3976 = vpack.c.b16 %v3600, %v3592
    %v3977 = vpack.c.b16 %v3601, %v3593
    %v3978 = vpack.c.b16 %v3602, %v3594
    %v3979 = vpack.c.b16 %v3611, %v3603
    %v3980 = vpack.c.b16 %v3612, %v3604
    %v3981 = vpack.c.b16 %v3613, %v3605
    %v3982 = vpack.c.b16 %v3614, %v3606
    %v3983 = vpack.c.b16 %v3615, %v3607
    %v3984 = vpack.c.b16 %v3616, %v3608
    %v3985 = vpack.c.b16 %v3617, %v3609
    %v3986 = vpack.c.b16 %v3618, %v3610
    %v3987 = vpack.c.b16 %v3627, %v3619
    %v3988 = vpack.c.b16 %v3628, %v3620
    %v3989 = vpack.c.b16 %v3629, %v3621
    %v3990 = vpack.c.b16 %v3630, %v3622
    %v3991 = vpack.c.b16 %v3631, %v3623
    %v3992 = vpack.c.b16 %v3632, %v3624
    %v3993 = vpack.c.b16 %v3633, %v3625
    %v3994 = vpack.c.b16 %v3634, %v3626
    %v3995 = vpack.c.b16 %v3643, %v3635
    %v3996 = vpack.c.b16 %v3644, %v3636
    %v3997 = vpack.c.b16 %v3645, %v3637
    %v3998 = vpack.c.b16 %v3646, %v3638
    %v3999 = vpack.c.b16 %v3647, %v3639
    %v4000 = vpack.c.b16 %v3648, %v3640
    %v4001 = vpack.c.b16 %v3649, %v3641
    %v4002 = vpack.c.b16 %v3650, %v3642
    %v4003 = vpack.c.b16 %v3659, %v3651
    %v4004 = vpack.c.b16 %v3660, %v3652
    %v4005 = vpack.c.b16 %v3661, %v3653
    %v4006 = vpack.c.b16 %v3662, %v3654
    %v4007 = vpack.c.b16 %v3663, %v3655
    %v4008 = vpack.c.b16 %v3664, %v3656
    %v4009 = vpack.c.b16 %v3665, %v3657
    %v4010 = vpack.c.b16 %v3666, %v3658
    %v4011 = vpack.c.b16 %v3675, %v3667
    %v4012 = vpack.c.b16 %v3676, %v3668
    %v4013 = vpack.c.b16 %v3677, %v3669
    %v4014 = vpack.c.b16 %v3678, %v3670
    %v4015 = vpack.c.b16 %v3679, %v3671
    %v4016 = vpack.c.b16 %v3680, %v3672
    %v4017 = vpack.c.b16 %v3681, %v3673
    %v4018 = vpack.c.b16 %v3682, %v3674
    %v4019 = vpack.c.b16 %v3691, %v3683
    %v4020 = vpack.c.b16 %v3692, %v3684
    %v4021 = vpack.c.b16 %v3693, %v3685
    %v4022 = vpack.c.b16 %v3694, %v3686
    %v4023 = vpack.c.b16 %v3695, %v3687
    %v4024 = vpack.c.b16 %v3696, %v3688
    %v4025 = vpack.c.b16 %v3697, %v3689
    %v4026 = vpack.c.b16 %v3698, %v3690
    %v4027 = vpack.c.b16 %v3707, %v3699
    %v4028 = vpack.c.b16 %v3708, %v3700
    %v4029 = vpack.c.b16 %v3709, %v3701
    %v4030 = vpack.c.b16 %v3710, %v3702
    %v4031 = vpack.c.b16 %v3711, %v3703
    %v4032 = vpack.c.b16 %v3712, %v3704
    %v4033 = vpack.c.b16 %v3713, %v3705
    %v4034 = vpack.c.b16 %v3714, %v3706
    %v4035 = vpack.c.b16 %v3723, %v3715
    %v4036 = vpack.c.b16 %v3724, %v3716
    %v4037 = vpack.c.b16 %v3725, %v3717
    %v4038 = vpack.c.b16 %v3726, %v3718
    %v4039 = vpack.c.b16 %v3727, %v3719
    %v4040 = vpack.c.b16 %v3728, %v3720
    %v4041 = vpack.c.b16 %v3729, %v3721
    %v4042 = vpack.c.b16 %v3730, %v3722
    %v4043 = vpack.c.b16 %v3739, %v3731
    %v4044 = vpack.c.b16 %v3740, %v3732
    %v4045 = vpack.c.b16 %v3741, %v3733
    %v4046 = vpack.c.b16 %v3742, %v3734
    %v4047 = vpack.c.b16 %v3743, %v3735
    %v4048 = vpack.c.b16 %v3744, %v3736
    %v4049 = vpack.c.b16 %v3745, %v3737
    %v4050 = vpack.c.b16 %v3746, %v3738
    %v4051 = vpack.c.b16 %v3755, %v3747
    %v4052 = vpack.c.b16 %v3756, %v3748
    %v4053 = vpack.c.b16 %v3757, %v3749
    %v4054 = vpack.c.b16 %v3758, %v3750
    %v4055 = vpack.c.b16 %v3759, %v3751
    %v4056 = vpack.c.b16 %v3760, %v3752
    %v4057 = vpack.c.b16 %v3761, %v3753
    %v4058 = vpack.c.b16 %v3762, %v3754
    %v4059 = vpack.c.b16 %v3771, %v3763
    %v4060 = vpack.c.b16 %v3772, %v3764
    %v4061 = vpack.c.b16 %v3773, %v3765
    %v4062 = vpack.c.b16 %v3774, %v3766
    %v4063 = vpack.c.b16 %v3775, %v3767
    %v4064 = vpack.c.b16 %v3776, %v3768
    %v4065 = vpack.c.b16 %v3777, %v3769
    %v4066 = vpack.c.b16 %v3778, %v3770
    %v4067 = vpack.c.b16 %v3787, %v3779
    %v4068 = vpack.c.b16 %v3788, %v3780
    %v4069 = vpack.c.b16 %v3789, %v3781
    %v4070 = vpack.c.b16 %v3790, %v3782
    %v4071 = vpack.c.b16 %v3791, %v3783
    %v4072 = vpack.c.b16 %v3792, %v3784
    %v4073 = vpack.c.b16 %v3793, %v3785
    %v4074 = vpack.c.b16 %v3794, %v3786
    %v4075 = vpack.c.b16 %v3803, %v3795
    %v4076 = vpack.c.b16 %v3804, %v3796
    %v4077 = vpack.c.b16 %v3805, %v3797
    %v4078 = vpack.c.b16 %v3806, %v3798
    %v4079 = vpack.c.b16 %v3807, %v3799
    %v4080 = vpack.c.b16 %v3808, %v3800
    %v4081 = vpack.c.b16 %v3809, %v3801
    %v4082 = vpack.c.b16 %v3810, %v3802
    %v4083 = vpack.c.b16 %v3819, %v3811
    %v4084 = vpack.c.b16 %v3820, %v3812
    %v4085 = vpack.c.b16 %v3821, %v3813
    %v4086 = vpack.c.b16 %v3822, %v3814
    %v4087 = vpack.c.b16 %v3823, %v3815
    %v4088 = vpack.c.b16 %v3824, %v3816
    %v4089 = vpack.c.b16 %v3825, %v3817
    %v4090 = vpack.c.b16 %v3826, %v3818
    %v4091 = vpack.c.b16 %v3835, %v3827
    %v4092 = vpack.c.b16 %v3836, %v3828
    %v4093 = vpack.c.b16 %v3837, %v3829
    %v4094 = vpack.c.b16 %v3838, %v3830
    %v4095 = vpack.c.b16 %v3839, %v3831
    %v4096 = vpack.c.b16 %v3840, %v3832
    %v4097 = vpack.c.b16 %v3841, %v3833
    %v4098 = vpack.c.b16 %v3842, %v3834
    %4355 = vmatpush.bf16.msra.mxu0 %v3899
    %4356 = vmatpush.bf16.msra.mxu0 %v3891
    %4357 = vmatpush.bf16.msra.mxu0 %v3883
    %4358 = vmatpush.bf16.msra.mxu0 %v3875
    %4359 = vmatpush.bf16.msra.mxu0 %v3867
    %4360 = vmatpush.bf16.msra.mxu0 %v3859
    %4361 = vmatpush.bf16.msra.mxu0 %v3851
    %4362 = vmatpush.bf16.msra.mxu0 %v3843
    %4363 = vmatmul.bf16.gmra.mxu0 %v3043
    %v4364 = vpop.f32.mrf.mxu0
    %v4365 = vadd.f32 0.0, %v4364
    %v4366 = vpop.f32.mrf.mxu0
    %v4367 = vadd.f32 0.0, %v4366
    %4368 = vmatmul.bf16.gmra.mxu0 %v3047
    %v4369 = vpop.f32.mrf.mxu0
    %v4370 = vadd.f32 0.0, %v4369
    %v4371 = vpop.f32.mrf.mxu0
    %v4372 = vadd.f32 0.0, %v4371
    %4373 = vmatmul.bf16.gmra.mxu0 %v3051
    %v4374 = vpop.f32.mrf.mxu0
    %v4375 = vadd.f32 0.0, %v4374
    %v4376 = vpop.f32.mrf.mxu0
    %v4377 = vadd.f32 0.0, %v4376
    %4378 = vmatmul.bf16.gmra.mxu0 %v3055
    %v4379 = vpop.f32.mrf.mxu0
    %v4380 = vadd.f32 0.0, %v4379
    %v4381 = vpop.f32.mrf.mxu0
    %v4382 = vadd.f32 0.0, %v4381
    %4383 = vmatmul.bf16.gmra.mxu0 %v3059
    %v4384 = vpop.f32.mrf.mxu0
    %v4385 = vadd.f32 0.0, %v4384
    %v4386 = vpop.f32.mrf.mxu0
    %v4387 = vadd.f32 0.0, %v4386
    %4388 = vmatmul.bf16.gmra.mxu0 %v3063
    %v4389 = vpop.f32.mrf.mxu0
    %v4390 = vadd.f32 0.0, %v4389
    %v4391 = vpop.f32.mrf.mxu0
    %v4392 = vadd.f32 0.0, %v4391
    %4393 = vmatmul.bf16.gmra.mxu0 %v3067
    %v4394 = vpop.f32.mrf.mxu0
    %v4395 = vadd.f32 0.0, %v4394
    %v4396 = vpop.f32.mrf.mxu0
    %v4397 = vadd.f32 0.0, %v4396
    %4398 = vmatmul.bf16.gmra.mxu0 %v3071
    %v4399 = vpop.f32.mrf.mxu0
    %v4400 = vadd.f32 0.0, %v4399
    %v4401 = vpop.f32.mrf.mxu0
    %v4402 = vadd.f32 0.0, %v4401
    %4403 = vdwg.mxu0
    %4404 = vmatpush.bf16.msra.mxu0 %v3963
    %4405 = vmatpush.bf16.msra.mxu0 %v3955
    %4406 = vmatpush.bf16.msra.mxu0 %v3947
    %4407 = vmatpush.bf16.msra.mxu0 %v3939
    %4408 = vmatpush.bf16.msra.mxu0 %v3931
    %4409 = vmatpush.bf16.msra.mxu0 %v3923
    %4410 = vmatpush.bf16.msra.mxu0 %v3915
    %4411 = vmatpush.bf16.msra.mxu0 %v3907
    %4412 = vmatmul.bf16.gmra.mxu0 %v3044
    %v4413 = vpop.f32.mrf.mxu0
    %v4414 = vadd.f32 %v4365, %v4413
    %v4415 = vpop.f32.mrf.mxu0
    %v4416 = vadd.f32 %v4367, %v4415
    %4417 = vmatmul.bf16.gmra.mxu0 %v3048
    %v4418 = vpop.f32.mrf.mxu0
    %v4419 = vadd.f32 %v4370, %v4418
    %v4420 = vpop.f32.mrf.mxu0
    %v4421 = vadd.f32 %v4372, %v4420
    %4422 = vmatmul.bf16.gmra.mxu0 %v3052
    %v4423 = vpop.f32.mrf.mxu0
    %v4424 = vadd.f32 %v4375, %v4423
    %v4425 = vpop.f32.mrf.mxu0
    %v4426 = vadd.f32 %v4377, %v4425
    %4427 = vmatmul.bf16.gmra.mxu0 %v3056
    %v4428 = vpop.f32.mrf.mxu0
    %v4429 = vadd.f32 %v4380, %v4428
    %v4430 = vpop.f32.mrf.mxu0
    %v4431 = vadd.f32 %v4382, %v4430
    %4432 = vmatmul.bf16.gmra.mxu0 %v3060
    %v4433 = vpop.f32.mrf.mxu0
    %v4434 = vadd.f32 %v4385, %v4433
    %v4435 = vpop.f32.mrf.mxu0
    %v4436 = vadd.f32 %v4387, %v4435
    %4437 = vmatmul.bf16.gmra.mxu0 %v3064
    %v4438 = vpop.f32.mrf.mxu0
    %v4439 = vadd.f32 %v4390, %v4438
    %v4440 = vpop.f32.mrf.mxu0
    %v4441 = vadd.f32 %v4392, %v4440
    %4442 = vmatmul.bf16.gmra.mxu0 %v3068
    %v4443 = vpop.f32.mrf.mxu0
    %v4444 = vadd.f32 %v4395, %v4443
    %v4445 = vpop.f32.mrf.mxu0
    %v4446 = vadd.f32 %v4397, %v4445
    %4447 = vmatmul.bf16.gmra.mxu0 %v3072
    %v4448 = vpop.f32.mrf.mxu0
    %v4449 = vadd.f32 %v4400, %v4448
    %v4450 = vpop.f32.mrf.mxu0
    %v4451 = vadd.f32 %v4402, %v4450
    %4452 = vdwg.mxu0
    %4453 = vmatpush.bf16.msra.mxu0 %v4027
    %4454 = vmatpush.bf16.msra.mxu0 %v4019
    %4455 = vmatpush.bf16.msra.mxu0 %v4011
    %4456 = vmatpush.bf16.msra.mxu0 %v4003
    %4457 = vmatpush.bf16.msra.mxu0 %v3995
    %4458 = vmatpush.bf16.msra.mxu0 %v3987
    %4459 = vmatpush.bf16.msra.mxu0 %v3979
    %4460 = vmatpush.bf16.msra.mxu0 %v3971
    %4461 = vmatmul.bf16.gmra.mxu0 %v3045
    %v4462 = vpop.f32.mrf.mxu0
    %v4463 = vadd.f32 %v4414, %v4462
    %v4464 = vpop.f32.mrf.mxu0
    %v4465 = vadd.f32 %v4416, %v4464
    %4466 = vmatmul.bf16.gmra.mxu0 %v3049
    %v4467 = vpop.f32.mrf.mxu0
    %v4468 = vadd.f32 %v4419, %v4467
    %v4469 = vpop.f32.mrf.mxu0
    %v4470 = vadd.f32 %v4421, %v4469
    %4471 = vmatmul.bf16.gmra.mxu0 %v3053
    %v4472 = vpop.f32.mrf.mxu0
    %v4473 = vadd.f32 %v4424, %v4472
    %v4474 = vpop.f32.mrf.mxu0
    %v4475 = vadd.f32 %v4426, %v4474
    %4476 = vmatmul.bf16.gmra.mxu0 %v3057
    %v4477 = vpop.f32.mrf.mxu0
    %v4478 = vadd.f32 %v4429, %v4477
    %v4479 = vpop.f32.mrf.mxu0
    %v4480 = vadd.f32 %v4431, %v4479
    %4481 = vmatmul.bf16.gmra.mxu0 %v3061
    %v4482 = vpop.f32.mrf.mxu0
    %v4483 = vadd.f32 %v4434, %v4482
    %v4484 = vpop.f32.mrf.mxu0
    %v4485 = vadd.f32 %v4436, %v4484
    %4486 = vmatmul.bf16.gmra.mxu0 %v3065
    %v4487 = vpop.f32.mrf.mxu0
    %v4488 = vadd.f32 %v4439, %v4487
    %v4489 = vpop.f32.mrf.mxu0
    %v4490 = vadd.f32 %v4441, %v4489
    %4491 = vmatmul.bf16.gmra.mxu0 %v3069
    %v4492 = vpop.f32.mrf.mxu0
    %v4493 = vadd.f32 %v4444, %v4492
    %v4494 = vpop.f32.mrf.mxu0
    %v4495 = vadd.f32 %v4446, %v4494
    %4496 = vmatmul.bf16.gmra.mxu0 %v3073
    %v4497 = vpop.f32.mrf.mxu0
    %v4498 = vadd.f32 %v4449, %v4497
    %v4499 = vpop.f32.mrf.mxu0
    %v4500 = vadd.f32 %v4451, %v4499
    %4501 = vdwg.mxu0
    %4502 = vmatpush.bf16.msra.mxu0 %v4091
    %4503 = vmatpush.bf16.msra.mxu0 %v4083
    %4504 = vmatpush.bf16.msra.mxu0 %v4075
    %4505 = vmatpush.bf16.msra.mxu0 %v4067
    %4506 = vmatpush.bf16.msra.mxu0 %v4059
    %4507 = vmatpush.bf16.msra.mxu0 %v4051
    %4508 = vmatpush.bf16.msra.mxu0 %v4043
    %4509 = vmatpush.bf16.msra.mxu0 %v4035
    %4510 = vmatmul.bf16.gmra.mxu0 %v3046
    %v4511 = vpop.f32.mrf.mxu0
    %v4512 = vadd.f32 %v4463, %v4511
    %v4513 = vpop.f32.mrf.mxu0
    %v4514 = vadd.f32 %v4465, %v4513
    %4515 = vmatmul.bf16.gmra.mxu0 %v3050
    %v4516 = vpop.f32.mrf.mxu0
    %v4517 = vadd.f32 %v4468, %v4516
    %v4518 = vpop.f32.mrf.mxu0
    %v4519 = vadd.f32 %v4470, %v4518
    %4520 = vmatmul.bf16.gmra.mxu0 %v3054
    %v4521 = vpop.f32.mrf.mxu0
    %v4522 = vadd.f32 %v4473, %v4521
    %v4523 = vpop.f32.mrf.mxu0
    %v4524 = vadd.f32 %v4475, %v4523
    %4525 = vmatmul.bf16.gmra.mxu0 %v3058
    %v4526 = vpop.f32.mrf.mxu0
    %v4527 = vadd.f32 %v4478, %v4526
    %v4528 = vpop.f32.mrf.mxu0
    %v4529 = vadd.f32 %v4480, %v4528
    %4530 = vmatmul.bf16.gmra.mxu0 %v3062
    %v4531 = vpop.f32.mrf.mxu0
    %v4532 = vadd.f32 %v4483, %v4531
    %v4533 = vpop.f32.mrf.mxu0
    %v4534 = vadd.f32 %v4485, %v4533
    %4535 = vmatmul.bf16.gmra.mxu0 %v3066
    %v4536 = vpop.f32.mrf.mxu0
    %v4537 = vadd.f32 %v4488, %v4536
    %v4538 = vpop.f32.mrf.mxu0
    %v4539 = vadd.f32 %v4490, %v4538
    %4540 = vmatmul.bf16.gmra.mxu0 %v3070
    %v4541 = vpop.f32.mrf.mxu0
    %v4542 = vadd.f32 %v4493, %v4541
    %v4543 = vpop.f32.mrf.mxu0
    %v4544 = vadd.f32 %v4495, %v4543
    %4545 = vmatmul.bf16.gmra.mxu0 %v3074
    %v4546 = vpop.f32.mrf.mxu0
    %v4547 = vadd.f32 %v4498, %v4546
    %v4548 = vpop.f32.mrf.mxu0
    %v4549 = vadd.f32 %v4500, %v4548
    %4550 = vdwg.mxu0
    %4551 = vmatpush.bf16.msra.mxu0 %v3900
    %4552 = vmatpush.bf16.msra.mxu0 %v3892
    %4553 = vmatpush.bf16.msra.mxu0 %v3884
    %4554 = vmatpush.bf16.msra.mxu0 %v3876
    %4555 = vmatpush.bf16.msra.mxu0 %v3868
    %4556 = vmatpush.bf16.msra.mxu0 %v3860
    %4557 = vmatpush.bf16.msra.mxu0 %v3852
    %4558 = vmatpush.bf16.msra.mxu0 %v3844
    %4559 = vmatmul.bf16.gmra.mxu0 %v3043
    %v4560 = vpop.f32.mrf.mxu0
    %v4561 = vadd.f32 0.0, %v4560
    %v4562 = vpop.f32.mrf.mxu0
    %v4563 = vadd.f32 0.0, %v4562
    %4564 = vmatmul.bf16.gmra.mxu0 %v3047
    %v4565 = vpop.f32.mrf.mxu0
    %v4566 = vadd.f32 0.0, %v4565
    %v4567 = vpop.f32.mrf.mxu0
    %v4568 = vadd.f32 0.0, %v4567
    %4569 = vmatmul.bf16.gmra.mxu0 %v3051
    %v4570 = vpop.f32.mrf.mxu0
    %v4571 = vadd.f32 0.0, %v4570
    %v4572 = vpop.f32.mrf.mxu0
    %v4573 = vadd.f32 0.0, %v4572
    %4574 = vmatmul.bf16.gmra.mxu0 %v3055
    %v4575 = vpop.f32.mrf.mxu0
    %v4576 = vadd.f32 0.0, %v4575
    %v4577 = vpop.f32.mrf.mxu0
    %v4578 = vadd.f32 0.0, %v4577
    %4579 = vmatmul.bf16.gmra.mxu0 %v3059
    %v4580 = vpop.f32.mrf.mxu0
    %v4581 = vadd.f32 0.0, %v4580
    %v4582 = vpop.f32.mrf.mxu0
    %v4583 = vadd.f32 0.0, %v4582
    %4584 = vmatmul.bf16.gmra.mxu0 %v3063
    %v4585 = vpop.f32.mrf.mxu0
    %v4586 = vadd.f32 0.0, %v4585
    %v4587 = vpop.f32.mrf.mxu0
    %v4588 = vadd.f32 0.0, %v4587
    %4589 = vmatmul.bf16.gmra.mxu0 %v3067
    %v4590 = vpop.f32.mrf.mxu0
    %v4591 = vadd.f32 0.0, %v4590
    %v4592 = vpop.f32.mrf.mxu0
    %v4593 = vadd.f32 0.0, %v4592
    %4594 = vmatmul.bf16.gmra.mxu0 %v3071
    %v4595 = vpop.f32.mrf.mxu0
    %v4596 = vadd.f32 0.0, %v4595
    %v4597 = vpop.f32.mrf.mxu0
    %v4598 = vadd.f32 0.0, %v4597
    %4599 = vdwg.mxu0
    %4600 = vmatpush.bf16.msra.mxu0 %v3964
    %4601 = vmatpush.bf16.msra.mxu0 %v3956
    %4602 = vmatpush.bf16.msra.mxu0 %v3948
    %4603 = vmatpush.bf16.msra.mxu0 %v3940
    %4604 = vmatpush.bf16.msra.mxu0 %v3932
    %4605 = vmatpush.bf16.msra.mxu0 %v3924
    %4606 = vmatpush.bf16.msra.mxu0 %v3916
    %4607 = vmatpush.bf16.msra.mxu0 %v3908
    %4608 = vmatmul.bf16.gmra.mxu0 %v3044
    %v4609 = vpop.f32.mrf.mxu0
    %v4610 = vadd.f32 %v4561, %v4609
    %v4611 = vpop.f32.mrf.mxu0
    %v4612 = vadd.f32 %v4563, %v4611
    %4613 = vmatmul.bf16.gmra.mxu0 %v3048
    %v4614 = vpop.f32.mrf.mxu0
    %v4615 = vadd.f32 %v4566, %v4614
    %v4616 = vpop.f32.mrf.mxu0
    %v4617 = vadd.f32 %v4568, %v4616
    %4618 = vmatmul.bf16.gmra.mxu0 %v3052
    %v4619 = vpop.f32.mrf.mxu0
    %v4620 = vadd.f32 %v4571, %v4619
    %v4621 = vpop.f32.mrf.mxu0
    %v4622 = vadd.f32 %v4573, %v4621
    %4623 = vmatmul.bf16.gmra.mxu0 %v3056
    %v4624 = vpop.f32.mrf.mxu0
    %v4625 = vadd.f32 %v4576, %v4624
    %v4626 = vpop.f32.mrf.mxu0
    %v4627 = vadd.f32 %v4578, %v4626
    %4628 = vmatmul.bf16.gmra.mxu0 %v3060
    %v4629 = vpop.f32.mrf.mxu0
    %v4630 = vadd.f32 %v4581, %v4629
    %v4631 = vpop.f32.mrf.mxu0
    %v4632 = vadd.f32 %v4583, %v4631
    %4633 = vmatmul.bf16.gmra.mxu0 %v3064
    %v4634 = vpop.f32.mrf.mxu0
    %v4635 = vadd.f32 %v4586, %v4634
    %v4636 = vpop.f32.mrf.mxu0
    %v4637 = vadd.f32 %v4588, %v4636
    %4638 = vmatmul.bf16.gmra.mxu0 %v3068
    %v4639 = vpop.f32.mrf.mxu0
    %v4640 = vadd.f32 %v4591, %v4639
    %v4641 = vpop.f32.mrf.mxu0
    %v4642 = vadd.f32 %v4593, %v4641
    %4643 = vmatmul.bf16.gmra.mxu0 %v3072
    %v4644 = vpop.f32.mrf.mxu0
    %v4645 = vadd.f32 %v4596, %v4644
    %v4646 = vpop.f32.mrf.mxu0
    %v4647 = vadd.f32 %v4598, %v4646
    %4648 = vdwg.mxu0
    %4649 = vmatpush.bf16.msra.mxu0 %v4028
    %4650 = vmatpush.bf16.msra.mxu0 %v4020
    %4651 = vmatpush.bf16.msra.mxu0 %v4012
    %4652 = vmatpush.bf16.msra.mxu0 %v4004
    %4653 = vmatpush.bf16.msra.mxu0 %v3996
    %4654 = vmatpush.bf16.msra.mxu0 %v3988
    %4655 = vmatpush.bf16.msra.mxu0 %v3980
    %4656 = vmatpush.bf16.msra.mxu0 %v3972
    %4657 = vmatmul.bf16.gmra.mxu0 %v3045
    %v4658 = vpop.f32.mrf.mxu0
    %v4659 = vadd.f32 %v4610, %v4658
    %v4660 = vpop.f32.mrf.mxu0
    %v4661 = vadd.f32 %v4612, %v4660
    %4662 = vmatmul.bf16.gmra.mxu0 %v3049
    %v4663 = vpop.f32.mrf.mxu0
    %v4664 = vadd.f32 %v4615, %v4663
    %v4665 = vpop.f32.mrf.mxu0
    %v4666 = vadd.f32 %v4617, %v4665
    %4667 = vmatmul.bf16.gmra.mxu0 %v3053
    %v4668 = vpop.f32.mrf.mxu0
    %v4669 = vadd.f32 %v4620, %v4668
    %v4670 = vpop.f32.mrf.mxu0
    %v4671 = vadd.f32 %v4622, %v4670
    %4672 = vmatmul.bf16.gmra.mxu0 %v3057
    %v4673 = vpop.f32.mrf.mxu0
    %v4674 = vadd.f32 %v4625, %v4673
    %v4675 = vpop.f32.mrf.mxu0
    %v4676 = vadd.f32 %v4627, %v4675
    %4677 = vmatmul.bf16.gmra.mxu0 %v3061
    %v4678 = vpop.f32.mrf.mxu0
    %v4679 = vadd.f32 %v4630, %v4678
    %v4680 = vpop.f32.mrf.mxu0
    %v4681 = vadd.f32 %v4632, %v4680
    %4682 = vmatmul.bf16.gmra.mxu0 %v3065
    %v4683 = vpop.f32.mrf.mxu0
    %v4684 = vadd.f32 %v4635, %v4683
    %v4685 = vpop.f32.mrf.mxu0
    %v4686 = vadd.f32 %v4637, %v4685
    %4687 = vmatmul.bf16.gmra.mxu0 %v3069
    %v4688 = vpop.f32.mrf.mxu0
    %v4689 = vadd.f32 %v4640, %v4688
    %v4690 = vpop.f32.mrf.mxu0
    %v4691 = vadd.f32 %v4642, %v4690
    %4692 = vmatmul.bf16.gmra.mxu0 %v3073
    %v4693 = vpop.f32.mrf.mxu0
    %v4694 = vadd.f32 %v4645, %v4693
    %v4695 = vpop.f32.mrf.mxu0
    %v4696 = vadd.f32 %v4647, %v4695
    %4697 = vdwg.mxu0
    %4698 = vmatpush.bf16.msra.mxu0 %v4092
    %4699 = vmatpush.bf16.msra.mxu0 %v4084
    %4700 = vmatpush.bf16.msra.mxu0 %v4076
    %4701 = vmatpush.bf16.msra.mxu0 %v4068
    %4702 = vmatpush.bf16.msra.mxu0 %v4060
    %4703 = vmatpush.bf16.msra.mxu0 %v4052
    %4704 = vmatpush.bf16.msra.mxu0 %v4044
    %4705 = vmatpush.bf16.msra.mxu0 %v4036
    %4706 = vmatmul.bf16.gmra.mxu0 %v3046
    %v4707 = vpop.f32.mrf.mxu0
    %v4708 = vadd.f32 %v4659, %v4707
    %v4709 = vpop.f32.mrf.mxu0
    %v4710 = vadd.f32 %v4661, %v4709
    %4711 = vmatmul.bf16.gmra.mxu0 %v3050
    %v4712 = vpop.f32.mrf.mxu0
    %v4713 = vadd.f32 %v4664, %v4712
    %v4714 = vpop.f32.mrf.mxu0
    %v4715 = vadd.f32 %v4666, %v4714
    %4716 = vmatmul.bf16.gmra.mxu0 %v3054
    %v4717 = vpop.f32.mrf.mxu0
    %v4718 = vadd.f32 %v4669, %v4717
    %v4719 = vpop.f32.mrf.mxu0
    %v4720 = vadd.f32 %v4671, %v4719
    %4721 = vmatmul.bf16.gmra.mxu0 %v3058
    %v4722 = vpop.f32.mrf.mxu0
    %v4723 = vadd.f32 %v4674, %v4722
    %v4724 = vpop.f32.mrf.mxu0
    %v4725 = vadd.f32 %v4676, %v4724
    %4726 = vmatmul.bf16.gmra.mxu0 %v3062
    %v4727 = vpop.f32.mrf.mxu0
    %v4728 = vadd.f32 %v4679, %v4727
    %v4729 = vpop.f32.mrf.mxu0
    %v4730 = vadd.f32 %v4681, %v4729
    %4731 = vmatmul.bf16.gmra.mxu0 %v3066
    %v4732 = vpop.f32.mrf.mxu0
    %v4733 = vadd.f32 %v4684, %v4732
    %v4734 = vpop.f32.mrf.mxu0
    %v4735 = vadd.f32 %v4686, %v4734
    %4736 = vmatmul.bf16.gmra.mxu0 %v3070
    %v4737 = vpop.f32.mrf.mxu0
    %v4738 = vadd.f32 %v4689, %v4737
    %v4739 = vpop.f32.mrf.mxu0
    %v4740 = vadd.f32 %v4691, %v4739
    %4741 = vmatmul.bf16.gmra.mxu0 %v3074
    %v4742 = vpop.f32.mrf.mxu0
    %v4743 = vadd.f32 %v4694, %v4742
    %v4744 = vpop.f32.mrf.mxu0
    %v4745 = vadd.f32 %v4696, %v4744
    %4746 = vdwg.mxu0
    %4747 = vmatpush.bf16.msra.mxu0 %v3901
    %4748 = vmatpush.bf16.msra.mxu0 %v3893
    %4749 = vmatpush.bf16.msra.mxu0 %v3885
    %4750 = vmatpush.bf16.msra.mxu0 %v3877
    %4751 = vmatpush.bf16.msra.mxu0 %v3869
    %4752 = vmatpush.bf16.msra.mxu0 %v3861
    %4753 = vmatpush.bf16.msra.mxu0 %v3853
    %4754 = vmatpush.bf16.msra.mxu0 %v3845
    %4755 = vmatmul.bf16.gmra.mxu0 %v3043
    %v4756 = vpop.f32.mrf.mxu0
    %v4757 = vadd.f32 0.0, %v4756
    %v4758 = vpop.f32.mrf.mxu0
    %v4759 = vadd.f32 0.0, %v4758
    %4760 = vmatmul.bf16.gmra.mxu0 %v3047
    %v4761 = vpop.f32.mrf.mxu0
    %v4762 = vadd.f32 0.0, %v4761
    %v4763 = vpop.f32.mrf.mxu0
    %v4764 = vadd.f32 0.0, %v4763
    %4765 = vmatmul.bf16.gmra.mxu0 %v3051
    %v4766 = vpop.f32.mrf.mxu0
    %v4767 = vadd.f32 0.0, %v4766
    %v4768 = vpop.f32.mrf.mxu0
    %v4769 = vadd.f32 0.0, %v4768
    %4770 = vmatmul.bf16.gmra.mxu0 %v3055
    %v4771 = vpop.f32.mrf.mxu0
    %v4772 = vadd.f32 0.0, %v4771
    %v4773 = vpop.f32.mrf.mxu0
    %v4774 = vadd.f32 0.0, %v4773
    %4775 = vmatmul.bf16.gmra.mxu0 %v3059
    %v4776 = vpop.f32.mrf.mxu0
    %v4777 = vadd.f32 0.0, %v4776
    %v4778 = vpop.f32.mrf.mxu0
    %v4779 = vadd.f32 0.0, %v4778
    %4780 = vmatmul.bf16.gmra.mxu0 %v3063
    %v4781 = vpop.f32.mrf.mxu0
    %v4782 = vadd.f32 0.0, %v4781
    %v4783 = vpop.f32.mrf.mxu0
    %v4784 = vadd.f32 0.0, %v4783
    %4785 = vmatmul.bf16.gmra.mxu0 %v3067
    %v4786 = vpop.f32.mrf.mxu0
    %v4787 = vadd.f32 0.0, %v4786
    %v4788 = vpop.f32.mrf.mxu0
    %v4789 = vadd.f32 0.0, %v4788
    %4790 = vmatmul.bf16.gmra.mxu0 %v3071
    %v4791 = vpop.f32.mrf.mxu0
    %v4792 = vadd.f32 0.0, %v4791
    %v4793 = vpop.f32.mrf.mxu0
    %v4794 = vadd.f32 0.0, %v4793
    %4795 = vdwg.mxu0
    %4796 = vmatpush.bf16.msra.mxu0 %v3965
    %4797 = vmatpush.bf16.msra.mxu0 %v3957
    %4798 = vmatpush.bf16.msra.mxu0 %v3949
    %4799 = vmatpush.bf16.msra.mxu0 %v3941
    %4800 = vmatpush.bf16.msra.mxu0 %v3933
    %4801 = vmatpush.bf16.msra.mxu0 %v3925
    %4802 = vmatpush.bf16.msra.mxu0 %v3917
    %4803 = vmatpush.bf16.msra.mxu0 %v3909
    %4804 = vmatmul.bf16.gmra.mxu0 %v3044
    %v4805 = vpop.f32.mrf.mxu0
    %v4806 = vadd.f32 %v4757, %v4805
    %v4807 = vpop.f32.mrf.mxu0
    %v4808 = vadd.f32 %v4759, %v4807
    %4809 = vmatmul.bf16.gmra.mxu0 %v3048
    %v4810 = vpop.f32.mrf.mxu0
    %v4811 = vadd.f32 %v4762, %v4810
    %v4812 = vpop.f32.mrf.mxu0
    %v4813 = vadd.f32 %v4764, %v4812
    %4814 = vmatmul.bf16.gmra.mxu0 %v3052
    %v4815 = vpop.f32.mrf.mxu0
    %v4816 = vadd.f32 %v4767, %v4815
    %v4817 = vpop.f32.mrf.mxu0
    %v4818 = vadd.f32 %v4769, %v4817
    %4819 = vmatmul.bf16.gmra.mxu0 %v3056
    %v4820 = vpop.f32.mrf.mxu0
    %v4821 = vadd.f32 %v4772, %v4820
    %v4822 = vpop.f32.mrf.mxu0
    %v4823 = vadd.f32 %v4774, %v4822
    %4824 = vmatmul.bf16.gmra.mxu0 %v3060
    %v4825 = vpop.f32.mrf.mxu0
    %v4826 = vadd.f32 %v4777, %v4825
    %v4827 = vpop.f32.mrf.mxu0
    %v4828 = vadd.f32 %v4779, %v4827
    %4829 = vmatmul.bf16.gmra.mxu0 %v3064
    %v4830 = vpop.f32.mrf.mxu0
    %v4831 = vadd.f32 %v4782, %v4830
    %v4832 = vpop.f32.mrf.mxu0
    %v4833 = vadd.f32 %v4784, %v4832
    %4834 = vmatmul.bf16.gmra.mxu0 %v3068
    %v4835 = vpop.f32.mrf.mxu0
    %v4836 = vadd.f32 %v4787, %v4835
    %v4837 = vpop.f32.mrf.mxu0
    %v4838 = vadd.f32 %v4789, %v4837
    %4839 = vmatmul.bf16.gmra.mxu0 %v3072
    %v4840 = vpop.f32.mrf.mxu0
    %v4841 = vadd.f32 %v4792, %v4840
    %v4842 = vpop.f32.mrf.mxu0
    %v4843 = vadd.f32 %v4794, %v4842
    %4844 = vdwg.mxu0
    %4845 = vmatpush.bf16.msra.mxu0 %v4029
    %4846 = vmatpush.bf16.msra.mxu0 %v4021
    %4847 = vmatpush.bf16.msra.mxu0 %v4013
    %4848 = vmatpush.bf16.msra.mxu0 %v4005
    %4849 = vmatpush.bf16.msra.mxu0 %v3997
    %4850 = vmatpush.bf16.msra.mxu0 %v3989
    %4851 = vmatpush.bf16.msra.mxu0 %v3981
    %4852 = vmatpush.bf16.msra.mxu0 %v3973
    %4853 = vmatmul.bf16.gmra.mxu0 %v3045
    %v4854 = vpop.f32.mrf.mxu0
    %v4855 = vadd.f32 %v4806, %v4854
    %v4856 = vpop.f32.mrf.mxu0
    %v4857 = vadd.f32 %v4808, %v4856
    %4858 = vmatmul.bf16.gmra.mxu0 %v3049
    %v4859 = vpop.f32.mrf.mxu0
    %v4860 = vadd.f32 %v4811, %v4859
    %v4861 = vpop.f32.mrf.mxu0
    %v4862 = vadd.f32 %v4813, %v4861
    %4863 = vmatmul.bf16.gmra.mxu0 %v3053
    %v4864 = vpop.f32.mrf.mxu0
    %v4865 = vadd.f32 %v4816, %v4864
    %v4866 = vpop.f32.mrf.mxu0
    %v4867 = vadd.f32 %v4818, %v4866
    %4868 = vmatmul.bf16.gmra.mxu0 %v3057
    %v4869 = vpop.f32.mrf.mxu0
    %v4870 = vadd.f32 %v4821, %v4869
    %v4871 = vpop.f32.mrf.mxu0
    %v4872 = vadd.f32 %v4823, %v4871
    %4873 = vmatmul.bf16.gmra.mxu0 %v3061
    %v4874 = vpop.f32.mrf.mxu0
    %v4875 = vadd.f32 %v4826, %v4874
    %v4876 = vpop.f32.mrf.mxu0
    %v4877 = vadd.f32 %v4828, %v4876
    %4878 = vmatmul.bf16.gmra.mxu0 %v3065
    %v4879 = vpop.f32.mrf.mxu0
    %v4880 = vadd.f32 %v4831, %v4879
    %v4881 = vpop.f32.mrf.mxu0
    %v4882 = vadd.f32 %v4833, %v4881
    %4883 = vmatmul.bf16.gmra.mxu0 %v3069
    %v4884 = vpop.f32.mrf.mxu0
    %v4885 = vadd.f32 %v4836, %v4884
    %v4886 = vpop.f32.mrf.mxu0
    %v4887 = vadd.f32 %v4838, %v4886
    %4888 = vmatmul.bf16.gmra.mxu0 %v3073
    %v4889 = vpop.f32.mrf.mxu0
    %v4890 = vadd.f32 %v4841, %v4889
    %v4891 = vpop.f32.mrf.mxu0
    %v4892 = vadd.f32 %v4843, %v4891
    %4893 = vdwg.mxu0
    %4894 = vmatpush.bf16.msra.mxu0 %v4093
    %4895 = vmatpush.bf16.msra.mxu0 %v4085
    %4896 = vmatpush.bf16.msra.mxu0 %v4077
    %4897 = vmatpush.bf16.msra.mxu0 %v4069
    %4898 = vmatpush.bf16.msra.mxu0 %v4061
    %4899 = vmatpush.bf16.msra.mxu0 %v4053
    %4900 = vmatpush.bf16.msra.mxu0 %v4045
    %4901 = vmatpush.bf16.msra.mxu0 %v4037
    %4902 = vmatmul.bf16.gmra.mxu0 %v3046
    %v4903 = vpop.f32.mrf.mxu0
    %v4904 = vadd.f32 %v4855, %v4903
    %v4905 = vpop.f32.mrf.mxu0
    %v4906 = vadd.f32 %v4857, %v4905
    %4907 = vmatmul.bf16.gmra.mxu0 %v3050
    %v4908 = vpop.f32.mrf.mxu0
    %v4909 = vadd.f32 %v4860, %v4908
    %v4910 = vpop.f32.mrf.mxu0
    %v4911 = vadd.f32 %v4862, %v4910
    %4912 = vmatmul.bf16.gmra.mxu0 %v3054
    %v4913 = vpop.f32.mrf.mxu0
    %v4914 = vadd.f32 %v4865, %v4913
    %v4915 = vpop.f32.mrf.mxu0
    %v4916 = vadd.f32 %v4867, %v4915
    %4917 = vmatmul.bf16.gmra.mxu0 %v3058
    %v4918 = vpop.f32.mrf.mxu0
    %v4919 = vadd.f32 %v4870, %v4918
    %v4920 = vpop.f32.mrf.mxu0
    %v4921 = vadd.f32 %v4872, %v4920
    %4922 = vmatmul.bf16.gmra.mxu0 %v3062
    %v4923 = vpop.f32.mrf.mxu0
    %v4924 = vadd.f32 %v4875, %v4923
    %v4925 = vpop.f32.mrf.mxu0
    %v4926 = vadd.f32 %v4877, %v4925
    %4927 = vmatmul.bf16.gmra.mxu0 %v3066
    %v4928 = vpop.f32.mrf.mxu0
    %v4929 = vadd.f32 %v4880, %v4928
    %v4930 = vpop.f32.mrf.mxu0
    %v4931 = vadd.f32 %v4882, %v4930
    %4932 = vmatmul.bf16.gmra.mxu0 %v3070
    %v4933 = vpop.f32.mrf.mxu0
    %v4934 = vadd.f32 %v4885, %v4933
    %v4935 = vpop.f32.mrf.mxu0
    %v4936 = vadd.f32 %v4887, %v4935
    %4937 = vmatmul.bf16.gmra.mxu0 %v3074
    %v4938 = vpop.f32.mrf.mxu0
    %v4939 = vadd.f32 %v4890, %v4938
    %v4940 = vpop.f32.mrf.mxu0
    %v4941 = vadd.f32 %v4892, %v4940
    %4942 = vdwg.mxu0
    %4943 = vmatpush.bf16.msra.mxu0 %v3902
    %4944 = vmatpush.bf16.msra.mxu0 %v3894
    %4945 = vmatpush.bf16.msra.mxu0 %v3886
    %4946 = vmatpush.bf16.msra.mxu0 %v3878
    %4947 = vmatpush.bf16.msra.mxu0 %v3870
    %4948 = vmatpush.bf16.msra.mxu0 %v3862
    %4949 = vmatpush.bf16.msra.mxu0 %v3854
    %4950 = vmatpush.bf16.msra.mxu0 %v3846
    %4951 = vmatmul.bf16.gmra.mxu0 %v3043
    %v4952 = vpop.f32.mrf.mxu0
    %v4953 = vadd.f32 0.0, %v4952
    %v4954 = vpop.f32.mrf.mxu0
    %v4955 = vadd.f32 0.0, %v4954
    %4956 = vmatmul.bf16.gmra.mxu0 %v3047
    %v4957 = vpop.f32.mrf.mxu0
    %v4958 = vadd.f32 0.0, %v4957
    %v4959 = vpop.f32.mrf.mxu0
    %v4960 = vadd.f32 0.0, %v4959
    %4961 = vmatmul.bf16.gmra.mxu0 %v3051
    %v4962 = vpop.f32.mrf.mxu0
    %v4963 = vadd.f32 0.0, %v4962
    %v4964 = vpop.f32.mrf.mxu0
    %v4965 = vadd.f32 0.0, %v4964
    %4966 = vmatmul.bf16.gmra.mxu0 %v3055
    %v4967 = vpop.f32.mrf.mxu0
    %v4968 = vadd.f32 0.0, %v4967
    %v4969 = vpop.f32.mrf.mxu0
    %v4970 = vadd.f32 0.0, %v4969
    %4971 = vmatmul.bf16.gmra.mxu0 %v3059
    %v4972 = vpop.f32.mrf.mxu0
    %v4973 = vadd.f32 0.0, %v4972
    %v4974 = vpop.f32.mrf.mxu0
    %v4975 = vadd.f32 0.0, %v4974
    %4976 = vmatmul.bf16.gmra.mxu0 %v3063
    %v4977 = vpop.f32.mrf.mxu0
    %v4978 = vadd.f32 0.0, %v4977
    %v4979 = vpop.f32.mrf.mxu0
    %v4980 = vadd.f32 0.0, %v4979
    %4981 = vmatmul.bf16.gmra.mxu0 %v3067
    %v4982 = vpop.f32.mrf.mxu0
    %v4983 = vadd.f32 0.0, %v4982
    %v4984 = vpop.f32.mrf.mxu0
    %v4985 = vadd.f32 0.0, %v4984
    %4986 = vmatmul.bf16.gmra.mxu0 %v3071
    %v4987 = vpop.f32.mrf.mxu0
    %v4988 = vadd.f32 0.0, %v4987
    %v4989 = vpop.f32.mrf.mxu0
    %v4990 = vadd.f32 0.0, %v4989
    %4991 = vdwg.mxu0
    %4992 = vmatpush.bf16.msra.mxu0 %v3966
    %4993 = vmatpush.bf16.msra.mxu0 %v3958
    %4994 = vmatpush.bf16.msra.mxu0 %v3950
    %4995 = vmatpush.bf16.msra.mxu0 %v3942
    %4996 = vmatpush.bf16.msra.mxu0 %v3934
    %4997 = vmatpush.bf16.msra.mxu0 %v3926
    %4998 = vmatpush.bf16.msra.mxu0 %v3918
    %4999 = vmatpush.bf16.msra.mxu0 %v3910
    %5000 = vmatmul.bf16.gmra.mxu0 %v3044
    %v5001 = vpop.f32.mrf.mxu0
    %v5002 = vadd.f32 %v4953, %v5001
    %v5003 = vpop.f32.mrf.mxu0
    %v5004 = vadd.f32 %v4955, %v5003
    %5005 = vmatmul.bf16.gmra.mxu0 %v3048
    %v5006 = vpop.f32.mrf.mxu0
    %v5007 = vadd.f32 %v4958, %v5006
    %v5008 = vpop.f32.mrf.mxu0
    %v5009 = vadd.f32 %v4960, %v5008
    %5010 = vmatmul.bf16.gmra.mxu0 %v3052
    %v5011 = vpop.f32.mrf.mxu0
    %v5012 = vadd.f32 %v4963, %v5011
    %v5013 = vpop.f32.mrf.mxu0
    %v5014 = vadd.f32 %v4965, %v5013
    %5015 = vmatmul.bf16.gmra.mxu0 %v3056
    %v5016 = vpop.f32.mrf.mxu0
    %v5017 = vadd.f32 %v4968, %v5016
    %v5018 = vpop.f32.mrf.mxu0
    %v5019 = vadd.f32 %v4970, %v5018
    %5020 = vmatmul.bf16.gmra.mxu0 %v3060
    %v5021 = vpop.f32.mrf.mxu0
    %v5022 = vadd.f32 %v4973, %v5021
    %v5023 = vpop.f32.mrf.mxu0
    %v5024 = vadd.f32 %v4975, %v5023
    %5025 = vmatmul.bf16.gmra.mxu0 %v3064
    %v5026 = vpop.f32.mrf.mxu0
    %v5027 = vadd.f32 %v4978, %v5026
    %v5028 = vpop.f32.mrf.mxu0
    %v5029 = vadd.f32 %v4980, %v5028
    %5030 = vmatmul.bf16.gmra.mxu0 %v3068
    %v5031 = vpop.f32.mrf.mxu0
    %v5032 = vadd.f32 %v4983, %v5031
    %v5033 = vpop.f32.mrf.mxu0
    %v5034 = vadd.f32 %v4985, %v5033
    %5035 = vmatmul.bf16.gmra.mxu0 %v3072
    %v5036 = vpop.f32.mrf.mxu0
    %v5037 = vadd.f32 %v4988, %v5036
    %v5038 = vpop.f32.mrf.mxu0
    %v5039 = vadd.f32 %v4990, %v5038
    %5040 = vdwg.mxu0
    %5041 = vmatpush.bf16.msra.mxu0 %v4030
    %5042 = vmatpush.bf16.msra.mxu0 %v4022
    %5043 = vmatpush.bf16.msra.mxu0 %v4014
    %5044 = vmatpush.bf16.msra.mxu0 %v4006
    %5045 = vmatpush.bf16.msra.mxu0 %v3998
    %5046 = vmatpush.bf16.msra.mxu0 %v3990
    %5047 = vmatpush.bf16.msra.mxu0 %v3982
    %5048 = vmatpush.bf16.msra.mxu0 %v3974
    %5049 = vmatmul.bf16.gmra.mxu0 %v3045
    %v5050 = vpop.f32.mrf.mxu0
    %v5051 = vadd.f32 %v5002, %v5050
    %v5052 = vpop.f32.mrf.mxu0
    %v5053 = vadd.f32 %v5004, %v5052
    %5054 = vmatmul.bf16.gmra.mxu0 %v3049
    %v5055 = vpop.f32.mrf.mxu0
    %v5056 = vadd.f32 %v5007, %v5055
    %v5057 = vpop.f32.mrf.mxu0
    %v5058 = vadd.f32 %v5009, %v5057
    %5059 = vmatmul.bf16.gmra.mxu0 %v3053
    %v5060 = vpop.f32.mrf.mxu0
    %v5061 = vadd.f32 %v5012, %v5060
    %v5062 = vpop.f32.mrf.mxu0
    %v5063 = vadd.f32 %v5014, %v5062
    %5064 = vmatmul.bf16.gmra.mxu0 %v3057
    %v5065 = vpop.f32.mrf.mxu0
    %v5066 = vadd.f32 %v5017, %v5065
    %v5067 = vpop.f32.mrf.mxu0
    %v5068 = vadd.f32 %v5019, %v5067
    %5069 = vmatmul.bf16.gmra.mxu0 %v3061
    %v5070 = vpop.f32.mrf.mxu0
    %v5071 = vadd.f32 %v5022, %v5070
    %v5072 = vpop.f32.mrf.mxu0
    %v5073 = vadd.f32 %v5024, %v5072
    %5074 = vmatmul.bf16.gmra.mxu0 %v3065
    %v5075 = vpop.f32.mrf.mxu0
    %v5076 = vadd.f32 %v5027, %v5075
    %v5077 = vpop.f32.mrf.mxu0
    %v5078 = vadd.f32 %v5029, %v5077
    %5079 = vmatmul.bf16.gmra.mxu0 %v3069
    %v5080 = vpop.f32.mrf.mxu0
    %v5081 = vadd.f32 %v5032, %v5080
    %v5082 = vpop.f32.mrf.mxu0
    %v5083 = vadd.f32 %v5034, %v5082
    %5084 = vmatmul.bf16.gmra.mxu0 %v3073
    %v5085 = vpop.f32.mrf.mxu0
    %v5086 = vadd.f32 %v5037, %v5085
    %v5087 = vpop.f32.mrf.mxu0
    %v5088 = vadd.f32 %v5039, %v5087
    %5089 = vdwg.mxu0
    %5090 = vmatpush.bf16.msra.mxu0 %v4094
    %5091 = vmatpush.bf16.msra.mxu0 %v4086
    %5092 = vmatpush.bf16.msra.mxu0 %v4078
    %5093 = vmatpush.bf16.msra.mxu0 %v4070
    %5094 = vmatpush.bf16.msra.mxu0 %v4062
    %5095 = vmatpush.bf16.msra.mxu0 %v4054
    %5096 = vmatpush.bf16.msra.mxu0 %v4046
    %5097 = vmatpush.bf16.msra.mxu0 %v4038
    %5098 = vmatmul.bf16.gmra.mxu0 %v3046
    %v5099 = vpop.f32.mrf.mxu0
    %v5100 = vadd.f32 %v5051, %v5099
    %v5101 = vpop.f32.mrf.mxu0
    %v5102 = vadd.f32 %v5053, %v5101
    %5103 = vmatmul.bf16.gmra.mxu0 %v3050
    %v5104 = vpop.f32.mrf.mxu0
    %v5105 = vadd.f32 %v5056, %v5104
    %v5106 = vpop.f32.mrf.mxu0
    %v5107 = vadd.f32 %v5058, %v5106
    %5108 = vmatmul.bf16.gmra.mxu0 %v3054
    %v5109 = vpop.f32.mrf.mxu0
    %v5110 = vadd.f32 %v5061, %v5109
    %v5111 = vpop.f32.mrf.mxu0
    %v5112 = vadd.f32 %v5063, %v5111
    %5113 = vmatmul.bf16.gmra.mxu0 %v3058
    %v5114 = vpop.f32.mrf.mxu0
    %v5115 = vadd.f32 %v5066, %v5114
    %v5116 = vpop.f32.mrf.mxu0
    %v5117 = vadd.f32 %v5068, %v5116
    %5118 = vmatmul.bf16.gmra.mxu0 %v3062
    %v5119 = vpop.f32.mrf.mxu0
    %v5120 = vadd.f32 %v5071, %v5119
    %v5121 = vpop.f32.mrf.mxu0
    %v5122 = vadd.f32 %v5073, %v5121
    %5123 = vmatmul.bf16.gmra.mxu0 %v3066
    %v5124 = vpop.f32.mrf.mxu0
    %v5125 = vadd.f32 %v5076, %v5124
    %v5126 = vpop.f32.mrf.mxu0
    %v5127 = vadd.f32 %v5078, %v5126
    %5128 = vmatmul.bf16.gmra.mxu0 %v3070
    %v5129 = vpop.f32.mrf.mxu0
    %v5130 = vadd.f32 %v5081, %v5129
    %v5131 = vpop.f32.mrf.mxu0
    %v5132 = vadd.f32 %v5083, %v5131
    %5133 = vmatmul.bf16.gmra.mxu0 %v3074
    %v5134 = vpop.f32.mrf.mxu0
    %v5135 = vadd.f32 %v5086, %v5134
    %v5136 = vpop.f32.mrf.mxu0
    %v5137 = vadd.f32 %v5088, %v5136
    %5138 = vdwg.mxu0
    %5139 = vmatpush.bf16.msra.mxu0 %v3903
    %5140 = vmatpush.bf16.msra.mxu0 %v3895
    %5141 = vmatpush.bf16.msra.mxu0 %v3887
    %5142 = vmatpush.bf16.msra.mxu0 %v3879
    %5143 = vmatpush.bf16.msra.mxu0 %v3871
    %5144 = vmatpush.bf16.msra.mxu0 %v3863
    %5145 = vmatpush.bf16.msra.mxu0 %v3855
    %5146 = vmatpush.bf16.msra.mxu0 %v3847
    %5147 = vmatmul.bf16.gmra.mxu0 %v3043
    %v5148 = vpop.f32.mrf.mxu0
    %v5149 = vadd.f32 0.0, %v5148
    %v5150 = vpop.f32.mrf.mxu0
    %v5151 = vadd.f32 0.0, %v5150
    %5152 = vmatmul.bf16.gmra.mxu0 %v3047
    %v5153 = vpop.f32.mrf.mxu0
    %v5154 = vadd.f32 0.0, %v5153
    %v5155 = vpop.f32.mrf.mxu0
    %v5156 = vadd.f32 0.0, %v5155
    %5157 = vmatmul.bf16.gmra.mxu0 %v3051
    %v5158 = vpop.f32.mrf.mxu0
    %v5159 = vadd.f32 0.0, %v5158
    %v5160 = vpop.f32.mrf.mxu0
    %v5161 = vadd.f32 0.0, %v5160
    %5162 = vmatmul.bf16.gmra.mxu0 %v3055
    %v5163 = vpop.f32.mrf.mxu0
    %v5164 = vadd.f32 0.0, %v5163
    %v5165 = vpop.f32.mrf.mxu0
    %v5166 = vadd.f32 0.0, %v5165
    %5167 = vmatmul.bf16.gmra.mxu0 %v3059
    %v5168 = vpop.f32.mrf.mxu0
    %v5169 = vadd.f32 0.0, %v5168
    %v5170 = vpop.f32.mrf.mxu0
    %v5171 = vadd.f32 0.0, %v5170
    %5172 = vmatmul.bf16.gmra.mxu0 %v3063
    %v5173 = vpop.f32.mrf.mxu0
    %v5174 = vadd.f32 0.0, %v5173
    %v5175 = vpop.f32.mrf.mxu0
    %v5176 = vadd.f32 0.0, %v5175
    %5177 = vmatmul.bf16.gmra.mxu0 %v3067
    %v5178 = vpop.f32.mrf.mxu0
    %v5179 = vadd.f32 0.0, %v5178
    %v5180 = vpop.f32.mrf.mxu0
    %v5181 = vadd.f32 0.0, %v5180
    %5182 = vmatmul.bf16.gmra.mxu0 %v3071
    %v5183 = vpop.f32.mrf.mxu0
    %v5184 = vadd.f32 0.0, %v5183
    %v5185 = vpop.f32.mrf.mxu0
    %v5186 = vadd.f32 0.0, %v5185
    %5187 = vdwg.mxu0
    %5188 = vmatpush.bf16.msra.mxu0 %v3967
    %5189 = vmatpush.bf16.msra.mxu0 %v3959
    %5190 = vmatpush.bf16.msra.mxu0 %v3951
    %5191 = vmatpush.bf16.msra.mxu0 %v3943
    %5192 = vmatpush.bf16.msra.mxu0 %v3935
    %5193 = vmatpush.bf16.msra.mxu0 %v3927
    %5194 = vmatpush.bf16.msra.mxu0 %v3919
    %5195 = vmatpush.bf16.msra.mxu0 %v3911
    %5196 = vmatmul.bf16.gmra.mxu0 %v3044
    %v5197 = vpop.f32.mrf.mxu0
    %v5198 = vadd.f32 %v5149, %v5197
    %v5199 = vpop.f32.mrf.mxu0
    %v5200 = vadd.f32 %v5151, %v5199
    %5201 = vmatmul.bf16.gmra.mxu0 %v3048
    %v5202 = vpop.f32.mrf.mxu0
    %v5203 = vadd.f32 %v5154, %v5202
    %v5204 = vpop.f32.mrf.mxu0
    %v5205 = vadd.f32 %v5156, %v5204
    %5206 = vmatmul.bf16.gmra.mxu0 %v3052
    %v5207 = vpop.f32.mrf.mxu0
    %v5208 = vadd.f32 %v5159, %v5207
    %v5209 = vpop.f32.mrf.mxu0
    %v5210 = vadd.f32 %v5161, %v5209
    %5211 = vmatmul.bf16.gmra.mxu0 %v3056
    %v5212 = vpop.f32.mrf.mxu0
    %v5213 = vadd.f32 %v5164, %v5212
    %v5214 = vpop.f32.mrf.mxu0
    %v5215 = vadd.f32 %v5166, %v5214
    %5216 = vmatmul.bf16.gmra.mxu0 %v3060
    %v5217 = vpop.f32.mrf.mxu0
    %v5218 = vadd.f32 %v5169, %v5217
    %v5219 = vpop.f32.mrf.mxu0
    %v5220 = vadd.f32 %v5171, %v5219
    %5221 = vmatmul.bf16.gmra.mxu0 %v3064
    %v5222 = vpop.f32.mrf.mxu0
    %v5223 = vadd.f32 %v5174, %v5222
    %v5224 = vpop.f32.mrf.mxu0
    %v5225 = vadd.f32 %v5176, %v5224
    %5226 = vmatmul.bf16.gmra.mxu0 %v3068
    %v5227 = vpop.f32.mrf.mxu0
    %v5228 = vadd.f32 %v5179, %v5227
    %v5229 = vpop.f32.mrf.mxu0
    %v5230 = vadd.f32 %v5181, %v5229
    %5231 = vmatmul.bf16.gmra.mxu0 %v3072
    %v5232 = vpop.f32.mrf.mxu0
    %v5233 = vadd.f32 %v5184, %v5232
    %v5234 = vpop.f32.mrf.mxu0
    %v5235 = vadd.f32 %v5186, %v5234
    %5236 = vdwg.mxu0
    %5237 = vmatpush.bf16.msra.mxu0 %v4031
    %5238 = vmatpush.bf16.msra.mxu0 %v4023
    %5239 = vmatpush.bf16.msra.mxu0 %v4015
    %5240 = vmatpush.bf16.msra.mxu0 %v4007
    %5241 = vmatpush.bf16.msra.mxu0 %v3999
    %5242 = vmatpush.bf16.msra.mxu0 %v3991
    %5243 = vmatpush.bf16.msra.mxu0 %v3983
    %5244 = vmatpush.bf16.msra.mxu0 %v3975
    %5245 = vmatmul.bf16.gmra.mxu0 %v3045
    %v5246 = vpop.f32.mrf.mxu0
    %v5247 = vadd.f32 %v5198, %v5246
    %v5248 = vpop.f32.mrf.mxu0
    %v5249 = vadd.f32 %v5200, %v5248
    %5250 = vmatmul.bf16.gmra.mxu0 %v3049
    %v5251 = vpop.f32.mrf.mxu0
    %v5252 = vadd.f32 %v5203, %v5251
    %v5253 = vpop.f32.mrf.mxu0
    %v5254 = vadd.f32 %v5205, %v5253
    %5255 = vmatmul.bf16.gmra.mxu0 %v3053
    %v5256 = vpop.f32.mrf.mxu0
    %v5257 = vadd.f32 %v5208, %v5256
    %v5258 = vpop.f32.mrf.mxu0
    %v5259 = vadd.f32 %v5210, %v5258
    %5260 = vmatmul.bf16.gmra.mxu0 %v3057
    %v5261 = vpop.f32.mrf.mxu0
    %v5262 = vadd.f32 %v5213, %v5261
    %v5263 = vpop.f32.mrf.mxu0
    %v5264 = vadd.f32 %v5215, %v5263
    %5265 = vmatmul.bf16.gmra.mxu0 %v3061
    %v5266 = vpop.f32.mrf.mxu0
    %v5267 = vadd.f32 %v5218, %v5266
    %v5268 = vpop.f32.mrf.mxu0
    %v5269 = vadd.f32 %v5220, %v5268
    %5270 = vmatmul.bf16.gmra.mxu0 %v3065
    %v5271 = vpop.f32.mrf.mxu0
    %v5272 = vadd.f32 %v5223, %v5271
    %v5273 = vpop.f32.mrf.mxu0
    %v5274 = vadd.f32 %v5225, %v5273
    %5275 = vmatmul.bf16.gmra.mxu0 %v3069
    %v5276 = vpop.f32.mrf.mxu0
    %v5277 = vadd.f32 %v5228, %v5276
    %v5278 = vpop.f32.mrf.mxu0
    %v5279 = vadd.f32 %v5230, %v5278
    %5280 = vmatmul.bf16.gmra.mxu0 %v3073
    %v5281 = vpop.f32.mrf.mxu0
    %v5282 = vadd.f32 %v5233, %v5281
    %v5283 = vpop.f32.mrf.mxu0
    %v5284 = vadd.f32 %v5235, %v5283
    %5285 = vdwg.mxu0
    %5286 = vmatpush.bf16.msra.mxu0 %v4095
    %5287 = vmatpush.bf16.msra.mxu0 %v4087
    %5288 = vmatpush.bf16.msra.mxu0 %v4079
    %5289 = vmatpush.bf16.msra.mxu0 %v4071
    %5290 = vmatpush.bf16.msra.mxu0 %v4063
    %5291 = vmatpush.bf16.msra.mxu0 %v4055
    %5292 = vmatpush.bf16.msra.mxu0 %v4047
    %5293 = vmatpush.bf16.msra.mxu0 %v4039
    %5294 = vmatmul.bf16.gmra.mxu0 %v3046
    %v5295 = vpop.f32.mrf.mxu0
    %v5296 = vadd.f32 %v5247, %v5295
    %v5297 = vpop.f32.mrf.mxu0
    %v5298 = vadd.f32 %v5249, %v5297
    %5299 = vmatmul.bf16.gmra.mxu0 %v3050
    %v5300 = vpop.f32.mrf.mxu0
    %v5301 = vadd.f32 %v5252, %v5300
    %v5302 = vpop.f32.mrf.mxu0
    %v5303 = vadd.f32 %v5254, %v5302
    %5304 = vmatmul.bf16.gmra.mxu0 %v3054
    %v5305 = vpop.f32.mrf.mxu0
    %v5306 = vadd.f32 %v5257, %v5305
    %v5307 = vpop.f32.mrf.mxu0
    %v5308 = vadd.f32 %v5259, %v5307
    %5309 = vmatmul.bf16.gmra.mxu0 %v3058
    %v5310 = vpop.f32.mrf.mxu0
    %v5311 = vadd.f32 %v5262, %v5310
    %v5312 = vpop.f32.mrf.mxu0
    %v5313 = vadd.f32 %v5264, %v5312
    %5314 = vmatmul.bf16.gmra.mxu0 %v3062
    %v5315 = vpop.f32.mrf.mxu0
    %v5316 = vadd.f32 %v5267, %v5315
    %v5317 = vpop.f32.mrf.mxu0
    %v5318 = vadd.f32 %v5269, %v5317
    %5319 = vmatmul.bf16.gmra.mxu0 %v3066
    %v5320 = vpop.f32.mrf.mxu0
    %v5321 = vadd.f32 %v5272, %v5320
    %v5322 = vpop.f32.mrf.mxu0
    %v5323 = vadd.f32 %v5274, %v5322
    %5324 = vmatmul.bf16.gmra.mxu0 %v3070
    %v5325 = vpop.f32.mrf.mxu0
    %v5326 = vadd.f32 %v5277, %v5325
    %v5327 = vpop.f32.mrf.mxu0
    %v5328 = vadd.f32 %v5279, %v5327
    %5329 = vmatmul.bf16.gmra.mxu0 %v3074
    %v5330 = vpop.f32.mrf.mxu0
    %v5331 = vadd.f32 %v5282, %v5330
    %v5332 = vpop.f32.mrf.mxu0
    %v5333 = vadd.f32 %v5284, %v5332
    %5334 = vdwg.mxu0
    %5335 = vmatpush.bf16.msra.mxu0 %v3904
    %5336 = vmatpush.bf16.msra.mxu0 %v3896
    %5337 = vmatpush.bf16.msra.mxu0 %v3888
    %5338 = vmatpush.bf16.msra.mxu0 %v3880
    %5339 = vmatpush.bf16.msra.mxu0 %v3872
    %5340 = vmatpush.bf16.msra.mxu0 %v3864
    %5341 = vmatpush.bf16.msra.mxu0 %v3856
    %5342 = vmatpush.bf16.msra.mxu0 %v3848
    %5343 = vmatmul.bf16.gmra.mxu0 %v3043
    %v5344 = vpop.f32.mrf.mxu0
    %v5345 = vadd.f32 0.0, %v5344
    %v5346 = vpop.f32.mrf.mxu0
    %v5347 = vadd.f32 0.0, %v5346
    %5348 = vmatmul.bf16.gmra.mxu0 %v3047
    %v5349 = vpop.f32.mrf.mxu0
    %v5350 = vadd.f32 0.0, %v5349
    %v5351 = vpop.f32.mrf.mxu0
    %v5352 = vadd.f32 0.0, %v5351
    %5353 = vmatmul.bf16.gmra.mxu0 %v3051
    %v5354 = vpop.f32.mrf.mxu0
    %v5355 = vadd.f32 0.0, %v5354
    %v5356 = vpop.f32.mrf.mxu0
    %v5357 = vadd.f32 0.0, %v5356
    %5358 = vmatmul.bf16.gmra.mxu0 %v3055
    %v5359 = vpop.f32.mrf.mxu0
    %v5360 = vadd.f32 0.0, %v5359
    %v5361 = vpop.f32.mrf.mxu0
    %v5362 = vadd.f32 0.0, %v5361
    %5363 = vmatmul.bf16.gmra.mxu0 %v3059
    %v5364 = vpop.f32.mrf.mxu0
    %v5365 = vadd.f32 0.0, %v5364
    %v5366 = vpop.f32.mrf.mxu0
    %v5367 = vadd.f32 0.0, %v5366
    %5368 = vmatmul.bf16.gmra.mxu0 %v3063
    %v5369 = vpop.f32.mrf.mxu0
    %v5370 = vadd.f32 0.0, %v5369
    %v5371 = vpop.f32.mrf.mxu0
    %v5372 = vadd.f32 0.0, %v5371
    %5373 = vmatmul.bf16.gmra.mxu0 %v3067
    %v5374 = vpop.f32.mrf.mxu0
    %v5375 = vadd.f32 0.0, %v5374
    %v5376 = vpop.f32.mrf.mxu0
    %v5377 = vadd.f32 0.0, %v5376
    %5378 = vmatmul.bf16.gmra.mxu0 %v3071
    %v5379 = vpop.f32.mrf.mxu0
    %v5380 = vadd.f32 0.0, %v5379
    %v5381 = vpop.f32.mrf.mxu0
    %v5382 = vadd.f32 0.0, %v5381
    %5383 = vdwg.mxu0
    %5384 = vmatpush.bf16.msra.mxu0 %v3968
    %5385 = vmatpush.bf16.msra.mxu0 %v3960
    %5386 = vmatpush.bf16.msra.mxu0 %v3952
    %5387 = vmatpush.bf16.msra.mxu0 %v3944
    %5388 = vmatpush.bf16.msra.mxu0 %v3936
    %5389 = vmatpush.bf16.msra.mxu0 %v3928
    %5390 = vmatpush.bf16.msra.mxu0 %v3920
    %5391 = vmatpush.bf16.msra.mxu0 %v3912
    %5392 = vmatmul.bf16.gmra.mxu0 %v3044
    %v5393 = vpop.f32.mrf.mxu0
    %v5394 = vadd.f32 %v5345, %v5393
    %v5395 = vpop.f32.mrf.mxu0
    %v5396 = vadd.f32 %v5347, %v5395
    %5397 = vmatmul.bf16.gmra.mxu0 %v3048
    %v5398 = vpop.f32.mrf.mxu0
    %v5399 = vadd.f32 %v5350, %v5398
    %v5400 = vpop.f32.mrf.mxu0
    %v5401 = vadd.f32 %v5352, %v5400
    %5402 = vmatmul.bf16.gmra.mxu0 %v3052
    %v5403 = vpop.f32.mrf.mxu0
    %v5404 = vadd.f32 %v5355, %v5403
    %v5405 = vpop.f32.mrf.mxu0
    %v5406 = vadd.f32 %v5357, %v5405
    %5407 = vmatmul.bf16.gmra.mxu0 %v3056
    %v5408 = vpop.f32.mrf.mxu0
    %v5409 = vadd.f32 %v5360, %v5408
    %v5410 = vpop.f32.mrf.mxu0
    %v5411 = vadd.f32 %v5362, %v5410
    %5412 = vmatmul.bf16.gmra.mxu0 %v3060
    %v5413 = vpop.f32.mrf.mxu0
    %v5414 = vadd.f32 %v5365, %v5413
    %v5415 = vpop.f32.mrf.mxu0
    %v5416 = vadd.f32 %v5367, %v5415
    %5417 = vmatmul.bf16.gmra.mxu0 %v3064
    %v5418 = vpop.f32.mrf.mxu0
    %v5419 = vadd.f32 %v5370, %v5418
    %v5420 = vpop.f32.mrf.mxu0
    %v5421 = vadd.f32 %v5372, %v5420
    %5422 = vmatmul.bf16.gmra.mxu0 %v3068
    %v5423 = vpop.f32.mrf.mxu0
    %v5424 = vadd.f32 %v5375, %v5423
    %v5425 = vpop.f32.mrf.mxu0
    %v5426 = vadd.f32 %v5377, %v5425
    %5427 = vmatmul.bf16.gmra.mxu0 %v3072
    %v5428 = vpop.f32.mrf.mxu0
    %v5429 = vadd.f32 %v5380, %v5428
    %v5430 = vpop.f32.mrf.mxu0
    %v5431 = vadd.f32 %v5382, %v5430
    %5432 = vdwg.mxu0
    %5433 = vmatpush.bf16.msra.mxu0 %v4032
    %5434 = vmatpush.bf16.msra.mxu0 %v4024
    %5435 = vmatpush.bf16.msra.mxu0 %v4016
    %5436 = vmatpush.bf16.msra.mxu0 %v4008
    %5437 = vmatpush.bf16.msra.mxu0 %v4000
    %5438 = vmatpush.bf16.msra.mxu0 %v3992
    %5439 = vmatpush.bf16.msra.mxu0 %v3984
    %5440 = vmatpush.bf16.msra.mxu0 %v3976
    %5441 = vmatmul.bf16.gmra.mxu0 %v3045
    %v5442 = vpop.f32.mrf.mxu0
    %v5443 = vadd.f32 %v5394, %v5442
    %v5444 = vpop.f32.mrf.mxu0
    %v5445 = vadd.f32 %v5396, %v5444
    %5446 = vmatmul.bf16.gmra.mxu0 %v3049
    %v5447 = vpop.f32.mrf.mxu0
    %v5448 = vadd.f32 %v5399, %v5447
    %v5449 = vpop.f32.mrf.mxu0
    %v5450 = vadd.f32 %v5401, %v5449
    %5451 = vmatmul.bf16.gmra.mxu0 %v3053
    %v5452 = vpop.f32.mrf.mxu0
    %v5453 = vadd.f32 %v5404, %v5452
    %v5454 = vpop.f32.mrf.mxu0
    %v5455 = vadd.f32 %v5406, %v5454
    %5456 = vmatmul.bf16.gmra.mxu0 %v3057
    %v5457 = vpop.f32.mrf.mxu0
    %v5458 = vadd.f32 %v5409, %v5457
    %v5459 = vpop.f32.mrf.mxu0
    %v5460 = vadd.f32 %v5411, %v5459
    %5461 = vmatmul.bf16.gmra.mxu0 %v3061
    %v5462 = vpop.f32.mrf.mxu0
    %v5463 = vadd.f32 %v5414, %v5462
    %v5464 = vpop.f32.mrf.mxu0
    %v5465 = vadd.f32 %v5416, %v5464
    %5466 = vmatmul.bf16.gmra.mxu0 %v3065
    %v5467 = vpop.f32.mrf.mxu0
    %v5468 = vadd.f32 %v5419, %v5467
    %v5469 = vpop.f32.mrf.mxu0
    %v5470 = vadd.f32 %v5421, %v5469
    %5471 = vmatmul.bf16.gmra.mxu0 %v3069
    %v5472 = vpop.f32.mrf.mxu0
    %v5473 = vadd.f32 %v5424, %v5472
    %v5474 = vpop.f32.mrf.mxu0
    %v5475 = vadd.f32 %v5426, %v5474
    %5476 = vmatmul.bf16.gmra.mxu0 %v3073
    %v5477 = vpop.f32.mrf.mxu0
    %v5478 = vadd.f32 %v5429, %v5477
    %v5479 = vpop.f32.mrf.mxu0
    %v5480 = vadd.f32 %v5431, %v5479
    %5481 = vdwg.mxu0
    %5482 = vmatpush.bf16.msra.mxu0 %v4096
    %5483 = vmatpush.bf16.msra.mxu0 %v4088
    %5484 = vmatpush.bf16.msra.mxu0 %v4080
    %5485 = vmatpush.bf16.msra.mxu0 %v4072
    %5486 = vmatpush.bf16.msra.mxu0 %v4064
    %5487 = vmatpush.bf16.msra.mxu0 %v4056
    %5488 = vmatpush.bf16.msra.mxu0 %v4048
    %5489 = vmatpush.bf16.msra.mxu0 %v4040
    %5490 = vmatmul.bf16.gmra.mxu0 %v3046
    %v5491 = vpop.f32.mrf.mxu0
    %v5492 = vadd.f32 %v5443, %v5491
    %v5493 = vpop.f32.mrf.mxu0
    %v5494 = vadd.f32 %v5445, %v5493
    %5495 = vmatmul.bf16.gmra.mxu0 %v3050
    %v5496 = vpop.f32.mrf.mxu0
    %v5497 = vadd.f32 %v5448, %v5496
    %v5498 = vpop.f32.mrf.mxu0
    %v5499 = vadd.f32 %v5450, %v5498
    %5500 = vmatmul.bf16.gmra.mxu0 %v3054
    %v5501 = vpop.f32.mrf.mxu0
    %v5502 = vadd.f32 %v5453, %v5501
    %v5503 = vpop.f32.mrf.mxu0
    %v5504 = vadd.f32 %v5455, %v5503
    %5505 = vmatmul.bf16.gmra.mxu0 %v3058
    %v5506 = vpop.f32.mrf.mxu0
    %v5507 = vadd.f32 %v5458, %v5506
    %v5508 = vpop.f32.mrf.mxu0
    %v5509 = vadd.f32 %v5460, %v5508
    %5510 = vmatmul.bf16.gmra.mxu0 %v3062
    %v5511 = vpop.f32.mrf.mxu0
    %v5512 = vadd.f32 %v5463, %v5511
    %v5513 = vpop.f32.mrf.mxu0
    %v5514 = vadd.f32 %v5465, %v5513
    %5515 = vmatmul.bf16.gmra.mxu0 %v3066
    %v5516 = vpop.f32.mrf.mxu0
    %v5517 = vadd.f32 %v5468, %v5516
    %v5518 = vpop.f32.mrf.mxu0
    %v5519 = vadd.f32 %v5470, %v5518
    %5520 = vmatmul.bf16.gmra.mxu0 %v3070
    %v5521 = vpop.f32.mrf.mxu0
    %v5522 = vadd.f32 %v5473, %v5521
    %v5523 = vpop.f32.mrf.mxu0
    %v5524 = vadd.f32 %v5475, %v5523
    %5525 = vmatmul.bf16.gmra.mxu0 %v3074
    %v5526 = vpop.f32.mrf.mxu0
    %v5527 = vadd.f32 %v5478, %v5526
    %v5528 = vpop.f32.mrf.mxu0
    %v5529 = vadd.f32 %v5480, %v5528
    %5530 = vdwg.mxu0
    %5531 = vmatpush.bf16.msra.mxu0 %v3905
    %5532 = vmatpush.bf16.msra.mxu0 %v3897
    %5533 = vmatpush.bf16.msra.mxu0 %v3889
    %5534 = vmatpush.bf16.msra.mxu0 %v3881
    %5535 = vmatpush.bf16.msra.mxu0 %v3873
    %5536 = vmatpush.bf16.msra.mxu0 %v3865
    %5537 = vmatpush.bf16.msra.mxu0 %v3857
    %5538 = vmatpush.bf16.msra.mxu0 %v3849
    %5539 = vmatmul.bf16.gmra.mxu0 %v3043
    %v5540 = vpop.f32.mrf.mxu0
    %v5541 = vadd.f32 0.0, %v5540
    %v5542 = vpop.f32.mrf.mxu0
    %v5543 = vadd.f32 0.0, %v5542
    %5544 = vmatmul.bf16.gmra.mxu0 %v3047
    %v5545 = vpop.f32.mrf.mxu0
    %v5546 = vadd.f32 0.0, %v5545
    %v5547 = vpop.f32.mrf.mxu0
    %v5548 = vadd.f32 0.0, %v5547
    %5549 = vmatmul.bf16.gmra.mxu0 %v3051
    %v5550 = vpop.f32.mrf.mxu0
    %v5551 = vadd.f32 0.0, %v5550
    %v5552 = vpop.f32.mrf.mxu0
    %v5553 = vadd.f32 0.0, %v5552
    %5554 = vmatmul.bf16.gmra.mxu0 %v3055
    %v5555 = vpop.f32.mrf.mxu0
    %v5556 = vadd.f32 0.0, %v5555
    %v5557 = vpop.f32.mrf.mxu0
    %v5558 = vadd.f32 0.0, %v5557
    %5559 = vmatmul.bf16.gmra.mxu0 %v3059
    %v5560 = vpop.f32.mrf.mxu0
    %v5561 = vadd.f32 0.0, %v5560
    %v5562 = vpop.f32.mrf.mxu0
    %v5563 = vadd.f32 0.0, %v5562
    %5564 = vmatmul.bf16.gmra.mxu0 %v3063
    %v5565 = vpop.f32.mrf.mxu0
    %v5566 = vadd.f32 0.0, %v5565
    %v5567 = vpop.f32.mrf.mxu0
    %v5568 = vadd.f32 0.0, %v5567
    %5569 = vmatmul.bf16.gmra.mxu0 %v3067
    %v5570 = vpop.f32.mrf.mxu0
    %v5571 = vadd.f32 0.0, %v5570
    %v5572 = vpop.f32.mrf.mxu0
    %v5573 = vadd.f32 0.0, %v5572
    %5574 = vmatmul.bf16.gmra.mxu0 %v3071
    %v5575 = vpop.f32.mrf.mxu0
    %v5576 = vadd.f32 0.0, %v5575
    %v5577 = vpop.f32.mrf.mxu0
    %v5578 = vadd.f32 0.0, %v5577
    %5579 = vdwg.mxu0
    %5580 = vmatpush.bf16.msra.mxu0 %v3969
    %5581 = vmatpush.bf16.msra.mxu0 %v3961
    %5582 = vmatpush.bf16.msra.mxu0 %v3953
    %5583 = vmatpush.bf16.msra.mxu0 %v3945
    %5584 = vmatpush.bf16.msra.mxu0 %v3937
    %5585 = vmatpush.bf16.msra.mxu0 %v3929
    %5586 = vmatpush.bf16.msra.mxu0 %v3921
    %5587 = vmatpush.bf16.msra.mxu0 %v3913
    %5588 = vmatmul.bf16.gmra.mxu0 %v3044
    %v5589 = vpop.f32.mrf.mxu0
    %v5590 = vadd.f32 %v5541, %v5589
    %v5591 = vpop.f32.mrf.mxu0
    %v5592 = vadd.f32 %v5543, %v5591
    %5593 = vmatmul.bf16.gmra.mxu0 %v3048
    %v5594 = vpop.f32.mrf.mxu0
    %v5595 = vadd.f32 %v5546, %v5594
    %v5596 = vpop.f32.mrf.mxu0
    %v5597 = vadd.f32 %v5548, %v5596
    %5598 = vmatmul.bf16.gmra.mxu0 %v3052
    %v5599 = vpop.f32.mrf.mxu0
    %v5600 = vadd.f32 %v5551, %v5599
    %v5601 = vpop.f32.mrf.mxu0
    %v5602 = vadd.f32 %v5553, %v5601
    %5603 = vmatmul.bf16.gmra.mxu0 %v3056
    %v5604 = vpop.f32.mrf.mxu0
    %v5605 = vadd.f32 %v5556, %v5604
    %v5606 = vpop.f32.mrf.mxu0
    %v5607 = vadd.f32 %v5558, %v5606
    %5608 = vmatmul.bf16.gmra.mxu0 %v3060
    %v5609 = vpop.f32.mrf.mxu0
    %v5610 = vadd.f32 %v5561, %v5609
    %v5611 = vpop.f32.mrf.mxu0
    %v5612 = vadd.f32 %v5563, %v5611
    %5613 = vmatmul.bf16.gmra.mxu0 %v3064
    %v5614 = vpop.f32.mrf.mxu0
    %v5615 = vadd.f32 %v5566, %v5614
    %v5616 = vpop.f32.mrf.mxu0
    %v5617 = vadd.f32 %v5568, %v5616
    %5618 = vmatmul.bf16.gmra.mxu0 %v3068
    %v5619 = vpop.f32.mrf.mxu0
    %v5620 = vadd.f32 %v5571, %v5619
    %v5621 = vpop.f32.mrf.mxu0
    %v5622 = vadd.f32 %v5573, %v5621
    %5623 = vmatmul.bf16.gmra.mxu0 %v3072
    %v5624 = vpop.f32.mrf.mxu0
    %v5625 = vadd.f32 %v5576, %v5624
    %v5626 = vpop.f32.mrf.mxu0
    %v5627 = vadd.f32 %v5578, %v5626
    %5628 = vdwg.mxu0
    %5629 = vmatpush.bf16.msra.mxu0 %v4033
    %5630 = vmatpush.bf16.msra.mxu0 %v4025
    %5631 = vmatpush.bf16.msra.mxu0 %v4017
    %5632 = vmatpush.bf16.msra.mxu0 %v4009
    %5633 = vmatpush.bf16.msra.mxu0 %v4001
    %5634 = vmatpush.bf16.msra.mxu0 %v3993
    %5635 = vmatpush.bf16.msra.mxu0 %v3985
    %5636 = vmatpush.bf16.msra.mxu0 %v3977
    %5637 = vmatmul.bf16.gmra.mxu0 %v3045
    %v5638 = vpop.f32.mrf.mxu0
    %v5639 = vadd.f32 %v5590, %v5638
    %v5640 = vpop.f32.mrf.mxu0
    %v5641 = vadd.f32 %v5592, %v5640
    %5642 = vmatmul.bf16.gmra.mxu0 %v3049
    %v5643 = vpop.f32.mrf.mxu0
    %v5644 = vadd.f32 %v5595, %v5643
    %v5645 = vpop.f32.mrf.mxu0
    %v5646 = vadd.f32 %v5597, %v5645
    %5647 = vmatmul.bf16.gmra.mxu0 %v3053
    %v5648 = vpop.f32.mrf.mxu0
    %v5649 = vadd.f32 %v5600, %v5648
    %v5650 = vpop.f32.mrf.mxu0
    %v5651 = vadd.f32 %v5602, %v5650
    %5652 = vmatmul.bf16.gmra.mxu0 %v3057
    %v5653 = vpop.f32.mrf.mxu0
    %v5654 = vadd.f32 %v5605, %v5653
    %v5655 = vpop.f32.mrf.mxu0
    %v5656 = vadd.f32 %v5607, %v5655
    %5657 = vmatmul.bf16.gmra.mxu0 %v3061
    %v5658 = vpop.f32.mrf.mxu0
    %v5659 = vadd.f32 %v5610, %v5658
    %v5660 = vpop.f32.mrf.mxu0
    %v5661 = vadd.f32 %v5612, %v5660
    %5662 = vmatmul.bf16.gmra.mxu0 %v3065
    %v5663 = vpop.f32.mrf.mxu0
    %v5664 = vadd.f32 %v5615, %v5663
    %v5665 = vpop.f32.mrf.mxu0
    %v5666 = vadd.f32 %v5617, %v5665
    %5667 = vmatmul.bf16.gmra.mxu0 %v3069
    %v5668 = vpop.f32.mrf.mxu0
    %v5669 = vadd.f32 %v5620, %v5668
    %v5670 = vpop.f32.mrf.mxu0
    %v5671 = vadd.f32 %v5622, %v5670
    %5672 = vmatmul.bf16.gmra.mxu0 %v3073
    %v5673 = vpop.f32.mrf.mxu0
    %v5674 = vadd.f32 %v5625, %v5673
    %v5675 = vpop.f32.mrf.mxu0
    %v5676 = vadd.f32 %v5627, %v5675
    %5677 = vdwg.mxu0
    %5678 = vmatpush.bf16.msra.mxu0 %v4097
    %5679 = vmatpush.bf16.msra.mxu0 %v4089
    %5680 = vmatpush.bf16.msra.mxu0 %v4081
    %5681 = vmatpush.bf16.msra.mxu0 %v4073
    %5682 = vmatpush.bf16.msra.mxu0 %v4065
    %5683 = vmatpush.bf16.msra.mxu0 %v4057
    %5684 = vmatpush.bf16.msra.mxu0 %v4049
    %5685 = vmatpush.bf16.msra.mxu0 %v4041
    %5686 = vmatmul.bf16.gmra.mxu0 %v3046
    %v5687 = vpop.f32.mrf.mxu0
    %v5688 = vadd.f32 %v5639, %v5687
    %v5689 = vpop.f32.mrf.mxu0
    %v5690 = vadd.f32 %v5641, %v5689
    %5691 = vmatmul.bf16.gmra.mxu0 %v3050
    %v5692 = vpop.f32.mrf.mxu0
    %v5693 = vadd.f32 %v5644, %v5692
    %v5694 = vpop.f32.mrf.mxu0
    %v5695 = vadd.f32 %v5646, %v5694
    %5696 = vmatmul.bf16.gmra.mxu0 %v3054
    %v5697 = vpop.f32.mrf.mxu0
    %v5698 = vadd.f32 %v5649, %v5697
    %v5699 = vpop.f32.mrf.mxu0
    %v5700 = vadd.f32 %v5651, %v5699
    %5701 = vmatmul.bf16.gmra.mxu0 %v3058
    %v5702 = vpop.f32.mrf.mxu0
    %v5703 = vadd.f32 %v5654, %v5702
    %v5704 = vpop.f32.mrf.mxu0
    %v5705 = vadd.f32 %v5656, %v5704
    %5706 = vmatmul.bf16.gmra.mxu0 %v3062
    %v5707 = vpop.f32.mrf.mxu0
    %v5708 = vadd.f32 %v5659, %v5707
    %v5709 = vpop.f32.mrf.mxu0
    %v5710 = vadd.f32 %v5661, %v5709
    %5711 = vmatmul.bf16.gmra.mxu0 %v3066
    %v5712 = vpop.f32.mrf.mxu0
    %v5713 = vadd.f32 %v5664, %v5712
    %v5714 = vpop.f32.mrf.mxu0
    %v5715 = vadd.f32 %v5666, %v5714
    %5716 = vmatmul.bf16.gmra.mxu0 %v3070
    %v5717 = vpop.f32.mrf.mxu0
    %v5718 = vadd.f32 %v5669, %v5717
    %v5719 = vpop.f32.mrf.mxu0
    %v5720 = vadd.f32 %v5671, %v5719
    %5721 = vmatmul.bf16.gmra.mxu0 %v3074
    %v5722 = vpop.f32.mrf.mxu0
    %v5723 = vadd.f32 %v5674, %v5722
    %v5724 = vpop.f32.mrf.mxu0
    %v5725 = vadd.f32 %v5676, %v5724
    %5726 = vdwg.mxu0
    %5727 = vmatpush.bf16.msra.mxu0 %v3906
    %5728 = vmatpush.bf16.msra.mxu0 %v3898
    %5729 = vmatpush.bf16.msra.mxu0 %v3890
    %5730 = vmatpush.bf16.msra.mxu0 %v3882
    %5731 = vmatpush.bf16.msra.mxu0 %v3874
    %5732 = vmatpush.bf16.msra.mxu0 %v3866
    %5733 = vmatpush.bf16.msra.mxu0 %v3858
    %5734 = vmatpush.bf16.msra.mxu0 %v3850
    %5735 = vmatmul.bf16.gmra.mxu0 %v3043
    %v5736 = vpop.f32.mrf.mxu0
    %v5737 = vadd.f32 0.0, %v5736
    %v5738 = vpop.f32.mrf.mxu0
    %v5739 = vadd.f32 0.0, %v5738
    %5740 = vmatmul.bf16.gmra.mxu0 %v3047
    %v5741 = vpop.f32.mrf.mxu0
    %v5742 = vadd.f32 0.0, %v5741
    %v5743 = vpop.f32.mrf.mxu0
    %v5744 = vadd.f32 0.0, %v5743
    %5745 = vmatmul.bf16.gmra.mxu0 %v3051
    %v5746 = vpop.f32.mrf.mxu0
    %v5747 = vadd.f32 0.0, %v5746
    %v5748 = vpop.f32.mrf.mxu0
    %v5749 = vadd.f32 0.0, %v5748
    %5750 = vmatmul.bf16.gmra.mxu0 %v3055
    %v5751 = vpop.f32.mrf.mxu0
    %v5752 = vadd.f32 0.0, %v5751
    %v5753 = vpop.f32.mrf.mxu0
    %v5754 = vadd.f32 0.0, %v5753
    %5755 = vmatmul.bf16.gmra.mxu0 %v3059
    %v5756 = vpop.f32.mrf.mxu0
    %v5757 = vadd.f32 0.0, %v5756
    %v5758 = vpop.f32.mrf.mxu0
    %v5759 = vadd.f32 0.0, %v5758
    %5760 = vmatmul.bf16.gmra.mxu0 %v3063
    %v5761 = vpop.f32.mrf.mxu0
    %v5762 = vadd.f32 0.0, %v5761
    %v5763 = vpop.f32.mrf.mxu0
    %v5764 = vadd.f32 0.0, %v5763
    %5765 = vmatmul.bf16.gmra.mxu0 %v3067
    %v5766 = vpop.f32.mrf.mxu0
    %v5767 = vadd.f32 0.0, %v5766
    %v5768 = vpop.f32.mrf.mxu0
    %v5769 = vadd.f32 0.0, %v5768
    %5770 = vmatmul.bf16.gmra.mxu0 %v3071
    %v5771 = vpop.f32.mrf.mxu0
    %v5772 = vadd.f32 0.0, %v5771
    %v5773 = vpop.f32.mrf.mxu0
    %v5774 = vadd.f32 0.0, %v5773
    %5775 = vdwg.mxu0
    %5776 = vmatpush.bf16.msra.mxu0 %v3970
    %5777 = vmatpush.bf16.msra.mxu0 %v3962
    %5778 = vmatpush.bf16.msra.mxu0 %v3954
    %5779 = vmatpush.bf16.msra.mxu0 %v3946
    %5780 = vmatpush.bf16.msra.mxu0 %v3938
    %5781 = vmatpush.bf16.msra.mxu0 %v3930
    %5782 = vmatpush.bf16.msra.mxu0 %v3922
    %5783 = vmatpush.bf16.msra.mxu0 %v3914
    %5784 = vmatmul.bf16.gmra.mxu0 %v3044
    %v5785 = vpop.f32.mrf.mxu0
    %v5786 = vadd.f32 %v5737, %v5785
    %v5787 = vpop.f32.mrf.mxu0
    %v5788 = vadd.f32 %v5739, %v5787
    %5789 = vmatmul.bf16.gmra.mxu0 %v3048
    %v5790 = vpop.f32.mrf.mxu0
    %v5791 = vadd.f32 %v5742, %v5790
    %v5792 = vpop.f32.mrf.mxu0
    %v5793 = vadd.f32 %v5744, %v5792
    %5794 = vmatmul.bf16.gmra.mxu0 %v3052
    %v5795 = vpop.f32.mrf.mxu0
    %v5796 = vadd.f32 %v5747, %v5795
    %v5797 = vpop.f32.mrf.mxu0
    %v5798 = vadd.f32 %v5749, %v5797
    %5799 = vmatmul.bf16.gmra.mxu0 %v3056
    %v5800 = vpop.f32.mrf.mxu0
    %v5801 = vadd.f32 %v5752, %v5800
    %v5802 = vpop.f32.mrf.mxu0
    %v5803 = vadd.f32 %v5754, %v5802
    %5804 = vmatmul.bf16.gmra.mxu0 %v3060
    %v5805 = vpop.f32.mrf.mxu0
    %v5806 = vadd.f32 %v5757, %v5805
    %v5807 = vpop.f32.mrf.mxu0
    %v5808 = vadd.f32 %v5759, %v5807
    %5809 = vmatmul.bf16.gmra.mxu0 %v3064
    %v5810 = vpop.f32.mrf.mxu0
    %v5811 = vadd.f32 %v5762, %v5810
    %v5812 = vpop.f32.mrf.mxu0
    %v5813 = vadd.f32 %v5764, %v5812
    %5814 = vmatmul.bf16.gmra.mxu0 %v3068
    %v5815 = vpop.f32.mrf.mxu0
    %v5816 = vadd.f32 %v5767, %v5815
    %v5817 = vpop.f32.mrf.mxu0
    %v5818 = vadd.f32 %v5769, %v5817
    %5819 = vmatmul.bf16.gmra.mxu0 %v3072
    %v5820 = vpop.f32.mrf.mxu0
    %v5821 = vadd.f32 %v5772, %v5820
    %v5822 = vpop.f32.mrf.mxu0
    %v5823 = vadd.f32 %v5774, %v5822
    %5824 = vdwg.mxu0
    %5825 = vmatpush.bf16.msra.mxu0 %v4034
    %5826 = vmatpush.bf16.msra.mxu0 %v4026
    %5827 = vmatpush.bf16.msra.mxu0 %v4018
    %5828 = vmatpush.bf16.msra.mxu0 %v4010
    %5829 = vmatpush.bf16.msra.mxu0 %v4002
    %5830 = vmatpush.bf16.msra.mxu0 %v3994
    %5831 = vmatpush.bf16.msra.mxu0 %v3986
    %5832 = vmatpush.bf16.msra.mxu0 %v3978
    %5833 = vmatmul.bf16.gmra.mxu0 %v3045
    %v5834 = vpop.f32.mrf.mxu0
    %v5835 = vadd.f32 %v5786, %v5834
    %v5836 = vpop.f32.mrf.mxu0
    %v5837 = vadd.f32 %v5788, %v5836
    %5838 = vmatmul.bf16.gmra.mxu0 %v3049
    %v5839 = vpop.f32.mrf.mxu0
    %v5840 = vadd.f32 %v5791, %v5839
    %v5841 = vpop.f32.mrf.mxu0
    %v5842 = vadd.f32 %v5793, %v5841
    %5843 = vmatmul.bf16.gmra.mxu0 %v3053
    %v5844 = vpop.f32.mrf.mxu0
    %v5845 = vadd.f32 %v5796, %v5844
    %v5846 = vpop.f32.mrf.mxu0
    %v5847 = vadd.f32 %v5798, %v5846
    %5848 = vmatmul.bf16.gmra.mxu0 %v3057
    %v5849 = vpop.f32.mrf.mxu0
    %v5850 = vadd.f32 %v5801, %v5849
    %v5851 = vpop.f32.mrf.mxu0
    %v5852 = vadd.f32 %v5803, %v5851
    %5853 = vmatmul.bf16.gmra.mxu0 %v3061
    %v5854 = vpop.f32.mrf.mxu0
    %v5855 = vadd.f32 %v5806, %v5854
    %v5856 = vpop.f32.mrf.mxu0
    %v5857 = vadd.f32 %v5808, %v5856
    %5858 = vmatmul.bf16.gmra.mxu0 %v3065
    %v5859 = vpop.f32.mrf.mxu0
    %v5860 = vadd.f32 %v5811, %v5859
    %v5861 = vpop.f32.mrf.mxu0
    %v5862 = vadd.f32 %v5813, %v5861
    %5863 = vmatmul.bf16.gmra.mxu0 %v3069
    %v5864 = vpop.f32.mrf.mxu0
    %v5865 = vadd.f32 %v5816, %v5864
    %v5866 = vpop.f32.mrf.mxu0
    %v5867 = vadd.f32 %v5818, %v5866
    %5868 = vmatmul.bf16.gmra.mxu0 %v3073
    %v5869 = vpop.f32.mrf.mxu0
    %v5870 = vadd.f32 %v5821, %v5869
    %v5871 = vpop.f32.mrf.mxu0
    %v5872 = vadd.f32 %v5823, %v5871
    %5873 = vdwg.mxu0
    %5874 = vmatpush.bf16.msra.mxu0 %v4098
    %5875 = vmatpush.bf16.msra.mxu0 %v4090
    %5876 = vmatpush.bf16.msra.mxu0 %v4082
    %5877 = vmatpush.bf16.msra.mxu0 %v4074
    %5878 = vmatpush.bf16.msra.mxu0 %v4066
    %5879 = vmatpush.bf16.msra.mxu0 %v4058
    %5880 = vmatpush.bf16.msra.mxu0 %v4050
    %5881 = vmatpush.bf16.msra.mxu0 %v4042
    %5882 = vmatmul.bf16.gmra.mxu0 %v3046
    %v5883 = vpop.f32.mrf.mxu0
    %v5884 = vadd.f32 %v5835, %v5883
    %v5885 = vpop.f32.mrf.mxu0
    %v5886 = vadd.f32 %v5837, %v5885
    %5887 = vmatmul.bf16.gmra.mxu0 %v3050
    %v5888 = vpop.f32.mrf.mxu0
    %v5889 = vadd.f32 %v5840, %v5888
    %v5890 = vpop.f32.mrf.mxu0
    %v5891 = vadd.f32 %v5842, %v5890
    %5892 = vmatmul.bf16.gmra.mxu0 %v3054
    %v5893 = vpop.f32.mrf.mxu0
    %v5894 = vadd.f32 %v5845, %v5893
    %v5895 = vpop.f32.mrf.mxu0
    %v5896 = vadd.f32 %v5847, %v5895
    %5897 = vmatmul.bf16.gmra.mxu0 %v3058
    %v5898 = vpop.f32.mrf.mxu0
    %v5899 = vadd.f32 %v5850, %v5898
    %v5900 = vpop.f32.mrf.mxu0
    %v5901 = vadd.f32 %v5852, %v5900
    %5902 = vmatmul.bf16.gmra.mxu0 %v3062
    %v5903 = vpop.f32.mrf.mxu0
    %v5904 = vadd.f32 %v5855, %v5903
    %v5905 = vpop.f32.mrf.mxu0
    %v5906 = vadd.f32 %v5857, %v5905
    %5907 = vmatmul.bf16.gmra.mxu0 %v3066
    %v5908 = vpop.f32.mrf.mxu0
    %v5909 = vadd.f32 %v5860, %v5908
    %v5910 = vpop.f32.mrf.mxu0
    %v5911 = vadd.f32 %v5862, %v5910
    %5912 = vmatmul.bf16.gmra.mxu0 %v3070
    %v5913 = vpop.f32.mrf.mxu0
    %v5914 = vadd.f32 %v5865, %v5913
    %v5915 = vpop.f32.mrf.mxu0
    %v5916 = vadd.f32 %v5867, %v5915
    %5917 = vmatmul.bf16.gmra.mxu0 %v3074
    %v5918 = vpop.f32.mrf.mxu0
    %v5919 = vadd.f32 %v5870, %v5918
    %v5920 = vpop.f32.mrf.mxu0
    %v5921 = vadd.f32 %v5872, %v5920
    %5922 = vdwg.mxu0
    %v5923 = vadd.f32 %v4512, %v4514
    %v5924 = vadd.f32 %v5923, %v4517
    %v5925 = vadd.f32 %v5924, %v4519
    %v5926 = vadd.f32 %v5925, %v4522
    %v5927 = vadd.f32 %v5926, %v4524
    %v5928 = vadd.f32 %v5927, %v4527
    %v5929 = vadd.f32 %v5928, %v4529
    %v5930 = vadd.f32 %v5929, %v4532
    %v5931 = vadd.f32 %v5930, %v4534
    %v5932 = vadd.f32 %v5931, %v4537
    %v5933 = vadd.f32 %v5932, %v4539
    %v5934 = vadd.f32 %v5933, %v4542
    %v5935 = vadd.f32 %v5934, %v4544
    %v5936 = vadd.f32 %v5935, %v4547
    %v5937 = vadd.f32 %v5936, %v4549
    %v5938 = vrot.slane %v5937, 4
    %v5939 = vadd.f32 %v5937, %v5938
    %v5940 = vrot.slane %v5939, 2
    %v5941 = vadd.f32 %v5939, %v5940
    %v5942 = vrot.slane %v5941, 1
    %v5943 = vadd.f32 %v5941, %v5942
    %v5944 = vadd.f32 %v4708, %v4710
    %v5945 = vadd.f32 %v5944, %v4713
    %v5946 = vadd.f32 %v5945, %v4715
    %v5947 = vadd.f32 %v5946, %v4718
    %v5948 = vadd.f32 %v5947, %v4720
    %v5949 = vadd.f32 %v5948, %v4723
    %v5950 = vadd.f32 %v5949, %v4725
    %v5951 = vadd.f32 %v5950, %v4728
    %v5952 = vadd.f32 %v5951, %v4730
    %v5953 = vadd.f32 %v5952, %v4733
    %v5954 = vadd.f32 %v5953, %v4735
    %v5955 = vadd.f32 %v5954, %v4738
    %v5956 = vadd.f32 %v5955, %v4740
    %v5957 = vadd.f32 %v5956, %v4743
    %v5958 = vadd.f32 %v5957, %v4745
    %v5959 = vrot.slane %v5958, 4
    %v5960 = vadd.f32 %v5958, %v5959
    %v5961 = vrot.slane %v5960, 2
    %v5962 = vadd.f32 %v5960, %v5961
    %v5963 = vrot.slane %v5962, 1
    %v5964 = vadd.f32 %v5962, %v5963
    %v5965 = vadd.f32 %v4904, %v4906
    %v5966 = vadd.f32 %v5965, %v4909
    %v5967 = vadd.f32 %v5966, %v4911
    %v5968 = vadd.f32 %v5967, %v4914
    %v5969 = vadd.f32 %v5968, %v4916
    %v5970 = vadd.f32 %v5969, %v4919
    %v5971 = vadd.f32 %v5970, %v4921
    %v5972 = vadd.f32 %v5971, %v4924
    %v5973 = vadd.f32 %v5972, %v4926
    %v5974 = vadd.f32 %v5973, %v4929
    %v5975 = vadd.f32 %v5974, %v4931
    %v5976 = vadd.f32 %v5975, %v4934
    %v5977 = vadd.f32 %v5976, %v4936
    %v5978 = vadd.f32 %v5977, %v4939
    %v5979 = vadd.f32 %v5978, %v4941
    %v5980 = vrot.slane %v5979, 4
    %v5981 = vadd.f32 %v5979, %v5980
    %v5982 = vrot.slane %v5981, 2
    %v5983 = vadd.f32 %v5981, %v5982
    %v5984 = vrot.slane %v5983, 1
    %v5985 = vadd.f32 %v5983, %v5984
    %v5986 = vadd.f32 %v5100, %v5102
    %v5987 = vadd.f32 %v5986, %v5105
    %v5988 = vadd.f32 %v5987, %v5107
    %v5989 = vadd.f32 %v5988, %v5110
    %v5990 = vadd.f32 %v5989, %v5112
    %v5991 = vadd.f32 %v5990, %v5115
    %v5992 = vadd.f32 %v5991, %v5117
    %v5993 = vadd.f32 %v5992, %v5120
    %v5994 = vadd.f32 %v5993, %v5122
    %v5995 = vadd.f32 %v5994, %v5125
    %v5996 = vadd.f32 %v5995, %v5127
    %v5997 = vadd.f32 %v5996, %v5130
    %v5998 = vadd.f32 %v5997, %v5132
    %v5999 = vadd.f32 %v5998, %v5135
    %v6000 = vadd.f32 %v5999, %v5137
    %v6001 = vrot.slane %v6000, 4
    %v6002 = vadd.f32 %v6000, %v6001
    %v6003 = vrot.slane %v6002, 2
    %v6004 = vadd.f32 %v6002, %v6003
    %v6005 = vrot.slane %v6004, 1
    %v6006 = vadd.f32 %v6004, %v6005
    %v6007 = vadd.f32 %v5296, %v5298
    %v6008 = vadd.f32 %v6007, %v5301
    %v6009 = vadd.f32 %v6008, %v5303
    %v6010 = vadd.f32 %v6009, %v5306
    %v6011 = vadd.f32 %v6010, %v5308
    %v6012 = vadd.f32 %v6011, %v5311
    %v6013 = vadd.f32 %v6012, %v5313
    %v6014 = vadd.f32 %v6013, %v5316
    %v6015 = vadd.f32 %v6014, %v5318
    %v6016 = vadd.f32 %v6015, %v5321
    %v6017 = vadd.f32 %v6016, %v5323
    %v6018 = vadd.f32 %v6017, %v5326
    %v6019 = vadd.f32 %v6018, %v5328
    %v6020 = vadd.f32 %v6019, %v5331
    %v6021 = vadd.f32 %v6020, %v5333
    %v6022 = vrot.slane %v6021, 4
    %v6023 = vadd.f32 %v6021, %v6022
    %v6024 = vrot.slane %v6023, 2
    %v6025 = vadd.f32 %v6023, %v6024
    %v6026 = vrot.slane %v6025, 1
    %v6027 = vadd.f32 %v6025, %v6026
    %v6028 = vadd.f32 %v5492, %v5494
    %v6029 = vadd.f32 %v6028, %v5497
    %v6030 = vadd.f32 %v6029, %v5499
    %v6031 = vadd.f32 %v6030, %v5502
    %v6032 = vadd.f32 %v6031, %v5504
    %v6033 = vadd.f32 %v6032, %v5507
    %v6034 = vadd.f32 %v6033, %v5509
    %v6035 = vadd.f32 %v6034, %v5512
    %v6036 = vadd.f32 %v6035, %v5514
    %v6037 = vadd.f32 %v6036, %v5517
    %v6038 = vadd.f32 %v6037, %v5519
    %v6039 = vadd.f32 %v6038, %v5522
    %v6040 = vadd.f32 %v6039, %v5524
    %v6041 = vadd.f32 %v6040, %v5527
    %v6042 = vadd.f32 %v6041, %v5529
    %v6043 = vrot.slane %v6042, 4
    %v6044 = vadd.f32 %v6042, %v6043
    %v6045 = vrot.slane %v6044, 2
    %v6046 = vadd.f32 %v6044, %v6045
    %v6047 = vrot.slane %v6046, 1
    %v6048 = vadd.f32 %v6046, %v6047
    %v6049 = vadd.f32 %v5688, %v5690
    %v6050 = vadd.f32 %v6049, %v5693
    %v6051 = vadd.f32 %v6050, %v5695
    %v6052 = vadd.f32 %v6051, %v5698
    %v6053 = vadd.f32 %v6052, %v5700
    %v6054 = vadd.f32 %v6053, %v5703
    %v6055 = vadd.f32 %v6054, %v5705
    %v6056 = vadd.f32 %v6055, %v5708
    %v6057 = vadd.f32 %v6056, %v5710
    %v6058 = vadd.f32 %v6057, %v5713
    %v6059 = vadd.f32 %v6058, %v5715
    %v6060 = vadd.f32 %v6059, %v5718
    %v6061 = vadd.f32 %v6060, %v5720
    %v6062 = vadd.f32 %v6061, %v5723
    %v6063 = vadd.f32 %v6062, %v5725
    %v6064 = vrot.slane %v6063, 4
    %v6065 = vadd.f32 %v6063, %v6064
    %v6066 = vrot.slane %v6065, 2
    %v6067 = vadd.f32 %v6065, %v6066
    %v6068 = vrot.slane %v6067, 1
    %v6069 = vadd.f32 %v6067, %v6068
    %v6070 = vadd.f32 %v5884, %v5886
    %v6071 = vadd.f32 %v6070, %v5889
    %v6072 = vadd.f32 %v6071, %v5891
    %v6073 = vadd.f32 %v6072, %v5894
    %v6074 = vadd.f32 %v6073, %v5896
    %v6075 = vadd.f32 %v6074, %v5899
    %v6076 = vadd.f32 %v6075, %v5901
    %v6077 = vadd.f32 %v6076, %v5904
    %v6078 = vadd.f32 %v6077, %v5906
    %v6079 = vadd.f32 %v6078, %v5909
    %v6080 = vadd.f32 %v6079, %v5911
    %v6081 = vadd.f32 %v6080, %v5914
    %v6082 = vadd.f32 %v6081, %v5916
    %v6083 = vadd.f32 %v6082, %v5919
    %v6084 = vadd.f32 %v6083, %v5921
    %v6085 = vrot.slane %v6084, 4
    %v6086 = vadd.f32 %v6084, %v6085
    %v6087 = vrot.slane %v6086, 2
    %v6088 = vadd.f32 %v6086, %v6087
    %v6089 = vrot.slane %v6088, 1
    %v6090 = vadd.f32 %v6088, %v6089
    %v6091 = vmul.f32 %v4512, %v4512
    %v6092 = vmul.f32 %v4708, %v4708
    %v6093 = vmul.f32 %v4904, %v4904
    %v6094 = vmul.f32 %v5100, %v5100
    %v6095 = vmul.f32 %v5296, %v5296
    %v6096 = vmul.f32 %v5492, %v5492
    %v6097 = vmul.f32 %v5688, %v5688
    %v6098 = vmul.f32 %v5884, %v5884
    %v6099 = vmul.f32 %v4514, %v4514
    %v6100 = vmul.f32 %v4710, %v4710
    %v6101 = vmul.f32 %v4906, %v4906
    %v6102 = vmul.f32 %v5102, %v5102
    %v6103 = vmul.f32 %v5298, %v5298
    %v6104 = vmul.f32 %v5494, %v5494
    %v6105 = vmul.f32 %v5690, %v5690
    %v6106 = vmul.f32 %v5886, %v5886
    %v6107 = vmul.f32 %v4517, %v4517
    %v6108 = vmul.f32 %v4713, %v4713
    %v6109 = vmul.f32 %v4909, %v4909
    %v6110 = vmul.f32 %v5105, %v5105
    %v6111 = vmul.f32 %v5301, %v5301
    %v6112 = vmul.f32 %v5497, %v5497
    %v6113 = vmul.f32 %v5693, %v5693
    %v6114 = vmul.f32 %v5889, %v5889
    %v6115 = vmul.f32 %v4519, %v4519
    %v6116 = vmul.f32 %v4715, %v4715
    %v6117 = vmul.f32 %v4911, %v4911
    %v6118 = vmul.f32 %v5107, %v5107
    %v6119 = vmul.f32 %v5303, %v5303
    %v6120 = vmul.f32 %v5499, %v5499
    %v6121 = vmul.f32 %v5695, %v5695
    %v6122 = vmul.f32 %v5891, %v5891
    %v6123 = vmul.f32 %v4522, %v4522
    %v6124 = vmul.f32 %v4718, %v4718
    %v6125 = vmul.f32 %v4914, %v4914
    %v6126 = vmul.f32 %v5110, %v5110
    %v6127 = vmul.f32 %v5306, %v5306
    %v6128 = vmul.f32 %v5502, %v5502
    %v6129 = vmul.f32 %v5698, %v5698
    %v6130 = vmul.f32 %v5894, %v5894
    %v6131 = vmul.f32 %v4524, %v4524
    %v6132 = vmul.f32 %v4720, %v4720
    %v6133 = vmul.f32 %v4916, %v4916
    %v6134 = vmul.f32 %v5112, %v5112
    %v6135 = vmul.f32 %v5308, %v5308
    %v6136 = vmul.f32 %v5504, %v5504
    %v6137 = vmul.f32 %v5700, %v5700
    %v6138 = vmul.f32 %v5896, %v5896
    %v6139 = vmul.f32 %v4527, %v4527
    %v6140 = vmul.f32 %v4723, %v4723
    %v6141 = vmul.f32 %v4919, %v4919
    %v6142 = vmul.f32 %v5115, %v5115
    %v6143 = vmul.f32 %v5311, %v5311
    %v6144 = vmul.f32 %v5507, %v5507
    %v6145 = vmul.f32 %v5703, %v5703
    %v6146 = vmul.f32 %v5899, %v5899
    %v6147 = vmul.f32 %v4529, %v4529
    %v6148 = vmul.f32 %v4725, %v4725
    %v6149 = vmul.f32 %v4921, %v4921
    %v6150 = vmul.f32 %v5117, %v5117
    %v6151 = vmul.f32 %v5313, %v5313
    %v6152 = vmul.f32 %v5509, %v5509
    %v6153 = vmul.f32 %v5705, %v5705
    %v6154 = vmul.f32 %v5901, %v5901
    %v6155 = vmul.f32 %v4532, %v4532
    %v6156 = vmul.f32 %v4728, %v4728
    %v6157 = vmul.f32 %v4924, %v4924
    %v6158 = vmul.f32 %v5120, %v5120
    %v6159 = vmul.f32 %v5316, %v5316
    %v6160 = vmul.f32 %v5512, %v5512
    %v6161 = vmul.f32 %v5708, %v5708
    %v6162 = vmul.f32 %v5904, %v5904
    %v6163 = vmul.f32 %v4534, %v4534
    %v6164 = vmul.f32 %v4730, %v4730
    %v6165 = vmul.f32 %v4926, %v4926
    %v6166 = vmul.f32 %v5122, %v5122
    %v6167 = vmul.f32 %v5318, %v5318
    %v6168 = vmul.f32 %v5514, %v5514
    %v6169 = vmul.f32 %v5710, %v5710
    %v6170 = vmul.f32 %v5906, %v5906
    %v6171 = vmul.f32 %v4537, %v4537
    %v6172 = vmul.f32 %v4733, %v4733
    %v6173 = vmul.f32 %v4929, %v4929
    %v6174 = vmul.f32 %v5125, %v5125
    %v6175 = vmul.f32 %v5321, %v5321
    %v6176 = vmul.f32 %v5517, %v5517
    %v6177 = vmul.f32 %v5713, %v5713
    %v6178 = vmul.f32 %v5909, %v5909
    %v6179 = vmul.f32 %v4539, %v4539
    %v6180 = vmul.f32 %v4735, %v4735
    %v6181 = vmul.f32 %v4931, %v4931
    %v6182 = vmul.f32 %v5127, %v5127
    %v6183 = vmul.f32 %v5323, %v5323
    %v6184 = vmul.f32 %v5519, %v5519
    %v6185 = vmul.f32 %v5715, %v5715
    %v6186 = vmul.f32 %v5911, %v5911
    %v6187 = vmul.f32 %v4542, %v4542
    %v6188 = vmul.f32 %v4738, %v4738
    %v6189 = vmul.f32 %v4934, %v4934
    %v6190 = vmul.f32 %v5130, %v5130
    %v6191 = vmul.f32 %v5326, %v5326
    %v6192 = vmul.f32 %v5522, %v5522
    %v6193 = vmul.f32 %v5718, %v5718
    %v6194 = vmul.f32 %v5914, %v5914
    %v6195 = vmul.f32 %v4544, %v4544
    %v6196 = vmul.f32 %v4740, %v4740
    %v6197 = vmul.f32 %v4936, %v4936
    %v6198 = vmul.f32 %v5132, %v5132
    %v6199 = vmul.f32 %v5328, %v5328
    %v6200 = vmul.f32 %v5524, %v5524
    %v6201 = vmul.f32 %v5720, %v5720
    %v6202 = vmul.f32 %v5916, %v5916
    %v6203 = vmul.f32 %v4547, %v4547
    %v6204 = vmul.f32 %v4743, %v4743
    %v6205 = vmul.f32 %v4939, %v4939
    %v6206 = vmul.f32 %v5135, %v5135
    %v6207 = vmul.f32 %v5331, %v5331
    %v6208 = vmul.f32 %v5527, %v5527
    %v6209 = vmul.f32 %v5723, %v5723
    %v6210 = vmul.f32 %v5919, %v5919
    %v6211 = vmul.f32 %v4549, %v4549
    %v6212 = vmul.f32 %v4745, %v4745
    %v6213 = vmul.f32 %v4941, %v4941
    %v6214 = vmul.f32 %v5137, %v5137
    %v6215 = vmul.f32 %v5333, %v5333
    %v6216 = vmul.f32 %v5529, %v5529
    %v6217 = vmul.f32 %v5725, %v5725
    %v6218 = vmul.f32 %v5921, %v5921
    %v6219 = vadd.f32 %v6091, %v6099
    %v6220 = vadd.f32 %v6219, %v6107
    %v6221 = vadd.f32 %v6220, %v6115
    %v6222 = vadd.f32 %v6221, %v6123
    %v6223 = vadd.f32 %v6222, %v6131
    %v6224 = vadd.f32 %v6223, %v6139
    %v6225 = vadd.f32 %v6224, %v6147
    %v6226 = vadd.f32 %v6225, %v6155
    %v6227 = vadd.f32 %v6226, %v6163
    %v6228 = vadd.f32 %v6227, %v6171
    %v6229 = vadd.f32 %v6228, %v6179
    %v6230 = vadd.f32 %v6229, %v6187
    %v6231 = vadd.f32 %v6230, %v6195
    %v6232 = vadd.f32 %v6231, %v6203
    %v6233 = vadd.f32 %v6232, %v6211
    %v6234 = vrot.slane %v6233, 4
    %v6235 = vadd.f32 %v6233, %v6234
    %v6236 = vrot.slane %v6235, 2
    %v6237 = vadd.f32 %v6235, %v6236
    %v6238 = vrot.slane %v6237, 1
    %v6239 = vadd.f32 %v6237, %v6238
    %v6240 = vadd.f32 %v6092, %v6100
    %v6241 = vadd.f32 %v6240, %v6108
    %v6242 = vadd.f32 %v6241, %v6116
    %v6243 = vadd.f32 %v6242, %v6124
    %v6244 = vadd.f32 %v6243, %v6132
    %v6245 = vadd.f32 %v6244, %v6140
    %v6246 = vadd.f32 %v6245, %v6148
    %v6247 = vadd.f32 %v6246, %v6156
    %v6248 = vadd.f32 %v6247, %v6164
    %v6249 = vadd.f32 %v6248, %v6172
    %v6250 = vadd.f32 %v6249, %v6180
    %v6251 = vadd.f32 %v6250, %v6188
    %v6252 = vadd.f32 %v6251, %v6196
    %v6253 = vadd.f32 %v6252, %v6204
    %v6254 = vadd.f32 %v6253, %v6212
    %v6255 = vrot.slane %v6254, 4
    %v6256 = vadd.f32 %v6254, %v6255
    %v6257 = vrot.slane %v6256, 2
    %v6258 = vadd.f32 %v6256, %v6257
    %v6259 = vrot.slane %v6258, 1
    %v6260 = vadd.f32 %v6258, %v6259
    %v6261 = vadd.f32 %v6093, %v6101
    %v6262 = vadd.f32 %v6261, %v6109
    %v6263 = vadd.f32 %v6262, %v6117
    %v6264 = vadd.f32 %v6263, %v6125
    %v6265 = vadd.f32 %v6264, %v6133
    %v6266 = vadd.f32 %v6265, %v6141
    %v6267 = vadd.f32 %v6266, %v6149
    %v6268 = vadd.f32 %v6267, %v6157
    %v6269 = vadd.f32 %v6268, %v6165
    %v6270 = vadd.f32 %v6269, %v6173
    %v6271 = vadd.f32 %v6270, %v6181
    %v6272 = vadd.f32 %v6271, %v6189
    %v6273 = vadd.f32 %v6272, %v6197
    %v6274 = vadd.f32 %v6273, %v6205
    %v6275 = vadd.f32 %v6274, %v6213
    %v6276 = vrot.slane %v6275, 4
    %v6277 = vadd.f32 %v6275, %v6276
    %v6278 = vrot.slane %v6277, 2
    %v6279 = vadd.f32 %v6277, %v6278
    %v6280 = vrot.slane %v6279, 1
    %v6281 = vadd.f32 %v6279, %v6280
    %v6282 = vadd.f32 %v6094, %v6102
    %v6283 = vadd.f32 %v6282, %v6110
    %v6284 = vadd.f32 %v6283, %v6118
    %v6285 = vadd.f32 %v6284, %v6126
    %v6286 = vadd.f32 %v6285, %v6134
    %v6287 = vadd.f32 %v6286, %v6142
    %v6288 = vadd.f32 %v6287, %v6150
    %v6289 = vadd.f32 %v6288, %v6158
    %v6290 = vadd.f32 %v6289, %v6166
    %v6291 = vadd.f32 %v6290, %v6174
    %v6292 = vadd.f32 %v6291, %v6182
    %v6293 = vadd.f32 %v6292, %v6190
    %v6294 = vadd.f32 %v6293, %v6198
    %v6295 = vadd.f32 %v6294, %v6206
    %v6296 = vadd.f32 %v6295, %v6214
    %v6297 = vrot.slane %v6296, 4
    %v6298 = vadd.f32 %v6296, %v6297
    %v6299 = vrot.slane %v6298, 2
    %v6300 = vadd.f32 %v6298, %v6299
    %v6301 = vrot.slane %v6300, 1
    %v6302 = vadd.f32 %v6300, %v6301
    %v6303 = vadd.f32 %v6095, %v6103
    %v6304 = vadd.f32 %v6303, %v6111
    %v6305 = vadd.f32 %v6304, %v6119
    %v6306 = vadd.f32 %v6305, %v6127
    %v6307 = vadd.f32 %v6306, %v6135
    %v6308 = vadd.f32 %v6307, %v6143
    %v6309 = vadd.f32 %v6308, %v6151
    %v6310 = vadd.f32 %v6309, %v6159
    %v6311 = vadd.f32 %v6310, %v6167
    %v6312 = vadd.f32 %v6311, %v6175
    %v6313 = vadd.f32 %v6312, %v6183
    %v6314 = vadd.f32 %v6313, %v6191
    %v6315 = vadd.f32 %v6314, %v6199
    %v6316 = vadd.f32 %v6315, %v6207
    %v6317 = vadd.f32 %v6316, %v6215
    %v6318 = vrot.slane %v6317, 4
    %v6319 = vadd.f32 %v6317, %v6318
    %v6320 = vrot.slane %v6319, 2
    %v6321 = vadd.f32 %v6319, %v6320
    %v6322 = vrot.slane %v6321, 1
    %v6323 = vadd.f32 %v6321, %v6322
    %v6324 = vadd.f32 %v6096, %v6104
    %v6325 = vadd.f32 %v6324, %v6112
    %v6326 = vadd.f32 %v6325, %v6120
    %v6327 = vadd.f32 %v6326, %v6128
    %v6328 = vadd.f32 %v6327, %v6136
    %v6329 = vadd.f32 %v6328, %v6144
    %v6330 = vadd.f32 %v6329, %v6152
    %v6331 = vadd.f32 %v6330, %v6160
    %v6332 = vadd.f32 %v6331, %v6168
    %v6333 = vadd.f32 %v6332, %v6176
    %v6334 = vadd.f32 %v6333, %v6184
    %v6335 = vadd.f32 %v6334, %v6192
    %v6336 = vadd.f32 %v6335, %v6200
    %v6337 = vadd.f32 %v6336, %v6208
    %v6338 = vadd.f32 %v6337, %v6216
    %v6339 = vrot.slane %v6338, 4
    %v6340 = vadd.f32 %v6338, %v6339
    %v6341 = vrot.slane %v6340, 2
    %v6342 = vadd.f32 %v6340, %v6341
    %v6343 = vrot.slane %v6342, 1
    %v6344 = vadd.f32 %v6342, %v6343
    %v6345 = vadd.f32 %v6097, %v6105
    %v6346 = vadd.f32 %v6345, %v6113
    %v6347 = vadd.f32 %v6346, %v6121
    %v6348 = vadd.f32 %v6347, %v6129
    %v6349 = vadd.f32 %v6348, %v6137
    %v6350 = vadd.f32 %v6349, %v6145
    %v6351 = vadd.f32 %v6350, %v6153
    %v6352 = vadd.f32 %v6351, %v6161
    %v6353 = vadd.f32 %v6352, %v6169
    %v6354 = vadd.f32 %v6353, %v6177
    %v6355 = vadd.f32 %v6354, %v6185
    %v6356 = vadd.f32 %v6355, %v6193
    %v6357 = vadd.f32 %v6356, %v6201
    %v6358 = vadd.f32 %v6357, %v6209
    %v6359 = vadd.f32 %v6358, %v6217
    %v6360 = vrot.slane %v6359, 4
    %v6361 = vadd.f32 %v6359, %v6360
    %v6362 = vrot.slane %v6361, 2
    %v6363 = vadd.f32 %v6361, %v6362
    %v6364 = vrot.slane %v6363, 1
    %v6365 = vadd.f32 %v6363, %v6364
    %v6366 = vadd.f32 %v6098, %v6106
    %v6367 = vadd.f32 %v6366, %v6114
    %v6368 = vadd.f32 %v6367, %v6122
    %v6369 = vadd.f32 %v6368, %v6130
    %v6370 = vadd.f32 %v6369, %v6138
    %v6371 = vadd.f32 %v6370, %v6146
    %v6372 = vadd.f32 %v6371, %v6154
    %v6373 = vadd.f32 %v6372, %v6162
    %v6374 = vadd.f32 %v6373, %v6170
    %v6375 = vadd.f32 %v6374, %v6178
    %v6376 = vadd.f32 %v6375, %v6186
    %v6377 = vadd.f32 %v6376, %v6194
    %v6378 = vadd.f32 %v6377, %v6202
    %v6379 = vadd.f32 %v6378, %v6210
    %v6380 = vadd.f32 %v6379, %v6218
    %v6381 = vrot.slane %v6380, 4
    %v6382 = vadd.f32 %v6380, %v6381
    %v6383 = vrot.slane %v6382, 2
    %v6384 = vadd.f32 %v6382, %v6383
    %v6385 = vrot.slane %v6384, 1
    %v6386 = vadd.f32 %v6384, %v6385
    %v6387 = vmax.f32 %v4512, %v4514
    %v6388 = vmax.f32 %v6387, %v4517
    %v6389 = vmax.f32 %v6388, %v4519
    %v6390 = vmax.f32 %v6389, %v4522
    %v6391 = vmax.f32 %v6390, %v4524
    %v6392 = vmax.f32 %v6391, %v4527
    %v6393 = vmax.f32 %v6392, %v4529
    %v6394 = vrot.slane %v6393, 4
    %v6395 = vmax.f32 %v6393, %v6394
    %v6396 = vrot.slane %v6395, 2
    %v6397 = vmax.f32 %v6395, %v6396
    %v6398 = vrot.slane %v6397, 1
    %v6399 = vmax.f32 %v6397, %v6398
    %v6400 = vmax.f32 %v4708, %v4710
    %v6401 = vmax.f32 %v6400, %v4713
    %v6402 = vmax.f32 %v6401, %v4715
    %v6403 = vmax.f32 %v6402, %v4718
    %v6404 = vmax.f32 %v6403, %v4720
    %v6405 = vmax.f32 %v6404, %v4723
    %v6406 = vmax.f32 %v6405, %v4725
    %v6407 = vrot.slane %v6406, 4
    %v6408 = vmax.f32 %v6406, %v6407
    %v6409 = vrot.slane %v6408, 2
    %v6410 = vmax.f32 %v6408, %v6409
    %v6411 = vrot.slane %v6410, 1
    %v6412 = vmax.f32 %v6410, %v6411
    %v6413 = vmax.f32 %v4904, %v4906
    %v6414 = vmax.f32 %v6413, %v4909
    %v6415 = vmax.f32 %v6414, %v4911
    %v6416 = vmax.f32 %v6415, %v4914
    %v6417 = vmax.f32 %v6416, %v4916
    %v6418 = vmax.f32 %v6417, %v4919
    %v6419 = vmax.f32 %v6418, %v4921
    %v6420 = vrot.slane %v6419, 4
    %v6421 = vmax.f32 %v6419, %v6420
    %v6422 = vrot.slane %v6421, 2
    %v6423 = vmax.f32 %v6421, %v6422
    %v6424 = vrot.slane %v6423, 1
    %v6425 = vmax.f32 %v6423, %v6424
    %v6426 = vmax.f32 %v5100, %v5102
    %v6427 = vmax.f32 %v6426, %v5105
    %v6428 = vmax.f32 %v6427, %v5107
    %v6429 = vmax.f32 %v6428, %v5110
    %v6430 = vmax.f32 %v6429, %v5112
    %v6431 = vmax.f32 %v6430, %v5115
    %v6432 = vmax.f32 %v6431, %v5117
    %v6433 = vrot.slane %v6432, 4
    %v6434 = vmax.f32 %v6432, %v6433
    %v6435 = vrot.slane %v6434, 2
    %v6436 = vmax.f32 %v6434, %v6435
    %v6437 = vrot.slane %v6436, 1
    %v6438 = vmax.f32 %v6436, %v6437
    %v6439 = vmax.f32 %v5296, %v5298
    %v6440 = vmax.f32 %v6439, %v5301
    %v6441 = vmax.f32 %v6440, %v5303
    %v6442 = vmax.f32 %v6441, %v5306
    %v6443 = vmax.f32 %v6442, %v5308
    %v6444 = vmax.f32 %v6443, %v5311
    %v6445 = vmax.f32 %v6444, %v5313
    %v6446 = vrot.slane %v6445, 4
    %v6447 = vmax.f32 %v6445, %v6446
    %v6448 = vrot.slane %v6447, 2
    %v6449 = vmax.f32 %v6447, %v6448
    %v6450 = vrot.slane %v6449, 1
    %v6451 = vmax.f32 %v6449, %v6450
    %v6452 = vmax.f32 %v5492, %v5494
    %v6453 = vmax.f32 %v6452, %v5497
    %v6454 = vmax.f32 %v6453, %v5499
    %v6455 = vmax.f32 %v6454, %v5502
    %v6456 = vmax.f32 %v6455, %v5504
    %v6457 = vmax.f32 %v6456, %v5507
    %v6458 = vmax.f32 %v6457, %v5509
    %v6459 = vrot.slane %v6458, 4
    %v6460 = vmax.f32 %v6458, %v6459
    %v6461 = vrot.slane %v6460, 2
    %v6462 = vmax.f32 %v6460, %v6461
    %v6463 = vrot.slane %v6462, 1
    %v6464 = vmax.f32 %v6462, %v6463
    %v6465 = vmax.f32 %v5688, %v5690
    %v6466 = vmax.f32 %v6465, %v5693
    %v6467 = vmax.f32 %v6466, %v5695
    %v6468 = vmax.f32 %v6467, %v5698
    %v6469 = vmax.f32 %v6468, %v5700
    %v6470 = vmax.f32 %v6469, %v5703
    %v6471 = vmax.f32 %v6470, %v5705
    %v6472 = vrot.slane %v6471, 4
    %v6473 = vmax.f32 %v6471, %v6472
    %v6474 = vrot.slane %v6473, 2
    %v6475 = vmax.f32 %v6473, %v6474
    %v6476 = vrot.slane %v6475, 1
    %v6477 = vmax.f32 %v6475, %v6476
    %v6478 = vmax.f32 %v5884, %v5886
    %v6479 = vmax.f32 %v6478, %v5889
    %v6480 = vmax.f32 %v6479, %v5891
    %v6481 = vmax.f32 %v6480, %v5894
    %v6482 = vmax.f32 %v6481, %v5896
    %v6483 = vmax.f32 %v6482, %v5899
    %v6484 = vmax.f32 %v6483, %v5901
    %v6485 = vrot.slane %v6484, 4
    %v6486 = vmax.f32 %v6484, %v6485
    %v6487 = vrot.slane %v6486, 2
    %v6488 = vmax.f32 %v6486, %v6487
    %v6489 = vrot.slane %v6488, 1
    %v6490 = vmax.f32 %v6488, %v6489
    %v6491 = vmax.f32 %v4532, %v4534
    %v6492 = vmax.f32 %v6491, %v4537
    %v6493 = vmax.f32 %v6492, %v4539
    %v6494 = vmax.f32 %v6493, %v4542
    %v6495 = vmax.f32 %v6494, %v4544
    %v6496 = vmax.f32 %v6495, %v4547
    %v6497 = vmax.f32 %v6496, %v4549
    %v6498 = vrot.slane %v6497, 4
    %v6499 = vmax.f32 %v6497, %v6498
    %v6500 = vrot.slane %v6499, 2
    %v6501 = vmax.f32 %v6499, %v6500
    %v6502 = vrot.slane %v6501, 1
    %v6503 = vmax.f32 %v6501, %v6502
    %v6504 = vmax.f32 %v4728, %v4730
    %v6505 = vmax.f32 %v6504, %v4733
    %v6506 = vmax.f32 %v6505, %v4735
    %v6507 = vmax.f32 %v6506, %v4738
    %v6508 = vmax.f32 %v6507, %v4740
    %v6509 = vmax.f32 %v6508, %v4743
    %v6510 = vmax.f32 %v6509, %v4745
    %v6511 = vrot.slane %v6510, 4
    %v6512 = vmax.f32 %v6510, %v6511
    %v6513 = vrot.slane %v6512, 2
    %v6514 = vmax.f32 %v6512, %v6513
    %v6515 = vrot.slane %v6514, 1
    %v6516 = vmax.f32 %v6514, %v6515
    %v6517 = vmax.f32 %v4924, %v4926
    %v6518 = vmax.f32 %v6517, %v4929
    %v6519 = vmax.f32 %v6518, %v4931
    %v6520 = vmax.f32 %v6519, %v4934
    %v6521 = vmax.f32 %v6520, %v4936
    %v6522 = vmax.f32 %v6521, %v4939
    %v6523 = vmax.f32 %v6522, %v4941
    %v6524 = vrot.slane %v6523, 4
    %v6525 = vmax.f32 %v6523, %v6524
    %v6526 = vrot.slane %v6525, 2
    %v6527 = vmax.f32 %v6525, %v6526
    %v6528 = vrot.slane %v6527, 1
    %v6529 = vmax.f32 %v6527, %v6528
    %v6530 = vmax.f32 %v5120, %v5122
    %v6531 = vmax.f32 %v6530, %v5125
    %v6532 = vmax.f32 %v6531, %v5127
    %v6533 = vmax.f32 %v6532, %v5130
    %v6534 = vmax.f32 %v6533, %v5132
    %v6535 = vmax.f32 %v6534, %v5135
    %v6536 = vmax.f32 %v6535, %v5137
    %v6537 = vrot.slane %v6536, 4
    %v6538 = vmax.f32 %v6536, %v6537
    %v6539 = vrot.slane %v6538, 2
    %v6540 = vmax.f32 %v6538, %v6539
    %v6541 = vrot.slane %v6540, 1
    %v6542 = vmax.f32 %v6540, %v6541
    %v6543 = vmax.f32 %v5316, %v5318
    %v6544 = vmax.f32 %v6543, %v5321
    %v6545 = vmax.f32 %v6544, %v5323
    %v6546 = vmax.f32 %v6545, %v5326
    %v6547 = vmax.f32 %v6546, %v5328
    %v6548 = vmax.f32 %v6547, %v5331
    %v6549 = vmax.f32 %v6548, %v5333
    %v6550 = vrot.slane %v6549, 4
    %v6551 = vmax.f32 %v6549, %v6550
    %v6552 = vrot.slane %v6551, 2
    %v6553 = vmax.f32 %v6551, %v6552
    %v6554 = vrot.slane %v6553, 1
    %v6555 = vmax.f32 %v6553, %v6554
    %v6556 = vmax.f32 %v5512, %v5514
    %v6557 = vmax.f32 %v6556, %v5517
    %v6558 = vmax.f32 %v6557, %v5519
    %v6559 = vmax.f32 %v6558, %v5522
    %v6560 = vmax.f32 %v6559, %v5524
    %v6561 = vmax.f32 %v6560, %v5527
    %v6562 = vmax.f32 %v6561, %v5529
    %v6563 = vrot.slane %v6562, 4
    %v6564 = vmax.f32 %v6562, %v6563
    %v6565 = vrot.slane %v6564, 2
    %v6566 = vmax.f32 %v6564, %v6565
    %v6567 = vrot.slane %v6566, 1
    %v6568 = vmax.f32 %v6566, %v6567
    %v6569 = vmax.f32 %v5708, %v5710
    %v6570 = vmax.f32 %v6569, %v5713
    %v6571 = vmax.f32 %v6570, %v5715
    %v6572 = vmax.f32 %v6571, %v5718
    %v6573 = vmax.f32 %v6572, %v5720
    %v6574 = vmax.f32 %v6573, %v5723
    %v6575 = vmax.f32 %v6574, %v5725
    %v6576 = vrot.slane %v6575, 4
    %v6577 = vmax.f32 %v6575, %v6576
    %v6578 = vrot.slane %v6577, 2
    %v6579 = vmax.f32 %v6577, %v6578
    %v6580 = vrot.slane %v6579, 1
    %v6581 = vmax.f32 %v6579, %v6580
    %v6582 = vmax.f32 %v5904, %v5906
    %v6583 = vmax.f32 %v6582, %v5909
    %v6584 = vmax.f32 %v6583, %v5911
    %v6585 = vmax.f32 %v6584, %v5914
    %v6586 = vmax.f32 %v6585, %v5916
    %v6587 = vmax.f32 %v6586, %v5919
    %v6588 = vmax.f32 %v6587, %v5921
    %v6589 = vrot.slane %v6588, 4
    %v6590 = vmax.f32 %v6588, %v6589
    %v6591 = vrot.slane %v6590, 2
    %v6592 = vmax.f32 %v6590, %v6591
    %v6593 = vrot.slane %v6592, 1
    %v6594 = vmax.f32 %v6592, %v6593
    %v6595 = vmin.f32 %v4512, %v4514
    %v6596 = vmin.f32 %v6595, %v4517
    %v6597 = vmin.f32 %v6596, %v4519
    %v6598 = vmin.f32 %v6597, %v4522
    %v6599 = vmin.f32 %v6598, %v4524
    %v6600 = vmin.f32 %v6599, %v4527
    %v6601 = vmin.f32 %v6600, %v4529
    %v6602 = vrot.slane %v6601, 4
    %v6603 = vmin.f32 %v6601, %v6602
    %v6604 = vrot.slane %v6603, 2
    %v6605 = vmin.f32 %v6603, %v6604
    %v6606 = vrot.slane %v6605, 1
    %v6607 = vmin.f32 %v6605, %v6606
    %v6608 = vmin.f32 %v4708, %v4710
    %v6609 = vmin.f32 %v6608, %v4713
    %v6610 = vmin.f32 %v6609, %v4715
    %v6611 = vmin.f32 %v6610, %v4718
    %v6612 = vmin.f32 %v6611, %v4720
    %v6613 = vmin.f32 %v6612, %v4723
    %v6614 = vmin.f32 %v6613, %v4725
    %v6615 = vrot.slane %v6614, 4
    %v6616 = vmin.f32 %v6614, %v6615
    %v6617 = vrot.slane %v6616, 2
    %v6618 = vmin.f32 %v6616, %v6617
    %v6619 = vrot.slane %v6618, 1
    %v6620 = vmin.f32 %v6618, %v6619
    %v6621 = vmin.f32 %v4904, %v4906
    %v6622 = vmin.f32 %v6621, %v4909
    %v6623 = vmin.f32 %v6622, %v4911
    %v6624 = vmin.f32 %v6623, %v4914
    %v6625 = vmin.f32 %v6624, %v4916
    %v6626 = vmin.f32 %v6625, %v4919
    %v6627 = vmin.f32 %v6626, %v4921
    %v6628 = vrot.slane %v6627, 4
    %v6629 = vmin.f32 %v6627, %v6628
    %v6630 = vrot.slane %v6629, 2
    %v6631 = vmin.f32 %v6629, %v6630
    %v6632 = vrot.slane %v6631, 1
    %v6633 = vmin.f32 %v6631, %v6632
    %v6634 = vmin.f32 %v5100, %v5102
    %v6635 = vmin.f32 %v6634, %v5105
    %v6636 = vmin.f32 %v6635, %v5107
    %v6637 = vmin.f32 %v6636, %v5110
    %v6638 = vmin.f32 %v6637, %v5112
    %v6639 = vmin.f32 %v6638, %v5115
    %v6640 = vmin.f32 %v6639, %v5117
    %v6641 = vrot.slane %v6640, 4
    %v6642 = vmin.f32 %v6640, %v6641
    %v6643 = vrot.slane %v6642, 2
    %v6644 = vmin.f32 %v6642, %v6643
    %v6645 = vrot.slane %v6644, 1
    %v6646 = vmin.f32 %v6644, %v6645
    %v6647 = vmin.f32 %v5296, %v5298
    %v6648 = vmin.f32 %v6647, %v5301
    %v6649 = vmin.f32 %v6648, %v5303
    %v6650 = vmin.f32 %v6649, %v5306
    %v6651 = vmin.f32 %v6650, %v5308
    %v6652 = vmin.f32 %v6651, %v5311
    %v6653 = vmin.f32 %v6652, %v5313
    %v6654 = vrot.slane %v6653, 4
    %v6655 = vmin.f32 %v6653, %v6654
    %v6656 = vrot.slane %v6655, 2
    %v6657 = vmin.f32 %v6655, %v6656
    %v6658 = vrot.slane %v6657, 1
    %v6659 = vmin.f32 %v6657, %v6658
    %v6660 = vmin.f32 %v5492, %v5494
    %v6661 = vmin.f32 %v6660, %v5497
    %v6662 = vmin.f32 %v6661, %v5499
    %v6663 = vmin.f32 %v6662, %v5502
    %v6664 = vmin.f32 %v6663, %v5504
    %v6665 = vmin.f32 %v6664, %v5507
    %v6666 = vmin.f32 %v6665, %v5509
    %v6667 = vrot.slane %v6666, 4
    %v6668 = vmin.f32 %v6666, %v6667
    %v6669 = vrot.slane %v6668, 2
    %v6670 = vmin.f32 %v6668, %v6669
    %v6671 = vrot.slane %v6670, 1
    %v6672 = vmin.f32 %v6670, %v6671
    %v6673 = vmin.f32 %v5688, %v5690
    %v6674 = vmin.f32 %v6673, %v5693
    %v6675 = vmin.f32 %v6674, %v5695
    %v6676 = vmin.f32 %v6675, %v5698
    %v6677 = vmin.f32 %v6676, %v5700
    %v6678 = vmin.f32 %v6677, %v5703
    %v6679 = vmin.f32 %v6678, %v5705
    %v6680 = vrot.slane %v6679, 4
    %v6681 = vmin.f32 %v6679, %v6680
    %v6682 = vrot.slane %v6681, 2
    %v6683 = vmin.f32 %v6681, %v6682
    %v6684 = vrot.slane %v6683, 1
    %v6685 = vmin.f32 %v6683, %v6684
    %v6686 = vmin.f32 %v5884, %v5886
    %v6687 = vmin.f32 %v6686, %v5889
    %v6688 = vmin.f32 %v6687, %v5891
    %v6689 = vmin.f32 %v6688, %v5894
    %v6690 = vmin.f32 %v6689, %v5896
    %v6691 = vmin.f32 %v6690, %v5899
    %v6692 = vmin.f32 %v6691, %v5901
    %v6693 = vrot.slane %v6692, 4
    %v6694 = vmin.f32 %v6692, %v6693
    %v6695 = vrot.slane %v6694, 2
    %v6696 = vmin.f32 %v6694, %v6695
    %v6697 = vrot.slane %v6696, 1
    %v6698 = vmin.f32 %v6696, %v6697
    %v6699 = vmin.f32 %v4532, %v4534
    %v6700 = vmin.f32 %v6699, %v4537
    %v6701 = vmin.f32 %v6700, %v4539
    %v6702 = vmin.f32 %v6701, %v4542
    %v6703 = vmin.f32 %v6702, %v4544
    %v6704 = vmin.f32 %v6703, %v4547
    %v6705 = vmin.f32 %v6704, %v4549
    %v6706 = vrot.slane %v6705, 4
    %v6707 = vmin.f32 %v6705, %v6706
    %v6708 = vrot.slane %v6707, 2
    %v6709 = vmin.f32 %v6707, %v6708
    %v6710 = vrot.slane %v6709, 1
    %v6711 = vmin.f32 %v6709, %v6710
    %v6712 = vmin.f32 %v4728, %v4730
    %v6713 = vmin.f32 %v6712, %v4733
    %v6714 = vmin.f32 %v6713, %v4735
    %v6715 = vmin.f32 %v6714, %v4738
    %v6716 = vmin.f32 %v6715, %v4740
    %v6717 = vmin.f32 %v6716, %v4743
    %v6718 = vmin.f32 %v6717, %v4745
    %v6719 = vrot.slane %v6718, 4
    %v6720 = vmin.f32 %v6718, %v6719
    %v6721 = vrot.slane %v6720, 2
    %v6722 = vmin.f32 %v6720, %v6721
    %v6723 = vrot.slane %v6722, 1
    %v6724 = vmin.f32 %v6722, %v6723
    %v6725 = vmin.f32 %v4924, %v4926
    %v6726 = vmin.f32 %v6725, %v4929
    %v6727 = vmin.f32 %v6726, %v4931
    %v6728 = vmin.f32 %v6727, %v4934
    %v6729 = vmin.f32 %v6728, %v4936
    %v6730 = vmin.f32 %v6729, %v4939
    %v6731 = vmin.f32 %v6730, %v4941
    %v6732 = vrot.slane %v6731, 4
    %v6733 = vmin.f32 %v6731, %v6732
    %v6734 = vrot.slane %v6733, 2
    %v6735 = vmin.f32 %v6733, %v6734
    %v6736 = vrot.slane %v6735, 1
    %v6737 = vmin.f32 %v6735, %v6736
    %v6738 = vmin.f32 %v5120, %v5122
    %v6739 = vmin.f32 %v6738, %v5125
    %v6740 = vmin.f32 %v6739, %v5127
    %v6741 = vmin.f32 %v6740, %v5130
    %v6742 = vmin.f32 %v6741, %v5132
    %v6743 = vmin.f32 %v6742, %v5135
    %v6744 = vmin.f32 %v6743, %v5137
    %v6745 = vrot.slane %v6744, 4
    %v6746 = vmin.f32 %v6744, %v6745
    %v6747 = vrot.slane %v6746, 2
    %v6748 = vmin.f32 %v6746, %v6747
    %v6749 = vrot.slane %v6748, 1
    %v6750 = vmin.f32 %v6748, %v6749
    %v6751 = vmin.f32 %v5316, %v5318
    %v6752 = vmin.f32 %v6751, %v5321
    %v6753 = vmin.f32 %v6752, %v5323
    %v6754 = vmin.f32 %v6753, %v5326
    %v6755 = vmin.f32 %v6754, %v5328
    %v6756 = vmin.f32 %v6755, %v5331
    %v6757 = vmin.f32 %v6756, %v5333
    %v6758 = vrot.slane %v6757, 4
    %v6759 = vmin.f32 %v6757, %v6758
    %v6760 = vrot.slane %v6759, 2
    %v6761 = vmin.f32 %v6759, %v6760
    %v6762 = vrot.slane %v6761, 1
    %v6763 = vmin.f32 %v6761, %v6762
    %v6764 = vmin.f32 %v5512, %v5514
    %v6765 = vmin.f32 %v6764, %v5517
    %v6766 = vmin.f32 %v6765, %v5519
    %v6767 = vmin.f32 %v6766, %v5522
    %v6768 = vmin.f32 %v6767, %v5524
    %v6769 = vmin.f32 %v6768, %v5527
    %v6770 = vmin.f32 %v6769, %v5529
    %v6771 = vrot.slane %v6770, 4
    %v6772 = vmin.f32 %v6770, %v6771
    %v6773 = vrot.slane %v6772, 2
    %v6774 = vmin.f32 %v6772, %v6773
    %v6775 = vrot.slane %v6774, 1
    %v6776 = vmin.f32 %v6774, %v6775
    %v6777 = vmin.f32 %v5708, %v5710
    %v6778 = vmin.f32 %v6777, %v5713
    %v6779 = vmin.f32 %v6778, %v5715
    %v6780 = vmin.f32 %v6779, %v5718
    %v6781 = vmin.f32 %v6780, %v5720
    %v6782 = vmin.f32 %v6781, %v5723
    %v6783 = vmin.f32 %v6782, %v5725
    %v6784 = vrot.slane %v6783, 4
    %v6785 = vmin.f32 %v6783, %v6784
    %v6786 = vrot.slane %v6785, 2
    %v6787 = vmin.f32 %v6785, %v6786
    %v6788 = vrot.slane %v6787, 1
    %v6789 = vmin.f32 %v6787, %v6788
    %v6790 = vmin.f32 %v5904, %v5906
    %v6791 = vmin.f32 %v6790, %v5909
    %v6792 = vmin.f32 %v6791, %v5911
    %v6793 = vmin.f32 %v6792, %v5914
    %v6794 = vmin.f32 %v6793, %v5916
    %v6795 = vmin.f32 %v6794, %v5919
    %v6796 = vmin.f32 %v6795, %v5921
    %v6797 = vrot.slane %v6796, 4
    %v6798 = vmin.f32 %v6796, %v6797
    %v6799 = vrot.slane %v6798, 2
    %v6800 = vmin.f32 %v6798, %v6799
    %v6801 = vrot.slane %v6800, 1
    %v6802 = vmin.f32 %v6800, %v6801
    %v6803 = vmul.f32 %v5943, 0.0078125
    %v6804 = vmul.f32 %v5964, 0.0078125
    %v6805 = vmul.f32 %v5985, 0.0078125
    %v6806 = vmul.f32 %v6006, 0.0078125
    %v6807 = vmul.f32 %v6027, 0.0078125
    %v6808 = vmul.f32 %v6048, 0.0078125
    %v6809 = vmul.f32 %v6069, 0.0078125
    %v6810 = vmul.f32 %v6090, 0.0078125
    %v6811 = vmul.f32 %v6239, 0.0078125
    %v6812 = vmul.f32 %v6260, 0.0078125
    %v6813 = vmul.f32 %v6281, 0.0078125
    %v6814 = vmul.f32 %v6302, 0.0078125
    %v6815 = vmul.f32 %v6323, 0.0078125
    %v6816 = vmul.f32 %v6344, 0.0078125
    %v6817 = vmul.f32 %v6365, 0.0078125
    %v6818 = vmul.f32 %v6386, 0.0078125
    %v6819 = vmul.f32 %v6803, %v6803
    %v6820 = vmul.f32 %v6804, %v6804
    %v6821 = vmul.f32 %v6805, %v6805
    %v6822 = vmul.f32 %v6806, %v6806
    %v6823 = vmul.f32 %v6807, %v6807
    %v6824 = vmul.f32 %v6808, %v6808
    %v6825 = vmul.f32 %v6809, %v6809
    %v6826 = vmul.f32 %v6810, %v6810
    %v6827 = vsub.f32 %v6811, %v6819
    %v6828 = vsub.f32 %v6812, %v6820
    %v6829 = vsub.f32 %v6813, %v6821
    %v6830 = vsub.f32 %v6814, %v6822
    %v6831 = vsub.f32 %v6815, %v6823
    %v6832 = vsub.f32 %v6816, %v6824
    %v6833 = vsub.f32 %v6817, %v6825
    %v6834 = vsub.f32 %v6818, %v6826
    %v6835 = vmax.f32 %v6827, 0.0
    %v6836 = vmax.f32 %v6828, 0.0
    %v6837 = vmax.f32 %v6829, 0.0
    %v6838 = vmax.f32 %v6830, 0.0
    %v6839 = vmax.f32 %v6831, 0.0
    %v6840 = vmax.f32 %v6832, 0.0
    %v6841 = vmax.f32 %v6833, 0.0
    %v6842 = vmax.f32 %v6834, 0.0
    %v6843 = vld [vmem:[%s31] sm:$0xff]
    %v6844 = vadd.f32 %v6835, 1e-05
    %v6845 = vadd.f32 %v6836, 1e-05
    %v6846 = vadd.f32 %v6837, 1e-05
    %v6847 = vadd.f32 %v6838, 1e-05
    %v6848 = vadd.f32 %v6839, 1e-05
    %v6849 = vadd.f32 %v6840, 1e-05
    %v6850 = vadd.f32 %v6841, 1e-05
    %v6851 = vadd.f32 %v6842, 1e-05
    %v6852 = vrsqrt.pop %v6844
    %v6853 = vmul.f32 %v6852, %v6844
    %v6854 = vmul.f32 %v6853, %v6852
    %v6855 = vmul.f32 0.5, %v6854
    %v6856 = vsub.f32 1.5, %v6855
    %v6857 = vmul.f32 %v6852, %v6856
    %vm6858 = vweird.f32 %v6844
    %vm6859 = vweird.f32 %v6852
    %vm6860 = vmor %vm6858, %vm6859
    %v6861 = vsel %vm6860, %v6852, %v6857
    %v6862 = vrsqrt.pop %v6845
    %v6863 = vmul.f32 %v6862, %v6845
    %v6864 = vmul.f32 %v6863, %v6862
    %v6865 = vmul.f32 0.5, %v6864
    %v6866 = vsub.f32 1.5, %v6865
    %v6867 = vmul.f32 %v6862, %v6866
    %vm6868 = vweird.f32 %v6845
    %vm6869 = vweird.f32 %v6862
    %vm6870 = vmor %vm6868, %vm6869
    %v6871 = vsel %vm6870, %v6862, %v6867
    %v6872 = vrsqrt.pop %v6846
    %v6873 = vmul.f32 %v6872, %v6846
    %v6874 = vmul.f32 %v6873, %v6872
    %v6875 = vmul.f32 0.5, %v6874
    %v6876 = vsub.f32 1.5, %v6875
    %v6877 = vmul.f32 %v6872, %v6876
    %vm6878 = vweird.f32 %v6846
    %vm6879 = vweird.f32 %v6872
    %vm6880 = vmor %vm6878, %vm6879
    %v6881 = vsel %vm6880, %v6872, %v6877
    %v6882 = vrsqrt.pop %v6847
    %v6883 = vmul.f32 %v6882, %v6847
    %v6884 = vmul.f32 %v6883, %v6882
    %v6885 = vmul.f32 0.5, %v6884
    %v6886 = vsub.f32 1.5, %v6885
    %v6887 = vmul.f32 %v6882, %v6886
    %vm6888 = vweird.f32 %v6847
    %vm6889 = vweird.f32 %v6882
    %vm6890 = vmor %vm6888, %vm6889
    %v6891 = vsel %vm6890, %v6882, %v6887
    %v6892 = vrsqrt.pop %v6848
    %v6893 = vmul.f32 %v6892, %v6848
    %v6894 = vmul.f32 %v6893, %v6892
    %v6895 = vmul.f32 0.5, %v6894
    %v6896 = vsub.f32 1.5, %v6895
    %v6897 = vmul.f32 %v6892, %v6896
    %vm6898 = vweird.f32 %v6848
    %vm6899 = vweird.f32 %v6892
    %vm6900 = vmor %vm6898, %vm6899
    %v6901 = vsel %vm6900, %v6892, %v6897
    %v6902 = vrsqrt.pop %v6849
    %v6903 = vmul.f32 %v6902, %v6849
    %v6904 = vmul.f32 %v6903, %v6902
    %v6905 = vmul.f32 0.5, %v6904
    %v6906 = vsub.f32 1.5, %v6905
    %v6907 = vmul.f32 %v6902, %v6906
    %vm6908 = vweird.f32 %v6849
    %vm6909 = vweird.f32 %v6902
    %vm6910 = vmor %vm6908, %vm6909
    %v6911 = vsel %vm6910, %v6902, %v6907
    %v6912 = vrsqrt.pop %v6850
    %v6913 = vmul.f32 %v6912, %v6850
    %v6914 = vmul.f32 %v6913, %v6912
    %v6915 = vmul.f32 0.5, %v6914
    %v6916 = vsub.f32 1.5, %v6915
    %v6917 = vmul.f32 %v6912, %v6916
    %vm6918 = vweird.f32 %v6850
    %vm6919 = vweird.f32 %v6912
    %vm6920 = vmor %vm6918, %vm6919
    %v6921 = vsel %vm6920, %v6912, %v6917
    %v6922 = vrsqrt.pop %v6851
    %v6923 = vmul.f32 %v6922, %v6851
    %v6924 = vmul.f32 %v6923, %v6922
    %v6925 = vmul.f32 0.5, %v6924
    %v6926 = vsub.f32 1.5, %v6925
    %v6927 = vmul.f32 %v6922, %v6926
    %vm6928 = vweird.f32 %v6851
    %vm6929 = vweird.f32 %v6922
    %vm6930 = vmor %vm6928, %vm6929
    %v6931 = vsel %vm6930, %v6922, %v6927
    %v6940 = vrot.slane %v6871, 7
    %v6941 = vrot.slane %v6881, 6
    %v6942 = vrot.slane %v6891, 5
    %v6943 = vrot.slane %v6901, 4
    %v6944 = vrot.slane %v6911, 3
    %v6945 = vrot.slane %v6921, 2
    %v6946 = vrot.slane %v6931, 1
    %v6947 = vsel %vm1210, %v6861, %v6940
    %v6948 = vsel %vm2490, %v6941, %v6942
    %v6949 = vsel %vm2492, %v6947, %v6948
    %vm6950 = vcmask 1044484
    %v6951 = vsel %vm6950, %v6943, %v6944
    %vm6952 = vcmask 1046534
    %v6953 = vsel %vm6952, %v6945, %v6946
    %vm6954 = vcmask 1045508
    %v6955 = vsel %vm6954, %v6951, %v6953
    %vm6956 = vcmask 1043456
    %v6957 = vsel %vm6956, %v6949, %v6955
    %v6959 = vmul.f32 %v6843, %v6957
    %v6960 = vld [vmem:[%s33] sm:$0xff]
    %v6962 = vperm.slane %v6959, 0
    %v6963 = vperm.slane %v6959, 1
    %v6964 = vperm.slane %v6959, 2
    %v6965 = vperm.slane %v6959, 3
    %v6966 = vperm.slane %v6959, 4
    %v6967 = vperm.slane %v6959, 5
    %v6968 = vperm.slane %v6959, 6
    %v6969 = vperm.slane %v6959, 7
    %v6978 = vmul.f32 %v6803, %v6962
    %v6979 = vmul.f32 %v6804, %v6963
    %v6980 = vmul.f32 %v6805, %v6964
    %v6981 = vmul.f32 %v6806, %v6965
    %v6982 = vmul.f32 %v6807, %v6966
    %v6983 = vmul.f32 %v6808, %v6967
    %v6984 = vmul.f32 %v6809, %v6968
    %v6985 = vmul.f32 %v6810, %v6969
    %v6994 = vrot.slane %v6979, 7
    %v6995 = vrot.slane %v6980, 6
    %v6996 = vrot.slane %v6981, 5
    %v6997 = vrot.slane %v6982, 4
    %v6998 = vrot.slane %v6983, 3
    %v6999 = vrot.slane %v6984, 2
    %v7000 = vrot.slane %v6985, 1
    %v7001 = vsel %vm1210, %v6978, %v6994
    %v7002 = vsel %vm2490, %v6995, %v6996
    %v7003 = vsel %vm2492, %v7001, %v7002
    %v7004 = vsel %vm6950, %v6997, %v6998
    %v7005 = vsel %vm6952, %v6999, %v7000
    %v7006 = vsel %vm6954, %v7004, %v7005
    %v7007 = vsel %vm6956, %v7003, %v7006
    %v7009 = vsub.f32 %v6960, %v7007
    %vm7010 = vcmp.ge.f32.partialorder %v6959, 0.0
    %vm7027 = vcmask 1041409
    %v7028 = vsel %vm7027, %v6503, %v6399
    %v7029 = vsel %vm7027, %v6516, %v6412
    %v7030 = vsel %vm7027, %v6529, %v6425
    %v7031 = vsel %vm7027, %v6542, %v6438
    %v7032 = vsel %vm7027, %v6555, %v6451
    %v7033 = vsel %vm7027, %v6568, %v6464
    %v7034 = vsel %vm7027, %v6581, %v6477
    %v7035 = vsel %vm7027, %v6594, %v6490
    %v7044 = vmul.f32 %v6962, %v7028
    %v7045 = vmul.f32 %v6963, %v7029
    %v7046 = vmul.f32 %v6964, %v7030
    %v7047 = vmul.f32 %v6965, %v7031
    %v7048 = vmul.f32 %v6966, %v7032
    %v7049 = vmul.f32 %v6967, %v7033
    %v7050 = vmul.f32 %v6968, %v7034
    %v7051 = vmul.f32 %v6969, %v7035
    %v7068 = vsel %vm7027, %v6711, %v6607
    %v7069 = vsel %vm7027, %v6724, %v6620
    %v7070 = vsel %vm7027, %v6737, %v6633
    %v7071 = vsel %vm7027, %v6750, %v6646
    %v7072 = vsel %vm7027, %v6763, %v6659
    %v7073 = vsel %vm7027, %v6776, %v6672
    %v7074 = vsel %vm7027, %v6789, %v6685
    %v7075 = vsel %vm7027, %v6802, %v6698
    %v7084 = vmul.f32 %v6962, %v7068
    %v7085 = vmul.f32 %v6963, %v7069
    %v7086 = vmul.f32 %v6964, %v7070
    %v7087 = vmul.f32 %v6965, %v7071
    %v7088 = vmul.f32 %v6966, %v7072
    %v7089 = vmul.f32 %v6967, %v7073
    %v7090 = vmul.f32 %v6968, %v7074
    %v7091 = vmul.f32 %v6969, %v7075
    %v7092 = vsel %vm7010, 1, 0
    %v7093 = vperm.slane %v7092, 0
    %v7094 = vperm.slane %v7092, 1
    %v7095 = vperm.slane %v7092, 2
    %v7096 = vperm.slane %v7092, 3
    %v7097 = vperm.slane %v7092, 4
    %v7098 = vperm.slane %v7092, 5
    %v7099 = vperm.slane %v7092, 6
    %v7100 = vperm.slane %v7092, 7
    %vm7101 = vcmp.eq.s32.totalorder %v7093, 1
    %vm7102 = vcmp.eq.s32.totalorder %v7094, 1
    %vm7103 = vcmp.eq.s32.totalorder %v7095, 1
    %vm7104 = vcmp.eq.s32.totalorder %v7096, 1
    %vm7105 = vcmp.eq.s32.totalorder %v7097, 1
    %vm7106 = vcmp.eq.s32.totalorder %v7098, 1
    %vm7107 = vcmp.eq.s32.totalorder %v7099, 1
    %vm7108 = vcmp.eq.s32.totalorder %v7100, 1
    %v7109 = vsel %vm7101, %v7044, %v7084
    %v7110 = vsel %vm7102, %v7045, %v7085
    %v7111 = vsel %vm7103, %v7046, %v7086
    %v7112 = vsel %vm7104, %v7047, %v7087
    %v7113 = vsel %vm7105, %v7048, %v7088
    %v7114 = vsel %vm7106, %v7049, %v7089
    %v7115 = vsel %vm7107, %v7050, %v7090
    %v7116 = vsel %vm7108, %v7051, %v7091
    %v7118 = vperm.slane %v7009, 0
    %v7119 = vperm.slane %v7009, 1
    %v7120 = vperm.slane %v7009, 2
    %v7121 = vperm.slane %v7009, 3
    %v7122 = vperm.slane %v7009, 4
    %v7123 = vperm.slane %v7009, 5
    %v7124 = vperm.slane %v7009, 6
    %v7125 = vperm.slane %v7009, 7
    %v7134 = vadd.f32 %v7109, %v7118
    %v7135 = vadd.f32 %v7110, %v7119
    %v7136 = vadd.f32 %v7111, %v7120
    %v7137 = vadd.f32 %v7112, %v7121
    %v7138 = vadd.f32 %v7113, %v7122
    %v7139 = vadd.f32 %v7114, %v7123
    %v7140 = vadd.f32 %v7115, %v7124
    %v7141 = vadd.f32 %v7116, %v7125
    %v7142 = vmax.f32 %v7134, 0.0
    %v7143 = vmax.f32 %v7135, 0.0
    %v7144 = vmax.f32 %v7136, 0.0
    %v7145 = vmax.f32 %v7137, 0.0
    %v7146 = vmax.f32 %v7138, 0.0
    %v7147 = vmax.f32 %v7139, 0.0
    %v7148 = vmax.f32 %v7140, 0.0
    %v7149 = vmax.f32 %v7141, 0.0
    %v7150 = vpack.c.bf16 %v7142, %v7142
    %v7151 = vpack.c.bf16 %v7143, %v7143
    %v7152 = vpack.c.bf16 %v7144, %v7144
    %v7153 = vpack.c.bf16 %v7145, %v7145
    %v7154 = vpack.c.bf16 %v7146, %v7146
    %v7155 = vpack.c.bf16 %v7147, %v7147
    %v7156 = vpack.c.bf16 %v7148, %v7148
    %v7157 = vpack.c.bf16 %v7149, %v7149
    %v7158 = vld [vmem:[#allocation11] sm:$0xff]
    %v7159 = vld [vmem:[#allocation11 + $0x8] sm:$0xff]
    %v7160 = vld [vmem:[#allocation11 + $0x10] sm:$0xff]
    %v7161 = vld [vmem:[#allocation11 + $0x18] sm:$0xff]
    %v7162 = vld [vmem:[#allocation11 + $0x20] sm:$0xff]
    %v7163 = vld [vmem:[#allocation11 + $0x28] sm:$0xff]
    %v7164 = vld [vmem:[#allocation11 + $0x30] sm:$0xff]
    %v7165 = vld [vmem:[#allocation11 + $0x38] sm:$0xff]
    %v7166 = vld [vmem:[#allocation11 + $0x40] sm:$0xff]
    %v7167 = vld [vmem:[#allocation11 + $0x48] sm:$0xff]
    %v7168 = vld [vmem:[#allocation11 + $0x50] sm:$0xff]
    %v7169 = vld [vmem:[#allocation11 + $0x58] sm:$0xff]
    %v7170 = vld [vmem:[#allocation11 + $0x60] sm:$0xff]
    %v7171 = vld [vmem:[#allocation11 + $0x68] sm:$0xff]
    %v7172 = vld [vmem:[#allocation11 + $0x70] sm:$0xff]
    %v7173 = vld [vmem:[#allocation11 + $0x78] sm:$0xff]
    %v7174 = vld [vmem:[#allocation11 + $0x80] sm:$0xff]
    %v7175 = vld [vmem:[#allocation11 + $0x88] sm:$0xff]
    %v7176 = vld [vmem:[#allocation11 + $0x90] sm:$0xff]
    %v7177 = vld [vmem:[#allocation11 + $0x98] sm:$0xff]
    %v7178 = vld [vmem:[#allocation11 + $0xa0] sm:$0xff]
    %v7179 = vld [vmem:[#allocation11 + $0xa8] sm:$0xff]
    %v7180 = vld [vmem:[#allocation11 + $0xb0] sm:$0xff]
    %v7181 = vld [vmem:[#allocation11 + $0xb8] sm:$0xff]
    %v7182 = vld [vmem:[#allocation11 + $0xc0] sm:$0xff]
    %v7183 = vld [vmem:[#allocation11 + $0xc8] sm:$0xff]
    %v7184 = vld [vmem:[#allocation11 + $0xd0] sm:$0xff]
    %v7185 = vld [vmem:[#allocation11 + $0xd8] sm:$0xff]
    %v7186 = vld [vmem:[#allocation11 + $0xe0] sm:$0xff]
    %v7187 = vld [vmem:[#allocation11 + $0xe8] sm:$0xff]
    %v7188 = vld [vmem:[#allocation11 + $0xf0] sm:$0xff]
    %v7189 = vld [vmem:[#allocation11 + $0xf8] sm:$0xff]
    %v7190 = vld [vmem:[#allocation11 + $0x100] sm:$0xff]
    %v7191 = vld [vmem:[#allocation11 + $0x108] sm:$0xff]
    %v7192 = vld [vmem:[#allocation11 + $0x110] sm:$0xff]
    %v7193 = vld [vmem:[#allocation11 + $0x118] sm:$0xff]
    %v7194 = vld [vmem:[#allocation11 + $0x120] sm:$0xff]
    %v7195 = vld [vmem:[#allocation11 + $0x128] sm:$0xff]
    %v7196 = vld [vmem:[#allocation11 + $0x130] sm:$0xff]
    %v7197 = vld [vmem:[#allocation11 + $0x138] sm:$0xff]
    %v7198 = vld [vmem:[#allocation11 + $0x140] sm:$0xff]
    %v7199 = vld [vmem:[#allocation11 + $0x148] sm:$0xff]
    %v7200 = vld [vmem:[#allocation11 + $0x150] sm:$0xff]
    %v7201 = vld [vmem:[#allocation11 + $0x158] sm:$0xff]
    %v7202 = vld [vmem:[#allocation11 + $0x160] sm:$0xff]
    %v7203 = vld [vmem:[#allocation11 + $0x168] sm:$0xff]
    %v7204 = vld [vmem:[#allocation11 + $0x170] sm:$0xff]
    %v7205 = vld [vmem:[#allocation11 + $0x178] sm:$0xff]
    %v7206 = vld [vmem:[#allocation11 + $0x180] sm:$0xff]
    %v7207 = vld [vmem:[#allocation11 + $0x188] sm:$0xff]
    %v7208 = vld [vmem:[#allocation11 + $0x190] sm:$0xff]
    %v7209 = vld [vmem:[#allocation11 + $0x198] sm:$0xff]
    %v7210 = vld [vmem:[#allocation11 + $0x1a0] sm:$0xff]
    %v7211 = vld [vmem:[#allocation11 + $0x1a8] sm:$0xff]
    %v7212 = vld [vmem:[#allocation11 + $0x1b0] sm:$0xff]
    %v7213 = vld [vmem:[#allocation11 + $0x1b8] sm:$0xff]
    %v7214 = vld [vmem:[#allocation11 + $0x1c0] sm:$0xff]
    %v7215 = vld [vmem:[#allocation11 + $0x1c8] sm:$0xff]
    %v7216 = vld [vmem:[#allocation11 + $0x1d0] sm:$0xff]
    %v7217 = vld [vmem:[#allocation11 + $0x1d8] sm:$0xff]
    %v7218 = vld [vmem:[#allocation11 + $0x1e0] sm:$0xff]
    %v7219 = vld [vmem:[#allocation11 + $0x1e8] sm:$0xff]
    %v7220 = vld [vmem:[#allocation11 + $0x1f0] sm:$0xff]
    %v7221 = vld [vmem:[#allocation11 + $0x1f8] sm:$0xff]
    %v7222 = vld [vmem:[#allocation11 + $0x200] sm:$0xff]
    %v7223 = vld [vmem:[#allocation11 + $0x208] sm:$0xff]
    %v7224 = vld [vmem:[#allocation11 + $0x210] sm:$0xff]
    %v7225 = vld [vmem:[#allocation11 + $0x218] sm:$0xff]
    %v7226 = vld [vmem:[#allocation11 + $0x220] sm:$0xff]
    %v7227 = vld [vmem:[#allocation11 + $0x228] sm:$0xff]
    %v7228 = vld [vmem:[#allocation11 + $0x230] sm:$0xff]
    %v7229 = vld [vmem:[#allocation11 + $0x238] sm:$0xff]
    %v7230 = vld [vmem:[#allocation11 + $0x240] sm:$0xff]
    %v7231 = vld [vmem:[#allocation11 + $0x248] sm:$0xff]
    %v7232 = vld [vmem:[#allocation11 + $0x250] sm:$0xff]
    %v7233 = vld [vmem:[#allocation11 + $0x258] sm:$0xff]
    %v7234 = vld [vmem:[#allocation11 + $0x260] sm:$0xff]
    %v7235 = vld [vmem:[#allocation11 + $0x268] sm:$0xff]
    %v7236 = vld [vmem:[#allocation11 + $0x270] sm:$0xff]
    %v7237 = vld [vmem:[#allocation11 + $0x278] sm:$0xff]
    %v7238 = vld [vmem:[#allocation11 + $0x280] sm:$0xff]
    %v7239 = vld [vmem:[#allocation11 + $0x288] sm:$0xff]
    %v7240 = vld [vmem:[#allocation11 + $0x290] sm:$0xff]
    %v7241 = vld [vmem:[#allocation11 + $0x298] sm:$0xff]
    %v7242 = vld [vmem:[#allocation11 + $0x2a0] sm:$0xff]
    %v7243 = vld [vmem:[#allocation11 + $0x2a8] sm:$0xff]
    %v7244 = vld [vmem:[#allocation11 + $0x2b0] sm:$0xff]
    %v7245 = vld [vmem:[#allocation11 + $0x2b8] sm:$0xff]
    %v7246 = vld [vmem:[#allocation11 + $0x2c0] sm:$0xff]
    %v7247 = vld [vmem:[#allocation11 + $0x2c8] sm:$0xff]
    %v7248 = vld [vmem:[#allocation11 + $0x2d0] sm:$0xff]
    %v7249 = vld [vmem:[#allocation11 + $0x2d8] sm:$0xff]
    %v7250 = vld [vmem:[#allocation11 + $0x2e0] sm:$0xff]
    %v7251 = vld [vmem:[#allocation11 + $0x2e8] sm:$0xff]
    %v7252 = vld [vmem:[#allocation11 + $0x2f0] sm:$0xff]
    %v7253 = vld [vmem:[#allocation11 + $0x2f8] sm:$0xff]
    %v7254 = vld [vmem:[#allocation11 + $0x300] sm:$0xff]
    %v7255 = vld [vmem:[#allocation11 + $0x308] sm:$0xff]
    %v7256 = vld [vmem:[#allocation11 + $0x310] sm:$0xff]
    %v7257 = vld [vmem:[#allocation11 + $0x318] sm:$0xff]
    %v7258 = vld [vmem:[#allocation11 + $0x320] sm:$0xff]
    %v7259 = vld [vmem:[#allocation11 + $0x328] sm:$0xff]
    %v7260 = vld [vmem:[#allocation11 + $0x330] sm:$0xff]
    %v7261 = vld [vmem:[#allocation11 + $0x338] sm:$0xff]
    %v7262 = vld [vmem:[#allocation11 + $0x340] sm:$0xff]
    %v7263 = vld [vmem:[#allocation11 + $0x348] sm:$0xff]
    %v7264 = vld [vmem:[#allocation11 + $0x350] sm:$0xff]
    %v7265 = vld [vmem:[#allocation11 + $0x358] sm:$0xff]
    %v7266 = vld [vmem:[#allocation11 + $0x360] sm:$0xff]
    %v7267 = vld [vmem:[#allocation11 + $0x368] sm:$0xff]
    %v7268 = vld [vmem:[#allocation11 + $0x370] sm:$0xff]
    %v7269 = vld [vmem:[#allocation11 + $0x378] sm:$0xff]
    %v7270 = vld [vmem:[#allocation11 + $0x380] sm:$0xff]
    %v7271 = vld [vmem:[#allocation11 + $0x388] sm:$0xff]
    %v7272 = vld [vmem:[#allocation11 + $0x390] sm:$0xff]
    %v7273 = vld [vmem:[#allocation11 + $0x398] sm:$0xff]
    %v7274 = vld [vmem:[#allocation11 + $0x3a0] sm:$0xff]
    %v7275 = vld [vmem:[#allocation11 + $0x3a8] sm:$0xff]
    %v7276 = vld [vmem:[#allocation11 + $0x3b0] sm:$0xff]
    %v7277 = vld [vmem:[#allocation11 + $0x3b8] sm:$0xff]
    %v7278 = vld [vmem:[#allocation11 + $0x3c0] sm:$0xff]
    %v7279 = vld [vmem:[#allocation11 + $0x3c8] sm:$0xff]
    %v7280 = vld [vmem:[#allocation11 + $0x3d0] sm:$0xff]
    %v7281 = vld [vmem:[#allocation11 + $0x3d8] sm:$0xff]
    %v7282 = vld [vmem:[#allocation11 + $0x3e0] sm:$0xff]
    %v7283 = vld [vmem:[#allocation11 + $0x3e8] sm:$0xff]
    %v7284 = vld [vmem:[#allocation11 + $0x3f0] sm:$0xff]
    %v7285 = vld [vmem:[#allocation11 + $0x3f8] sm:$0xff]
    %v7286 = vld [vmem:[#allocation11 + $0x400] sm:$0xff]
    %v7287 = vld [vmem:[#allocation11 + $0x408] sm:$0xff]
    %v7288 = vld [vmem:[#allocation11 + $0x410] sm:$0xff]
    %v7289 = vld [vmem:[#allocation11 + $0x418] sm:$0xff]
    %v7290 = vld [vmem:[#allocation11 + $0x420] sm:$0xff]
    %v7291 = vld [vmem:[#allocation11 + $0x428] sm:$0xff]
    %v7292 = vld [vmem:[#allocation11 + $0x430] sm:$0xff]
    %v7293 = vld [vmem:[#allocation11 + $0x438] sm:$0xff]
    %v7294 = vld [vmem:[#allocation11 + $0x440] sm:$0xff]
    %v7295 = vld [vmem:[#allocation11 + $0x448] sm:$0xff]
    %v7296 = vld [vmem:[#allocation11 + $0x450] sm:$0xff]
    %v7297 = vld [vmem:[#allocation11 + $0x458] sm:$0xff]
    %v7298 = vld [vmem:[#allocation11 + $0x460] sm:$0xff]
    %v7299 = vld [vmem:[#allocation11 + $0x468] sm:$0xff]
    %v7300 = vld [vmem:[#allocation11 + $0x470] sm:$0xff]
    %v7301 = vld [vmem:[#allocation11 + $0x478] sm:$0xff]
    %v7302 = vld [vmem:[#allocation11 + $0x480] sm:$0xff]
    %v7303 = vld [vmem:[#allocation11 + $0x488] sm:$0xff]
    %v7304 = vld [vmem:[#allocation11 + $0x490] sm:$0xff]
    %v7305 = vld [vmem:[#allocation11 + $0x498] sm:$0xff]
    %v7306 = vld [vmem:[#allocation11 + $0x4a0] sm:$0xff]
    %v7307 = vld [vmem:[#allocation11 + $0x4a8] sm:$0xff]
    %v7308 = vld [vmem:[#allocation11 + $0x4b0] sm:$0xff]
    %v7309 = vld [vmem:[#allocation11 + $0x4b8] sm:$0xff]
    %v7310 = vld [vmem:[#allocation11 + $0x4c0] sm:$0xff]
    %v7311 = vld [vmem:[#allocation11 + $0x4c8] sm:$0xff]
    %v7312 = vld [vmem:[#allocation11 + $0x4d0] sm:$0xff]
    %v7313 = vld [vmem:[#allocation11 + $0x4d8] sm:$0xff]
    %v7314 = vld [vmem:[#allocation11 + $0x4e0] sm:$0xff]
    %v7315 = vld [vmem:[#allocation11 + $0x4e8] sm:$0xff]
    %v7316 = vld [vmem:[#allocation11 + $0x4f0] sm:$0xff]
    %v7317 = vld [vmem:[#allocation11 + $0x4f8] sm:$0xff]
    %v7318 = vld [vmem:[#allocation11 + $0x500] sm:$0xff]
    %v7319 = vld [vmem:[#allocation11 + $0x508] sm:$0xff]
    %v7320 = vld [vmem:[#allocation11 + $0x510] sm:$0xff]
    %v7321 = vld [vmem:[#allocation11 + $0x518] sm:$0xff]
    %v7322 = vld [vmem:[#allocation11 + $0x520] sm:$0xff]
    %v7323 = vld [vmem:[#allocation11 + $0x528] sm:$0xff]
    %v7324 = vld [vmem:[#allocation11 + $0x530] sm:$0xff]
    %v7325 = vld [vmem:[#allocation11 + $0x538] sm:$0xff]
    %v7326 = vld [vmem:[#allocation11 + $0x540] sm:$0xff]
    %v7327 = vld [vmem:[#allocation11 + $0x548] sm:$0xff]
    %v7328 = vld [vmem:[#allocation11 + $0x550] sm:$0xff]
    %v7329 = vld [vmem:[#allocation11 + $0x558] sm:$0xff]
    %v7330 = vld [vmem:[#allocation11 + $0x560] sm:$0xff]
    %v7331 = vld [vmem:[#allocation11 + $0x568] sm:$0xff]
    %v7332 = vld [vmem:[#allocation11 + $0x570] sm:$0xff]
    %v7333 = vld [vmem:[#allocation11 + $0x578] sm:$0xff]
    %v7334 = vld [vmem:[#allocation11 + $0x580] sm:$0xff]
    %v7335 = vld [vmem:[#allocation11 + $0x588] sm:$0xff]
    %v7336 = vld [vmem:[#allocation11 + $0x590] sm:$0xff]
    %v7337 = vld [vmem:[#allocation11 + $0x598] sm:$0xff]
    %v7338 = vld [vmem:[#allocation11 + $0x5a0] sm:$0xff]
    %v7339 = vld [vmem:[#allocation11 + $0x5a8] sm:$0xff]
    %v7340 = vld [vmem:[#allocation11 + $0x5b0] sm:$0xff]
    %v7341 = vld [vmem:[#allocation11 + $0x5b8] sm:$0xff]
    %v7342 = vld [vmem:[#allocation11 + $0x5c0] sm:$0xff]
    %v7343 = vld [vmem:[#allocation11 + $0x5c8] sm:$0xff]
    %v7344 = vld [vmem:[#allocation11 + $0x5d0] sm:$0xff]
    %v7345 = vld [vmem:[#allocation11 + $0x5d8] sm:$0xff]
    %v7346 = vld [vmem:[#allocation11 + $0x5e0] sm:$0xff]
    %v7347 = vld [vmem:[#allocation11 + $0x5e8] sm:$0xff]
    %v7348 = vld [vmem:[#allocation11 + $0x5f0] sm:$0xff]
    %v7349 = vld [vmem:[#allocation11 + $0x5f8] sm:$0xff]
    %v7350 = vld [vmem:[#allocation11 + $0x600] sm:$0xff]
    %v7351 = vld [vmem:[#allocation11 + $0x608] sm:$0xff]
    %v7352 = vld [vmem:[#allocation11 + $0x610] sm:$0xff]
    %v7353 = vld [vmem:[#allocation11 + $0x618] sm:$0xff]
    %v7354 = vld [vmem:[#allocation11 + $0x620] sm:$0xff]
    %v7355 = vld [vmem:[#allocation11 + $0x628] sm:$0xff]
    %v7356 = vld [vmem:[#allocation11 + $0x630] sm:$0xff]
    %v7357 = vld [vmem:[#allocation11 + $0x638] sm:$0xff]
    %v7358 = vld [vmem:[#allocation11 + $0x640] sm:$0xff]
    %v7359 = vld [vmem:[#allocation11 + $0x648] sm:$0xff]
    %v7360 = vld [vmem:[#allocation11 + $0x650] sm:$0xff]
    %v7361 = vld [vmem:[#allocation11 + $0x658] sm:$0xff]
    %v7362 = vld [vmem:[#allocation11 + $0x660] sm:$0xff]
    %v7363 = vld [vmem:[#allocation11 + $0x668] sm:$0xff]
    %v7364 = vld [vmem:[#allocation11 + $0x670] sm:$0xff]
    %v7365 = vld [vmem:[#allocation11 + $0x678] sm:$0xff]
    %v7366 = vld [vmem:[#allocation11 + $0x680] sm:$0xff]
    %v7367 = vld [vmem:[#allocation11 + $0x688] sm:$0xff]
    %v7368 = vld [vmem:[#allocation11 + $0x690] sm:$0xff]
    %v7369 = vld [vmem:[#allocation11 + $0x698] sm:$0xff]
    %v7370 = vld [vmem:[#allocation11 + $0x6a0] sm:$0xff]
    %v7371 = vld [vmem:[#allocation11 + $0x6a8] sm:$0xff]
    %v7372 = vld [vmem:[#allocation11 + $0x6b0] sm:$0xff]
    %v7373 = vld [vmem:[#allocation11 + $0x6b8] sm:$0xff]
    %v7374 = vld [vmem:[#allocation11 + $0x6c0] sm:$0xff]
    %v7375 = vld [vmem:[#allocation11 + $0x6c8] sm:$0xff]
    %v7376 = vld [vmem:[#allocation11 + $0x6d0] sm:$0xff]
    %v7377 = vld [vmem:[#allocation11 + $0x6d8] sm:$0xff]
    %v7378 = vld [vmem:[#allocation11 + $0x6e0] sm:$0xff]
    %v7379 = vld [vmem:[#allocation11 + $0x6e8] sm:$0xff]
    %v7380 = vld [vmem:[#allocation11 + $0x6f0] sm:$0xff]
    %v7381 = vld [vmem:[#allocation11 + $0x6f8] sm:$0xff]
    %v7382 = vld [vmem:[#allocation11 + $0x700] sm:$0xff]
    %v7383 = vld [vmem:[#allocation11 + $0x708] sm:$0xff]
    %v7384 = vld [vmem:[#allocation11 + $0x710] sm:$0xff]
    %v7385 = vld [vmem:[#allocation11 + $0x718] sm:$0xff]
    %v7386 = vld [vmem:[#allocation11 + $0x720] sm:$0xff]
    %v7387 = vld [vmem:[#allocation11 + $0x728] sm:$0xff]
    %v7388 = vld [vmem:[#allocation11 + $0x730] sm:$0xff]
    %v7389 = vld [vmem:[#allocation11 + $0x738] sm:$0xff]
    %v7390 = vld [vmem:[#allocation11 + $0x740] sm:$0xff]
    %v7391 = vld [vmem:[#allocation11 + $0x748] sm:$0xff]
    %v7392 = vld [vmem:[#allocation11 + $0x750] sm:$0xff]
    %v7393 = vld [vmem:[#allocation11 + $0x758] sm:$0xff]
    %v7394 = vld [vmem:[#allocation11 + $0x760] sm:$0xff]
    %v7395 = vld [vmem:[#allocation11 + $0x768] sm:$0xff]
    %v7396 = vld [vmem:[#allocation11 + $0x770] sm:$0xff]
    %v7397 = vld [vmem:[#allocation11 + $0x778] sm:$0xff]
    %v7398 = vld [vmem:[#allocation11 + $0x780] sm:$0xff]
    %v7399 = vld [vmem:[#allocation11 + $0x788] sm:$0xff]
    %v7400 = vld [vmem:[#allocation11 + $0x790] sm:$0xff]
    %v7401 = vld [vmem:[#allocation11 + $0x798] sm:$0xff]
    %v7402 = vld [vmem:[#allocation11 + $0x7a0] sm:$0xff]
    %v7403 = vld [vmem:[#allocation11 + $0x7a8] sm:$0xff]
    %v7404 = vld [vmem:[#allocation11 + $0x7b0] sm:$0xff]
    %v7405 = vld [vmem:[#allocation11 + $0x7b8] sm:$0xff]
    %v7406 = vld [vmem:[#allocation11 + $0x7c0] sm:$0xff]
    %v7407 = vld [vmem:[#allocation11 + $0x7c8] sm:$0xff]
    %v7408 = vld [vmem:[#allocation11 + $0x7d0] sm:$0xff]
    %v7409 = vld [vmem:[#allocation11 + $0x7d8] sm:$0xff]
    %v7410 = vld [vmem:[#allocation11 + $0x7e0] sm:$0xff]
    %v7411 = vld [vmem:[#allocation11 + $0x7e8] sm:$0xff]
    %v7412 = vld [vmem:[#allocation11 + $0x7f0] sm:$0xff]
    %v7413 = vld [vmem:[#allocation11 + $0x7f8] sm:$0xff]
    %v7670 = vunpack.c.l.b16 %v7158
    %v7671 = vunpack.c.h.b16 %v7158
    %v7672 = vunpack.c.l.b16 %v7159
    %v7673 = vunpack.c.h.b16 %v7159
    %v7674 = vunpack.c.l.b16 %v7160
    %v7675 = vunpack.c.h.b16 %v7160
    %v7676 = vunpack.c.l.b16 %v7161
    %v7677 = vunpack.c.h.b16 %v7161
    %v7678 = vunpack.c.l.b16 %v7162
    %v7679 = vunpack.c.h.b16 %v7162
    %v7680 = vunpack.c.l.b16 %v7163
    %v7681 = vunpack.c.h.b16 %v7163
    %v7682 = vunpack.c.l.b16 %v7164
    %v7683 = vunpack.c.h.b16 %v7164
    %v7684 = vunpack.c.l.b16 %v7165
    %v7685 = vunpack.c.h.b16 %v7165
    %v7686 = vunpack.c.l.b16 %v7166
    %v7687 = vunpack.c.h.b16 %v7166
    %v7688 = vunpack.c.l.b16 %v7167
    %v7689 = vunpack.c.h.b16 %v7167
    %v7690 = vunpack.c.l.b16 %v7168
    %v7691 = vunpack.c.h.b16 %v7168
    %v7692 = vunpack.c.l.b16 %v7169
    %v7693 = vunpack.c.h.b16 %v7169
    %v7694 = vunpack.c.l.b16 %v7170
    %v7695 = vunpack.c.h.b16 %v7170
    %v7696 = vunpack.c.l.b16 %v7171
    %v7697 = vunpack.c.h.b16 %v7171
    %v7698 = vunpack.c.l.b16 %v7172
    %v7699 = vunpack.c.h.b16 %v7172
    %v7700 = vunpack.c.l.b16 %v7173
    %v7701 = vunpack.c.h.b16 %v7173
    %v7702 = vunpack.c.l.b16 %v7174
    %v7703 = vunpack.c.h.b16 %v7174
    %v7704 = vunpack.c.l.b16 %v7175
    %v7705 = vunpack.c.h.b16 %v7175
    %v7706 = vunpack.c.l.b16 %v7176
    %v7707 = vunpack.c.h.b16 %v7176
    %v7708 = vunpack.c.l.b16 %v7177
    %v7709 = vunpack.c.h.b16 %v7177
    %v7710 = vunpack.c.l.b16 %v7178
    %v7711 = vunpack.c.h.b16 %v7178
    %v7712 = vunpack.c.l.b16 %v7179
    %v7713 = vunpack.c.h.b16 %v7179
    %v7714 = vunpack.c.l.b16 %v7180
    %v7715 = vunpack.c.h.b16 %v7180
    %v7716 = vunpack.c.l.b16 %v7181
    %v7717 = vunpack.c.h.b16 %v7181
    %v7718 = vunpack.c.l.b16 %v7182
    %v7719 = vunpack.c.h.b16 %v7182
    %v7720 = vunpack.c.l.b16 %v7183
    %v7721 = vunpack.c.h.b16 %v7183
    %v7722 = vunpack.c.l.b16 %v7184
    %v7723 = vunpack.c.h.b16 %v7184
    %v7724 = vunpack.c.l.b16 %v7185
    %v7725 = vunpack.c.h.b16 %v7185
    %v7726 = vunpack.c.l.b16 %v7186
    %v7727 = vunpack.c.h.b16 %v7186
    %v7728 = vunpack.c.l.b16 %v7187
    %v7729 = vunpack.c.h.b16 %v7187
    %v7730 = vunpack.c.l.b16 %v7188
    %v7731 = vunpack.c.h.b16 %v7188
    %v7732 = vunpack.c.l.b16 %v7189
    %v7733 = vunpack.c.h.b16 %v7189
    %v7734 = vunpack.c.l.b16 %v7190
    %v7735 = vunpack.c.h.b16 %v7190
    %v7736 = vunpack.c.l.b16 %v7191
    %v7737 = vunpack.c.h.b16 %v7191
    %v7738 = vunpack.c.l.b16 %v7192
    %v7739 = vunpack.c.h.b16 %v7192
    %v7740 = vunpack.c.l.b16 %v7193
    %v7741 = vunpack.c.h.b16 %v7193
    %v7742 = vunpack.c.l.b16 %v7194
    %v7743 = vunpack.c.h.b16 %v7194
    %v7744 = vunpack.c.l.b16 %v7195
    %v7745 = vunpack.c.h.b16 %v7195
    %v7746 = vunpack.c.l.b16 %v7196
    %v7747 = vunpack.c.h.b16 %v7196
    %v7748 = vunpack.c.l.b16 %v7197
    %v7749 = vunpack.c.h.b16 %v7197
    %v7750 = vunpack.c.l.b16 %v7198
    %v7751 = vunpack.c.h.b16 %v7198
    %v7752 = vunpack.c.l.b16 %v7199
    %v7753 = vunpack.c.h.b16 %v7199
    %v7754 = vunpack.c.l.b16 %v7200
    %v7755 = vunpack.c.h.b16 %v7200
    %v7756 = vunpack.c.l.b16 %v7201
    %v7757 = vunpack.c.h.b16 %v7201
    %v7758 = vunpack.c.l.b16 %v7202
    %v7759 = vunpack.c.h.b16 %v7202
    %v7760 = vunpack.c.l.b16 %v7203
    %v7761 = vunpack.c.h.b16 %v7203
    %v7762 = vunpack.c.l.b16 %v7204
    %v7763 = vunpack.c.h.b16 %v7204
    %v7764 = vunpack.c.l.b16 %v7205
    %v7765 = vunpack.c.h.b16 %v7205
    %v7766 = vunpack.c.l.b16 %v7206
    %v7767 = vunpack.c.h.b16 %v7206
    %v7768 = vunpack.c.l.b16 %v7207
    %v7769 = vunpack.c.h.b16 %v7207
    %v7770 = vunpack.c.l.b16 %v7208
    %v7771 = vunpack.c.h.b16 %v7208
    %v7772 = vunpack.c.l.b16 %v7209
    %v7773 = vunpack.c.h.b16 %v7209
    %v7774 = vunpack.c.l.b16 %v7210
    %v7775 = vunpack.c.h.b16 %v7210
    %v7776 = vunpack.c.l.b16 %v7211
    %v7777 = vunpack.c.h.b16 %v7211
    %v7778 = vunpack.c.l.b16 %v7212
    %v7779 = vunpack.c.h.b16 %v7212
    %v7780 = vunpack.c.l.b16 %v7213
    %v7781 = vunpack.c.h.b16 %v7213
    %v7782 = vunpack.c.l.b16 %v7214
    %v7783 = vunpack.c.h.b16 %v7214
    %v7784 = vunpack.c.l.b16 %v7215
    %v7785 = vunpack.c.h.b16 %v7215
    %v7786 = vunpack.c.l.b16 %v7216
    %v7787 = vunpack.c.h.b16 %v7216
    %v7788 = vunpack.c.l.b16 %v7217
    %v7789 = vunpack.c.h.b16 %v7217
    %v7790 = vunpack.c.l.b16 %v7218
    %v7791 = vunpack.c.h.b16 %v7218
    %v7792 = vunpack.c.l.b16 %v7219
    %v7793 = vunpack.c.h.b16 %v7219
    %v7794 = vunpack.c.l.b16 %v7220
    %v7795 = vunpack.c.h.b16 %v7220
    %v7796 = vunpack.c.l.b16 %v7221
    %v7797 = vunpack.c.h.b16 %v7221
    %v7798 = vunpack.c.l.b16 %v7222
    %v7799 = vunpack.c.h.b16 %v7222
    %v7800 = vunpack.c.l.b16 %v7223
    %v7801 = vunpack.c.h.b16 %v7223
    %v7802 = vunpack.c.l.b16 %v7224
    %v7803 = vunpack.c.h.b16 %v7224
    %v7804 = vunpack.c.l.b16 %v7225
    %v7805 = vunpack.c.h.b16 %v7225
    %v7806 = vunpack.c.l.b16 %v7226
    %v7807 = vunpack.c.h.b16 %v7226
    %v7808 = vunpack.c.l.b16 %v7227
    %v7809 = vunpack.c.h.b16 %v7227
    %v7810 = vunpack.c.l.b16 %v7228
    %v7811 = vunpack.c.h.b16 %v7228
    %v7812 = vunpack.c.l.b16 %v7229
    %v7813 = vunpack.c.h.b16 %v7229
    %v7814 = vunpack.c.l.b16 %v7230
    %v7815 = vunpack.c.h.b16 %v7230
    %v7816 = vunpack.c.l.b16 %v7231
    %v7817 = vunpack.c.h.b16 %v7231
    %v7818 = vunpack.c.l.b16 %v7232
    %v7819 = vunpack.c.h.b16 %v7232
    %v7820 = vunpack.c.l.b16 %v7233
    %v7821 = vunpack.c.h.b16 %v7233
    %v7822 = vunpack.c.l.b16 %v7234
    %v7823 = vunpack.c.h.b16 %v7234
    %v7824 = vunpack.c.l.b16 %v7235
    %v7825 = vunpack.c.h.b16 %v7235
    %v7826 = vunpack.c.l.b16 %v7236
    %v7827 = vunpack.c.h.b16 %v7236
    %v7828 = vunpack.c.l.b16 %v7237
    %v7829 = vunpack.c.h.b16 %v7237
    %v7830 = vunpack.c.l.b16 %v7238
    %v7831 = vunpack.c.h.b16 %v7238
    %v7832 = vunpack.c.l.b16 %v7239
    %v7833 = vunpack.c.h.b16 %v7239
    %v7834 = vunpack.c.l.b16 %v7240
    %v7835 = vunpack.c.h.b16 %v7240
    %v7836 = vunpack.c.l.b16 %v7241
    %v7837 = vunpack.c.h.b16 %v7241
    %v7838 = vunpack.c.l.b16 %v7242
    %v7839 = vunpack.c.h.b16 %v7242
    %v7840 = vunpack.c.l.b16 %v7243
    %v7841 = vunpack.c.h.b16 %v7243
    %v7842 = vunpack.c.l.b16 %v7244
    %v7843 = vunpack.c.h.b16 %v7244
    %v7844 = vunpack.c.l.b16 %v7245
    %v7845 = vunpack.c.h.b16 %v7245
    %v7846 = vunpack.c.l.b16 %v7246
    %v7847 = vunpack.c.h.b16 %v7246
    %v7848 = vunpack.c.l.b16 %v7247
    %v7849 = vunpack.c.h.b16 %v7247
    %v7850 = vunpack.c.l.b16 %v7248
    %v7851 = vunpack.c.h.b16 %v7248
    %v7852 = vunpack.c.l.b16 %v7249
    %v7853 = vunpack.c.h.b16 %v7249
    %v7854 = vunpack.c.l.b16 %v7250
    %v7855 = vunpack.c.h.b16 %v7250
    %v7856 = vunpack.c.l.b16 %v7251
    %v7857 = vunpack.c.h.b16 %v7251
    %v7858 = vunpack.c.l.b16 %v7252
    %v7859 = vunpack.c.h.b16 %v7252
    %v7860 = vunpack.c.l.b16 %v7253
    %v7861 = vunpack.c.h.b16 %v7253
    %v7862 = vunpack.c.l.b16 %v7254
    %v7863 = vunpack.c.h.b16 %v7254
    %v7864 = vunpack.c.l.b16 %v7255
    %v7865 = vunpack.c.h.b16 %v7255
    %v7866 = vunpack.c.l.b16 %v7256
    %v7867 = vunpack.c.h.b16 %v7256
    %v7868 = vunpack.c.l.b16 %v7257
    %v7869 = vunpack.c.h.b16 %v7257
    %v7870 = vunpack.c.l.b16 %v7258
    %v7871 = vunpack.c.h.b16 %v7258
    %v7872 = vunpack.c.l.b16 %v7259
    %v7873 = vunpack.c.h.b16 %v7259
    %v7874 = vunpack.c.l.b16 %v7260
    %v7875 = vunpack.c.h.b16 %v7260
    %v7876 = vunpack.c.l.b16 %v7261
    %v7877 = vunpack.c.h.b16 %v7261
    %v7878 = vunpack.c.l.b16 %v7262
    %v7879 = vunpack.c.h.b16 %v7262
    %v7880 = vunpack.c.l.b16 %v7263
    %v7881 = vunpack.c.h.b16 %v7263
    %v7882 = vunpack.c.l.b16 %v7264
    %v7883 = vunpack.c.h.b16 %v7264
    %v7884 = vunpack.c.l.b16 %v7265
    %v7885 = vunpack.c.h.b16 %v7265
    %v7886 = vunpack.c.l.b16 %v7266
    %v7887 = vunpack.c.h.b16 %v7266
    %v7888 = vunpack.c.l.b16 %v7267
    %v7889 = vunpack.c.h.b16 %v7267
    %v7890 = vunpack.c.l.b16 %v7268
    %v7891 = vunpack.c.h.b16 %v7268
    %v7892 = vunpack.c.l.b16 %v7269
    %v7893 = vunpack.c.h.b16 %v7269
    %v7894 = vunpack.c.l.b16 %v7270
    %v7895 = vunpack.c.h.b16 %v7270
    %v7896 = vunpack.c.l.b16 %v7271
    %v7897 = vunpack.c.h.b16 %v7271
    %v7898 = vunpack.c.l.b16 %v7272
    %v7899 = vunpack.c.h.b16 %v7272
    %v7900 = vunpack.c.l.b16 %v7273
    %v7901 = vunpack.c.h.b16 %v7273
    %v7902 = vunpack.c.l.b16 %v7274
    %v7903 = vunpack.c.h.b16 %v7274
    %v7904 = vunpack.c.l.b16 %v7275
    %v7905 = vunpack.c.h.b16 %v7275
    %v7906 = vunpack.c.l.b16 %v7276
    %v7907 = vunpack.c.h.b16 %v7276
    %v7908 = vunpack.c.l.b16 %v7277
    %v7909 = vunpack.c.h.b16 %v7277
    %v7910 = vunpack.c.l.b16 %v7278
    %v7911 = vunpack.c.h.b16 %v7278
    %v7912 = vunpack.c.l.b16 %v7279
    %v7913 = vunpack.c.h.b16 %v7279
    %v7914 = vunpack.c.l.b16 %v7280
    %v7915 = vunpack.c.h.b16 %v7280
    %v7916 = vunpack.c.l.b16 %v7281
    %v7917 = vunpack.c.h.b16 %v7281
    %v7918 = vunpack.c.l.b16 %v7282
    %v7919 = vunpack.c.h.b16 %v7282
    %v7920 = vunpack.c.l.b16 %v7283
    %v7921 = vunpack.c.h.b16 %v7283
    %v7922 = vunpack.c.l.b16 %v7284
    %v7923 = vunpack.c.h.b16 %v7284
    %v7924 = vunpack.c.l.b16 %v7285
    %v7925 = vunpack.c.h.b16 %v7285
    %v7926 = vunpack.c.l.b16 %v7286
    %v7927 = vunpack.c.h.b16 %v7286
    %v7928 = vunpack.c.l.b16 %v7287
    %v7929 = vunpack.c.h.b16 %v7287
    %v7930 = vunpack.c.l.b16 %v7288
    %v7931 = vunpack.c.h.b16 %v7288
    %v7932 = vunpack.c.l.b16 %v7289
    %v7933 = vunpack.c.h.b16 %v7289
    %v7934 = vunpack.c.l.b16 %v7290
    %v7935 = vunpack.c.h.b16 %v7290
    %v7936 = vunpack.c.l.b16 %v7291
    %v7937 = vunpack.c.h.b16 %v7291
    %v7938 = vunpack.c.l.b16 %v7292
    %v7939 = vunpack.c.h.b16 %v7292
    %v7940 = vunpack.c.l.b16 %v7293
    %v7941 = vunpack.c.h.b16 %v7293
    %v7942 = vunpack.c.l.b16 %v7294
    %v7943 = vunpack.c.h.b16 %v7294
    %v7944 = vunpack.c.l.b16 %v7295
    %v7945 = vunpack.c.h.b16 %v7295
    %v7946 = vunpack.c.l.b16 %v7296
    %v7947 = vunpack.c.h.b16 %v7296
    %v7948 = vunpack.c.l.b16 %v7297
    %v7949 = vunpack.c.h.b16 %v7297
    %v7950 = vunpack.c.l.b16 %v7298
    %v7951 = vunpack.c.h.b16 %v7298
    %v7952 = vunpack.c.l.b16 %v7299
    %v7953 = vunpack.c.h.b16 %v7299
    %v7954 = vunpack.c.l.b16 %v7300
    %v7955 = vunpack.c.h.b16 %v7300
    %v7956 = vunpack.c.l.b16 %v7301
    %v7957 = vunpack.c.h.b16 %v7301
    %v7958 = vunpack.c.l.b16 %v7302
    %v7959 = vunpack.c.h.b16 %v7302
    %v7960 = vunpack.c.l.b16 %v7303
    %v7961 = vunpack.c.h.b16 %v7303
    %v7962 = vunpack.c.l.b16 %v7304
    %v7963 = vunpack.c.h.b16 %v7304
    %v7964 = vunpack.c.l.b16 %v7305
    %v7965 = vunpack.c.h.b16 %v7305
    %v7966 = vunpack.c.l.b16 %v7306
    %v7967 = vunpack.c.h.b16 %v7306
    %v7968 = vunpack.c.l.b16 %v7307
    %v7969 = vunpack.c.h.b16 %v7307
    %v7970 = vunpack.c.l.b16 %v7308
    %v7971 = vunpack.c.h.b16 %v7308
    %v7972 = vunpack.c.l.b16 %v7309
    %v7973 = vunpack.c.h.b16 %v7309
    %v7974 = vunpack.c.l.b16 %v7310
    %v7975 = vunpack.c.h.b16 %v7310
    %v7976 = vunpack.c.l.b16 %v7311
    %v7977 = vunpack.c.h.b16 %v7311
    %v7978 = vunpack.c.l.b16 %v7312
    %v7979 = vunpack.c.h.b16 %v7312
    %v7980 = vunpack.c.l.b16 %v7313
    %v7981 = vunpack.c.h.b16 %v7313
    %v7982 = vunpack.c.l.b16 %v7314
    %v7983 = vunpack.c.h.b16 %v7314
    %v7984 = vunpack.c.l.b16 %v7315
    %v7985 = vunpack.c.h.b16 %v7315
    %v7986 = vunpack.c.l.b16 %v7316
    %v7987 = vunpack.c.h.b16 %v7316
    %v7988 = vunpack.c.l.b16 %v7317
    %v7989 = vunpack.c.h.b16 %v7317
    %v7990 = vunpack.c.l.b16 %v7318
    %v7991 = vunpack.c.h.b16 %v7318
    %v7992 = vunpack.c.l.b16 %v7319
    %v7993 = vunpack.c.h.b16 %v7319
    %v7994 = vunpack.c.l.b16 %v7320
    %v7995 = vunpack.c.h.b16 %v7320
    %v7996 = vunpack.c.l.b16 %v7321
    %v7997 = vunpack.c.h.b16 %v7321
    %v7998 = vunpack.c.l.b16 %v7322
    %v7999 = vunpack.c.h.b16 %v7322
    %v8000 = vunpack.c.l.b16 %v7323
    %v8001 = vunpack.c.h.b16 %v7323
    %v8002 = vunpack.c.l.b16 %v7324
    %v8003 = vunpack.c.h.b16 %v7324
    %v8004 = vunpack.c.l.b16 %v7325
    %v8005 = vunpack.c.h.b16 %v7325
    %v8006 = vunpack.c.l.b16 %v7326
    %v8007 = vunpack.c.h.b16 %v7326
    %v8008 = vunpack.c.l.b16 %v7327
    %v8009 = vunpack.c.h.b16 %v7327
    %v8010 = vunpack.c.l.b16 %v7328
    %v8011 = vunpack.c.h.b16 %v7328
    %v8012 = vunpack.c.l.b16 %v7329
    %v8013 = vunpack.c.h.b16 %v7329
    %v8014 = vunpack.c.l.b16 %v7330
    %v8015 = vunpack.c.h.b16 %v7330
    %v8016 = vunpack.c.l.b16 %v7331
    %v8017 = vunpack.c.h.b16 %v7331
    %v8018 = vunpack.c.l.b16 %v7332
    %v8019 = vunpack.c.h.b16 %v7332
    %v8020 = vunpack.c.l.b16 %v7333
    %v8021 = vunpack.c.h.b16 %v7333
    %v8022 = vunpack.c.l.b16 %v7334
    %v8023 = vunpack.c.h.b16 %v7334
    %v8024 = vunpack.c.l.b16 %v7335
    %v8025 = vunpack.c.h.b16 %v7335
    %v8026 = vunpack.c.l.b16 %v7336
    %v8027 = vunpack.c.h.b16 %v7336
    %v8028 = vunpack.c.l.b16 %v7337
    %v8029 = vunpack.c.h.b16 %v7337
    %v8030 = vunpack.c.l.b16 %v7338
    %v8031 = vunpack.c.h.b16 %v7338
    %v8032 = vunpack.c.l.b16 %v7339
    %v8033 = vunpack.c.h.b16 %v7339
    %v8034 = vunpack.c.l.b16 %v7340
    %v8035 = vunpack.c.h.b16 %v7340
    %v8036 = vunpack.c.l.b16 %v7341
    %v8037 = vunpack.c.h.b16 %v7341
    %v8038 = vunpack.c.l.b16 %v7342
    %v8039 = vunpack.c.h.b16 %v7342
    %v8040 = vunpack.c.l.b16 %v7343
    %v8041 = vunpack.c.h.b16 %v7343
    %v8042 = vunpack.c.l.b16 %v7344
    %v8043 = vunpack.c.h.b16 %v7344
    %v8044 = vunpack.c.l.b16 %v7345
    %v8045 = vunpack.c.h.b16 %v7345
    %v8046 = vunpack.c.l.b16 %v7346
    %v8047 = vunpack.c.h.b16 %v7346
    %v8048 = vunpack.c.l.b16 %v7347
    %v8049 = vunpack.c.h.b16 %v7347
    %v8050 = vunpack.c.l.b16 %v7348
    %v8051 = vunpack.c.h.b16 %v7348
    %v8052 = vunpack.c.l.b16 %v7349
    %v8053 = vunpack.c.h.b16 %v7349
    %v8054 = vunpack.c.l.b16 %v7350
    %v8055 = vunpack.c.h.b16 %v7350
    %v8056 = vunpack.c.l.b16 %v7351
    %v8057 = vunpack.c.h.b16 %v7351
    %v8058 = vunpack.c.l.b16 %v7352
    %v8059 = vunpack.c.h.b16 %v7352
    %v8060 = vunpack.c.l.b16 %v7353
    %v8061 = vunpack.c.h.b16 %v7353
    %v8062 = vunpack.c.l.b16 %v7354
    %v8063 = vunpack.c.h.b16 %v7354
    %v8064 = vunpack.c.l.b16 %v7355
    %v8065 = vunpack.c.h.b16 %v7355
    %v8066 = vunpack.c.l.b16 %v7356
    %v8067 = vunpack.c.h.b16 %v7356
    %v8068 = vunpack.c.l.b16 %v7357
    %v8069 = vunpack.c.h.b16 %v7357
    %v8070 = vunpack.c.l.b16 %v7358
    %v8071 = vunpack.c.h.b16 %v7358
    %v8072 = vunpack.c.l.b16 %v7359
    %v8073 = vunpack.c.h.b16 %v7359
    %v8074 = vunpack.c.l.b16 %v7360
    %v8075 = vunpack.c.h.b16 %v7360
    %v8076 = vunpack.c.l.b16 %v7361
    %v8077 = vunpack.c.h.b16 %v7361
    %v8078 = vunpack.c.l.b16 %v7362
    %v8079 = vunpack.c.h.b16 %v7362
    %v8080 = vunpack.c.l.b16 %v7363
    %v8081 = vunpack.c.h.b16 %v7363
    %v8082 = vunpack.c.l.b16 %v7364
    %v8083 = vunpack.c.h.b16 %v7364
    %v8084 = vunpack.c.l.b16 %v7365
    %v8085 = vunpack.c.h.b16 %v7365
    %v8086 = vunpack.c.l.b16 %v7366
    %v8087 = vunpack.c.h.b16 %v7366
    %v8088 = vunpack.c.l.b16 %v7367
    %v8089 = vunpack.c.h.b16 %v7367
    %v8090 = vunpack.c.l.b16 %v7368
    %v8091 = vunpack.c.h.b16 %v7368
    %v8092 = vunpack.c.l.b16 %v7369
    %v8093 = vunpack.c.h.b16 %v7369
    %v8094 = vunpack.c.l.b16 %v7370
    %v8095 = vunpack.c.h.b16 %v7370
    %v8096 = vunpack.c.l.b16 %v7371
    %v8097 = vunpack.c.h.b16 %v7371
    %v8098 = vunpack.c.l.b16 %v7372
    %v8099 = vunpack.c.h.b16 %v7372
    %v8100 = vunpack.c.l.b16 %v7373
    %v8101 = vunpack.c.h.b16 %v7373
    %v8102 = vunpack.c.l.b16 %v7374
    %v8103 = vunpack.c.h.b16 %v7374
    %v8104 = vunpack.c.l.b16 %v7375
    %v8105 = vunpack.c.h.b16 %v7375
    %v8106 = vunpack.c.l.b16 %v7376
    %v8107 = vunpack.c.h.b16 %v7376
    %v8108 = vunpack.c.l.b16 %v7377
    %v8109 = vunpack.c.h.b16 %v7377
    %v8110 = vunpack.c.l.b16 %v7378
    %v8111 = vunpack.c.h.b16 %v7378
    %v8112 = vunpack.c.l.b16 %v7379
    %v8113 = vunpack.c.h.b16 %v7379
    %v8114 = vunpack.c.l.b16 %v7380
    %v8115 = vunpack.c.h.b16 %v7380
    %v8116 = vunpack.c.l.b16 %v7381
    %v8117 = vunpack.c.h.b16 %v7381
    %v8118 = vunpack.c.l.b16 %v7382
    %v8119 = vunpack.c.h.b16 %v7382
    %v8120 = vunpack.c.l.b16 %v7383
    %v8121 = vunpack.c.h.b16 %v7383
    %v8122 = vunpack.c.l.b16 %v7384
    %v8123 = vunpack.c.h.b16 %v7384
    %v8124 = vunpack.c.l.b16 %v7385
    %v8125 = vunpack.c.h.b16 %v7385
    %v8126 = vunpack.c.l.b16 %v7386
    %v8127 = vunpack.c.h.b16 %v7386
    %v8128 = vunpack.c.l.b16 %v7387
    %v8129 = vunpack.c.h.b16 %v7387
    %v8130 = vunpack.c.l.b16 %v7388
    %v8131 = vunpack.c.h.b16 %v7388
    %v8132 = vunpack.c.l.b16 %v7389
    %v8133 = vunpack.c.h.b16 %v7389
    %v8134 = vunpack.c.l.b16 %v7390
    %v8135 = vunpack.c.h.b16 %v7390
    %v8136 = vunpack.c.l.b16 %v7391
    %v8137 = vunpack.c.h.b16 %v7391
    %v8138 = vunpack.c.l.b16 %v7392
    %v8139 = vunpack.c.h.b16 %v7392
    %v8140 = vunpack.c.l.b16 %v7393
    %v8141 = vunpack.c.h.b16 %v7393
    %v8142 = vunpack.c.l.b16 %v7394
    %v8143 = vunpack.c.h.b16 %v7394
    %v8144 = vunpack.c.l.b16 %v7395
    %v8145 = vunpack.c.h.b16 %v7395
    %v8146 = vunpack.c.l.b16 %v7396
    %v8147 = vunpack.c.h.b16 %v7396
    %v8148 = vunpack.c.l.b16 %v7397
    %v8149 = vunpack.c.h.b16 %v7397
    %v8150 = vunpack.c.l.b16 %v7398
    %v8151 = vunpack.c.h.b16 %v7398
    %v8152 = vunpack.c.l.b16 %v7399
    %v8153 = vunpack.c.h.b16 %v7399
    %v8154 = vunpack.c.l.b16 %v7400
    %v8155 = vunpack.c.h.b16 %v7400
    %v8156 = vunpack.c.l.b16 %v7401
    %v8157 = vunpack.c.h.b16 %v7401
    %v8158 = vunpack.c.l.b16 %v7402
    %v8159 = vunpack.c.h.b16 %v7402
    %v8160 = vunpack.c.l.b16 %v7403
    %v8161 = vunpack.c.h.b16 %v7403
    %v8162 = vunpack.c.l.b16 %v7404
    %v8163 = vunpack.c.h.b16 %v7404
    %v8164 = vunpack.c.l.b16 %v7405
    %v8165 = vunpack.c.h.b16 %v7405
    %v8166 = vunpack.c.l.b16 %v7406
    %v8167 = vunpack.c.h.b16 %v7406
    %v8168 = vunpack.c.l.b16 %v7407
    %v8169 = vunpack.c.h.b16 %v7407
    %v8170 = vunpack.c.l.b16 %v7408
    %v8171 = vunpack.c.h.b16 %v7408
    %v8172 = vunpack.c.l.b16 %v7409
    %v8173 = vunpack.c.h.b16 %v7409
    %v8174 = vunpack.c.l.b16 %v7410
    %v8175 = vunpack.c.h.b16 %v7410
    %v8176 = vunpack.c.l.b16 %v7411
    %v8177 = vunpack.c.h.b16 %v7411
    %v8178 = vunpack.c.l.b16 %v7412
    %v8179 = vunpack.c.h.b16 %v7412
    %v8180 = vunpack.c.l.b16 %v7413
    %v8181 = vunpack.c.h.b16 %v7413
    %v8182 = vpack.c.b16 %v7674, %v7670
    %v8183 = vpack.c.b16 %v7675, %v7671
    %v8184 = vpack.c.b16 %v7676, %v7672
    %v8185 = vpack.c.b16 %v7677, %v7673
    %v8186 = vpack.c.b16 %v7682, %v7678
    %v8187 = vpack.c.b16 %v7683, %v7679
    %v8188 = vpack.c.b16 %v7684, %v7680
    %v8189 = vpack.c.b16 %v7685, %v7681
    %v8190 = vpack.c.b16 %v7690, %v7686
    %v8191 = vpack.c.b16 %v7691, %v7687
    %v8192 = vpack.c.b16 %v7692, %v7688
    %v8193 = vpack.c.b16 %v7693, %v7689
    %v8194 = vpack.c.b16 %v7698, %v7694
    %v8195 = vpack.c.b16 %v7699, %v7695
    %v8196 = vpack.c.b16 %v7700, %v7696
    %v8197 = vpack.c.b16 %v7701, %v7697
    %v8198 = vpack.c.b16 %v7706, %v7702
    %v8199 = vpack.c.b16 %v7707, %v7703
    %v8200 = vpack.c.b16 %v7708, %v7704
    %v8201 = vpack.c.b16 %v7709, %v7705
    %v8202 = vpack.c.b16 %v7714, %v7710
    %v8203 = vpack.c.b16 %v7715, %v7711
    %v8204 = vpack.c.b16 %v7716, %v7712
    %v8205 = vpack.c.b16 %v7717, %v7713
    %v8206 = vpack.c.b16 %v7722, %v7718
    %v8207 = vpack.c.b16 %v7723, %v7719
    %v8208 = vpack.c.b16 %v7724, %v7720
    %v8209 = vpack.c.b16 %v7725, %v7721
    %v8210 = vpack.c.b16 %v7730, %v7726
    %v8211 = vpack.c.b16 %v7731, %v7727
    %v8212 = vpack.c.b16 %v7732, %v7728
    %v8213 = vpack.c.b16 %v7733, %v7729
    %v8214 = vpack.c.b16 %v7738, %v7734
    %v8215 = vpack.c.b16 %v7739, %v7735
    %v8216 = vpack.c.b16 %v7740, %v7736
    %v8217 = vpack.c.b16 %v7741, %v7737
    %v8218 = vpack.c.b16 %v7746, %v7742
    %v8219 = vpack.c.b16 %v7747, %v7743
    %v8220 = vpack.c.b16 %v7748, %v7744
    %v8221 = vpack.c.b16 %v7749, %v7745
    %v8222 = vpack.c.b16 %v7754, %v7750
    %v8223 = vpack.c.b16 %v7755, %v7751
    %v8224 = vpack.c.b16 %v7756, %v7752
    %v8225 = vpack.c.b16 %v7757, %v7753
    %v8226 = vpack.c.b16 %v7762, %v7758
    %v8227 = vpack.c.b16 %v7763, %v7759
    %v8228 = vpack.c.b16 %v7764, %v7760
    %v8229 = vpack.c.b16 %v7765, %v7761
    %v8230 = vpack.c.b16 %v7770, %v7766
    %v8231 = vpack.c.b16 %v7771, %v7767
    %v8232 = vpack.c.b16 %v7772, %v7768
    %v8233 = vpack.c.b16 %v7773, %v7769
    %v8234 = vpack.c.b16 %v7778, %v7774
    %v8235 = vpack.c.b16 %v7779, %v7775
    %v8236 = vpack.c.b16 %v7780, %v7776
    %v8237 = vpack.c.b16 %v7781, %v7777
    %v8238 = vpack.c.b16 %v7786, %v7782
    %v8239 = vpack.c.b16 %v7787, %v7783
    %v8240 = vpack.c.b16 %v7788, %v7784
    %v8241 = vpack.c.b16 %v7789, %v7785
    %v8242 = vpack.c.b16 %v7794, %v7790
    %v8243 = vpack.c.b16 %v7795, %v7791
    %v8244 = vpack.c.b16 %v7796, %v7792
    %v8245 = vpack.c.b16 %v7797, %v7793
    %v8246 = vpack.c.b16 %v7802, %v7798
    %v8247 = vpack.c.b16 %v7803, %v7799
    %v8248 = vpack.c.b16 %v7804, %v7800
    %v8249 = vpack.c.b16 %v7805, %v7801
    %v8250 = vpack.c.b16 %v7810, %v7806
    %v8251 = vpack.c.b16 %v7811, %v7807
    %v8252 = vpack.c.b16 %v7812, %v7808
    %v8253 = vpack.c.b16 %v7813, %v7809
    %v8254 = vpack.c.b16 %v7818, %v7814
    %v8255 = vpack.c.b16 %v7819, %v7815
    %v8256 = vpack.c.b16 %v7820, %v7816
    %v8257 = vpack.c.b16 %v7821, %v7817
    %v8258 = vpack.c.b16 %v7826, %v7822
    %v8259 = vpack.c.b16 %v7827, %v7823
    %v8260 = vpack.c.b16 %v7828, %v7824
    %v8261 = vpack.c.b16 %v7829, %v7825
    %v8262 = vpack.c.b16 %v7834, %v7830
    %v8263 = vpack.c.b16 %v7835, %v7831
    %v8264 = vpack.c.b16 %v7836, %v7832
    %v8265 = vpack.c.b16 %v7837, %v7833
    %v8266 = vpack.c.b16 %v7842, %v7838
    %v8267 = vpack.c.b16 %v7843, %v7839
    %v8268 = vpack.c.b16 %v7844, %v7840
    %v8269 = vpack.c.b16 %v7845, %v7841
    %v8270 = vpack.c.b16 %v7850, %v7846
    %v8271 = vpack.c.b16 %v7851, %v7847
    %v8272 = vpack.c.b16 %v7852, %v7848
    %v8273 = vpack.c.b16 %v7853, %v7849
    %v8274 = vpack.c.b16 %v7858, %v7854
    %v8275 = vpack.c.b16 %v7859, %v7855
    %v8276 = vpack.c.b16 %v7860, %v7856
    %v8277 = vpack.c.b16 %v7861, %v7857
    %v8278 = vpack.c.b16 %v7866, %v7862
    %v8279 = vpack.c.b16 %v7867, %v7863
    %v8280 = vpack.c.b16 %v7868, %v7864
    %v8281 = vpack.c.b16 %v7869, %v7865
    %v8282 = vpack.c.b16 %v7874, %v7870
    %v8283 = vpack.c.b16 %v7875, %v7871
    %v8284 = vpack.c.b16 %v7876, %v7872
    %v8285 = vpack.c.b16 %v7877, %v7873
    %v8286 = vpack.c.b16 %v7882, %v7878
    %v8287 = vpack.c.b16 %v7883, %v7879
    %v8288 = vpack.c.b16 %v7884, %v7880
    %v8289 = vpack.c.b16 %v7885, %v7881
    %v8290 = vpack.c.b16 %v7890, %v7886
    %v8291 = vpack.c.b16 %v7891, %v7887
    %v8292 = vpack.c.b16 %v7892, %v7888
    %v8293 = vpack.c.b16 %v7893, %v7889
    %v8294 = vpack.c.b16 %v7898, %v7894
    %v8295 = vpack.c.b16 %v7899, %v7895
    %v8296 = vpack.c.b16 %v7900, %v7896
    %v8297 = vpack.c.b16 %v7901, %v7897
    %v8298 = vpack.c.b16 %v7906, %v7902
    %v8299 = vpack.c.b16 %v7907, %v7903
    %v8300 = vpack.c.b16 %v7908, %v7904
    %v8301 = vpack.c.b16 %v7909, %v7905
    %v8302 = vpack.c.b16 %v7914, %v7910
    %v8303 = vpack.c.b16 %v7915, %v7911
    %v8304 = vpack.c.b16 %v7916, %v7912
    %v8305 = vpack.c.b16 %v7917, %v7913
    %v8306 = vpack.c.b16 %v7922, %v7918
    %v8307 = vpack.c.b16 %v7923, %v7919
    %v8308 = vpack.c.b16 %v7924, %v7920
    %v8309 = vpack.c.b16 %v7925, %v7921
    %v8310 = vpack.c.b16 %v7930, %v7926
    %v8311 = vpack.c.b16 %v7931, %v7927
    %v8312 = vpack.c.b16 %v7932, %v7928
    %v8313 = vpack.c.b16 %v7933, %v7929
    %v8314 = vpack.c.b16 %v7938, %v7934
    %v8315 = vpack.c.b16 %v7939, %v7935
    %v8316 = vpack.c.b16 %v7940, %v7936
    %v8317 = vpack.c.b16 %v7941, %v7937
    %v8318 = vpack.c.b16 %v7946, %v7942
    %v8319 = vpack.c.b16 %v7947, %v7943
    %v8320 = vpack.c.b16 %v7948, %v7944
    %v8321 = vpack.c.b16 %v7949, %v7945
    %v8322 = vpack.c.b16 %v7954, %v7950
    %v8323 = vpack.c.b16 %v7955, %v7951
    %v8324 = vpack.c.b16 %v7956, %v7952
    %v8325 = vpack.c.b16 %v7957, %v7953
    %v8326 = vpack.c.b16 %v7962, %v7958
    %v8327 = vpack.c.b16 %v7963, %v7959
    %v8328 = vpack.c.b16 %v7964, %v7960
    %v8329 = vpack.c.b16 %v7965, %v7961
    %v8330 = vpack.c.b16 %v7970, %v7966
    %v8331 = vpack.c.b16 %v7971, %v7967
    %v8332 = vpack.c.b16 %v7972, %v7968
    %v8333 = vpack.c.b16 %v7973, %v7969
    %v8334 = vpack.c.b16 %v7978, %v7974
    %v8335 = vpack.c.b16 %v7979, %v7975
    %v8336 = vpack.c.b16 %v7980, %v7976
    %v8337 = vpack.c.b16 %v7981, %v7977
    %v8338 = vpack.c.b16 %v7986, %v7982
    %v8339 = vpack.c.b16 %v7987, %v7983
    %v8340 = vpack.c.b16 %v7988, %v7984
    %v8341 = vpack.c.b16 %v7989, %v7985
    %v8342 = vpack.c.b16 %v7994, %v7990
    %v8343 = vpack.c.b16 %v7995, %v7991
    %v8344 = vpack.c.b16 %v7996, %v7992
    %v8345 = vpack.c.b16 %v7997, %v7993
    %v8346 = vpack.c.b16 %v8002, %v7998
    %v8347 = vpack.c.b16 %v8003, %v7999
    %v8348 = vpack.c.b16 %v8004, %v8000
    %v8349 = vpack.c.b16 %v8005, %v8001
    %v8350 = vpack.c.b16 %v8010, %v8006
    %v8351 = vpack.c.b16 %v8011, %v8007
    %v8352 = vpack.c.b16 %v8012, %v8008
    %v8353 = vpack.c.b16 %v8013, %v8009
    %v8354 = vpack.c.b16 %v8018, %v8014
    %v8355 = vpack.c.b16 %v8019, %v8015
    %v8356 = vpack.c.b16 %v8020, %v8016
    %v8357 = vpack.c.b16 %v8021, %v8017
    %v8358 = vpack.c.b16 %v8026, %v8022
    %v8359 = vpack.c.b16 %v8027, %v8023
    %v8360 = vpack.c.b16 %v8028, %v8024
    %v8361 = vpack.c.b16 %v8029, %v8025
    %v8362 = vpack.c.b16 %v8034, %v8030
    %v8363 = vpack.c.b16 %v8035, %v8031
    %v8364 = vpack.c.b16 %v8036, %v8032
    %v8365 = vpack.c.b16 %v8037, %v8033
    %v8366 = vpack.c.b16 %v8042, %v8038
    %v8367 = vpack.c.b16 %v8043, %v8039
    %v8368 = vpack.c.b16 %v8044, %v8040
    %v8369 = vpack.c.b16 %v8045, %v8041
    %v8370 = vpack.c.b16 %v8050, %v8046
    %v8371 = vpack.c.b16 %v8051, %v8047
    %v8372 = vpack.c.b16 %v8052, %v8048
    %v8373 = vpack.c.b16 %v8053, %v8049
    %v8374 = vpack.c.b16 %v8058, %v8054
    %v8375 = vpack.c.b16 %v8059, %v8055
    %v8376 = vpack.c.b16 %v8060, %v8056
    %v8377 = vpack.c.b16 %v8061, %v8057
    %v8378 = vpack.c.b16 %v8066, %v8062
    %v8379 = vpack.c.b16 %v8067, %v8063
    %v8380 = vpack.c.b16 %v8068, %v8064
    %v8381 = vpack.c.b16 %v8069, %v8065
    %v8382 = vpack.c.b16 %v8074, %v8070
    %v8383 = vpack.c.b16 %v8075, %v8071
    %v8384 = vpack.c.b16 %v8076, %v8072
    %v8385 = vpack.c.b16 %v8077, %v8073
    %v8386 = vpack.c.b16 %v8082, %v8078
    %v8387 = vpack.c.b16 %v8083, %v8079
    %v8388 = vpack.c.b16 %v8084, %v8080
    %v8389 = vpack.c.b16 %v8085, %v8081
    %v8390 = vpack.c.b16 %v8090, %v8086
    %v8391 = vpack.c.b16 %v8091, %v8087
    %v8392 = vpack.c.b16 %v8092, %v8088
    %v8393 = vpack.c.b16 %v8093, %v8089
    %v8394 = vpack.c.b16 %v8098, %v8094
    %v8395 = vpack.c.b16 %v8099, %v8095
    %v8396 = vpack.c.b16 %v8100, %v8096
    %v8397 = vpack.c.b16 %v8101, %v8097
    %v8398 = vpack.c.b16 %v8106, %v8102
    %v8399 = vpack.c.b16 %v8107, %v8103
    %v8400 = vpack.c.b16 %v8108, %v8104
    %v8401 = vpack.c.b16 %v8109, %v8105
    %v8402 = vpack.c.b16 %v8114, %v8110
    %v8403 = vpack.c.b16 %v8115, %v8111
    %v8404 = vpack.c.b16 %v8116, %v8112
    %v8405 = vpack.c.b16 %v8117, %v8113
    %v8406 = vpack.c.b16 %v8122, %v8118
    %v8407 = vpack.c.b16 %v8123, %v8119
    %v8408 = vpack.c.b16 %v8124, %v8120
    %v8409 = vpack.c.b16 %v8125, %v8121
    %v8410 = vpack.c.b16 %v8130, %v8126
    %v8411 = vpack.c.b16 %v8131, %v8127
    %v8412 = vpack.c.b16 %v8132, %v8128
    %v8413 = vpack.c.b16 %v8133, %v8129
    %v8414 = vpack.c.b16 %v8138, %v8134
    %v8415 = vpack.c.b16 %v8139, %v8135
    %v8416 = vpack.c.b16 %v8140, %v8136
    %v8417 = vpack.c.b16 %v8141, %v8137
    %v8418 = vpack.c.b16 %v8146, %v8142
    %v8419 = vpack.c.b16 %v8147, %v8143
    %v8420 = vpack.c.b16 %v8148, %v8144
    %v8421 = vpack.c.b16 %v8149, %v8145
    %v8422 = vpack.c.b16 %v8154, %v8150
    %v8423 = vpack.c.b16 %v8155, %v8151
    %v8424 = vpack.c.b16 %v8156, %v8152
    %v8425 = vpack.c.b16 %v8157, %v8153
    %v8426 = vpack.c.b16 %v8162, %v8158
    %v8427 = vpack.c.b16 %v8163, %v8159
    %v8428 = vpack.c.b16 %v8164, %v8160
    %v8429 = vpack.c.b16 %v8165, %v8161
    %v8430 = vpack.c.b16 %v8170, %v8166
    %v8431 = vpack.c.b16 %v8171, %v8167
    %v8432 = vpack.c.b16 %v8172, %v8168
    %v8433 = vpack.c.b16 %v8173, %v8169
    %v8434 = vpack.c.b16 %v8178, %v8174
    %v8435 = vpack.c.b16 %v8179, %v8175
    %v8436 = vpack.c.b16 %v8180, %v8176
    %v8437 = vpack.c.b16 %v8181, %v8177
    %8694 = vmatpush.bf16.msra.mxu0 %v8210
    %8695 = vmatpush.bf16.msra.mxu0 %v8206
    %8696 = vmatpush.bf16.msra.mxu0 %v8202
    %8697 = vmatpush.bf16.msra.mxu0 %v8198
    %8698 = vmatpush.bf16.msra.mxu0 %v8194
    %8699 = vmatpush.bf16.msra.mxu0 %v8190
    %8700 = vmatpush.bf16.msra.mxu0 %v8186
    %8701 = vmatpush.bf16.msra.mxu0 %v8182
    %8702 = vmatmul.bf16.gmra.mxu0 %v7150
    %v8703 = vpop.f32.mrf.mxu0
    %v8704 = vadd.f32 0.0, %v8703
    %v8705 = vpop.f32.mrf.mxu0
    %8706 = vdwg.mxu0
    %8707 = vmatpush.bf16.msra.mxu0 %v8242
    %8708 = vmatpush.bf16.msra.mxu0 %v8238
    %8709 = vmatpush.bf16.msra.mxu0 %v8234
    %8710 = vmatpush.bf16.msra.mxu0 %v8230
    %8711 = vmatpush.bf16.msra.mxu0 %v8226
    %8712 = vmatpush.bf16.msra.mxu0 %v8222
    %8713 = vmatpush.bf16.msra.mxu0 %v8218
    %8714 = vmatpush.bf16.msra.mxu0 %v8214
    %8715 = vmatmul.bf16.gmra.mxu0 %v7151
    %v8716 = vpop.f32.mrf.mxu0
    %v8717 = vadd.f32 %v8704, %v8716
    %v8718 = vpop.f32.mrf.mxu0
    %8719 = vdwg.mxu0
    %8720 = vmatpush.bf16.msra.mxu0 %v8274
    %8721 = vmatpush.bf16.msra.mxu0 %v8270
    %8722 = vmatpush.bf16.msra.mxu0 %v8266
    %8723 = vmatpush.bf16.msra.mxu0 %v8262
    %8724 = vmatpush.bf16.msra.mxu0 %v8258
    %8725 = vmatpush.bf16.msra.mxu0 %v8254
    %8726 = vmatpush.bf16.msra.mxu0 %v8250
    %8727 = vmatpush.bf16.msra.mxu0 %v8246
    %8728 = vmatmul.bf16.gmra.mxu0 %v7152
    %v8729 = vpop.f32.mrf.mxu0
    %v8730 = vadd.f32 %v8717, %v8729
    %v8731 = vpop.f32.mrf.mxu0
    %8732 = vdwg.mxu0
    %8733 = vmatpush.bf16.msra.mxu0 %v8306
    %8734 = vmatpush.bf16.msra.mxu0 %v8302
    %8735 = vmatpush.bf16.msra.mxu0 %v8298
    %8736 = vmatpush.bf16.msra.mxu0 %v8294
    %8737 = vmatpush.bf16.msra.mxu0 %v8290
    %8738 = vmatpush.bf16.msra.mxu0 %v8286
    %8739 = vmatpush.bf16.msra.mxu0 %v8282
    %8740 = vmatpush.bf16.msra.mxu0 %v8278
    %8741 = vmatmul.bf16.gmra.mxu0 %v7153
    %v8742 = vpop.f32.mrf.mxu0
    %v8743 = vadd.f32 %v8730, %v8742
    %v8744 = vpop.f32.mrf.mxu0
    %8745 = vdwg.mxu0
    %8746 = vmatpush.bf16.msra.mxu0 %v8338
    %8747 = vmatpush.bf16.msra.mxu0 %v8334
    %8748 = vmatpush.bf16.msra.mxu0 %v8330
    %8749 = vmatpush.bf16.msra.mxu0 %v8326
    %8750 = vmatpush.bf16.msra.mxu0 %v8322
    %8751 = vmatpush.bf16.msra.mxu0 %v8318
    %8752 = vmatpush.bf16.msra.mxu0 %v8314
    %8753 = vmatpush.bf16.msra.mxu0 %v8310
    %8754 = vmatmul.bf16.gmra.mxu0 %v7154
    %v8755 = vpop.f32.mrf.mxu0
    %v8756 = vadd.f32 %v8743, %v8755
    %v8757 = vpop.f32.mrf.mxu0
    %8758 = vdwg.mxu0
    %8759 = vmatpush.bf16.msra.mxu0 %v8370
    %8760 = vmatpush.bf16.msra.mxu0 %v8366
    %8761 = vmatpush.bf16.msra.mxu0 %v8362
    %8762 = vmatpush.bf16.msra.mxu0 %v8358
    %8763 = vmatpush.bf16.msra.mxu0 %v8354
    %8764 = vmatpush.bf16.msra.mxu0 %v8350
    %8765 = vmatpush.bf16.msra.mxu0 %v8346
    %8766 = vmatpush.bf16.msra.mxu0 %v8342
    %8767 = vmatmul.bf16.gmra.mxu0 %v7155
    %v8768 = vpop.f32.mrf.mxu0
    %v8769 = vadd.f32 %v8756, %v8768
    %v8770 = vpop.f32.mrf.mxu0
    %8771 = vdwg.mxu0
    %8772 = vmatpush.bf16.msra.mxu0 %v8402
    %8773 = vmatpush.bf16.msra.mxu0 %v8398
    %8774 = vmatpush.bf16.msra.mxu0 %v8394
    %8775 = vmatpush.bf16.msra.mxu0 %v8390
    %8776 = vmatpush.bf16.msra.mxu0 %v8386
    %8777 = vmatpush.bf16.msra.mxu0 %v8382
    %8778 = vmatpush.bf16.msra.mxu0 %v8378
    %8779 = vmatpush.bf16.msra.mxu0 %v8374
    %8780 = vmatmul.bf16.gmra.mxu0 %v7156
    %v8781 = vpop.f32.mrf.mxu0
    %v8782 = vadd.f32 %v8769, %v8781
    %v8783 = vpop.f32.mrf.mxu0
    %8784 = vdwg.mxu0
    %8785 = vmatpush.bf16.msra.mxu0 %v8434
    %8786 = vmatpush.bf16.msra.mxu0 %v8430
    %8787 = vmatpush.bf16.msra.mxu0 %v8426
    %8788 = vmatpush.bf16.msra.mxu0 %v8422
    %8789 = vmatpush.bf16.msra.mxu0 %v8418
    %8790 = vmatpush.bf16.msra.mxu0 %v8414
    %8791 = vmatpush.bf16.msra.mxu0 %v8410
    %8792 = vmatpush.bf16.msra.mxu0 %v8406
    %8793 = vmatmul.bf16.gmra.mxu0 %v7157
    %v8794 = vpop.f32.mrf.mxu0
    %v8795 = vadd.f32 %v8782, %v8794
    %v8796 = vpop.f32.mrf.mxu0
    %8797 = vdwg.mxu0
    %8798 = vmatpush.bf16.msra.mxu0 %v8211
    %8799 = vmatpush.bf16.msra.mxu0 %v8207
    %8800 = vmatpush.bf16.msra.mxu0 %v8203
    %8801 = vmatpush.bf16.msra.mxu0 %v8199
    %8802 = vmatpush.bf16.msra.mxu0 %v8195
    %8803 = vmatpush.bf16.msra.mxu0 %v8191
    %8804 = vmatpush.bf16.msra.mxu0 %v8187
    %8805 = vmatpush.bf16.msra.mxu0 %v8183
    %8806 = vmatmul.bf16.gmra.mxu0 %v7150
    %v8807 = vpop.f32.mrf.mxu0
    %v8808 = vadd.f32 0.0, %v8807
    %v8809 = vpop.f32.mrf.mxu0
    %8810 = vdwg.mxu0
    %8811 = vmatpush.bf16.msra.mxu0 %v8243
    %8812 = vmatpush.bf16.msra.mxu0 %v8239
    %8813 = vmatpush.bf16.msra.mxu0 %v8235
    %8814 = vmatpush.bf16.msra.mxu0 %v8231
    %8815 = vmatpush.bf16.msra.mxu0 %v8227
    %8816 = vmatpush.bf16.msra.mxu0 %v8223
    %8817 = vmatpush.bf16.msra.mxu0 %v8219
    %8818 = vmatpush.bf16.msra.mxu0 %v8215
    %8819 = vmatmul.bf16.gmra.mxu0 %v7151
    %v8820 = vpop.f32.mrf.mxu0
    %v8821 = vadd.f32 %v8808, %v8820
    %v8822 = vpop.f32.mrf.mxu0
    %8823 = vdwg.mxu0
    %8824 = vmatpush.bf16.msra.mxu0 %v8275
    %8825 = vmatpush.bf16.msra.mxu0 %v8271
    %8826 = vmatpush.bf16.msra.mxu0 %v8267
    %8827 = vmatpush.bf16.msra.mxu0 %v8263
    %8828 = vmatpush.bf16.msra.mxu0 %v8259
    %8829 = vmatpush.bf16.msra.mxu0 %v8255
    %8830 = vmatpush.bf16.msra.mxu0 %v8251
    %8831 = vmatpush.bf16.msra.mxu0 %v8247
    %8832 = vmatmul.bf16.gmra.mxu0 %v7152
    %v8833 = vpop.f32.mrf.mxu0
    %v8834 = vadd.f32 %v8821, %v8833
    %v8835 = vpop.f32.mrf.mxu0
    %8836 = vdwg.mxu0
    %8837 = vmatpush.bf16.msra.mxu0 %v8307
    %8838 = vmatpush.bf16.msra.mxu0 %v8303
    %8839 = vmatpush.bf16.msra.mxu0 %v8299
    %8840 = vmatpush.bf16.msra.mxu0 %v8295
    %8841 = vmatpush.bf16.msra.mxu0 %v8291
    %8842 = vmatpush.bf16.msra.mxu0 %v8287
    %8843 = vmatpush.bf16.msra.mxu0 %v8283
    %8844 = vmatpush.bf16.msra.mxu0 %v8279
    %8845 = vmatmul.bf16.gmra.mxu0 %v7153
    %v8846 = vpop.f32.mrf.mxu0
    %v8847 = vadd.f32 %v8834, %v8846
    %v8848 = vpop.f32.mrf.mxu0
    %8849 = vdwg.mxu0
    %8850 = vmatpush.bf16.msra.mxu0 %v8339
    %8851 = vmatpush.bf16.msra.mxu0 %v8335
    %8852 = vmatpush.bf16.msra.mxu0 %v8331
    %8853 = vmatpush.bf16.msra.mxu0 %v8327
    %8854 = vmatpush.bf16.msra.mxu0 %v8323
    %8855 = vmatpush.bf16.msra.mxu0 %v8319
    %8856 = vmatpush.bf16.msra.mxu0 %v8315
    %8857 = vmatpush.bf16.msra.mxu0 %v8311
    %8858 = vmatmul.bf16.gmra.mxu0 %v7154
    %v8859 = vpop.f32.mrf.mxu0
    %v8860 = vadd.f32 %v8847, %v8859
    %v8861 = vpop.f32.mrf.mxu0
    %8862 = vdwg.mxu0
    %8863 = vmatpush.bf16.msra.mxu0 %v8371
    %8864 = vmatpush.bf16.msra.mxu0 %v8367
    %8865 = vmatpush.bf16.msra.mxu0 %v8363
    %8866 = vmatpush.bf16.msra.mxu0 %v8359
    %8867 = vmatpush.bf16.msra.mxu0 %v8355
    %8868 = vmatpush.bf16.msra.mxu0 %v8351
    %8869 = vmatpush.bf16.msra.mxu0 %v8347
    %8870 = vmatpush.bf16.msra.mxu0 %v8343
    %8871 = vmatmul.bf16.gmra.mxu0 %v7155
    %v8872 = vpop.f32.mrf.mxu0
    %v8873 = vadd.f32 %v8860, %v8872
    %v8874 = vpop.f32.mrf.mxu0
    %8875 = vdwg.mxu0
    %8876 = vmatpush.bf16.msra.mxu0 %v8403
    %8877 = vmatpush.bf16.msra.mxu0 %v8399
    %8878 = vmatpush.bf16.msra.mxu0 %v8395
    %8879 = vmatpush.bf16.msra.mxu0 %v8391
    %8880 = vmatpush.bf16.msra.mxu0 %v8387
    %8881 = vmatpush.bf16.msra.mxu0 %v8383
    %8882 = vmatpush.bf16.msra.mxu0 %v8379
    %8883 = vmatpush.bf16.msra.mxu0 %v8375
    %8884 = vmatmul.bf16.gmra.mxu0 %v7156
    %v8885 = vpop.f32.mrf.mxu0
    %v8886 = vadd.f32 %v8873, %v8885
    %v8887 = vpop.f32.mrf.mxu0
    %8888 = vdwg.mxu0
    %8889 = vmatpush.bf16.msra.mxu0 %v8435
    %8890 = vmatpush.bf16.msra.mxu0 %v8431
    %8891 = vmatpush.bf16.msra.mxu0 %v8427
    %8892 = vmatpush.bf16.msra.mxu0 %v8423
    %8893 = vmatpush.bf16.msra.mxu0 %v8419
    %8894 = vmatpush.bf16.msra.mxu0 %v8415
    %8895 = vmatpush.bf16.msra.mxu0 %v8411
    %8896 = vmatpush.bf16.msra.mxu0 %v8407
    %8897 = vmatmul.bf16.gmra.mxu0 %v7157
    %v8898 = vpop.f32.mrf.mxu0
    %v8899 = vadd.f32 %v8886, %v8898
    %v8900 = vpop.f32.mrf.mxu0
    %8901 = vdwg.mxu0
    %8902 = vmatpush.bf16.msra.mxu0 %v8212
    %8903 = vmatpush.bf16.msra.mxu0 %v8208
    %8904 = vmatpush.bf16.msra.mxu0 %v8204
    %8905 = vmatpush.bf16.msra.mxu0 %v8200
    %8906 = vmatpush.bf16.msra.mxu0 %v8196
    %8907 = vmatpush.bf16.msra.mxu0 %v8192
    %8908 = vmatpush.bf16.msra.mxu0 %v8188
    %8909 = vmatpush.bf16.msra.mxu0 %v8184
    %8910 = vmatmul.bf16.gmra.mxu0 %v7150
    %v8911 = vpop.f32.mrf.mxu0
    %v8912 = vadd.f32 0.0, %v8911
    %v8913 = vpop.f32.mrf.mxu0
    %8914 = vdwg.mxu0
    %8915 = vmatpush.bf16.msra.mxu0 %v8244
    %8916 = vmatpush.bf16.msra.mxu0 %v8240
    %8917 = vmatpush.bf16.msra.mxu0 %v8236
    %8918 = vmatpush.bf16.msra.mxu0 %v8232
    %8919 = vmatpush.bf16.msra.mxu0 %v8228
    %8920 = vmatpush.bf16.msra.mxu0 %v8224
    %8921 = vmatpush.bf16.msra.mxu0 %v8220
    %8922 = vmatpush.bf16.msra.mxu0 %v8216
    %8923 = vmatmul.bf16.gmra.mxu0 %v7151
    %v8924 = vpop.f32.mrf.mxu0
    %v8925 = vadd.f32 %v8912, %v8924
    %v8926 = vpop.f32.mrf.mxu0
    %8927 = vdwg.mxu0
    %8928 = vmatpush.bf16.msra.mxu0 %v8276
    %8929 = vmatpush.bf16.msra.mxu0 %v8272
    %8930 = vmatpush.bf16.msra.mxu0 %v8268
    %8931 = vmatpush.bf16.msra.mxu0 %v8264
    %8932 = vmatpush.bf16.msra.mxu0 %v8260
    %8933 = vmatpush.bf16.msra.mxu0 %v8256
    %8934 = vmatpush.bf16.msra.mxu0 %v8252
    %8935 = vmatpush.bf16.msra.mxu0 %v8248
    %8936 = vmatmul.bf16.gmra.mxu0 %v7152
    %v8937 = vpop.f32.mrf.mxu0
    %v8938 = vadd.f32 %v8925, %v8937
    %v8939 = vpop.f32.mrf.mxu0
    %8940 = vdwg.mxu0
    %8941 = vmatpush.bf16.msra.mxu0 %v8308
    %8942 = vmatpush.bf16.msra.mxu0 %v8304
    %8943 = vmatpush.bf16.msra.mxu0 %v8300
    %8944 = vmatpush.bf16.msra.mxu0 %v8296
    %8945 = vmatpush.bf16.msra.mxu0 %v8292
    %8946 = vmatpush.bf16.msra.mxu0 %v8288
    %8947 = vmatpush.bf16.msra.mxu0 %v8284
    %8948 = vmatpush.bf16.msra.mxu0 %v8280
    %8949 = vmatmul.bf16.gmra.mxu0 %v7153
    %v8950 = vpop.f32.mrf.mxu0
    %v8951 = vadd.f32 %v8938, %v8950
    %v8952 = vpop.f32.mrf.mxu0
    %8953 = vdwg.mxu0
    %8954 = vmatpush.bf16.msra.mxu0 %v8340
    %8955 = vmatpush.bf16.msra.mxu0 %v8336
    %8956 = vmatpush.bf16.msra.mxu0 %v8332
    %8957 = vmatpush.bf16.msra.mxu0 %v8328
    %8958 = vmatpush.bf16.msra.mxu0 %v8324
    %8959 = vmatpush.bf16.msra.mxu0 %v8320
    %8960 = vmatpush.bf16.msra.mxu0 %v8316
    %8961 = vmatpush.bf16.msra.mxu0 %v8312
    %8962 = vmatmul.bf16.gmra.mxu0 %v7154
    %v8963 = vpop.f32.mrf.mxu0
    %v8964 = vadd.f32 %v8951, %v8963
    %v8965 = vpop.f32.mrf.mxu0
    %8966 = vdwg.mxu0
    %8967 = vmatpush.bf16.msra.mxu0 %v8372
    %8968 = vmatpush.bf16.msra.mxu0 %v8368
    %8969 = vmatpush.bf16.msra.mxu0 %v8364
    %8970 = vmatpush.bf16.msra.mxu0 %v8360
    %8971 = vmatpush.bf16.msra.mxu0 %v8356
    %8972 = vmatpush.bf16.msra.mxu0 %v8352
    %8973 = vmatpush.bf16.msra.mxu0 %v8348
    %8974 = vmatpush.bf16.msra.mxu0 %v8344
    %8975 = vmatmul.bf16.gmra.mxu0 %v7155
    %v8976 = vpop.f32.mrf.mxu0
    %v8977 = vadd.f32 %v8964, %v8976
    %v8978 = vpop.f32.mrf.mxu0
    %8979 = vdwg.mxu0
    %8980 = vmatpush.bf16.msra.mxu0 %v8404
    %8981 = vmatpush.bf16.msra.mxu0 %v8400
    %8982 = vmatpush.bf16.msra.mxu0 %v8396
    %8983 = vmatpush.bf16.msra.mxu0 %v8392
    %8984 = vmatpush.bf16.msra.mxu0 %v8388
    %8985 = vmatpush.bf16.msra.mxu0 %v8384
    %8986 = vmatpush.bf16.msra.mxu0 %v8380
    %8987 = vmatpush.bf16.msra.mxu0 %v8376
    %8988 = vmatmul.bf16.gmra.mxu0 %v7156
    %v8989 = vpop.f32.mrf.mxu0
    %v8990 = vadd.f32 %v8977, %v8989
    %v8991 = vpop.f32.mrf.mxu0
    %8992 = vdwg.mxu0
    %8993 = vmatpush.bf16.msra.mxu0 %v8436
    %8994 = vmatpush.bf16.msra.mxu0 %v8432
    %8995 = vmatpush.bf16.msra.mxu0 %v8428
    %8996 = vmatpush.bf16.msra.mxu0 %v8424
    %8997 = vmatpush.bf16.msra.mxu0 %v8420
    %8998 = vmatpush.bf16.msra.mxu0 %v8416
    %8999 = vmatpush.bf16.msra.mxu0 %v8412
    %9000 = vmatpush.bf16.msra.mxu0 %v8408
    %9001 = vmatmul.bf16.gmra.mxu0 %v7157
    %v9002 = vpop.f32.mrf.mxu0
    %v9003 = vadd.f32 %v8990, %v9002
    %v9004 = vpop.f32.mrf.mxu0
    %9005 = vdwg.mxu0
    %9006 = vmatpush.bf16.msra.mxu0 %v8213
    %9007 = vmatpush.bf16.msra.mxu0 %v8209
    %9008 = vmatpush.bf16.msra.mxu0 %v8205
    %9009 = vmatpush.bf16.msra.mxu0 %v8201
    %9010 = vmatpush.bf16.msra.mxu0 %v8197
    %9011 = vmatpush.bf16.msra.mxu0 %v8193
    %9012 = vmatpush.bf16.msra.mxu0 %v8189
    %9013 = vmatpush.bf16.msra.mxu0 %v8185
    %9014 = vmatmul.bf16.gmra.mxu0 %v7150
    %v9015 = vpop.f32.mrf.mxu0
    %v9016 = vadd.f32 0.0, %v9015
    %v9017 = vpop.f32.mrf.mxu0
    %9018 = vdwg.mxu0
    %9019 = vmatpush.bf16.msra.mxu0 %v8245
    %9020 = vmatpush.bf16.msra.mxu0 %v8241
    %9021 = vmatpush.bf16.msra.mxu0 %v8237
    %9022 = vmatpush.bf16.msra.mxu0 %v8233
    %9023 = vmatpush.bf16.msra.mxu0 %v8229
    %9024 = vmatpush.bf16.msra.mxu0 %v8225
    %9025 = vmatpush.bf16.msra.mxu0 %v8221
    %9026 = vmatpush.bf16.msra.mxu0 %v8217
    %9027 = vmatmul.bf16.gmra.mxu0 %v7151
    %v9028 = vpop.f32.mrf.mxu0
    %v9029 = vadd.f32 %v9016, %v9028
    %v9030 = vpop.f32.mrf.mxu0
    %9031 = vdwg.mxu0
    %9032 = vmatpush.bf16.msra.mxu0 %v8277
    %9033 = vmatpush.bf16.msra.mxu0 %v8273
    %9034 = vmatpush.bf16.msra.mxu0 %v8269
    %9035 = vmatpush.bf16.msra.mxu0 %v8265
    %9036 = vmatpush.bf16.msra.mxu0 %v8261
    %9037 = vmatpush.bf16.msra.mxu0 %v8257
    %9038 = vmatpush.bf16.msra.mxu0 %v8253
    %9039 = vmatpush.bf16.msra.mxu0 %v8249
    %9040 = vmatmul.bf16.gmra.mxu0 %v7152
    %v9041 = vpop.f32.mrf.mxu0
    %v9042 = vadd.f32 %v9029, %v9041
    %v9043 = vpop.f32.mrf.mxu0
    %9044 = vdwg.mxu0
    %9045 = vmatpush.bf16.msra.mxu0 %v8309
    %9046 = vmatpush.bf16.msra.mxu0 %v8305
    %9047 = vmatpush.bf16.msra.mxu0 %v8301
    %9048 = vmatpush.bf16.msra.mxu0 %v8297
    %9049 = vmatpush.bf16.msra.mxu0 %v8293
    %9050 = vmatpush.bf16.msra.mxu0 %v8289
    %9051 = vmatpush.bf16.msra.mxu0 %v8285
    %9052 = vmatpush.bf16.msra.mxu0 %v8281
    %9053 = vmatmul.bf16.gmra.mxu0 %v7153
    %v9054 = vpop.f32.mrf.mxu0
    %v9055 = vadd.f32 %v9042, %v9054
    %v9056 = vpop.f32.mrf.mxu0
    %9057 = vdwg.mxu0
    %9058 = vmatpush.bf16.msra.mxu0 %v8341
    %9059 = vmatpush.bf16.msra.mxu0 %v8337
    %9060 = vmatpush.bf16.msra.mxu0 %v8333
    %9061 = vmatpush.bf16.msra.mxu0 %v8329
    %9062 = vmatpush.bf16.msra.mxu0 %v8325
    %9063 = vmatpush.bf16.msra.mxu0 %v8321
    %9064 = vmatpush.bf16.msra.mxu0 %v8317
    %9065 = vmatpush.bf16.msra.mxu0 %v8313
    %9066 = vmatmul.bf16.gmra.mxu0 %v7154
    %v9067 = vpop.f32.mrf.mxu0
    %v9068 = vadd.f32 %v9055, %v9067
    %v9069 = vpop.f32.mrf.mxu0
    %9070 = vdwg.mxu0
    %9071 = vmatpush.bf16.msra.mxu0 %v8373
    %9072 = vmatpush.bf16.msra.mxu0 %v8369
    %9073 = vmatpush.bf16.msra.mxu0 %v8365
    %9074 = vmatpush.bf16.msra.mxu0 %v8361
    %9075 = vmatpush.bf16.msra.mxu0 %v8357
    %9076 = vmatpush.bf16.msra.mxu0 %v8353
    %9077 = vmatpush.bf16.msra.mxu0 %v8349
    %9078 = vmatpush.bf16.msra.mxu0 %v8345
    %9079 = vmatmul.bf16.gmra.mxu0 %v7155
    %v9080 = vpop.f32.mrf.mxu0
    %v9081 = vadd.f32 %v9068, %v9080
    %v9082 = vpop.f32.mrf.mxu0
    %9083 = vdwg.mxu0
    %9084 = vmatpush.bf16.msra.mxu0 %v8405
    %9085 = vmatpush.bf16.msra.mxu0 %v8401
    %9086 = vmatpush.bf16.msra.mxu0 %v8397
    %9087 = vmatpush.bf16.msra.mxu0 %v8393
    %9088 = vmatpush.bf16.msra.mxu0 %v8389
    %9089 = vmatpush.bf16.msra.mxu0 %v8385
    %9090 = vmatpush.bf16.msra.mxu0 %v8381
    %9091 = vmatpush.bf16.msra.mxu0 %v8377
    %9092 = vmatmul.bf16.gmra.mxu0 %v7156
    %v9093 = vpop.f32.mrf.mxu0
    %v9094 = vadd.f32 %v9081, %v9093
    %v9095 = vpop.f32.mrf.mxu0
    %9096 = vdwg.mxu0
    %9097 = vmatpush.bf16.msra.mxu0 %v8437
    %9098 = vmatpush.bf16.msra.mxu0 %v8433
    %9099 = vmatpush.bf16.msra.mxu0 %v8429
    %9100 = vmatpush.bf16.msra.mxu0 %v8425
    %9101 = vmatpush.bf16.msra.mxu0 %v8421
    %9102 = vmatpush.bf16.msra.mxu0 %v8417
    %9103 = vmatpush.bf16.msra.mxu0 %v8413
    %9104 = vmatpush.bf16.msra.mxu0 %v8409
    %9105 = vmatmul.bf16.gmra.mxu0 %v7157
    %v9106 = vpop.f32.mrf.mxu0
    %v9107 = vadd.f32 %v9094, %v9106
    %v9108 = vpop.f32.mrf.mxu0
    %9109 = vdwg.mxu0
    %v9110 = vld [vmem:[#allocation10] sm:$0x77]
    %v9111 = vld [vmem:[#allocation10 + $0x8] sm:$0x77]
    %9114 = vst [vmem:[#allocation1] ss:$2 sm:$0xff] %v9110
    %s9115 = scalar_lea.vmem [#allocation1], 16
    %9116 = vst [vmem:[%s9115] ss:$2 sm:$0xff] %v9111
    %v9117 = vld.sshfl [vmem:[#allocation1] sm:$0xff pattern:$0x75316420]
    %v9118 = vld.sshfl [vmem:[#allocation1 + $0x8] sm:$0xff pattern:$0x75316420]
    %v9119 = vld.sshfl [vmem:[#allocation1 + $0x10] sm:$0xff pattern:$0x75316420]
    %v9120 = vld.sshfl [vmem:[#allocation1 + $0x18] sm:$0xff pattern:$0x75316420]
    %v9121 = vsel %vm295, %v9117, 0
    %v9123 = vsel %vm295, %v9118, 0
    %v9125 = vsel %vm295, %v9119, 0
    %v9127 = vsel %vm295, %v9120, 0
    %9129 = vmatpush.msra.mxu0 0.0
    %9130 = vmatpush.msra.mxu0 0.0
    %9131 = vmatpush.msra.mxu0 0.0
    %9132 = vmatpush.msra.mxu0 0.0
    %9133 = vmatpush.msra.mxu0 0.0
    %9134 = vmatpush.msra.mxu0 0.0
    %9135 = vmatpush.msra.mxu0 0.0
    %9136 = vmatpush.msra.mxu0 0.0
    %9137 = vmatpush.msra.mxu0 0.0
    %9138 = vmatpush.msra.mxu0 0.0
    %9139 = vmatpush.msra.mxu0 0.0
    %9140 = vmatpush.msra.mxu0 0.0
    %9141 = vmatpush.msra.mxu0 0.0
    %9142 = vmatpush.msra.mxu0 0.0
    %9143 = vmatpush.msra.mxu0 0.0
    %9144 = vmatpush.msra.mxu0 %v9121
    %9145 = vmatmul.f32.gmra.mxu0 %v248
    %v9146 = vpop.f32.mrf.mxu0
    %v9147 = vadd.f32 0.0, %v9146
    %9148 = vmatmul.f32.gmra.mxu0 %v251
    %v9149 = vpop.f32.mrf.mxu0
    %v9150 = vadd.f32 0.0, %v9149
    %9151 = vmatmul.f32.gmra.mxu0 %v254
    %v9152 = vpop.f32.mrf.mxu0
    %v9153 = vadd.f32 0.0, %v9152
    %9154 = vmatmul.f32.gmra.mxu0 %v257
    %v9155 = vpop.f32.mrf.mxu0
    %v9156 = vadd.f32 0.0, %v9155
    %9157 = vmatmul.f32.gmra.mxu0 %v260
    %v9158 = vpop.f32.mrf.mxu0
    %v9159 = vadd.f32 0.0, %v9158
    %9160 = vmatmul.f32.gmra.mxu0 %v263
    %v9161 = vpop.f32.mrf.mxu0
    %v9162 = vadd.f32 0.0, %v9161
    %9163 = vmatmul.f32.gmra.mxu0 %v266
    %v9164 = vpop.f32.mrf.mxu0
    %v9165 = vadd.f32 0.0, %v9164
    %9166 = vmatmul.f32.gmra.mxu0 %v269
    %v9167 = vpop.f32.mrf.mxu0
    %v9168 = vadd.f32 0.0, %v9167
    %9169 = vmatmul.f32.gmra.mxu0 %v272
    %v9170 = vpop.f32.mrf.mxu0
    %v9171 = vadd.f32 0.0, %v9170
    %9172 = vmatmul.f32.gmra.mxu0 %v275
    %v9173 = vpop.f32.mrf.mxu0
    %v9174 = vadd.f32 0.0, %v9173
    %9175 = vmatmul.f32.gmra.mxu0 %v278
    %v9176 = vpop.f32.mrf.mxu0
    %v9177 = vadd.f32 0.0, %v9176
    %9178 = vmatmul.f32.gmra.mxu0 %v281
    %v9179 = vpop.f32.mrf.mxu0
    %v9180 = vadd.f32 0.0, %v9179
    %9181 = vmatmul.f32.gmra.mxu0 %v284
    %v9182 = vpop.f32.mrf.mxu0
    %v9183 = vadd.f32 0.0, %v9182
    %9184 = vmatmul.f32.gmra.mxu0 %v287
    %v9185 = vpop.f32.mrf.mxu0
    %v9186 = vadd.f32 0.0, %v9185
    %9187 = vmatmul.f32.gmra.mxu0 %v290
    %v9188 = vpop.f32.mrf.mxu0
    %v9189 = vadd.f32 0.0, %v9188
    %9190 = vmatmul.f32.gmra.mxu0 %v293
    %v9191 = vpop.f32.mrf.mxu0
    %v9192 = vadd.f32 0.0, %v9191
    %9193 = vdwg.mxu0
    %9194 = vmatpush.msra.mxu0 0.0
    %9195 = vmatpush.msra.mxu0 0.0
    %9196 = vmatpush.msra.mxu0 0.0
    %9197 = vmatpush.msra.mxu0 0.0
    %9198 = vmatpush.msra.mxu0 0.0
    %9199 = vmatpush.msra.mxu0 0.0
    %9200 = vmatpush.msra.mxu0 0.0
    %9201 = vmatpush.msra.mxu0 0.0
    %9202 = vmatpush.msra.mxu0 0.0
    %9203 = vmatpush.msra.mxu0 0.0
    %9204 = vmatpush.msra.mxu0 0.0
    %9205 = vmatpush.msra.mxu0 0.0
    %9206 = vmatpush.msra.mxu0 0.0
    %9207 = vmatpush.msra.mxu0 0.0
    %9208 = vmatpush.msra.mxu0 0.0
    %9209 = vmatpush.msra.mxu0 %v9123
    %9210 = vmatmul.f32.gmra.mxu0 %v248
    %v9211 = vpop.f32.mrf.mxu0
    %v9212 = vadd.f32 0.0, %v9211
    %9213 = vmatmul.f32.gmra.mxu0 %v251
    %v9214 = vpop.f32.mrf.mxu0
    %v9215 = vadd.f32 0.0, %v9214
    %9216 = vmatmul.f32.gmra.mxu0 %v254
    %v9217 = vpop.f32.mrf.mxu0
    %v9218 = vadd.f32 0.0, %v9217
    %9219 = vmatmul.f32.gmra.mxu0 %v257
    %v9220 = vpop.f32.mrf.mxu0
    %v9221 = vadd.f32 0.0, %v9220
    %9222 = vmatmul.f32.gmra.mxu0 %v260
    %v9223 = vpop.f32.mrf.mxu0
    %v9224 = vadd.f32 0.0, %v9223
    %9225 = vmatmul.f32.gmra.mxu0 %v263
    %v9226 = vpop.f32.mrf.mxu0
    %v9227 = vadd.f32 0.0, %v9226
    %9228 = vmatmul.f32.gmra.mxu0 %v266
    %v9229 = vpop.f32.mrf.mxu0
    %v9230 = vadd.f32 0.0, %v9229
    %9231 = vmatmul.f32.gmra.mxu0 %v269
    %v9232 = vpop.f32.mrf.mxu0
    %v9233 = vadd.f32 0.0, %v9232
    %9234 = vmatmul.f32.gmra.mxu0 %v272
    %v9235 = vpop.f32.mrf.mxu0
    %v9236 = vadd.f32 0.0, %v9235
    %9237 = vmatmul.f32.gmra.mxu0 %v275
    %v9238 = vpop.f32.mrf.mxu0
    %v9239 = vadd.f32 0.0, %v9238
    %9240 = vmatmul.f32.gmra.mxu0 %v278
    %v9241 = vpop.f32.mrf.mxu0
    %v9242 = vadd.f32 0.0, %v9241
    %9243 = vmatmul.f32.gmra.mxu0 %v281
    %v9244 = vpop.f32.mrf.mxu0
    %v9245 = vadd.f32 0.0, %v9244
    %9246 = vmatmul.f32.gmra.mxu0 %v284
    %v9247 = vpop.f32.mrf.mxu0
    %v9248 = vadd.f32 0.0, %v9247
    %9249 = vmatmul.f32.gmra.mxu0 %v287
    %v9250 = vpop.f32.mrf.mxu0
    %v9251 = vadd.f32 0.0, %v9250
    %9252 = vmatmul.f32.gmra.mxu0 %v290
    %v9253 = vpop.f32.mrf.mxu0
    %v9254 = vadd.f32 0.0, %v9253
    %9255 = vmatmul.f32.gmra.mxu0 %v293
    %v9256 = vpop.f32.mrf.mxu0
    %v9257 = vadd.f32 0.0, %v9256
    %9258 = vdwg.mxu0
    %9259 = vmatpush.msra.mxu0 0.0
    %9260 = vmatpush.msra.mxu0 0.0
    %9261 = vmatpush.msra.mxu0 0.0
    %9262 = vmatpush.msra.mxu0 0.0
    %9263 = vmatpush.msra.mxu0 0.0
    %9264 = vmatpush.msra.mxu0 0.0
    %9265 = vmatpush.msra.mxu0 0.0
    %9266 = vmatpush.msra.mxu0 0.0
    %9267 = vmatpush.msra.mxu0 0.0
    %9268 = vmatpush.msra.mxu0 0.0
    %9269 = vmatpush.msra.mxu0 0.0
    %9270 = vmatpush.msra.mxu0 0.0
    %9271 = vmatpush.msra.mxu0 0.0
    %9272 = vmatpush.msra.mxu0 0.0
    %9273 = vmatpush.msra.mxu0 0.0
    %9274 = vmatpush.msra.mxu0 %v9125
    %9275 = vmatmul.f32.gmra.mxu0 %v248
    %v9276 = vpop.f32.mrf.mxu0
    %v9277 = vadd.f32 0.0, %v9276
    %9278 = vmatmul.f32.gmra.mxu0 %v251
    %v9279 = vpop.f32.mrf.mxu0
    %v9280 = vadd.f32 0.0, %v9279
    %9281 = vmatmul.f32.gmra.mxu0 %v254
    %v9282 = vpop.f32.mrf.mxu0
    %v9283 = vadd.f32 0.0, %v9282
    %9284 = vmatmul.f32.gmra.mxu0 %v257
    %v9285 = vpop.f32.mrf.mxu0
    %v9286 = vadd.f32 0.0, %v9285
    %9287 = vmatmul.f32.gmra.mxu0 %v260
    %v9288 = vpop.f32.mrf.mxu0
    %v9289 = vadd.f32 0.0, %v9288
    %9290 = vmatmul.f32.gmra.mxu0 %v263
    %v9291 = vpop.f32.mrf.mxu0
    %v9292 = vadd.f32 0.0, %v9291
    %9293 = vmatmul.f32.gmra.mxu0 %v266
    %v9294 = vpop.f32.mrf.mxu0
    %v9295 = vadd.f32 0.0, %v9294
    %9296 = vmatmul.f32.gmra.mxu0 %v269
    %v9297 = vpop.f32.mrf.mxu0
    %v9298 = vadd.f32 0.0, %v9297
    %9299 = vmatmul.f32.gmra.mxu0 %v272
    %v9300 = vpop.f32.mrf.mxu0
    %v9301 = vadd.f32 0.0, %v9300
    %9302 = vmatmul.f32.gmra.mxu0 %v275
    %v9303 = vpop.f32.mrf.mxu0
    %v9304 = vadd.f32 0.0, %v9303
    %9305 = vmatmul.f32.gmra.mxu0 %v278
    %v9306 = vpop.f32.mrf.mxu0
    %v9307 = vadd.f32 0.0, %v9306
    %9308 = vmatmul.f32.gmra.mxu0 %v281
    %v9309 = vpop.f32.mrf.mxu0
    %v9310 = vadd.f32 0.0, %v9309
    %9311 = vmatmul.f32.gmra.mxu0 %v284
    %v9312 = vpop.f32.mrf.mxu0
    %v9313 = vadd.f32 0.0, %v9312
    %9314 = vmatmul.f32.gmra.mxu0 %v287
    %v9315 = vpop.f32.mrf.mxu0
    %v9316 = vadd.f32 0.0, %v9315
    %9317 = vmatmul.f32.gmra.mxu0 %v290
    %v9318 = vpop.f32.mrf.mxu0
    %v9319 = vadd.f32 0.0, %v9318
    %9320 = vmatmul.f32.gmra.mxu0 %v293
    %v9321 = vpop.f32.mrf.mxu0
    %v9322 = vadd.f32 0.0, %v9321
    %9323 = vdwg.mxu0
    %9324 = vmatpush.msra.mxu0 0.0
    %9325 = vmatpush.msra.mxu0 0.0
    %9326 = vmatpush.msra.mxu0 0.0
    %9327 = vmatpush.msra.mxu0 0.0
    %9328 = vmatpush.msra.mxu0 0.0
    %9329 = vmatpush.msra.mxu0 0.0
    %9330 = vmatpush.msra.mxu0 0.0
    %9331 = vmatpush.msra.mxu0 0.0
    %9332 = vmatpush.msra.mxu0 0.0
    %9333 = vmatpush.msra.mxu0 0.0
    %9334 = vmatpush.msra.mxu0 0.0
    %9335 = vmatpush.msra.mxu0 0.0
    %9336 = vmatpush.msra.mxu0 0.0
    %9337 = vmatpush.msra.mxu0 0.0
    %9338 = vmatpush.msra.mxu0 0.0
    %9339 = vmatpush.msra.mxu0 %v9127
    %9340 = vmatmul.f32.gmra.mxu0 %v248
    %v9341 = vpop.f32.mrf.mxu0
    %v9342 = vadd.f32 0.0, %v9341
    %9343 = vmatmul.f32.gmra.mxu0 %v251
    %v9344 = vpop.f32.mrf.mxu0
    %v9345 = vadd.f32 0.0, %v9344
    %9346 = vmatmul.f32.gmra.mxu0 %v254
    %v9347 = vpop.f32.mrf.mxu0
    %v9348 = vadd.f32 0.0, %v9347
    %9349 = vmatmul.f32.gmra.mxu0 %v257
    %v9350 = vpop.f32.mrf.mxu0
    %v9351 = vadd.f32 0.0, %v9350
    %9352 = vmatmul.f32.gmra.mxu0 %v260
    %v9353 = vpop.f32.mrf.mxu0
    %v9354 = vadd.f32 0.0, %v9353
    %9355 = vmatmul.f32.gmra.mxu0 %v263
    %v9356 = vpop.f32.mrf.mxu0
    %v9357 = vadd.f32 0.0, %v9356
    %9358 = vmatmul.f32.gmra.mxu0 %v266
    %v9359 = vpop.f32.mrf.mxu0
    %v9360 = vadd.f32 0.0, %v9359
    %9361 = vmatmul.f32.gmra.mxu0 %v269
    %v9362 = vpop.f32.mrf.mxu0
    %v9363 = vadd.f32 0.0, %v9362
    %9364 = vmatmul.f32.gmra.mxu0 %v272
    %v9365 = vpop.f32.mrf.mxu0
    %v9366 = vadd.f32 0.0, %v9365
    %9367 = vmatmul.f32.gmra.mxu0 %v275
    %v9368 = vpop.f32.mrf.mxu0
    %v9369 = vadd.f32 0.0, %v9368
    %9370 = vmatmul.f32.gmra.mxu0 %v278
    %v9371 = vpop.f32.mrf.mxu0
    %v9372 = vadd.f32 0.0, %v9371
    %9373 = vmatmul.f32.gmra.mxu0 %v281
    %v9374 = vpop.f32.mrf.mxu0
    %v9375 = vadd.f32 0.0, %v9374
    %9376 = vmatmul.f32.gmra.mxu0 %v284
    %v9377 = vpop.f32.mrf.mxu0
    %v9378 = vadd.f32 0.0, %v9377
    %9379 = vmatmul.f32.gmra.mxu0 %v287
    %v9380 = vpop.f32.mrf.mxu0
    %v9381 = vadd.f32 0.0, %v9380
    %9382 = vmatmul.f32.gmra.mxu0 %v290
    %v9383 = vpop.f32.mrf.mxu0
    %v9384 = vadd.f32 0.0, %v9383
    %9385 = vmatmul.f32.gmra.mxu0 %v293
    %v9386 = vpop.f32.mrf.mxu0
    %v9387 = vadd.f32 0.0, %v9386
    %9388 = vdwg.mxu0
    %v9393 = vrot.slane %v8899, 7
    %v9394 = vrot.slane %v9003, 6
    %v9395 = vrot.slane %v9107, 5
    %v9396 = vsel %vm1210, %v8795, %v9393
    %v9397 = vsel %vm2490, %v9394, %v9395
    %v9398 = vsel %vm2492, %v9396, %v9397
    %v9399 = vsel %vm7027, %v8795, %v9393
    %vm9400 = vcmask 1043459
    %v9401 = vsel %vm9400, %v9394, %v9395
    %vm9402 = vcmask 1042433
    %v9403 = vsel %vm9402, %v9399, %v9401
    %v9404 = vrot.slane %v9403, 1
    %v9405 = vperm.slane %v9398, 0
    %v9406 = vperm.slane %v9398, 1
    %v9407 = vperm.slane %v9398, 2
    %v9408 = vperm.slane %v9398, 3
    %v9409 = vperm.slane %v9404, 0
    %v9410 = vperm.slane %v9404, 1
    %v9411 = vperm.slane %v9404, 2
    %v9412 = vperm.slane %v9404, 3
    %v9421 = vadd.f32 %v9147, %v9405
    %v9422 = vadd.f32 %v9212, %v9406
    %v9423 = vadd.f32 %v9277, %v9407
    %v9424 = vadd.f32 %v9342, %v9408
    %v9425 = vadd.f32 %v9150, %v9405
    %v9426 = vadd.f32 %v9215, %v9406
    %v9427 = vadd.f32 %v9280, %v9407
    %v9428 = vadd.f32 %v9345, %v9408
    %v9429 = vadd.f32 %v9153, %v9405
    %v9430 = vadd.f32 %v9218, %v9406
    %v9431 = vadd.f32 %v9283, %v9407
    %v9432 = vadd.f32 %v9348, %v9408
    %v9433 = vadd.f32 %v9156, %v9405
    %v9434 = vadd.f32 %v9221, %v9406
    %v9435 = vadd.f32 %v9286, %v9407
    %v9436 = vadd.f32 %v9351, %v9408
    %v9437 = vadd.f32 %v9159, %v9405
    %v9438 = vadd.f32 %v9224, %v9406
    %v9439 = vadd.f32 %v9289, %v9407
    %v9440 = vadd.f32 %v9354, %v9408
    %v9441 = vadd.f32 %v9162, %v9405
    %v9442 = vadd.f32 %v9227, %v9406
    %v9443 = vadd.f32 %v9292, %v9407
    %v9444 = vadd.f32 %v9357, %v9408
    %v9445 = vadd.f32 %v9165, %v9405
    %v9446 = vadd.f32 %v9230, %v9406
    %v9447 = vadd.f32 %v9295, %v9407
    %v9448 = vadd.f32 %v9360, %v9408
    %v9449 = vadd.f32 %v9168, %v9405
    %v9450 = vadd.f32 %v9233, %v9406
    %v9451 = vadd.f32 %v9298, %v9407
    %v9452 = vadd.f32 %v9363, %v9408
    %v9453 = vadd.f32 %v9171, %v9409
    %v9454 = vadd.f32 %v9236, %v9410
    %v9455 = vadd.f32 %v9301, %v9411
    %v9456 = vadd.f32 %v9366, %v9412
    %v9457 = vadd.f32 %v9174, %v9409
    %v9458 = vadd.f32 %v9239, %v9410
    %v9459 = vadd.f32 %v9304, %v9411
    %v9460 = vadd.f32 %v9369, %v9412
    %v9461 = vadd.f32 %v9177, %v9409
    %v9462 = vadd.f32 %v9242, %v9410
    %v9463 = vadd.f32 %v9307, %v9411
    %v9464 = vadd.f32 %v9372, %v9412
    %v9465 = vadd.f32 %v9180, %v9409
    %v9466 = vadd.f32 %v9245, %v9410
    %v9467 = vadd.f32 %v9310, %v9411
    %v9468 = vadd.f32 %v9375, %v9412
    %v9469 = vadd.f32 %v9183, %v9409
    %v9470 = vadd.f32 %v9248, %v9410
    %v9471 = vadd.f32 %v9313, %v9411
    %v9472 = vadd.f32 %v9378, %v9412
    %v9473 = vadd.f32 %v9186, %v9409
    %v9474 = vadd.f32 %v9251, %v9410
    %v9475 = vadd.f32 %v9316, %v9411
    %v9476 = vadd.f32 %v9381, %v9412
    %v9477 = vadd.f32 %v9189, %v9409
    %v9478 = vadd.f32 %v9254, %v9410
    %v9479 = vadd.f32 %v9319, %v9411
    %v9480 = vadd.f32 %v9384, %v9412
    %v9481 = vadd.f32 %v9192, %v9409
    %v9482 = vadd.f32 %v9257, %v9410
    %v9483 = vadd.f32 %v9322, %v9411
    %v9484 = vadd.f32 %v9387, %v9412
    %v9485 = vadd.f32 %v9421, %v9425
    %v9486 = vadd.f32 %v9485, %v9429
    %v9487 = vadd.f32 %v9486, %v9433
    %v9488 = vadd.f32 %v9487, %v9437
    %v9489 = vadd.f32 %v9488, %v9441
    %v9490 = vadd.f32 %v9489, %v9445
    %v9491 = vadd.f32 %v9490, %v9449
    %v9492 = vadd.f32 %v9491, %v9453
    %v9493 = vadd.f32 %v9492, %v9457
    %v9494 = vadd.f32 %v9493, %v9461
    %v9495 = vadd.f32 %v9494, %v9465
    %v9496 = vadd.f32 %v9495, %v9469
    %v9497 = vadd.f32 %v9496, %v9473
    %v9498 = vadd.f32 %v9497, %v9477
    %v9499 = vadd.f32 %v9498, %v9481
    %v9500 = vrot.slane %v9499, 4
    %v9501 = vadd.f32 %v9499, %v9500
    %v9502 = vrot.slane %v9501, 2
    %v9503 = vadd.f32 %v9501, %v9502
    %v9504 = vrot.slane %v9503, 1
    %v9505 = vadd.f32 %v9503, %v9504
    %v9506 = vadd.f32 %v9422, %v9426
    %v9507 = vadd.f32 %v9506, %v9430
    %v9508 = vadd.f32 %v9507, %v9434
    %v9509 = vadd.f32 %v9508, %v9438
    %v9510 = vadd.f32 %v9509, %v9442
    %v9511 = vadd.f32 %v9510, %v9446
    %v9512 = vadd.f32 %v9511, %v9450
    %v9513 = vadd.f32 %v9512, %v9454
    %v9514 = vadd.f32 %v9513, %v9458
    %v9515 = vadd.f32 %v9514, %v9462
    %v9516 = vadd.f32 %v9515, %v9466
    %v9517 = vadd.f32 %v9516, %v9470
    %v9518 = vadd.f32 %v9517, %v9474
    %v9519 = vadd.f32 %v9518, %v9478
    %v9520 = vadd.f32 %v9519, %v9482
    %v9521 = vrot.slane %v9520, 4
    %v9522 = vadd.f32 %v9520, %v9521
    %v9523 = vrot.slane %v9522, 2
    %v9524 = vadd.f32 %v9522, %v9523
    %v9525 = vrot.slane %v9524, 1
    %v9526 = vadd.f32 %v9524, %v9525
    %v9527 = vadd.f32 %v9423, %v9427
    %v9528 = vadd.f32 %v9527, %v9431
    %v9529 = vadd.f32 %v9528, %v9435
    %v9530 = vadd.f32 %v9529, %v9439
    %v9531 = vadd.f32 %v9530, %v9443
    %v9532 = vadd.f32 %v9531, %v9447
    %v9533 = vadd.f32 %v9532, %v9451
    %v9534 = vadd.f32 %v9533, %v9455
    %v9535 = vadd.f32 %v9534, %v9459
    %v9536 = vadd.f32 %v9535, %v9463
    %v9537 = vadd.f32 %v9536, %v9467
    %v9538 = vadd.f32 %v9537, %v9471
    %v9539 = vadd.f32 %v9538, %v9475
    %v9540 = vadd.f32 %v9539, %v9479
    %v9541 = vadd.f32 %v9540, %v9483
    %v9542 = vrot.slane %v9541, 4
    %v9543 = vadd.f32 %v9541, %v9542
    %v9544 = vrot.slane %v9543, 2
    %v9545 = vadd.f32 %v9543, %v9544
    %v9546 = vrot.slane %v9545, 1
    %v9547 = vadd.f32 %v9545, %v9546
    %v9548 = vadd.f32 %v9424, %v9428
    %v9549 = vadd.f32 %v9548, %v9432
    %v9550 = vadd.f32 %v9549, %v9436
    %v9551 = vadd.f32 %v9550, %v9440
    %v9552 = vadd.f32 %v9551, %v9444
    %v9553 = vadd.f32 %v9552, %v9448
    %v9554 = vadd.f32 %v9553, %v9452
    %v9555 = vadd.f32 %v9554, %v9456
    %v9556 = vadd.f32 %v9555, %v9460
    %v9557 = vadd.f32 %v9556, %v9464
    %v9558 = vadd.f32 %v9557, %v9468
    %v9559 = vadd.f32 %v9558, %v9472
    %v9560 = vadd.f32 %v9559, %v9476
    %v9561 = vadd.f32 %v9560, %v9480
    %v9562 = vadd.f32 %v9561, %v9484
    %v9563 = vrot.slane %v9562, 4
    %v9564 = vadd.f32 %v9562, %v9563
    %v9565 = vrot.slane %v9564, 2
    %v9566 = vadd.f32 %v9564, %v9565
    %v9567 = vrot.slane %v9566, 1
    %v9568 = vadd.f32 %v9566, %v9567
    %v9569 = vmul.f32 %v9421, %v9421
    %v9570 = vmul.f32 %v9422, %v9422
    %v9571 = vmul.f32 %v9423, %v9423
    %v9572 = vmul.f32 %v9424, %v9424
    %v9573 = vmul.f32 %v9425, %v9425
    %v9574 = vmul.f32 %v9426, %v9426
    %v9575 = vmul.f32 %v9427, %v9427
    %v9576 = vmul.f32 %v9428, %v9428
    %v9577 = vmul.f32 %v9429, %v9429
    %v9578 = vmul.f32 %v9430, %v9430
    %v9579 = vmul.f32 %v9431, %v9431
    %v9580 = vmul.f32 %v9432, %v9432
    %v9581 = vmul.f32 %v9433, %v9433
    %v9582 = vmul.f32 %v9434, %v9434
    %v9583 = vmul.f32 %v9435, %v9435
    %v9584 = vmul.f32 %v9436, %v9436
    %v9585 = vmul.f32 %v9437, %v9437
    %v9586 = vmul.f32 %v9438, %v9438
    %v9587 = vmul.f32 %v9439, %v9439
    %v9588 = vmul.f32 %v9440, %v9440
    %v9589 = vmul.f32 %v9441, %v9441
    %v9590 = vmul.f32 %v9442, %v9442
    %v9591 = vmul.f32 %v9443, %v9443
    %v9592 = vmul.f32 %v9444, %v9444
    %v9593 = vmul.f32 %v9445, %v9445
    %v9594 = vmul.f32 %v9446, %v9446
    %v9595 = vmul.f32 %v9447, %v9447
    %v9596 = vmul.f32 %v9448, %v9448
    %v9597 = vmul.f32 %v9449, %v9449
    %v9598 = vmul.f32 %v9450, %v9450
    %v9599 = vmul.f32 %v9451, %v9451
    %v9600 = vmul.f32 %v9452, %v9452
    %v9601 = vmul.f32 %v9453, %v9453
    %v9602 = vmul.f32 %v9454, %v9454
    %v9603 = vmul.f32 %v9455, %v9455
    %v9604 = vmul.f32 %v9456, %v9456
    %v9605 = vmul.f32 %v9457, %v9457
    %v9606 = vmul.f32 %v9458, %v9458
    %v9607 = vmul.f32 %v9459, %v9459
    %v9608 = vmul.f32 %v9460, %v9460
    %v9609 = vmul.f32 %v9461, %v9461
    %v9610 = vmul.f32 %v9462, %v9462
    %v9611 = vmul.f32 %v9463, %v9463
    %v9612 = vmul.f32 %v9464, %v9464
    %v9613 = vmul.f32 %v9465, %v9465
    %v9614 = vmul.f32 %v9466, %v9466
    %v9615 = vmul.f32 %v9467, %v9467
    %v9616 = vmul.f32 %v9468, %v9468
    %v9617 = vmul.f32 %v9469, %v9469
    %v9618 = vmul.f32 %v9470, %v9470
    %v9619 = vmul.f32 %v9471, %v9471
    %v9620 = vmul.f32 %v9472, %v9472
    %v9621 = vmul.f32 %v9473, %v9473
    %v9622 = vmul.f32 %v9474, %v9474
    %v9623 = vmul.f32 %v9475, %v9475
    %v9624 = vmul.f32 %v9476, %v9476
    %v9625 = vmul.f32 %v9477, %v9477
    %v9626 = vmul.f32 %v9478, %v9478
    %v9627 = vmul.f32 %v9479, %v9479
    %v9628 = vmul.f32 %v9480, %v9480
    %v9629 = vmul.f32 %v9481, %v9481
    %v9630 = vmul.f32 %v9482, %v9482
    %v9631 = vmul.f32 %v9483, %v9483
    %v9632 = vmul.f32 %v9484, %v9484
    %v9633 = vadd.f32 %v9569, %v9573
    %v9634 = vadd.f32 %v9633, %v9577
    %v9635 = vadd.f32 %v9634, %v9581
    %v9636 = vadd.f32 %v9635, %v9585
    %v9637 = vadd.f32 %v9636, %v9589
    %v9638 = vadd.f32 %v9637, %v9593
    %v9639 = vadd.f32 %v9638, %v9597
    %v9640 = vadd.f32 %v9639, %v9601
    %v9641 = vadd.f32 %v9640, %v9605
    %v9642 = vadd.f32 %v9641, %v9609
    %v9643 = vadd.f32 %v9642, %v9613
    %v9644 = vadd.f32 %v9643, %v9617
    %v9645 = vadd.f32 %v9644, %v9621
    %v9646 = vadd.f32 %v9645, %v9625
    %v9647 = vadd.f32 %v9646, %v9629
    %v9648 = vrot.slane %v9647, 4
    %v9649 = vadd.f32 %v9647, %v9648
    %v9650 = vrot.slane %v9649, 2
    %v9651 = vadd.f32 %v9649, %v9650
    %v9652 = vrot.slane %v9651, 1
    %v9653 = vadd.f32 %v9651, %v9652
    %v9654 = vadd.f32 %v9570, %v9574
    %v9655 = vadd.f32 %v9654, %v9578
    %v9656 = vadd.f32 %v9655, %v9582
    %v9657 = vadd.f32 %v9656, %v9586
    %v9658 = vadd.f32 %v9657, %v9590
    %v9659 = vadd.f32 %v9658, %v9594
    %v9660 = vadd.f32 %v9659, %v9598
    %v9661 = vadd.f32 %v9660, %v9602
    %v9662 = vadd.f32 %v9661, %v9606
    %v9663 = vadd.f32 %v9662, %v9610
    %v9664 = vadd.f32 %v9663, %v9614
    %v9665 = vadd.f32 %v9664, %v9618
    %v9666 = vadd.f32 %v9665, %v9622
    %v9667 = vadd.f32 %v9666, %v9626
    %v9668 = vadd.f32 %v9667, %v9630
    %v9669 = vrot.slane %v9668, 4
    %v9670 = vadd.f32 %v9668, %v9669
    %v9671 = vrot.slane %v9670, 2
    %v9672 = vadd.f32 %v9670, %v9671
    %v9673 = vrot.slane %v9672, 1
    %v9674 = vadd.f32 %v9672, %v9673
    %v9675 = vadd.f32 %v9571, %v9575
    %v9676 = vadd.f32 %v9675, %v9579
    %v9677 = vadd.f32 %v9676, %v9583
    %v9678 = vadd.f32 %v9677, %v9587
    %v9679 = vadd.f32 %v9678, %v9591
    %v9680 = vadd.f32 %v9679, %v9595
    %v9681 = vadd.f32 %v9680, %v9599
    %v9682 = vadd.f32 %v9681, %v9603
    %v9683 = vadd.f32 %v9682, %v9607
    %v9684 = vadd.f32 %v9683, %v9611
    %v9685 = vadd.f32 %v9684, %v9615
    %v9686 = vadd.f32 %v9685, %v9619
    %v9687 = vadd.f32 %v9686, %v9623
    %v9688 = vadd.f32 %v9687, %v9627
    %v9689 = vadd.f32 %v9688, %v9631
    %v9690 = vrot.slane %v9689, 4
    %v9691 = vadd.f32 %v9689, %v9690
    %v9692 = vrot.slane %v9691, 2
    %v9693 = vadd.f32 %v9691, %v9692
    %v9694 = vrot.slane %v9693, 1
    %v9695 = vadd.f32 %v9693, %v9694
    %v9696 = vadd.f32 %v9572, %v9576
    %v9697 = vadd.f32 %v9696, %v9580
    %v9698 = vadd.f32 %v9697, %v9584
    %v9699 = vadd.f32 %v9698, %v9588
    %v9700 = vadd.f32 %v9699, %v9592
    %v9701 = vadd.f32 %v9700, %v9596
    %v9702 = vadd.f32 %v9701, %v9600
    %v9703 = vadd.f32 %v9702, %v9604
    %v9704 = vadd.f32 %v9703, %v9608
    %v9705 = vadd.f32 %v9704, %v9612
    %v9706 = vadd.f32 %v9705, %v9616
    %v9707 = vadd.f32 %v9706, %v9620
    %v9708 = vadd.f32 %v9707, %v9624
    %v9709 = vadd.f32 %v9708, %v9628
    %v9710 = vadd.f32 %v9709, %v9632
    %v9711 = vrot.slane %v9710, 4
    %v9712 = vadd.f32 %v9710, %v9711
    %v9713 = vrot.slane %v9712, 2
    %v9714 = vadd.f32 %v9712, %v9713
    %v9715 = vrot.slane %v9714, 1
    %v9716 = vadd.f32 %v9714, %v9715
    %v9717 = vpack.c.bf16 %v9422, %v9421
    %v9718 = vpack.c.bf16 %v9424, %v9423
    %v9719 = vpack.c.bf16 %v9426, %v9425
    %v9720 = vpack.c.bf16 %v9428, %v9427
    %v9721 = vpack.c.bf16 %v9430, %v9429
    %v9722 = vpack.c.bf16 %v9432, %v9431
    %v9723 = vpack.c.bf16 %v9434, %v9433
    %v9724 = vpack.c.bf16 %v9436, %v9435
    %v9725 = vpack.c.bf16 %v9438, %v9437
    %v9726 = vpack.c.bf16 %v9440, %v9439
    %v9727 = vpack.c.bf16 %v9442, %v9441
    %v9728 = vpack.c.bf16 %v9444, %v9443
    %v9729 = vpack.c.bf16 %v9446, %v9445
    %v9730 = vpack.c.bf16 %v9448, %v9447
    %v9731 = vpack.c.bf16 %v9450, %v9449
    %v9732 = vpack.c.bf16 %v9452, %v9451
    %v9733 = vpack.c.bf16 %v9454, %v9453
    %v9734 = vpack.c.bf16 %v9456, %v9455
    %v9735 = vpack.c.bf16 %v9458, %v9457
    %v9736 = vpack.c.bf16 %v9460, %v9459
    %v9737 = vpack.c.bf16 %v9462, %v9461
    %v9738 = vpack.c.bf16 %v9464, %v9463
    %v9739 = vpack.c.bf16 %v9466, %v9465
    %v9740 = vpack.c.bf16 %v9468, %v9467
    %v9741 = vpack.c.bf16 %v9470, %v9469
    %v9742 = vpack.c.bf16 %v9472, %v9471
    %v9743 = vpack.c.bf16 %v9474, %v9473
    %v9744 = vpack.c.bf16 %v9476, %v9475
    %v9745 = vpack.c.bf16 %v9478, %v9477
    %v9746 = vpack.c.bf16 %v9480, %v9479
    %v9747 = vpack.c.bf16 %v9482, %v9481
    %v9748 = vpack.c.bf16 %v9484, %v9483
    %v9749 = vmul.f32 %v9505, 0.0078125
    %v9750 = vmul.f32 %v9526, 0.0078125
    %v9751 = vmul.f32 %v9547, 0.0078125
    %v9752 = vmul.f32 %v9568, 0.0078125
    %v9753 = vmul.f32 %v9653, 0.0078125
    %v9754 = vmul.f32 %v9674, 0.0078125
    %v9755 = vmul.f32 %v9695, 0.0078125
    %v9756 = vmul.f32 %v9716, 0.0078125
    %v9757 = vmul.f32 %v9749, %v9749
    %v9758 = vmul.f32 %v9750, %v9750
    %v9759 = vmul.f32 %v9751, %v9751
    %v9760 = vmul.f32 %v9752, %v9752
    %v9761 = vsub.f32 %v9753, %v9757
    %v9762 = vsub.f32 %v9754, %v9758
    %v9763 = vsub.f32 %v9755, %v9759
    %v9764 = vsub.f32 %v9756, %v9760
    %v9765 = vmax.f32 %v9761, 0.0
    %v9766 = vmax.f32 %v9762, 0.0
    %v9767 = vmax.f32 %v9763, 0.0
    %v9768 = vmax.f32 %v9764, 0.0
    %v9769 = vld [vmem:[%s39] sm:$0xf]
    %v9770 = vadd.f32 %v9765, 1e-05
    %v9771 = vadd.f32 %v9766, 1e-05
    %v9772 = vadd.f32 %v9767, 1e-05
    %v9773 = vadd.f32 %v9768, 1e-05
    %v9774 = vrsqrt.pop %v9770
    %v9775 = vmul.f32 %v9774, %v9770
    %v9776 = vmul.f32 %v9775, %v9774
    %v9777 = vmul.f32 0.5, %v9776
    %v9778 = vsub.f32 1.5, %v9777
    %v9779 = vmul.f32 %v9774, %v9778
    %vm9780 = vweird.f32 %v9770
    %vm9781 = vweird.f32 %v9774
    %vm9782 = vmor %vm9780, %vm9781
    %v9783 = vsel %vm9782, %v9774, %v9779
    %v9784 = vrsqrt.pop %v9771
    %v9785 = vmul.f32 %v9784, %v9771
    %v9786 = vmul.f32 %v9785, %v9784
    %v9787 = vmul.f32 0.5, %v9786
    %v9788 = vsub.f32 1.5, %v9787
    %v9789 = vmul.f32 %v9784, %v9788
    %vm9790 = vweird.f32 %v9771
    %vm9791 = vweird.f32 %v9784
    %vm9792 = vmor %vm9790, %vm9791
    %v9793 = vsel %vm9792, %v9784, %v9789
    %v9794 = vrsqrt.pop %v9772
    %v9795 = vmul.f32 %v9794, %v9772
    %v9796 = vmul.f32 %v9795, %v9794
    %v9797 = vmul.f32 0.5, %v9796
    %v9798 = vsub.f32 1.5, %v9797
    %v9799 = vmul.f32 %v9794, %v9798
    %vm9800 = vweird.f32 %v9772
    %vm9801 = vweird.f32 %v9794
    %vm9802 = vmor %vm9800, %vm9801
    %v9803 = vsel %vm9802, %v9794, %v9799
    %v9804 = vrsqrt.pop %v9773
    %v9805 = vmul.f32 %v9804, %v9773
    %v9806 = vmul.f32 %v9805, %v9804
    %v9807 = vmul.f32 0.5, %v9806
    %v9808 = vsub.f32 1.5, %v9807
    %v9809 = vmul.f32 %v9804, %v9808
    %vm9810 = vweird.f32 %v9773
    %vm9811 = vweird.f32 %v9804
    %vm9812 = vmor %vm9810, %vm9811
    %v9813 = vsel %vm9812, %v9804, %v9809
    %v9818 = vrot.slane %v9793, 7
    %v9819 = vrot.slane %v9803, 6
    %v9820 = vrot.slane %v9813, 5
    %v9821 = vsel %vm1210, %v9783, %v9818
    %v9822 = vsel %vm2490, %v9819, %v9820
    %v9823 = vsel %vm2492, %v9821, %v9822
    %v9825 = vmul.f32 %v9769, %v9823
    %v9826 = vld [vmem:[%s41] sm:$0xf]
    %v9828 = vperm.slane %v9825, 0
    %v9829 = vperm.slane %v9825, 1
    %v9830 = vperm.slane %v9825, 2
    %v9831 = vperm.slane %v9825, 3
    %v9836 = vmul.f32 %v9749, %v9828
    %v9837 = vmul.f32 %v9750, %v9829
    %v9838 = vmul.f32 %v9751, %v9830
    %v9839 = vmul.f32 %v9752, %v9831
    %v9844 = vrot.slane %v9837, 7
    %v9845 = vrot.slane %v9838, 6
    %v9846 = vrot.slane %v9839, 5
    %v9847 = vsel %vm1210, %v9836, %v9844
    %v9848 = vsel %vm2490, %v9845, %v9846
    %v9849 = vsel %vm2492, %v9847, %v9848
    %v9851 = vsub.f32 %v9826, %v9849
    %v9852 = vld [vmem:[#allocation13] sm:$0xff]
    %v9853 = vld [vmem:[#allocation13 + $0x8] sm:$0xff]
    %v9854 = vld [vmem:[#allocation13 + $0x10] sm:$0xff]
    %v9855 = vld [vmem:[#allocation13 + $0x18] sm:$0xff]
    %v9856 = vld [vmem:[#allocation13 + $0x20] sm:$0xff]
    %v9857 = vld [vmem:[#allocation13 + $0x28] sm:$0xff]
    %v9858 = vld [vmem:[#allocation13 + $0x30] sm:$0xff]
    %v9859 = vld [vmem:[#allocation13 + $0x38] sm:$0xff]
    %v9860 = vld [vmem:[#allocation13 + $0x40] sm:$0xff]
    %v9861 = vld [vmem:[#allocation13 + $0x48] sm:$0xff]
    %v9862 = vld [vmem:[#allocation13 + $0x50] sm:$0xff]
    %v9863 = vld [vmem:[#allocation13 + $0x58] sm:$0xff]
    %v9864 = vld [vmem:[#allocation13 + $0x60] sm:$0xff]
    %v9865 = vld [vmem:[#allocation13 + $0x68] sm:$0xff]
    %v9866 = vld [vmem:[#allocation13 + $0x70] sm:$0xff]
    %v9867 = vld [vmem:[#allocation13 + $0x78] sm:$0xff]
    %v9868 = vld [vmem:[#allocation13 + $0x80] sm:$0xff]
    %v9869 = vld [vmem:[#allocation13 + $0x88] sm:$0xff]
    %v9870 = vld [vmem:[#allocation13 + $0x90] sm:$0xff]
    %v9871 = vld [vmem:[#allocation13 + $0x98] sm:$0xff]
    %v9872 = vld [vmem:[#allocation13 + $0xa0] sm:$0xff]
    %v9873 = vld [vmem:[#allocation13 + $0xa8] sm:$0xff]
    %v9874 = vld [vmem:[#allocation13 + $0xb0] sm:$0xff]
    %v9875 = vld [vmem:[#allocation13 + $0xb8] sm:$0xff]
    %v9876 = vld [vmem:[#allocation13 + $0xc0] sm:$0xff]
    %v9877 = vld [vmem:[#allocation13 + $0xc8] sm:$0xff]
    %v9878 = vld [vmem:[#allocation13 + $0xd0] sm:$0xff]
    %v9879 = vld [vmem:[#allocation13 + $0xd8] sm:$0xff]
    %v9880 = vld [vmem:[#allocation13 + $0xe0] sm:$0xff]
    %v9881 = vld [vmem:[#allocation13 + $0xe8] sm:$0xff]
    %v9882 = vld [vmem:[#allocation13 + $0xf0] sm:$0xff]
    %v9883 = vld [vmem:[#allocation13 + $0xf8] sm:$0xff]
    %v9884 = vld [vmem:[#allocation13 + $0x100] sm:$0xff]
    %v9885 = vld [vmem:[#allocation13 + $0x108] sm:$0xff]
    %v9886 = vld [vmem:[#allocation13 + $0x110] sm:$0xff]
    %v9887 = vld [vmem:[#allocation13 + $0x118] sm:$0xff]
    %v9888 = vld [vmem:[#allocation13 + $0x120] sm:$0xff]
    %v9889 = vld [vmem:[#allocation13 + $0x128] sm:$0xff]
    %v9890 = vld [vmem:[#allocation13 + $0x130] sm:$0xff]
    %v9891 = vld [vmem:[#allocation13 + $0x138] sm:$0xff]
    %v9892 = vld [vmem:[#allocation13 + $0x140] sm:$0xff]
    %v9893 = vld [vmem:[#allocation13 + $0x148] sm:$0xff]
    %v9894 = vld [vmem:[#allocation13 + $0x150] sm:$0xff]
    %v9895 = vld [vmem:[#allocation13 + $0x158] sm:$0xff]
    %v9896 = vld [vmem:[#allocation13 + $0x160] sm:$0xff]
    %v9897 = vld [vmem:[#allocation13 + $0x168] sm:$0xff]
    %v9898 = vld [vmem:[#allocation13 + $0x170] sm:$0xff]
    %v9899 = vld [vmem:[#allocation13 + $0x178] sm:$0xff]
    %v9900 = vld [vmem:[#allocation13 + $0x180] sm:$0xff]
    %v9901 = vld [vmem:[#allocation13 + $0x188] sm:$0xff]
    %v9902 = vld [vmem:[#allocation13 + $0x190] sm:$0xff]
    %v9903 = vld [vmem:[#allocation13 + $0x198] sm:$0xff]
    %v9904 = vld [vmem:[#allocation13 + $0x1a0] sm:$0xff]
    %v9905 = vld [vmem:[#allocation13 + $0x1a8] sm:$0xff]
    %v9906 = vld [vmem:[#allocation13 + $0x1b0] sm:$0xff]
    %v9907 = vld [vmem:[#allocation13 + $0x1b8] sm:$0xff]
    %v9908 = vld [vmem:[#allocation13 + $0x1c0] sm:$0xff]
    %v9909 = vld [vmem:[#allocation13 + $0x1c8] sm:$0xff]
    %v9910 = vld [vmem:[#allocation13 + $0x1d0] sm:$0xff]
    %v9911 = vld [vmem:[#allocation13 + $0x1d8] sm:$0xff]
    %v9912 = vld [vmem:[#allocation13 + $0x1e0] sm:$0xff]
    %v9913 = vld [vmem:[#allocation13 + $0x1e8] sm:$0xff]
    %v9914 = vld [vmem:[#allocation13 + $0x1f0] sm:$0xff]
    %v9915 = vld [vmem:[#allocation13 + $0x1f8] sm:$0xff]
    %v9916 = vunpack.c.l.bf16 %v9717
    %v9917 = vunpack.c.h.bf16 %v9717
    %v9918 = vunpack.c.l.bf16 %v9718
    %v9919 = vunpack.c.h.bf16 %v9718
    %v9920 = vunpack.c.l.bf16 %v9719
    %v9921 = vunpack.c.h.bf16 %v9719
    %v9922 = vunpack.c.l.bf16 %v9720
    %v9923 = vunpack.c.h.bf16 %v9720
    %v9924 = vunpack.c.l.bf16 %v9721
    %v9925 = vunpack.c.h.bf16 %v9721
    %v9926 = vunpack.c.l.bf16 %v9722
    %v9927 = vunpack.c.h.bf16 %v9722
    %v9928 = vunpack.c.l.bf16 %v9723
    %v9929 = vunpack.c.h.bf16 %v9723
    %v9930 = vunpack.c.l.bf16 %v9724
    %v9931 = vunpack.c.h.bf16 %v9724
    %v9932 = vunpack.c.l.bf16 %v9725
    %v9933 = vunpack.c.h.bf16 %v9725
    %v9934 = vunpack.c.l.bf16 %v9726
    %v9935 = vunpack.c.h.bf16 %v9726
    %v9936 = vunpack.c.l.bf16 %v9727
    %v9937 = vunpack.c.h.bf16 %v9727
    %v9938 = vunpack.c.l.bf16 %v9728
    %v9939 = vunpack.c.h.bf16 %v9728
    %v9940 = vunpack.c.l.bf16 %v9729
    %v9941 = vunpack.c.h.bf16 %v9729
    %v9942 = vunpack.c.l.bf16 %v9730
    %v9943 = vunpack.c.h.bf16 %v9730
    %v9944 = vunpack.c.l.bf16 %v9731
    %v9945 = vunpack.c.h.bf16 %v9731
    %v9946 = vunpack.c.l.bf16 %v9732
    %v9947 = vunpack.c.h.bf16 %v9732
    %v9948 = vunpack.c.l.bf16 %v9733
    %v9949 = vunpack.c.h.bf16 %v9733
    %v9950 = vunpack.c.l.bf16 %v9734
    %v9951 = vunpack.c.h.bf16 %v9734
    %v9952 = vunpack.c.l.bf16 %v9735
    %v9953 = vunpack.c.h.bf16 %v9735
    %v9954 = vunpack.c.l.bf16 %v9736
    %v9955 = vunpack.c.h.bf16 %v9736
    %v9956 = vunpack.c.l.bf16 %v9737
    %v9957 = vunpack.c.h.bf16 %v9737
    %v9958 = vunpack.c.l.bf16 %v9738
    %v9959 = vunpack.c.h.bf16 %v9738
    %v9960 = vunpack.c.l.bf16 %v9739
    %v9961 = vunpack.c.h.bf16 %v9739
    %v9962 = vunpack.c.l.bf16 %v9740
    %v9963 = vunpack.c.h.bf16 %v9740
    %v9964 = vunpack.c.l.bf16 %v9741
    %v9965 = vunpack.c.h.bf16 %v9741
    %v9966 = vunpack.c.l.bf16 %v9742
    %v9967 = vunpack.c.h.bf16 %v9742
    %v9968 = vunpack.c.l.bf16 %v9743
    %v9969 = vunpack.c.h.bf16 %v9743
    %v9970 = vunpack.c.l.bf16 %v9744
    %v9971 = vunpack.c.h.bf16 %v9744
    %v9972 = vunpack.c.l.bf16 %v9745
    %v9973 = vunpack.c.h.bf16 %v9745
    %v9974 = vunpack.c.l.bf16 %v9746
    %v9975 = vunpack.c.h.bf16 %v9746
    %v9976 = vunpack.c.l.bf16 %v9747
    %v9977 = vunpack.c.h.bf16 %v9747
    %v9978 = vunpack.c.l.bf16 %v9748
    %v9979 = vunpack.c.h.bf16 %v9748
    %v9980 = vmul.f32 %v9916, %v9828
    %v9981 = vmul.f32 %v9917, %v9829
    %v9982 = vmul.f32 %v9918, %v9830
    %v9983 = vmul.f32 %v9919, %v9831
    %v9984 = vmul.f32 %v9920, %v9828
    %v9985 = vmul.f32 %v9921, %v9829
    %v9986 = vmul.f32 %v9922, %v9830
    %v9987 = vmul.f32 %v9923, %v9831
    %v9988 = vmul.f32 %v9924, %v9828
    %v9989 = vmul.f32 %v9925, %v9829
    %v9990 = vmul.f32 %v9926, %v9830
    %v9991 = vmul.f32 %v9927, %v9831
    %v9992 = vmul.f32 %v9928, %v9828
    %v9993 = vmul.f32 %v9929, %v9829
    %v9994 = vmul.f32 %v9930, %v9830
    %v9995 = vmul.f32 %v9931, %v9831
    %v9996 = vmul.f32 %v9932, %v9828
    %v9997 = vmul.f32 %v9933, %v9829
    %v9998 = vmul.f32 %v9934, %v9830
    %v9999 = vmul.f32 %v9935, %v9831
    %v10000 = vmul.f32 %v9936, %v9828
    %v10001 = vmul.f32 %v9937, %v9829
    %v10002 = vmul.f32 %v9938, %v9830
    %v10003 = vmul.f32 %v9939, %v9831
    %v10004 = vmul.f32 %v9940, %v9828
    %v10005 = vmul.f32 %v9941, %v9829
    %v10006 = vmul.f32 %v9942, %v9830
    %v10007 = vmul.f32 %v9943, %v9831
    %v10008 = vmul.f32 %v9944, %v9828
    %v10009 = vmul.f32 %v9945, %v9829
    %v10010 = vmul.f32 %v9946, %v9830
    %v10011 = vmul.f32 %v9947, %v9831
    %v10012 = vmul.f32 %v9948, %v9828
    %v10013 = vmul.f32 %v9949, %v9829
    %v10014 = vmul.f32 %v9950, %v9830
    %v10015 = vmul.f32 %v9951, %v9831
    %v10016 = vmul.f32 %v9952, %v9828
    %v10017 = vmul.f32 %v9953, %v9829
    %v10018 = vmul.f32 %v9954, %v9830
    %v10019 = vmul.f32 %v9955, %v9831
    %v10020 = vmul.f32 %v9956, %v9828
    %v10021 = vmul.f32 %v9957, %v9829
    %v10022 = vmul.f32 %v9958, %v9830
    %v10023 = vmul.f32 %v9959, %v9831
    %v10024 = vmul.f32 %v9960, %v9828
    %v10025 = vmul.f32 %v9961, %v9829
    %v10026 = vmul.f32 %v9962, %v9830
    %v10027 = vmul.f32 %v9963, %v9831
    %v10028 = vmul.f32 %v9964, %v9828
    %v10029 = vmul.f32 %v9965, %v9829
    %v10030 = vmul.f32 %v9966, %v9830
    %v10031 = vmul.f32 %v9967, %v9831
    %v10032 = vmul.f32 %v9968, %v9828
    %v10033 = vmul.f32 %v9969, %v9829
    %v10034 = vmul.f32 %v9970, %v9830
    %v10035 = vmul.f32 %v9971, %v9831
    %v10036 = vmul.f32 %v9972, %v9828
    %v10037 = vmul.f32 %v9973, %v9829
    %v10038 = vmul.f32 %v9974, %v9830
    %v10039 = vmul.f32 %v9975, %v9831
    %v10040 = vmul.f32 %v9976, %v9828
    %v10041 = vmul.f32 %v9977, %v9829
    %v10042 = vmul.f32 %v9978, %v9830
    %v10043 = vmul.f32 %v9979, %v9831
    %v10045 = vperm.slane %v9851, 0
    %v10046 = vperm.slane %v9851, 1
    %v10047 = vperm.slane %v9851, 2
    %v10048 = vperm.slane %v9851, 3
    %v10053 = vadd.f32 %v9980, %v10045
    %v10054 = vadd.f32 %v9981, %v10046
    %v10055 = vadd.f32 %v9982, %v10047
    %v10056 = vadd.f32 %v9983, %v10048
    %v10057 = vadd.f32 %v9984, %v10045
    %v10058 = vadd.f32 %v9985, %v10046
    %v10059 = vadd.f32 %v9986, %v10047
    %v10060 = vadd.f32 %v9987, %v10048
    %v10061 = vadd.f32 %v9988, %v10045
    %v10062 = vadd.f32 %v9989, %v10046
    %v10063 = vadd.f32 %v9990, %v10047
    %v10064 = vadd.f32 %v9991, %v10048
    %v10065 = vadd.f32 %v9992, %v10045
    %v10066 = vadd.f32 %v9993, %v10046
    %v10067 = vadd.f32 %v9994, %v10047
    %v10068 = vadd.f32 %v9995, %v10048
    %v10069 = vadd.f32 %v9996, %v10045
    %v10070 = vadd.f32 %v9997, %v10046
    %v10071 = vadd.f32 %v9998, %v10047
    %v10072 = vadd.f32 %v9999, %v10048
    %v10073 = vadd.f32 %v10000, %v10045
    %v10074 = vadd.f32 %v10001, %v10046
    %v10075 = vadd.f32 %v10002, %v10047
    %v10076 = vadd.f32 %v10003, %v10048
    %v10077 = vadd.f32 %v10004, %v10045
    %v10078 = vadd.f32 %v10005, %v10046
    %v10079 = vadd.f32 %v10006, %v10047
    %v10080 = vadd.f32 %v10007, %v10048
    %v10081 = vadd.f32 %v10008, %v10045
    %v10082 = vadd.f32 %v10009, %v10046
    %v10083 = vadd.f32 %v10010, %v10047
    %v10084 = vadd.f32 %v10011, %v10048
    %v10085 = vadd.f32 %v10012, %v10045
    %v10086 = vadd.f32 %v10013, %v10046
    %v10087 = vadd.f32 %v10014, %v10047
    %v10088 = vadd.f32 %v10015, %v10048
    %v10089 = vadd.f32 %v10016, %v10045
    %v10090 = vadd.f32 %v10017, %v10046
    %v10091 = vadd.f32 %v10018, %v10047
    %v10092 = vadd.f32 %v10019, %v10048
    %v10093 = vadd.f32 %v10020, %v10045
    %v10094 = vadd.f32 %v10021, %v10046
    %v10095 = vadd.f32 %v10022, %v10047
    %v10096 = vadd.f32 %v10023, %v10048
    %v10097 = vadd.f32 %v10024, %v10045
    %v10098 = vadd.f32 %v10025, %v10046
    %v10099 = vadd.f32 %v10026, %v10047
    %v10100 = vadd.f32 %v10027, %v10048
    %v10101 = vadd.f32 %v10028, %v10045
    %v10102 = vadd.f32 %v10029, %v10046
    %v10103 = vadd.f32 %v10030, %v10047
    %v10104 = vadd.f32 %v10031, %v10048
    %v10105 = vadd.f32 %v10032, %v10045
    %v10106 = vadd.f32 %v10033, %v10046
    %v10107 = vadd.f32 %v10034, %v10047
    %v10108 = vadd.f32 %v10035, %v10048
    %v10109 = vadd.f32 %v10036, %v10045
    %v10110 = vadd.f32 %v10037, %v10046
    %v10111 = vadd.f32 %v10038, %v10047
    %v10112 = vadd.f32 %v10039, %v10048
    %v10113 = vadd.f32 %v10040, %v10045
    %v10114 = vadd.f32 %v10041, %v10046
    %v10115 = vadd.f32 %v10042, %v10047
    %v10116 = vadd.f32 %v10043, %v10048
    %v10117 = vmax.f32 %v10053, 0.0
    %v10118 = vmax.f32 %v10054, 0.0
    %v10119 = vmax.f32 %v10055, 0.0
    %v10120 = vmax.f32 %v10056, 0.0
    %v10121 = vmax.f32 %v10057, 0.0
    %v10122 = vmax.f32 %v10058, 0.0
    %v10123 = vmax.f32 %v10059, 0.0
    %v10124 = vmax.f32 %v10060, 0.0
    %v10125 = vmax.f32 %v10061, 0.0
    %v10126 = vmax.f32 %v10062, 0.0
    %v10127 = vmax.f32 %v10063, 0.0
    %v10128 = vmax.f32 %v10064, 0.0
    %v10129 = vmax.f32 %v10065, 0.0
    %v10130 = vmax.f32 %v10066, 0.0
    %v10131 = vmax.f32 %v10067, 0.0
    %v10132 = vmax.f32 %v10068, 0.0
    %v10133 = vmax.f32 %v10069, 0.0
    %v10134 = vmax.f32 %v10070, 0.0
    %v10135 = vmax.f32 %v10071, 0.0
    %v10136 = vmax.f32 %v10072, 0.0
    %v10137 = vmax.f32 %v10073, 0.0
    %v10138 = vmax.f32 %v10074, 0.0
    %v10139 = vmax.f32 %v10075, 0.0
    %v10140 = vmax.f32 %v10076, 0.0
    %v10141 = vmax.f32 %v10077, 0.0
    %v10142 = vmax.f32 %v10078, 0.0
    %v10143 = vmax.f32 %v10079, 0.0
    %v10144 = vmax.f32 %v10080, 0.0
    %v10145 = vmax.f32 %v10081, 0.0
    %v10146 = vmax.f32 %v10082, 0.0
    %v10147 = vmax.f32 %v10083, 0.0
    %v10148 = vmax.f32 %v10084, 0.0
    %v10149 = vmax.f32 %v10085, 0.0
    %v10150 = vmax.f32 %v10086, 0.0
    %v10151 = vmax.f32 %v10087, 0.0
    %v10152 = vmax.f32 %v10088, 0.0
    %v10153 = vmax.f32 %v10089, 0.0
    %v10154 = vmax.f32 %v10090, 0.0
    %v10155 = vmax.f32 %v10091, 0.0
    %v10156 = vmax.f32 %v10092, 0.0
    %v10157 = vmax.f32 %v10093, 0.0
    %v10158 = vmax.f32 %v10094, 0.0
    %v10159 = vmax.f32 %v10095, 0.0
    %v10160 = vmax.f32 %v10096, 0.0
    %v10161 = vmax.f32 %v10097, 0.0
    %v10162 = vmax.f32 %v10098, 0.0
    %v10163 = vmax.f32 %v10099, 0.0
    %v10164 = vmax.f32 %v10100, 0.0
    %v10165 = vmax.f32 %v10101, 0.0
    %v10166 = vmax.f32 %v10102, 0.0
    %v10167 = vmax.f32 %v10103, 0.0
    %v10168 = vmax.f32 %v10104, 0.0
    %v10169 = vmax.f32 %v10105, 0.0
    %v10170 = vmax.f32 %v10106, 0.0
    %v10171 = vmax.f32 %v10107, 0.0
    %v10172 = vmax.f32 %v10108, 0.0
    %v10173 = vmax.f32 %v10109, 0.0
    %v10174 = vmax.f32 %v10110, 0.0
    %v10175 = vmax.f32 %v10111, 0.0
    %v10176 = vmax.f32 %v10112, 0.0
    %v10177 = vmax.f32 %v10113, 0.0
    %v10178 = vmax.f32 %v10114, 0.0
    %v10179 = vmax.f32 %v10115, 0.0
    %v10180 = vmax.f32 %v10116, 0.0
    %v10181 = vpack.c.bf16 %v10121, %v10117
    %v10182 = vpack.c.bf16 %v10122, %v10118
    %v10183 = vpack.c.bf16 %v10123, %v10119
    %v10184 = vpack.c.bf16 %v10124, %v10120
    %v10185 = vpack.c.bf16 %v10129, %v10125
    %v10186 = vpack.c.bf16 %v10130, %v10126
    %v10187 = vpack.c.bf16 %v10131, %v10127
    %v10188 = vpack.c.bf16 %v10132, %v10128
    %v10189 = vpack.c.bf16 %v10137, %v10133
    %v10190 = vpack.c.bf16 %v10138, %v10134
    %v10191 = vpack.c.bf16 %v10139, %v10135
    %v10192 = vpack.c.bf16 %v10140, %v10136
    %v10193 = vpack.c.bf16 %v10145, %v10141
    %v10194 = vpack.c.bf16 %v10146, %v10142
    %v10195 = vpack.c.bf16 %v10147, %v10143
    %v10196 = vpack.c.bf16 %v10148, %v10144
    %v10197 = vpack.c.bf16 %v10153, %v10149
    %v10198 = vpack.c.bf16 %v10154, %v10150
    %v10199 = vpack.c.bf16 %v10155, %v10151
    %v10200 = vpack.c.bf16 %v10156, %v10152
    %v10201 = vpack.c.bf16 %v10161, %v10157
    %v10202 = vpack.c.bf16 %v10162, %v10158
    %v10203 = vpack.c.bf16 %v10163, %v10159
    %v10204 = vpack.c.bf16 %v10164, %v10160
    %v10205 = vpack.c.bf16 %v10169, %v10165
    %v10206 = vpack.c.bf16 %v10170, %v10166
    %v10207 = vpack.c.bf16 %v10171, %v10167
    %v10208 = vpack.c.bf16 %v10172, %v10168
    %v10209 = vpack.c.bf16 %v10177, %v10173
    %v10210 = vpack.c.bf16 %v10178, %v10174
    %v10211 = vpack.c.bf16 %v10179, %v10175
    %v10212 = vpack.c.bf16 %v10180, %v10176
    %v10277 = vunpack.c.l.b16 %v9852
    %v10278 = vunpack.c.h.b16 %v9852
    %v10279 = vunpack.c.l.b16 %v9853
    %v10280 = vunpack.c.h.b16 %v9853
    %v10281 = vunpack.c.l.b16 %v9854
    %v10282 = vunpack.c.h.b16 %v9854
    %v10283 = vunpack.c.l.b16 %v9855
    %v10284 = vunpack.c.h.b16 %v9855
    %v10285 = vunpack.c.l.b16 %v9856
    %v10286 = vunpack.c.h.b16 %v9856
    %v10287 = vunpack.c.l.b16 %v9857
    %v10288 = vunpack.c.h.b16 %v9857
    %v10289 = vunpack.c.l.b16 %v9858
    %v10290 = vunpack.c.h.b16 %v9858
    %v10291 = vunpack.c.l.b16 %v9859
    %v10292 = vunpack.c.h.b16 %v9859
    %v10293 = vunpack.c.l.b16 %v9860
    %v10294 = vunpack.c.h.b16 %v9860
    %v10295 = vunpack.c.l.b16 %v9861
    %v10296 = vunpack.c.h.b16 %v9861
    %v10297 = vunpack.c.l.b16 %v9862
    %v10298 = vunpack.c.h.b16 %v9862
    %v10299 = vunpack.c.l.b16 %v9863
    %v10300 = vunpack.c.h.b16 %v9863
    %v10301 = vunpack.c.l.b16 %v9864
    %v10302 = vunpack.c.h.b16 %v9864
    %v10303 = vunpack.c.l.b16 %v9865
    %v10304 = vunpack.c.h.b16 %v9865
    %v10305 = vunpack.c.l.b16 %v9866
    %v10306 = vunpack.c.h.b16 %v9866
    %v10307 = vunpack.c.l.b16 %v9867
    %v10308 = vunpack.c.h.b16 %v9867
    %v10309 = vunpack.c.l.b16 %v9868
    %v10310 = vunpack.c.h.b16 %v9868
    %v10311 = vunpack.c.l.b16 %v9869
    %v10312 = vunpack.c.h.b16 %v9869
    %v10313 = vunpack.c.l.b16 %v9870
    %v10314 = vunpack.c.h.b16 %v9870
    %v10315 = vunpack.c.l.b16 %v9871
    %v10316 = vunpack.c.h.b16 %v9871
    %v10317 = vunpack.c.l.b16 %v9872
    %v10318 = vunpack.c.h.b16 %v9872
    %v10319 = vunpack.c.l.b16 %v9873
    %v10320 = vunpack.c.h.b16 %v9873
    %v10321 = vunpack.c.l.b16 %v9874
    %v10322 = vunpack.c.h.b16 %v9874
    %v10323 = vunpack.c.l.b16 %v9875
    %v10324 = vunpack.c.h.b16 %v9875
    %v10325 = vunpack.c.l.b16 %v9876
    %v10326 = vunpack.c.h.b16 %v9876
    %v10327 = vunpack.c.l.b16 %v9877
    %v10328 = vunpack.c.h.b16 %v9877
    %v10329 = vunpack.c.l.b16 %v9878
    %v10330 = vunpack.c.h.b16 %v9878
    %v10331 = vunpack.c.l.b16 %v9879
    %v10332 = vunpack.c.h.b16 %v9879
    %v10333 = vunpack.c.l.b16 %v9880
    %v10334 = vunpack.c.h.b16 %v9880
    %v10335 = vunpack.c.l.b16 %v9881
    %v10336 = vunpack.c.h.b16 %v9881
    %v10337 = vunpack.c.l.b16 %v9882
    %v10338 = vunpack.c.h.b16 %v9882
    %v10339 = vunpack.c.l.b16 %v9883
    %v10340 = vunpack.c.h.b16 %v9883
    %v10341 = vunpack.c.l.b16 %v9884
    %v10342 = vunpack.c.h.b16 %v9884
    %v10343 = vunpack.c.l.b16 %v9885
    %v10344 = vunpack.c.h.b16 %v9885
    %v10345 = vunpack.c.l.b16 %v9886
    %v10346 = vunpack.c.h.b16 %v9886
    %v10347 = vunpack.c.l.b16 %v9887
    %v10348 = vunpack.c.h.b16 %v9887
    %v10349 = vunpack.c.l.b16 %v9888
    %v10350 = vunpack.c.h.b16 %v9888
    %v10351 = vunpack.c.l.b16 %v9889
    %v10352 = vunpack.c.h.b16 %v9889
    %v10353 = vunpack.c.l.b16 %v9890
    %v10354 = vunpack.c.h.b16 %v9890
    %v10355 = vunpack.c.l.b16 %v9891
    %v10356 = vunpack.c.h.b16 %v9891
    %v10357 = vunpack.c.l.b16 %v9892
    %v10358 = vunpack.c.h.b16 %v9892
    %v10359 = vunpack.c.l.b16 %v9893
    %v10360 = vunpack.c.h.b16 %v9893
    %v10361 = vunpack.c.l.b16 %v9894
    %v10362 = vunpack.c.h.b16 %v9894
    %v10363 = vunpack.c.l.b16 %v9895
    %v10364 = vunpack.c.h.b16 %v9895
    %v10365 = vunpack.c.l.b16 %v9896
    %v10366 = vunpack.c.h.b16 %v9896
    %v10367 = vunpack.c.l.b16 %v9897
    %v10368 = vunpack.c.h.b16 %v9897
    %v10369 = vunpack.c.l.b16 %v9898
    %v10370 = vunpack.c.h.b16 %v9898
    %v10371 = vunpack.c.l.b16 %v9899
    %v10372 = vunpack.c.h.b16 %v9899
    %v10373 = vunpack.c.l.b16 %v9900
    %v10374 = vunpack.c.h.b16 %v9900
    %v10375 = vunpack.c.l.b16 %v9901
    %v10376 = vunpack.c.h.b16 %v9901
    %v10377 = vunpack.c.l.b16 %v9902
    %v10378 = vunpack.c.h.b16 %v9902
    %v10379 = vunpack.c.l.b16 %v9903
    %v10380 = vunpack.c.h.b16 %v9903
    %v10381 = vunpack.c.l.b16 %v9904
    %v10382 = vunpack.c.h.b16 %v9904
    %v10383 = vunpack.c.l.b16 %v9905
    %v10384 = vunpack.c.h.b16 %v9905
    %v10385 = vunpack.c.l.b16 %v9906
    %v10386 = vunpack.c.h.b16 %v9906
    %v10387 = vunpack.c.l.b16 %v9907
    %v10388 = vunpack.c.h.b16 %v9907
    %v10389 = vunpack.c.l.b16 %v9908
    %v10390 = vunpack.c.h.b16 %v9908
    %v10391 = vunpack.c.l.b16 %v9909
    %v10392 = vunpack.c.h.b16 %v9909
    %v10393 = vunpack.c.l.b16 %v9910
    %v10394 = vunpack.c.h.b16 %v9910
    %v10395 = vunpack.c.l.b16 %v9911
    %v10396 = vunpack.c.h.b16 %v9911
    %v10397 = vunpack.c.l.b16 %v9912
    %v10398 = vunpack.c.h.b16 %v9912
    %v10399 = vunpack.c.l.b16 %v9913
    %v10400 = vunpack.c.h.b16 %v9913
    %v10401 = vunpack.c.l.b16 %v9914
    %v10402 = vunpack.c.h.b16 %v9914
    %v10403 = vunpack.c.l.b16 %v9915
    %v10404 = vunpack.c.h.b16 %v9915
    %v10405 = vpack.c.b16 %v10279, %v10277
    %v10406 = vpack.c.b16 %v10280, %v10278
    %v10407 = vpack.c.b16 %v10283, %v10281
    %v10408 = vpack.c.b16 %v10284, %v10282
    %v10409 = vpack.c.b16 %v10287, %v10285
    %v10410 = vpack.c.b16 %v10288, %v10286
    %v10411 = vpack.c.b16 %v10291, %v10289
    %v10412 = vpack.c.b16 %v10292, %v10290
    %v10413 = vpack.c.b16 %v10295, %v10293
    %v10414 = vpack.c.b16 %v10296, %v10294
    %v10415 = vpack.c.b16 %v10299, %v10297
    %v10416 = vpack.c.b16 %v10300, %v10298
    %v10417 = vpack.c.b16 %v10303, %v10301
    %v10418 = vpack.c.b16 %v10304, %v10302
    %v10419 = vpack.c.b16 %v10307, %v10305
    %v10420 = vpack.c.b16 %v10308, %v10306
    %v10421 = vpack.c.b16 %v10311, %v10309
    %v10422 = vpack.c.b16 %v10312, %v10310
    %v10423 = vpack.c.b16 %v10315, %v10313
    %v10424 = vpack.c.b16 %v10316, %v10314
    %v10425 = vpack.c.b16 %v10319, %v10317
    %v10426 = vpack.c.b16 %v10320, %v10318
    %v10427 = vpack.c.b16 %v10323, %v10321
    %v10428 = vpack.c.b16 %v10324, %v10322
    %v10429 = vpack.c.b16 %v10327, %v10325
    %v10430 = vpack.c.b16 %v10328, %v10326
    %v10431 = vpack.c.b16 %v10331, %v10329
    %v10432 = vpack.c.b16 %v10332, %v10330
    %v10433 = vpack.c.b16 %v10335, %v10333
    %v10434 = vpack.c.b16 %v10336, %v10334
    %v10435 = vpack.c.b16 %v10339, %v10337
    %v10436 = vpack.c.b16 %v10340, %v10338
    %v10437 = vpack.c.b16 %v10343, %v10341
    %v10438 = vpack.c.b16 %v10344, %v10342
    %v10439 = vpack.c.b16 %v10347, %v10345
    %v10440 = vpack.c.b16 %v10348, %v10346
    %v10441 = vpack.c.b16 %v10351, %v10349
    %v10442 = vpack.c.b16 %v10352, %v10350
    %v10443 = vpack.c.b16 %v10355, %v10353
    %v10444 = vpack.c.b16 %v10356, %v10354
    %v10445 = vpack.c.b16 %v10359, %v10357
    %v10446 = vpack.c.b16 %v10360, %v10358
    %v10447 = vpack.c.b16 %v10363, %v10361
    %v10448 = vpack.c.b16 %v10364, %v10362
    %v10449 = vpack.c.b16 %v10367, %v10365
    %v10450 = vpack.c.b16 %v10368, %v10366
    %v10451 = vpack.c.b16 %v10371, %v10369
    %v10452 = vpack.c.b16 %v10372, %v10370
    %v10453 = vpack.c.b16 %v10375, %v10373
    %v10454 = vpack.c.b16 %v10376, %v10374
    %v10455 = vpack.c.b16 %v10379, %v10377
    %v10456 = vpack.c.b16 %v10380, %v10378
    %v10457 = vpack.c.b16 %v10383, %v10381
    %v10458 = vpack.c.b16 %v10384, %v10382
    %v10459 = vpack.c.b16 %v10387, %v10385
    %v10460 = vpack.c.b16 %v10388, %v10386
    %v10461 = vpack.c.b16 %v10391, %v10389
    %v10462 = vpack.c.b16 %v10392, %v10390
    %v10463 = vpack.c.b16 %v10395, %v10393
    %v10464 = vpack.c.b16 %v10396, %v10394
    %v10465 = vpack.c.b16 %v10399, %v10397
    %v10466 = vpack.c.b16 %v10400, %v10398
    %v10467 = vpack.c.b16 %v10403, %v10401
    %v10468 = vpack.c.b16 %v10404, %v10402
    %10533 = vmatpush.bf16.msra.mxu0 %v10419
    %10534 = vmatpush.bf16.msra.mxu0 %v10417
    %10535 = vmatpush.bf16.msra.mxu0 %v10415
    %10536 = vmatpush.bf16.msra.mxu0 %v10413
    %10537 = vmatpush.bf16.msra.mxu0 %v10411
    %10538 = vmatpush.bf16.msra.mxu0 %v10409
    %10539 = vmatpush.bf16.msra.mxu0 %v10407
    %10540 = vmatpush.bf16.msra.mxu0 %v10405
    %10541 = vmatmul.bf16.gmra.mxu0 %v10181
    %v10542 = vpop.f32.mrf.mxu0
    %v10543 = vadd.f32 0.0, %v10542
    %v10544 = vpop.f32.mrf.mxu0
    %v10545 = vadd.f32 0.0, %v10544
    %10546 = vmatmul.bf16.gmra.mxu0 %v10185
    %v10547 = vpop.f32.mrf.mxu0
    %v10548 = vadd.f32 0.0, %v10547
    %v10549 = vpop.f32.mrf.mxu0
    %v10550 = vadd.f32 0.0, %v10549
    %10551 = vmatmul.bf16.gmra.mxu0 %v10189
    %v10552 = vpop.f32.mrf.mxu0
    %v10553 = vadd.f32 0.0, %v10552
    %v10554 = vpop.f32.mrf.mxu0
    %v10555 = vadd.f32 0.0, %v10554
    %10556 = vmatmul.bf16.gmra.mxu0 %v10193
    %v10557 = vpop.f32.mrf.mxu0
    %v10558 = vadd.f32 0.0, %v10557
    %v10559 = vpop.f32.mrf.mxu0
    %v10560 = vadd.f32 0.0, %v10559
    %10561 = vmatmul.bf16.gmra.mxu0 %v10197
    %v10562 = vpop.f32.mrf.mxu0
    %v10563 = vadd.f32 0.0, %v10562
    %v10564 = vpop.f32.mrf.mxu0
    %v10565 = vadd.f32 0.0, %v10564
    %10566 = vmatmul.bf16.gmra.mxu0 %v10201
    %v10567 = vpop.f32.mrf.mxu0
    %v10568 = vadd.f32 0.0, %v10567
    %v10569 = vpop.f32.mrf.mxu0
    %v10570 = vadd.f32 0.0, %v10569
    %10571 = vmatmul.bf16.gmra.mxu0 %v10205
    %v10572 = vpop.f32.mrf.mxu0
    %v10573 = vadd.f32 0.0, %v10572
    %v10574 = vpop.f32.mrf.mxu0
    %v10575 = vadd.f32 0.0, %v10574
    %10576 = vmatmul.bf16.gmra.mxu0 %v10209
    %v10577 = vpop.f32.mrf.mxu0
    %v10578 = vadd.f32 0.0, %v10577
    %v10579 = vpop.f32.mrf.mxu0
    %v10580 = vadd.f32 0.0, %v10579
    %10581 = vdwg.mxu0
    %10582 = vmatpush.bf16.msra.mxu0 %v10435
    %10583 = vmatpush.bf16.msra.mxu0 %v10433
    %10584 = vmatpush.bf16.msra.mxu0 %v10431
    %10585 = vmatpush.bf16.msra.mxu0 %v10429
    %10586 = vmatpush.bf16.msra.mxu0 %v10427
    %10587 = vmatpush.bf16.msra.mxu0 %v10425
    %10588 = vmatpush.bf16.msra.mxu0 %v10423
    %10589 = vmatpush.bf16.msra.mxu0 %v10421
    %10590 = vmatmul.bf16.gmra.mxu0 %v10182
    %v10591 = vpop.f32.mrf.mxu0
    %v10592 = vadd.f32 %v10543, %v10591
    %v10593 = vpop.f32.mrf.mxu0
    %v10594 = vadd.f32 %v10545, %v10593
    %10595 = vmatmul.bf16.gmra.mxu0 %v10186
    %v10596 = vpop.f32.mrf.mxu0
    %v10597 = vadd.f32 %v10548, %v10596
    %v10598 = vpop.f32.mrf.mxu0
    %v10599 = vadd.f32 %v10550, %v10598
    %10600 = vmatmul.bf16.gmra.mxu0 %v10190
    %v10601 = vpop.f32.mrf.mxu0
    %v10602 = vadd.f32 %v10553, %v10601
    %v10603 = vpop.f32.mrf.mxu0
    %v10604 = vadd.f32 %v10555, %v10603
    %10605 = vmatmul.bf16.gmra.mxu0 %v10194
    %v10606 = vpop.f32.mrf.mxu0
    %v10607 = vadd.f32 %v10558, %v10606
    %v10608 = vpop.f32.mrf.mxu0
    %v10609 = vadd.f32 %v10560, %v10608
    %10610 = vmatmul.bf16.gmra.mxu0 %v10198
    %v10611 = vpop.f32.mrf.mxu0
    %v10612 = vadd.f32 %v10563, %v10611
    %v10613 = vpop.f32.mrf.mxu0
    %v10614 = vadd.f32 %v10565, %v10613
    %10615 = vmatmul.bf16.gmra.mxu0 %v10202
    %v10616 = vpop.f32.mrf.mxu0
    %v10617 = vadd.f32 %v10568, %v10616
    %v10618 = vpop.f32.mrf.mxu0
    %v10619 = vadd.f32 %v10570, %v10618
    %10620 = vmatmul.bf16.gmra.mxu0 %v10206
    %v10621 = vpop.f32.mrf.mxu0
    %v10622 = vadd.f32 %v10573, %v10621
    %v10623 = vpop.f32.mrf.mxu0
    %v10624 = vadd.f32 %v10575, %v10623
    %10625 = vmatmul.bf16.gmra.mxu0 %v10210
    %v10626 = vpop.f32.mrf.mxu0
    %v10627 = vadd.f32 %v10578, %v10626
    %v10628 = vpop.f32.mrf.mxu0
    %v10629 = vadd.f32 %v10580, %v10628
    %10630 = vdwg.mxu0
    %10631 = vmatpush.bf16.msra.mxu0 %v10451
    %10632 = vmatpush.bf16.msra.mxu0 %v10449
    %10633 = vmatpush.bf16.msra.mxu0 %v10447
    %10634 = vmatpush.bf16.msra.mxu0 %v10445
    %10635 = vmatpush.bf16.msra.mxu0 %v10443
    %10636 = vmatpush.bf16.msra.mxu0 %v10441
    %10637 = vmatpush.bf16.msra.mxu0 %v10439
    %10638 = vmatpush.bf16.msra.mxu0 %v10437
    %10639 = vmatmul.bf16.gmra.mxu0 %v10183
    %v10640 = vpop.f32.mrf.mxu0
    %v10641 = vadd.f32 %v10592, %v10640
    %v10642 = vpop.f32.mrf.mxu0
    %v10643 = vadd.f32 %v10594, %v10642
    %10644 = vmatmul.bf16.gmra.mxu0 %v10187
    %v10645 = vpop.f32.mrf.mxu0
    %v10646 = vadd.f32 %v10597, %v10645
    %v10647 = vpop.f32.mrf.mxu0
    %v10648 = vadd.f32 %v10599, %v10647
    %10649 = vmatmul.bf16.gmra.mxu0 %v10191
    %v10650 = vpop.f32.mrf.mxu0
    %v10651 = vadd.f32 %v10602, %v10650
    %v10652 = vpop.f32.mrf.mxu0
    %v10653 = vadd.f32 %v10604, %v10652
    %10654 = vmatmul.bf16.gmra.mxu0 %v10195
    %v10655 = vpop.f32.mrf.mxu0
    %v10656 = vadd.f32 %v10607, %v10655
    %v10657 = vpop.f32.mrf.mxu0
    %v10658 = vadd.f32 %v10609, %v10657
    %10659 = vmatmul.bf16.gmra.mxu0 %v10199
    %v10660 = vpop.f32.mrf.mxu0
    %v10661 = vadd.f32 %v10612, %v10660
    %v10662 = vpop.f32.mrf.mxu0
    %v10663 = vadd.f32 %v10614, %v10662
    %10664 = vmatmul.bf16.gmra.mxu0 %v10203
    %v10665 = vpop.f32.mrf.mxu0
    %v10666 = vadd.f32 %v10617, %v10665
    %v10667 = vpop.f32.mrf.mxu0
    %v10668 = vadd.f32 %v10619, %v10667
    %10669 = vmatmul.bf16.gmra.mxu0 %v10207
    %v10670 = vpop.f32.mrf.mxu0
    %v10671 = vadd.f32 %v10622, %v10670
    %v10672 = vpop.f32.mrf.mxu0
    %v10673 = vadd.f32 %v10624, %v10672
    %10674 = vmatmul.bf16.gmra.mxu0 %v10211
    %v10675 = vpop.f32.mrf.mxu0
    %v10676 = vadd.f32 %v10627, %v10675
    %v10677 = vpop.f32.mrf.mxu0
    %v10678 = vadd.f32 %v10629, %v10677
    %10679 = vdwg.mxu0
    %10680 = vmatpush.bf16.msra.mxu0 %v10467
    %10681 = vmatpush.bf16.msra.mxu0 %v10465
    %10682 = vmatpush.bf16.msra.mxu0 %v10463
    %10683 = vmatpush.bf16.msra.mxu0 %v10461
    %10684 = vmatpush.bf16.msra.mxu0 %v10459
    %10685 = vmatpush.bf16.msra.mxu0 %v10457
    %10686 = vmatpush.bf16.msra.mxu0 %v10455
    %10687 = vmatpush.bf16.msra.mxu0 %v10453
    %10688 = vmatmul.bf16.gmra.mxu0 %v10184
    %v10689 = vpop.f32.mrf.mxu0
    %v10690 = vadd.f32 %v10641, %v10689
    %v10691 = vpop.f32.mrf.mxu0
    %v10692 = vadd.f32 %v10643, %v10691
    %10693 = vmatmul.bf16.gmra.mxu0 %v10188
    %v10694 = vpop.f32.mrf.mxu0
    %v10695 = vadd.f32 %v10646, %v10694
    %v10696 = vpop.f32.mrf.mxu0
    %v10697 = vadd.f32 %v10648, %v10696
    %10698 = vmatmul.bf16.gmra.mxu0 %v10192
    %v10699 = vpop.f32.mrf.mxu0
    %v10700 = vadd.f32 %v10651, %v10699
    %v10701 = vpop.f32.mrf.mxu0
    %v10702 = vadd.f32 %v10653, %v10701
    %10703 = vmatmul.bf16.gmra.mxu0 %v10196
    %v10704 = vpop.f32.mrf.mxu0
    %v10705 = vadd.f32 %v10656, %v10704
    %v10706 = vpop.f32.mrf.mxu0
    %v10707 = vadd.f32 %v10658, %v10706
    %10708 = vmatmul.bf16.gmra.mxu0 %v10200
    %v10709 = vpop.f32.mrf.mxu0
    %v10710 = vadd.f32 %v10661, %v10709
    %v10711 = vpop.f32.mrf.mxu0
    %v10712 = vadd.f32 %v10663, %v10711
    %10713 = vmatmul.bf16.gmra.mxu0 %v10204
    %v10714 = vpop.f32.mrf.mxu0
    %v10715 = vadd.f32 %v10666, %v10714
    %v10716 = vpop.f32.mrf.mxu0
    %v10717 = vadd.f32 %v10668, %v10716
    %10718 = vmatmul.bf16.gmra.mxu0 %v10208
    %v10719 = vpop.f32.mrf.mxu0
    %v10720 = vadd.f32 %v10671, %v10719
    %v10721 = vpop.f32.mrf.mxu0
    %v10722 = vadd.f32 %v10673, %v10721
    %10723 = vmatmul.bf16.gmra.mxu0 %v10212
    %v10724 = vpop.f32.mrf.mxu0
    %v10725 = vadd.f32 %v10676, %v10724
    %v10726 = vpop.f32.mrf.mxu0
    %v10727 = vadd.f32 %v10678, %v10726
    %10728 = vdwg.mxu0
    %10729 = vmatpush.bf16.msra.mxu0 %v10420
    %10730 = vmatpush.bf16.msra.mxu0 %v10418
    %10731 = vmatpush.bf16.msra.mxu0 %v10416
    %10732 = vmatpush.bf16.msra.mxu0 %v10414
    %10733 = vmatpush.bf16.msra.mxu0 %v10412
    %10734 = vmatpush.bf16.msra.mxu0 %v10410
    %10735 = vmatpush.bf16.msra.mxu0 %v10408
    %10736 = vmatpush.bf16.msra.mxu0 %v10406
    %10737 = vmatmul.bf16.gmra.mxu0 %v10181
    %v10738 = vpop.f32.mrf.mxu0
    %v10739 = vadd.f32 0.0, %v10738
    %v10740 = vpop.f32.mrf.mxu0
    %v10741 = vadd.f32 0.0, %v10740
    %10742 = vmatmul.bf16.gmra.mxu0 %v10185
    %v10743 = vpop.f32.mrf.mxu0
    %v10744 = vadd.f32 0.0, %v10743
    %v10745 = vpop.f32.mrf.mxu0
    %v10746 = vadd.f32 0.0, %v10745
    %10747 = vmatmul.bf16.gmra.mxu0 %v10189
    %v10748 = vpop.f32.mrf.mxu0
    %v10749 = vadd.f32 0.0, %v10748
    %v10750 = vpop.f32.mrf.mxu0
    %v10751 = vadd.f32 0.0, %v10750
    %10752 = vmatmul.bf16.gmra.mxu0 %v10193
    %v10753 = vpop.f32.mrf.mxu0
    %v10754 = vadd.f32 0.0, %v10753
    %v10755 = vpop.f32.mrf.mxu0
    %v10756 = vadd.f32 0.0, %v10755
    %10757 = vmatmul.bf16.gmra.mxu0 %v10197
    %v10758 = vpop.f32.mrf.mxu0
    %v10759 = vadd.f32 0.0, %v10758
    %v10760 = vpop.f32.mrf.mxu0
    %v10761 = vadd.f32 0.0, %v10760
    %10762 = vmatmul.bf16.gmra.mxu0 %v10201
    %v10763 = vpop.f32.mrf.mxu0
    %v10764 = vadd.f32 0.0, %v10763
    %v10765 = vpop.f32.mrf.mxu0
    %v10766 = vadd.f32 0.0, %v10765
    %10767 = vmatmul.bf16.gmra.mxu0 %v10205
    %v10768 = vpop.f32.mrf.mxu0
    %v10769 = vadd.f32 0.0, %v10768
    %v10770 = vpop.f32.mrf.mxu0
    %v10771 = vadd.f32 0.0, %v10770
    %10772 = vmatmul.bf16.gmra.mxu0 %v10209
    %v10773 = vpop.f32.mrf.mxu0
    %v10774 = vadd.f32 0.0, %v10773
    %v10775 = vpop.f32.mrf.mxu0
    %v10776 = vadd.f32 0.0, %v10775
    %10777 = vdwg.mxu0
    %10778 = vmatpush.bf16.msra.mxu0 %v10436
    %10779 = vmatpush.bf16.msra.mxu0 %v10434
    %10780 = vmatpush.bf16.msra.mxu0 %v10432
    %10781 = vmatpush.bf16.msra.mxu0 %v10430
    %10782 = vmatpush.bf16.msra.mxu0 %v10428
    %10783 = vmatpush.bf16.msra.mxu0 %v10426
    %10784 = vmatpush.bf16.msra.mxu0 %v10424
    %10785 = vmatpush.bf16.msra.mxu0 %v10422
    %10786 = vmatmul.bf16.gmra.mxu0 %v10182
    %v10787 = vpop.f32.mrf.mxu0
    %v10788 = vadd.f32 %v10739, %v10787
    %v10789 = vpop.f32.mrf.mxu0
    %v10790 = vadd.f32 %v10741, %v10789
    %10791 = vmatmul.bf16.gmra.mxu0 %v10186
    %v10792 = vpop.f32.mrf.mxu0
    %v10793 = vadd.f32 %v10744, %v10792
    %v10794 = vpop.f32.mrf.mxu0
    %v10795 = vadd.f32 %v10746, %v10794
    %10796 = vmatmul.bf16.gmra.mxu0 %v10190
    %v10797 = vpop.f32.mrf.mxu0
    %v10798 = vadd.f32 %v10749, %v10797
    %v10799 = vpop.f32.mrf.mxu0
    %v10800 = vadd.f32 %v10751, %v10799
    %10801 = vmatmul.bf16.gmra.mxu0 %v10194
    %v10802 = vpop.f32.mrf.mxu0
    %v10803 = vadd.f32 %v10754, %v10802
    %v10804 = vpop.f32.mrf.mxu0
    %v10805 = vadd.f32 %v10756, %v10804
    %10806 = vmatmul.bf16.gmra.mxu0 %v10198
    %v10807 = vpop.f32.mrf.mxu0
    %v10808 = vadd.f32 %v10759, %v10807
    %v10809 = vpop.f32.mrf.mxu0
    %v10810 = vadd.f32 %v10761, %v10809
    %10811 = vmatmul.bf16.gmra.mxu0 %v10202
    %v10812 = vpop.f32.mrf.mxu0
    %v10813 = vadd.f32 %v10764, %v10812
    %v10814 = vpop.f32.mrf.mxu0
    %v10815 = vadd.f32 %v10766, %v10814
    %10816 = vmatmul.bf16.gmra.mxu0 %v10206
    %v10817 = vpop.f32.mrf.mxu0
    %v10818 = vadd.f32 %v10769, %v10817
    %v10819 = vpop.f32.mrf.mxu0
    %v10820 = vadd.f32 %v10771, %v10819
    %10821 = vmatmul.bf16.gmra.mxu0 %v10210
    %v10822 = vpop.f32.mrf.mxu0
    %v10823 = vadd.f32 %v10774, %v10822
    %v10824 = vpop.f32.mrf.mxu0
    %v10825 = vadd.f32 %v10776, %v10824
    %10826 = vdwg.mxu0
    %10827 = vmatpush.bf16.msra.mxu0 %v10452
    %10828 = vmatpush.bf16.msra.mxu0 %v10450
    %10829 = vmatpush.bf16.msra.mxu0 %v10448
    %10830 = vmatpush.bf16.msra.mxu0 %v10446
    %10831 = vmatpush.bf16.msra.mxu0 %v10444
    %10832 = vmatpush.bf16.msra.mxu0 %v10442
    %10833 = vmatpush.bf16.msra.mxu0 %v10440
    %10834 = vmatpush.bf16.msra.mxu0 %v10438
    %10835 = vmatmul.bf16.gmra.mxu0 %v10183
    %v10836 = vpop.f32.mrf.mxu0
    %v10837 = vadd.f32 %v10788, %v10836
    %v10838 = vpop.f32.mrf.mxu0
    %v10839 = vadd.f32 %v10790, %v10838
    %10840 = vmatmul.bf16.gmra.mxu0 %v10187
    %v10841 = vpop.f32.mrf.mxu0
    %v10842 = vadd.f32 %v10793, %v10841
    %v10843 = vpop.f32.mrf.mxu0
    %v10844 = vadd.f32 %v10795, %v10843
    %10845 = vmatmul.bf16.gmra.mxu0 %v10191
    %v10846 = vpop.f32.mrf.mxu0
    %v10847 = vadd.f32 %v10798, %v10846
    %v10848 = vpop.f32.mrf.mxu0
    %v10849 = vadd.f32 %v10800, %v10848
    %10850 = vmatmul.bf16.gmra.mxu0 %v10195
    %v10851 = vpop.f32.mrf.mxu0
    %v10852 = vadd.f32 %v10803, %v10851
    %v10853 = vpop.f32.mrf.mxu0
    %v10854 = vadd.f32 %v10805, %v10853
    %10855 = vmatmul.bf16.gmra.mxu0 %v10199
    %v10856 = vpop.f32.mrf.mxu0
    %v10857 = vadd.f32 %v10808, %v10856
    %v10858 = vpop.f32.mrf.mxu0
    %v10859 = vadd.f32 %v10810, %v10858
    %10860 = vmatmul.bf16.gmra.mxu0 %v10203
    %v10861 = vpop.f32.mrf.mxu0
    %v10862 = vadd.f32 %v10813, %v10861
    %v10863 = vpop.f32.mrf.mxu0
    %v10864 = vadd.f32 %v10815, %v10863
    %10865 = vmatmul.bf16.gmra.mxu0 %v10207
    %v10866 = vpop.f32.mrf.mxu0
    %v10867 = vadd.f32 %v10818, %v10866
    %v10868 = vpop.f32.mrf.mxu0
    %v10869 = vadd.f32 %v10820, %v10868
    %10870 = vmatmul.bf16.gmra.mxu0 %v10211
    %v10871 = vpop.f32.mrf.mxu0
    %v10872 = vadd.f32 %v10823, %v10871
    %v10873 = vpop.f32.mrf.mxu0
    %v10874 = vadd.f32 %v10825, %v10873
    %10875 = vdwg.mxu0
    %10876 = vmatpush.bf16.msra.mxu0 %v10468
    %10877 = vmatpush.bf16.msra.mxu0 %v10466
    %10878 = vmatpush.bf16.msra.mxu0 %v10464
    %10879 = vmatpush.bf16.msra.mxu0 %v10462
    %10880 = vmatpush.bf16.msra.mxu0 %v10460
    %10881 = vmatpush.bf16.msra.mxu0 %v10458
    %10882 = vmatpush.bf16.msra.mxu0 %v10456
    %10883 = vmatpush.bf16.msra.mxu0 %v10454
    %10884 = vmatmul.bf16.gmra.mxu0 %v10184
    %v10885 = vpop.f32.mrf.mxu0
    %v10886 = vadd.f32 %v10837, %v10885
    %v10887 = vpop.f32.mrf.mxu0
    %v10888 = vadd.f32 %v10839, %v10887
    %10889 = vmatmul.bf16.gmra.mxu0 %v10188
    %v10890 = vpop.f32.mrf.mxu0
    %v10891 = vadd.f32 %v10842, %v10890
    %v10892 = vpop.f32.mrf.mxu0
    %v10893 = vadd.f32 %v10844, %v10892
    %10894 = vmatmul.bf16.gmra.mxu0 %v10192
    %v10895 = vpop.f32.mrf.mxu0
    %v10896 = vadd.f32 %v10847, %v10895
    %v10897 = vpop.f32.mrf.mxu0
    %v10898 = vadd.f32 %v10849, %v10897
    %10899 = vmatmul.bf16.gmra.mxu0 %v10196
    %v10900 = vpop.f32.mrf.mxu0
    %v10901 = vadd.f32 %v10852, %v10900
    %v10902 = vpop.f32.mrf.mxu0
    %v10903 = vadd.f32 %v10854, %v10902
    %10904 = vmatmul.bf16.gmra.mxu0 %v10200
    %v10905 = vpop.f32.mrf.mxu0
    %v10906 = vadd.f32 %v10857, %v10905
    %v10907 = vpop.f32.mrf.mxu0
    %v10908 = vadd.f32 %v10859, %v10907
    %10909 = vmatmul.bf16.gmra.mxu0 %v10204
    %v10910 = vpop.f32.mrf.mxu0
    %v10911 = vadd.f32 %v10862, %v10910
    %v10912 = vpop.f32.mrf.mxu0
    %v10913 = vadd.f32 %v10864, %v10912
    %10914 = vmatmul.bf16.gmra.mxu0 %v10208
    %v10915 = vpop.f32.mrf.mxu0
    %v10916 = vadd.f32 %v10867, %v10915
    %v10917 = vpop.f32.mrf.mxu0
    %v10918 = vadd.f32 %v10869, %v10917
    %10919 = vmatmul.bf16.gmra.mxu0 %v10212
    %v10920 = vpop.f32.mrf.mxu0
    %v10921 = vadd.f32 %v10872, %v10920
    %v10922 = vpop.f32.mrf.mxu0
    %v10923 = vadd.f32 %v10874, %v10922
    %10924 = vdwg.mxu0
    %v10925 = vadd.f32 %v10690, %v10692
    %v10926 = vadd.f32 %v10925, %v10695
    %v10927 = vadd.f32 %v10926, %v10697
    %v10928 = vadd.f32 %v10927, %v10700
    %v10929 = vadd.f32 %v10928, %v10702
    %v10930 = vadd.f32 %v10929, %v10705
    %v10931 = vadd.f32 %v10930, %v10707
    %v10932 = vadd.f32 %v10931, %v10710
    %v10933 = vadd.f32 %v10932, %v10712
    %v10934 = vadd.f32 %v10933, %v10715
    %v10935 = vadd.f32 %v10934, %v10717
    %v10936 = vadd.f32 %v10935, %v10720
    %v10937 = vadd.f32 %v10936, %v10722
    %v10938 = vadd.f32 %v10937, %v10725
    %v10939 = vadd.f32 %v10938, %v10727
    %v10940 = vrot.slane %v10939, 4
    %v10941 = vadd.f32 %v10939, %v10940
    %v10942 = vrot.slane %v10941, 2
    %v10943 = vadd.f32 %v10941, %v10942
    %v10944 = vrot.slane %v10943, 1
    %v10945 = vadd.f32 %v10943, %v10944
    %v10946 = vadd.f32 %v10886, %v10888
    %v10947 = vadd.f32 %v10946, %v10891
    %v10948 = vadd.f32 %v10947, %v10893
    %v10949 = vadd.f32 %v10948, %v10896
    %v10950 = vadd.f32 %v10949, %v10898
    %v10951 = vadd.f32 %v10950, %v10901
    %v10952 = vadd.f32 %v10951, %v10903
    %v10953 = vadd.f32 %v10952, %v10906
    %v10954 = vadd.f32 %v10953, %v10908
    %v10955 = vadd.f32 %v10954, %v10911
    %v10956 = vadd.f32 %v10955, %v10913
    %v10957 = vadd.f32 %v10956, %v10916
    %v10958 = vadd.f32 %v10957, %v10918
    %v10959 = vadd.f32 %v10958, %v10921
    %v10960 = vadd.f32 %v10959, %v10923
    %v10961 = vrot.slane %v10960, 4
    %v10962 = vadd.f32 %v10960, %v10961
    %v10963 = vrot.slane %v10962, 2
    %v10964 = vadd.f32 %v10962, %v10963
    %v10965 = vrot.slane %v10964, 1
    %v10966 = vadd.f32 %v10964, %v10965
    %v10967 = vmul.f32 %v10690, %v10690
    %v10968 = vmul.f32 %v10886, %v10886
    %v10969 = vmul.f32 %v10692, %v10692
    %v10970 = vmul.f32 %v10888, %v10888
    %v10971 = vmul.f32 %v10695, %v10695
    %v10972 = vmul.f32 %v10891, %v10891
    %v10973 = vmul.f32 %v10697, %v10697
    %v10974 = vmul.f32 %v10893, %v10893
    %v10975 = vmul.f32 %v10700, %v10700
    %v10976 = vmul.f32 %v10896, %v10896
    %v10977 = vmul.f32 %v10702, %v10702
    %v10978 = vmul.f32 %v10898, %v10898
    %v10979 = vmul.f32 %v10705, %v10705
    %v10980 = vmul.f32 %v10901, %v10901
    %v10981 = vmul.f32 %v10707, %v10707
    %v10982 = vmul.f32 %v10903, %v10903
    %v10983 = vmul.f32 %v10710, %v10710
    %v10984 = vmul.f32 %v10906, %v10906
    %v10985 = vmul.f32 %v10712, %v10712
    %v10986 = vmul.f32 %v10908, %v10908
    %v10987 = vmul.f32 %v10715, %v10715
    %v10988 = vmul.f32 %v10911, %v10911
    %v10989 = vmul.f32 %v10717, %v10717
    %v10990 = vmul.f32 %v10913, %v10913
    %v10991 = vmul.f32 %v10720, %v10720
    %v10992 = vmul.f32 %v10916, %v10916
    %v10993 = vmul.f32 %v10722, %v10722
    %v10994 = vmul.f32 %v10918, %v10918
    %v10995 = vmul.f32 %v10725, %v10725
    %v10996 = vmul.f32 %v10921, %v10921
    %v10997 = vmul.f32 %v10727, %v10727
    %v10998 = vmul.f32 %v10923, %v10923
    %v10999 = vadd.f32 %v10967, %v10969
    %v11000 = vadd.f32 %v10999, %v10971
    %v11001 = vadd.f32 %v11000, %v10973
    %v11002 = vadd.f32 %v11001, %v10975
    %v11003 = vadd.f32 %v11002, %v10977
    %v11004 = vadd.f32 %v11003, %v10979
    %v11005 = vadd.f32 %v11004, %v10981
    %v11006 = vadd.f32 %v11005, %v10983
    %v11007 = vadd.f32 %v11006, %v10985
    %v11008 = vadd.f32 %v11007, %v10987
    %v11009 = vadd.f32 %v11008, %v10989
    %v11010 = vadd.f32 %v11009, %v10991
    %v11011 = vadd.f32 %v11010, %v10993
    %v11012 = vadd.f32 %v11011, %v10995
    %v11013 = vadd.f32 %v11012, %v10997
    %v11014 = vrot.slane %v11013, 4
    %v11015 = vadd.f32 %v11013, %v11014
    %v11016 = vrot.slane %v11015, 2
    %v11017 = vadd.f32 %v11015, %v11016
    %v11018 = vrot.slane %v11017, 1
    %v11019 = vadd.f32 %v11017, %v11018
    %v11020 = vadd.f32 %v10968, %v10970
    %v11021 = vadd.f32 %v11020, %v10972
    %v11022 = vadd.f32 %v11021, %v10974
    %v11023 = vadd.f32 %v11022, %v10976
    %v11024 = vadd.f32 %v11023, %v10978
    %v11025 = vadd.f32 %v11024, %v10980
    %v11026 = vadd.f32 %v11025, %v10982
    %v11027 = vadd.f32 %v11026, %v10984
    %v11028 = vadd.f32 %v11027, %v10986
    %v11029 = vadd.f32 %v11028, %v10988
    %v11030 = vadd.f32 %v11029, %v10990
    %v11031 = vadd.f32 %v11030, %v10992
    %v11032 = vadd.f32 %v11031, %v10994
    %v11033 = vadd.f32 %v11032, %v10996
    %v11034 = vadd.f32 %v11033, %v10998
    %v11035 = vrot.slane %v11034, 4
    %v11036 = vadd.f32 %v11034, %v11035
    %v11037 = vrot.slane %v11036, 2
    %v11038 = vadd.f32 %v11036, %v11037
    %v11039 = vrot.slane %v11038, 1
    %v11040 = vadd.f32 %v11038, %v11039
    %v11041 = vpack.c.bf16 %v10886, %v10690
    %v11042 = vpack.c.bf16 %v10888, %v10692
    %v11043 = vpack.c.bf16 %v10891, %v10695
    %v11044 = vpack.c.bf16 %v10893, %v10697
    %v11045 = vpack.c.bf16 %v10896, %v10700
    %v11046 = vpack.c.bf16 %v10898, %v10702
    %v11047 = vpack.c.bf16 %v10901, %v10705
    %v11048 = vpack.c.bf16 %v10903, %v10707
    %v11049 = vpack.c.bf16 %v10906, %v10710
    %v11050 = vpack.c.bf16 %v10908, %v10712
    %v11051 = vpack.c.bf16 %v10911, %v10715
    %v11052 = vpack.c.bf16 %v10913, %v10717
    %v11053 = vpack.c.bf16 %v10916, %v10720
    %v11054 = vpack.c.bf16 %v10918, %v10722
    %v11055 = vpack.c.bf16 %v10921, %v10725
    %v11056 = vpack.c.bf16 %v10923, %v10727
    %v11057 = vmul.f32 %v10945, 0.0078125
    %v11058 = vmul.f32 %v10966, 0.0078125
    %v11059 = vmul.f32 %v11019, 0.0078125
    %v11060 = vmul.f32 %v11040, 0.0078125
    %v11061 = vmul.f32 %v11057, %v11057
    %v11062 = vmul.f32 %v11058, %v11058
    %v11063 = vsub.f32 %v11059, %v11061
    %v11064 = vsub.f32 %v11060, %v11062
    %v11065 = vmax.f32 %v11063, 0.0
    %v11066 = vmax.f32 %v11064, 0.0
    %v11067 = vld [vmem:[%s45] sm:$0x3]
    %v11068 = vadd.f32 %v11065, 1e-05
    %v11069 = vadd.f32 %v11066, 1e-05
    %v11070 = vrsqrt.pop %v11068
    %v11071 = vmul.f32 %v11070, %v11068
    %v11072 = vmul.f32 %v11071, %v11070
    %v11073 = vmul.f32 0.5, %v11072
    %v11074 = vsub.f32 1.5, %v11073
    %v11075 = vmul.f32 %v11070, %v11074
    %vm11076 = vweird.f32 %v11068
    %vm11077 = vweird.f32 %v11070
    %vm11078 = vmor %vm11076, %vm11077
    %v11079 = vsel %vm11078, %v11070, %v11075
    %v11080 = vrsqrt.pop %v11069
    %v11081 = vmul.f32 %v11080, %v11069
    %v11082 = vmul.f32 %v11081, %v11080
    %v11083 = vmul.f32 0.5, %v11082
    %v11084 = vsub.f32 1.5, %v11083
    %v11085 = vmul.f32 %v11080, %v11084
    %vm11086 = vweird.f32 %v11069
    %vm11087 = vweird.f32 %v11080
    %vm11088 = vmor %vm11086, %vm11087
    %v11089 = vsel %vm11088, %v11080, %v11085
    %v11092 = vrot.slane %v11089, 7
    %v11093 = vsel %vm1210, %v11079, %v11092
    %v11095 = vmul.f32 %v11067, %v11093
    %v11096 = vld [vmem:[%s47] sm:$0x3]
    %v11098 = vperm.slane %v11095, 0
    %v11099 = vperm.slane %v11095, 1
    %v11102 = vmul.f32 %v11057, %v11098
    %v11103 = vmul.f32 %v11058, %v11099
    %v11106 = vrot.slane %v11103, 7
    %v11107 = vsel %vm1210, %v11102, %v11106
    %v11109 = vsub.f32 %v11096, %v11107
    %v11110 = vld [vmem:[%s49] sm:$0xf]
    %v11111 = vld [vmem:[%s49 + $0x4] sm:$0xf]
    %v11112 = vld [vmem:[%s49 + $0x8] sm:$0xf]
    %v11113 = vld [vmem:[%s49 + $0xc] sm:$0xf]
    %v11114 = vld [vmem:[%s49 + $0x10] sm:$0xf]
    %v11115 = vld [vmem:[%s49 + $0x14] sm:$0xf]
    %v11116 = vld [vmem:[%s49 + $0x18] sm:$0xf]
    %v11117 = vld [vmem:[%s49 + $0x1c] sm:$0xf]
    %v11118 = vld [vmem:[%s49 + $0x20] sm:$0xf]
    %v11119 = vld [vmem:[%s49 + $0x24] sm:$0xf]
    %v11120 = vld [vmem:[%s49 + $0x28] sm:$0xf]
    %v11121 = vld [vmem:[%s49 + $0x2c] sm:$0xf]
    %v11122 = vld [vmem:[%s49 + $0x30] sm:$0xf]
    %v11123 = vld [vmem:[%s49 + $0x34] sm:$0xf]
    %v11124 = vld [vmem:[%s49 + $0x38] sm:$0xf]
    %v11125 = vld [vmem:[%s49 + $0x3c] sm:$0xf]
    %v11126 = vld [vmem:[%s49 + $0x40] sm:$0xf]
    %v11127 = vld [vmem:[%s49 + $0x44] sm:$0xf]
    %v11128 = vld [vmem:[%s49 + $0x48] sm:$0xf]
    %v11129 = vld [vmem:[%s49 + $0x4c] sm:$0xf]
    %v11130 = vld [vmem:[%s49 + $0x50] sm:$0xf]
    %v11131 = vld [vmem:[%s49 + $0x54] sm:$0xf]
    %v11132 = vld [vmem:[%s49 + $0x58] sm:$0xf]
    %v11133 = vld [vmem:[%s49 + $0x5c] sm:$0xf]
    %v11134 = vld [vmem:[%s49 + $0x60] sm:$0xf]
    %v11135 = vld [vmem:[%s49 + $0x64] sm:$0xf]
    %v11136 = vld [vmem:[%s49 + $0x68] sm:$0xf]
    %v11137 = vld [vmem:[%s49 + $0x6c] sm:$0xf]
    %v11138 = vld [vmem:[%s49 + $0x70] sm:$0xf]
    %v11139 = vld [vmem:[%s49 + $0x74] sm:$0xf]
    %v11140 = vld [vmem:[%s49 + $0x78] sm:$0xf]
    %v11141 = vld [vmem:[%s49 + $0x7c] sm:$0xf]
    %v11142 = vunpack.c.l.bf16 %v11041
    %v11143 = vunpack.c.h.bf16 %v11041
    %v11144 = vunpack.c.l.bf16 %v11042
    %v11145 = vunpack.c.h.bf16 %v11042
    %v11146 = vunpack.c.l.bf16 %v11043
    %v11147 = vunpack.c.h.bf16 %v11043
    %v11148 = vunpack.c.l.bf16 %v11044
    %v11149 = vunpack.c.h.bf16 %v11044
    %v11150 = vunpack.c.l.bf16 %v11045
    %v11151 = vunpack.c.h.bf16 %v11045
    %v11152 = vunpack.c.l.bf16 %v11046
    %v11153 = vunpack.c.h.bf16 %v11046
    %v11154 = vunpack.c.l.bf16 %v11047
    %v11155 = vunpack.c.h.bf16 %v11047
    %v11156 = vunpack.c.l.bf16 %v11048
    %v11157 = vunpack.c.h.bf16 %v11048
    %v11158 = vunpack.c.l.bf16 %v11049
    %v11159 = vunpack.c.h.bf16 %v11049
    %v11160 = vunpack.c.l.bf16 %v11050
    %v11161 = vunpack.c.h.bf16 %v11050
    %v11162 = vunpack.c.l.bf16 %v11051
    %v11163 = vunpack.c.h.bf16 %v11051
    %v11164 = vunpack.c.l.bf16 %v11052
    %v11165 = vunpack.c.h.bf16 %v11052
    %v11166 = vunpack.c.l.bf16 %v11053
    %v11167 = vunpack.c.h.bf16 %v11053
    %v11168 = vunpack.c.l.bf16 %v11054
    %v11169 = vunpack.c.h.bf16 %v11054
    %v11170 = vunpack.c.l.bf16 %v11055
    %v11171 = vunpack.c.h.bf16 %v11055
    %v11172 = vunpack.c.l.bf16 %v11056
    %v11173 = vunpack.c.h.bf16 %v11056
    %v11174 = vmul.f32 %v11142, %v11098
    %v11175 = vmul.f32 %v11143, %v11099
    %v11176 = vmul.f32 %v11144, %v11098
    %v11177 = vmul.f32 %v11145, %v11099
    %v11178 = vmul.f32 %v11146, %v11098
    %v11179 = vmul.f32 %v11147, %v11099
    %v11180 = vmul.f32 %v11148, %v11098
    %v11181 = vmul.f32 %v11149, %v11099
    %v11182 = vmul.f32 %v11150, %v11098
    %v11183 = vmul.f32 %v11151, %v11099
    %v11184 = vmul.f32 %v11152, %v11098
    %v11185 = vmul.f32 %v11153, %v11099
    %v11186 = vmul.f32 %v11154, %v11098
    %v11187 = vmul.f32 %v11155, %v11099
    %v11188 = vmul.f32 %v11156, %v11098
    %v11189 = vmul.f32 %v11157, %v11099
    %v11190 = vmul.f32 %v11158, %v11098
    %v11191 = vmul.f32 %v11159, %v11099
    %v11192 = vmul.f32 %v11160, %v11098
    %v11193 = vmul.f32 %v11161, %v11099
    %v11194 = vmul.f32 %v11162, %v11098
    %v11195 = vmul.f32 %v11163, %v11099
    %v11196 = vmul.f32 %v11164, %v11098
    %v11197 = vmul.f32 %v11165, %v11099
    %v11198 = vmul.f32 %v11166, %v11098
    %v11199 = vmul.f32 %v11167, %v11099
    %v11200 = vmul.f32 %v11168, %v11098
    %v11201 = vmul.f32 %v11169, %v11099
    %v11202 = vmul.f32 %v11170, %v11098
    %v11203 = vmul.f32 %v11171, %v11099
    %v11204 = vmul.f32 %v11172, %v11098
    %v11205 = vmul.f32 %v11173, %v11099
    %v11207 = vperm.slane %v11109, 0
    %v11208 = vperm.slane %v11109, 1
    %v11211 = vadd.f32 %v11174, %v11207
    %v11212 = vadd.f32 %v11175, %v11208
    %v11213 = vadd.f32 %v11176, %v11207
    %v11214 = vadd.f32 %v11177, %v11208
    %v11215 = vadd.f32 %v11178, %v11207
    %v11216 = vadd.f32 %v11179, %v11208
    %v11217 = vadd.f32 %v11180, %v11207
    %v11218 = vadd.f32 %v11181, %v11208
    %v11219 = vadd.f32 %v11182, %v11207
    %v11220 = vadd.f32 %v11183, %v11208
    %v11221 = vadd.f32 %v11184, %v11207
    %v11222 = vadd.f32 %v11185, %v11208
    %v11223 = vadd.f32 %v11186, %v11207
    %v11224 = vadd.f32 %v11187, %v11208
    %v11225 = vadd.f32 %v11188, %v11207
    %v11226 = vadd.f32 %v11189, %v11208
    %v11227 = vadd.f32 %v11190, %v11207
    %v11228 = vadd.f32 %v11191, %v11208
    %v11229 = vadd.f32 %v11192, %v11207
    %v11230 = vadd.f32 %v11193, %v11208
    %v11231 = vadd.f32 %v11194, %v11207
    %v11232 = vadd.f32 %v11195, %v11208
    %v11233 = vadd.f32 %v11196, %v11207
    %v11234 = vadd.f32 %v11197, %v11208
    %v11235 = vadd.f32 %v11198, %v11207
    %v11236 = vadd.f32 %v11199, %v11208
    %v11237 = vadd.f32 %v11200, %v11207
    %v11238 = vadd.f32 %v11201, %v11208
    %v11239 = vadd.f32 %v11202, %v11207
    %v11240 = vadd.f32 %v11203, %v11208
    %v11241 = vadd.f32 %v11204, %v11207
    %v11242 = vadd.f32 %v11205, %v11208
    %v11243 = vmax.f32 %v11211, 0.0
    %v11244 = vmax.f32 %v11212, 0.0
    %v11245 = vmax.f32 %v11213, 0.0
    %v11246 = vmax.f32 %v11214, 0.0
    %v11247 = vmax.f32 %v11215, 0.0
    %v11248 = vmax.f32 %v11216, 0.0
    %v11249 = vmax.f32 %v11217, 0.0
    %v11250 = vmax.f32 %v11218, 0.0
    %v11251 = vmax.f32 %v11219, 0.0
    %v11252 = vmax.f32 %v11220, 0.0
    %v11253 = vmax.f32 %v11221, 0.0
    %v11254 = vmax.f32 %v11222, 0.0
    %v11255 = vmax.f32 %v11223, 0.0
    %v11256 = vmax.f32 %v11224, 0.0
    %v11257 = vmax.f32 %v11225, 0.0
    %v11258 = vmax.f32 %v11226, 0.0
    %v11259 = vmax.f32 %v11227, 0.0
    %v11260 = vmax.f32 %v11228, 0.0
    %v11261 = vmax.f32 %v11229, 0.0
    %v11262 = vmax.f32 %v11230, 0.0
    %v11263 = vmax.f32 %v11231, 0.0
    %v11264 = vmax.f32 %v11232, 0.0
    %v11265 = vmax.f32 %v11233, 0.0
    %v11266 = vmax.f32 %v11234, 0.0
    %v11267 = vmax.f32 %v11235, 0.0
    %v11268 = vmax.f32 %v11236, 0.0
    %v11269 = vmax.f32 %v11237, 0.0
    %v11270 = vmax.f32 %v11238, 0.0
    %v11271 = vmax.f32 %v11239, 0.0
    %v11272 = vmax.f32 %v11240, 0.0
    %v11273 = vmax.f32 %v11241, 0.0
    %v11274 = vmax.f32 %v11242, 0.0
    %v11275 = vpack.c.bf16 %v11245, %v11243
    %v11276 = vpack.c.bf16 %v11246, %v11244
    %v11277 = vpack.c.bf16 %v11249, %v11247
    %v11278 = vpack.c.bf16 %v11250, %v11248
    %v11279 = vpack.c.bf16 %v11253, %v11251
    %v11280 = vpack.c.bf16 %v11254, %v11252
    %v11281 = vpack.c.bf16 %v11257, %v11255
    %v11282 = vpack.c.bf16 %v11258, %v11256
    %v11283 = vpack.c.bf16 %v11261, %v11259
    %v11284 = vpack.c.bf16 %v11262, %v11260
    %v11285 = vpack.c.bf16 %v11265, %v11263
    %v11286 = vpack.c.bf16 %v11266, %v11264
    %v11287 = vpack.c.bf16 %v11269, %v11267
    %v11288 = vpack.c.bf16 %v11270, %v11268
    %v11289 = vpack.c.bf16 %v11273, %v11271
    %v11290 = vpack.c.bf16 %v11274, %v11272
    %v11323 = vunpack.c.l.b16 %v11110
    %v11324 = vunpack.c.l.b16 %v11111
    %v11325 = vunpack.c.l.b16 %v11112
    %v11326 = vunpack.c.l.b16 %v11113
    %v11327 = vunpack.c.l.b16 %v11114
    %v11328 = vunpack.c.l.b16 %v11115
    %v11329 = vunpack.c.l.b16 %v11116
    %v11330 = vunpack.c.l.b16 %v11117
    %v11331 = vunpack.c.l.b16 %v11118
    %v11332 = vunpack.c.l.b16 %v11119
    %v11333 = vunpack.c.l.b16 %v11120
    %v11334 = vunpack.c.l.b16 %v11121
    %v11335 = vunpack.c.l.b16 %v11122
    %v11336 = vunpack.c.l.b16 %v11123
    %v11337 = vunpack.c.l.b16 %v11124
    %v11338 = vunpack.c.l.b16 %v11125
    %v11339 = vunpack.c.l.b16 %v11126
    %v11340 = vunpack.c.l.b16 %v11127
    %v11341 = vunpack.c.l.b16 %v11128
    %v11342 = vunpack.c.l.b16 %v11129
    %v11343 = vunpack.c.l.b16 %v11130
    %v11344 = vunpack.c.l.b16 %v11131
    %v11345 = vunpack.c.l.b16 %v11132
    %v11346 = vunpack.c.l.b16 %v11133
    %v11347 = vunpack.c.l.b16 %v11134
    %v11348 = vunpack.c.l.b16 %v11135
    %v11349 = vunpack.c.l.b16 %v11136
    %v11350 = vunpack.c.l.b16 %v11137
    %v11351 = vunpack.c.l.b16 %v11138
    %v11352 = vunpack.c.l.b16 %v11139
    %v11353 = vunpack.c.l.b16 %v11140
    %v11354 = vunpack.c.l.b16 %v11141
    %v11355 = vpack.c.b16 %v11324, %v11323
    %v11356 = vpack.c.b16 %v11326, %v11325
    %v11357 = vpack.c.b16 %v11328, %v11327
    %v11358 = vpack.c.b16 %v11330, %v11329
    %v11359 = vpack.c.b16 %v11332, %v11331
    %v11360 = vpack.c.b16 %v11334, %v11333
    %v11361 = vpack.c.b16 %v11336, %v11335
    %v11362 = vpack.c.b16 %v11338, %v11337
    %v11363 = vpack.c.b16 %v11340, %v11339
    %v11364 = vpack.c.b16 %v11342, %v11341
    %v11365 = vpack.c.b16 %v11344, %v11343
    %v11366 = vpack.c.b16 %v11346, %v11345
    %v11367 = vpack.c.b16 %v11348, %v11347
    %v11368 = vpack.c.b16 %v11350, %v11349
    %v11369 = vpack.c.b16 %v11352, %v11351
    %v11370 = vpack.c.b16 %v11354, %v11353
    %11387 = vmatpush.bf16.msra.mxu0 %v11362
    %11388 = vmatpush.bf16.msra.mxu0 %v11361
    %11389 = vmatpush.bf16.msra.mxu0 %v11360
    %11390 = vmatpush.bf16.msra.mxu0 %v11359
    %11391 = vmatpush.bf16.msra.mxu0 %v11358
    %11392 = vmatpush.bf16.msra.mxu0 %v11357
    %11393 = vmatpush.bf16.msra.mxu0 %v11356
    %11394 = vmatpush.bf16.msra.mxu0 %v11355
    %11395 = vmatmul.bf16.gmra.mxu0 %v11275
    %v11396 = vpop.f32.mrf.mxu0
    %v11397 = vadd.f32 0.0, %v11396
    %v11398 = vpop.f32.mrf.mxu0
    %v11399 = vadd.f32 0.0, %v11398
    %11400 = vmatmul.bf16.gmra.mxu0 %v11277
    %v11401 = vpop.f32.mrf.mxu0
    %v11402 = vadd.f32 0.0, %v11401
    %v11403 = vpop.f32.mrf.mxu0
    %v11404 = vadd.f32 0.0, %v11403
    %11405 = vmatmul.bf16.gmra.mxu0 %v11279
    %v11406 = vpop.f32.mrf.mxu0
    %v11407 = vadd.f32 0.0, %v11406
    %v11408 = vpop.f32.mrf.mxu0
    %v11409 = vadd.f32 0.0, %v11408
    %11410 = vmatmul.bf16.gmra.mxu0 %v11281
    %v11411 = vpop.f32.mrf.mxu0
    %v11412 = vadd.f32 0.0, %v11411
    %v11413 = vpop.f32.mrf.mxu0
    %v11414 = vadd.f32 0.0, %v11413
    %11415 = vmatmul.bf16.gmra.mxu0 %v11283
    %v11416 = vpop.f32.mrf.mxu0
    %v11417 = vadd.f32 0.0, %v11416
    %v11418 = vpop.f32.mrf.mxu0
    %v11419 = vadd.f32 0.0, %v11418
    %11420 = vmatmul.bf16.gmra.mxu0 %v11285
    %v11421 = vpop.f32.mrf.mxu0
    %v11422 = vadd.f32 0.0, %v11421
    %v11423 = vpop.f32.mrf.mxu0
    %v11424 = vadd.f32 0.0, %v11423
    %11425 = vmatmul.bf16.gmra.mxu0 %v11287
    %v11426 = vpop.f32.mrf.mxu0
    %v11427 = vadd.f32 0.0, %v11426
    %v11428 = vpop.f32.mrf.mxu0
    %v11429 = vadd.f32 0.0, %v11428
    %11430 = vmatmul.bf16.gmra.mxu0 %v11289
    %v11431 = vpop.f32.mrf.mxu0
    %v11432 = vadd.f32 0.0, %v11431
    %v11433 = vpop.f32.mrf.mxu0
    %v11434 = vadd.f32 0.0, %v11433
    %11435 = vdwg.mxu0
    %11436 = vmatpush.bf16.msra.mxu0 %v11370
    %11437 = vmatpush.bf16.msra.mxu0 %v11369
    %11438 = vmatpush.bf16.msra.mxu0 %v11368
    %11439 = vmatpush.bf16.msra.mxu0 %v11367
    %11440 = vmatpush.bf16.msra.mxu0 %v11366
    %11441 = vmatpush.bf16.msra.mxu0 %v11365
    %11442 = vmatpush.bf16.msra.mxu0 %v11364
    %11443 = vmatpush.bf16.msra.mxu0 %v11363
    %11444 = vmatmul.bf16.gmra.mxu0 %v11276
    %v11445 = vpop.f32.mrf.mxu0
    %v11446 = vadd.f32 %v11397, %v11445
    %v11447 = vpop.f32.mrf.mxu0
    %v11448 = vadd.f32 %v11399, %v11447
    %11449 = vmatmul.bf16.gmra.mxu0 %v11278
    %v11450 = vpop.f32.mrf.mxu0
    %v11451 = vadd.f32 %v11402, %v11450
    %v11452 = vpop.f32.mrf.mxu0
    %v11453 = vadd.f32 %v11404, %v11452
    %11454 = vmatmul.bf16.gmra.mxu0 %v11280
    %v11455 = vpop.f32.mrf.mxu0
    %v11456 = vadd.f32 %v11407, %v11455
    %v11457 = vpop.f32.mrf.mxu0
    %v11458 = vadd.f32 %v11409, %v11457
    %11459 = vmatmul.bf16.gmra.mxu0 %v11282
    %v11460 = vpop.f32.mrf.mxu0
    %v11461 = vadd.f32 %v11412, %v11460
    %v11462 = vpop.f32.mrf.mxu0
    %v11463 = vadd.f32 %v11414, %v11462
    %11464 = vmatmul.bf16.gmra.mxu0 %v11284
    %v11465 = vpop.f32.mrf.mxu0
    %v11466 = vadd.f32 %v11417, %v11465
    %v11467 = vpop.f32.mrf.mxu0
    %v11468 = vadd.f32 %v11419, %v11467
    %11469 = vmatmul.bf16.gmra.mxu0 %v11286
    %v11470 = vpop.f32.mrf.mxu0
    %v11471 = vadd.f32 %v11422, %v11470
    %v11472 = vpop.f32.mrf.mxu0
    %v11473 = vadd.f32 %v11424, %v11472
    %11474 = vmatmul.bf16.gmra.mxu0 %v11288
    %v11475 = vpop.f32.mrf.mxu0
    %v11476 = vadd.f32 %v11427, %v11475
    %v11477 = vpop.f32.mrf.mxu0
    %v11478 = vadd.f32 %v11429, %v11477
    %11479 = vmatmul.bf16.gmra.mxu0 %v11290
    %v11480 = vpop.f32.mrf.mxu0
    %v11481 = vadd.f32 %v11432, %v11480
    %v11482 = vpop.f32.mrf.mxu0
    %v11483 = vadd.f32 %v11434, %v11482
    %11484 = vdwg.mxu0
    %v11485 = vadd.f32 %v11446, %v11448
    %v11486 = vadd.f32 %v11485, %v11451
    %v11487 = vadd.f32 %v11486, %v11453
    %v11488 = vadd.f32 %v11487, %v11456
    %v11489 = vadd.f32 %v11488, %v11458
    %v11490 = vadd.f32 %v11489, %v11461
    %v11491 = vadd.f32 %v11490, %v11463
    %v11492 = vadd.f32 %v11491, %v11466
    %v11493 = vadd.f32 %v11492, %v11468
    %v11494 = vadd.f32 %v11493, %v11471
    %v11495 = vadd.f32 %v11494, %v11473
    %v11496 = vadd.f32 %v11495, %v11476
    %v11497 = vadd.f32 %v11496, %v11478
    %v11498 = vadd.f32 %v11497, %v11481
    %v11499 = vadd.f32 %v11498, %v11483
    %v11500 = vrot.slane %v11499, 4
    %v11501 = vadd.f32 %v11499, %v11500
    %v11502 = vrot.slane %v11501, 2
    %v11503 = vadd.f32 %v11501, %v11502
    %v11504 = vrot.slane %v11503, 1
    %v11505 = vadd.f32 %v11503, %v11504
    %v11506 = vmul.f32 %v11446, %v11446
    %v11507 = vmul.f32 %v11448, %v11448
    %v11508 = vmul.f32 %v11451, %v11451
    %v11509 = vmul.f32 %v11453, %v11453
    %v11510 = vmul.f32 %v11456, %v11456
    %v11511 = vmul.f32 %v11458, %v11458
    %v11512 = vmul.f32 %v11461, %v11461
    %v11513 = vmul.f32 %v11463, %v11463
    %v11514 = vmul.f32 %v11466, %v11466
    %v11515 = vmul.f32 %v11468, %v11468
    %v11516 = vmul.f32 %v11471, %v11471
    %v11517 = vmul.f32 %v11473, %v11473
    %v11518 = vmul.f32 %v11476, %v11476
    %v11519 = vmul.f32 %v11478, %v11478
    %v11520 = vmul.f32 %v11481, %v11481
    %v11521 = vmul.f32 %v11483, %v11483
    %v11522 = vadd.f32 %v11506, %v11507
    %v11523 = vadd.f32 %v11522, %v11508
    %v11524 = vadd.f32 %v11523, %v11509
    %v11525 = vadd.f32 %v11524, %v11510
    %v11526 = vadd.f32 %v11525, %v11511
    %v11527 = vadd.f32 %v11526, %v11512
    %v11528 = vadd.f32 %v11527, %v11513
    %v11529 = vadd.f32 %v11528, %v11514
    %v11530 = vadd.f32 %v11529, %v11515
    %v11531 = vadd.f32 %v11530, %v11516
    %v11532 = vadd.f32 %v11531, %v11517
    %v11533 = vadd.f32 %v11532, %v11518
    %v11534 = vadd.f32 %v11533, %v11519
    %v11535 = vadd.f32 %v11534, %v11520
    %v11536 = vadd.f32 %v11535, %v11521
    %v11537 = vrot.slane %v11536, 4
    %v11538 = vadd.f32 %v11536, %v11537
    %v11539 = vrot.slane %v11538, 2
    %v11540 = vadd.f32 %v11538, %v11539
    %v11541 = vrot.slane %v11540, 1
    %v11542 = vadd.f32 %v11540, %v11541
    %v11543 = vpack.c.bf16 %v11446, %v11446
    %v11544 = vpack.c.bf16 %v11448, %v11448
    %v11545 = vpack.c.bf16 %v11451, %v11451
    %v11546 = vpack.c.bf16 %v11453, %v11453
    %v11547 = vpack.c.bf16 %v11456, %v11456
    %v11548 = vpack.c.bf16 %v11458, %v11458
    %v11549 = vpack.c.bf16 %v11461, %v11461
    %v11550 = vpack.c.bf16 %v11463, %v11463
    %v11551 = vpack.c.bf16 %v11466, %v11466
    %v11552 = vpack.c.bf16 %v11468, %v11468
    %v11553 = vpack.c.bf16 %v11471, %v11471
    %v11554 = vpack.c.bf16 %v11473, %v11473
    %v11555 = vpack.c.bf16 %v11476, %v11476
    %v11556 = vpack.c.bf16 %v11478, %v11478
    %v11557 = vpack.c.bf16 %v11481, %v11481
    %v11558 = vpack.c.bf16 %v11483, %v11483
    %v11559 = vmul.f32 %v11505, 0.0078125
    %v11560 = vmul.f32 %v11542, 0.0078125
    %v11561 = vmul.f32 %v11559, %v11559
    %v11562 = vsub.f32 %v11560, %v11561
    %v11563 = vmax.f32 %v11562, 0.0
    %v11564 = vld [vmem:[%s51] sm:$0x1]
    %v11565 = vadd.f32 %v11563, 1e-05
    %v11566 = vrsqrt.pop %v11565
    %v11567 = vmul.f32 %v11566, %v11565
    %v11568 = vmul.f32 %v11567, %v11566
    %v11569 = vmul.f32 0.5, %v11568
    %v11570 = vsub.f32 1.5, %v11569
    %v11571 = vmul.f32 %v11566, %v11570
    %vm11572 = vweird.f32 %v11565
    %vm11573 = vweird.f32 %v11566
    %vm11574 = vmor %vm11572, %vm11573
    %v11575 = vsel %vm11574, %v11566, %v11571
    %v11576 = vmul.f32 %v11564, %v11575
    %v11577 = vld [vmem:[%s53] sm:$0x1]
    %v11578 = vmul.f32 %v11559, %v11576
    %v11579 = vsub.f32 %v11577, %v11578
    %v11580 = vld [vmem:[%s55] sm:$0xf]
    %v11581 = vld [vmem:[%s55 + $0x4] sm:$0xf]
    %v11582 = vld [vmem:[%s55 + $0x8] sm:$0xf]
    %v11583 = vld [vmem:[%s55 + $0xc] sm:$0xf]
    %v11584 = vld [vmem:[%s55 + $0x10] sm:$0xf]
    %v11585 = vld [vmem:[%s55 + $0x14] sm:$0xf]
    %v11586 = vld [vmem:[%s55 + $0x18] sm:$0xf]
    %v11587 = vld [vmem:[%s55 + $0x1c] sm:$0xf]
    %v11588 = vld [vmem:[%s55 + $0x20] sm:$0xf]
    %v11589 = vld [vmem:[%s55 + $0x24] sm:$0xf]
    %v11590 = vld [vmem:[%s55 + $0x28] sm:$0xf]
    %v11591 = vld [vmem:[%s55 + $0x2c] sm:$0xf]
    %v11592 = vld [vmem:[%s55 + $0x30] sm:$0xf]
    %v11593 = vld [vmem:[%s55 + $0x34] sm:$0xf]
    %v11594 = vld [vmem:[%s55 + $0x38] sm:$0xf]
    %v11595 = vld [vmem:[%s55 + $0x3c] sm:$0xf]
    %v11596 = vld [vmem:[%s57] sm:$0x1]
    %v11597 = vunpack.c.l.bf16 %v11543
    %v11598 = vunpack.c.l.bf16 %v11544
    %v11599 = vunpack.c.l.bf16 %v11545
    %v11600 = vunpack.c.l.bf16 %v11546
    %v11601 = vunpack.c.l.bf16 %v11547
    %v11602 = vunpack.c.l.bf16 %v11548
    %v11603 = vunpack.c.l.bf16 %v11549
    %v11604 = vunpack.c.l.bf16 %v11550
    %v11605 = vunpack.c.l.bf16 %v11551
    %v11606 = vunpack.c.l.bf16 %v11552
    %v11607 = vunpack.c.l.bf16 %v11553
    %v11608 = vunpack.c.l.bf16 %v11554
    %v11609 = vunpack.c.l.bf16 %v11555
    %v11610 = vunpack.c.l.bf16 %v11556
    %v11611 = vunpack.c.l.bf16 %v11557
    %v11612 = vunpack.c.l.bf16 %v11558
    %v11614 = vperm.slane %v11576, 0
    %v11616 = vmul.f32 %v11597, %v11614
    %v11617 = vmul.f32 %v11598, %v11614
    %v11618 = vmul.f32 %v11599, %v11614
    %v11619 = vmul.f32 %v11600, %v11614
    %v11620 = vmul.f32 %v11601, %v11614
    %v11621 = vmul.f32 %v11602, %v11614
    %v11622 = vmul.f32 %v11603, %v11614
    %v11623 = vmul.f32 %v11604, %v11614
    %v11624 = vmul.f32 %v11605, %v11614
    %v11625 = vmul.f32 %v11606, %v11614
    %v11626 = vmul.f32 %v11607, %v11614
    %v11627 = vmul.f32 %v11608, %v11614
    %v11628 = vmul.f32 %v11609, %v11614
    %v11629 = vmul.f32 %v11610, %v11614
    %v11630 = vmul.f32 %v11611, %v11614
    %v11631 = vmul.f32 %v11612, %v11614
    %v11633 = vperm.slane %v11579, 0
    %v11635 = vadd.f32 %v11616, %v11633
    %v11636 = vadd.f32 %v11617, %v11633
    %v11637 = vadd.f32 %v11618, %v11633
    %v11638 = vadd.f32 %v11619, %v11633
    %v11639 = vadd.f32 %v11620, %v11633
    %v11640 = vadd.f32 %v11621, %v11633
    %v11641 = vadd.f32 %v11622, %v11633
    %v11642 = vadd.f32 %v11623, %v11633
    %v11643 = vadd.f32 %v11624, %v11633
    %v11644 = vadd.f32 %v11625, %v11633
    %v11645 = vadd.f32 %v11626, %v11633
    %v11646 = vadd.f32 %v11627, %v11633
    %v11647 = vadd.f32 %v11628, %v11633
    %v11648 = vadd.f32 %v11629, %v11633
    %v11649 = vadd.f32 %v11630, %v11633
    %v11650 = vadd.f32 %v11631, %v11633
    %v11651 = vmax.f32 %v11635, 0.0
    %v11652 = vmax.f32 %v11636, 0.0
    %v11653 = vmax.f32 %v11637, 0.0
    %v11654 = vmax.f32 %v11638, 0.0
    %v11655 = vmax.f32 %v11639, 0.0
    %v11656 = vmax.f32 %v11640, 0.0
    %v11657 = vmax.f32 %v11641, 0.0
    %v11658 = vmax.f32 %v11642, 0.0
    %v11659 = vmax.f32 %v11643, 0.0
    %v11660 = vmax.f32 %v11644, 0.0
    %v11661 = vmax.f32 %v11645, 0.0
    %v11662 = vmax.f32 %v11646, 0.0
    %v11663 = vmax.f32 %v11647, 0.0
    %v11664 = vmax.f32 %v11648, 0.0
    %v11665 = vmax.f32 %v11649, 0.0
    %v11666 = vmax.f32 %v11650, 0.0
    %v11667 = vpack.c.bf16 %v11652, %v11651
    %v11668 = vpack.c.bf16 %v11654, %v11653
    %v11669 = vpack.c.bf16 %v11656, %v11655
    %v11670 = vpack.c.bf16 %v11658, %v11657
    %v11671 = vpack.c.bf16 %v11660, %v11659
    %v11672 = vpack.c.bf16 %v11662, %v11661
    %v11673 = vpack.c.bf16 %v11664, %v11663
    %v11674 = vpack.c.bf16 %v11666, %v11665
    %v11676 = vperm.slane %v11596, 0
    %v11694 = vunpack.c.l.b16 %v11580
    %v11695 = vunpack.c.l.b16 %v11581
    %v11696 = vunpack.c.l.b16 %v11582
    %v11697 = vunpack.c.l.b16 %v11583
    %v11698 = vunpack.c.l.b16 %v11584
    %v11699 = vunpack.c.l.b16 %v11585
    %v11700 = vunpack.c.l.b16 %v11586
    %v11701 = vunpack.c.l.b16 %v11587
    %v11702 = vunpack.c.l.b16 %v11588
    %v11703 = vunpack.c.l.b16 %v11589
    %v11704 = vunpack.c.l.b16 %v11590
    %v11705 = vunpack.c.l.b16 %v11591
    %v11706 = vunpack.c.l.b16 %v11592
    %v11707 = vunpack.c.l.b16 %v11593
    %v11708 = vunpack.c.l.b16 %v11594
    %v11709 = vunpack.c.l.b16 %v11595
    %v11710 = vpack.c.b16 %v11695, %v11694
    %v11711 = vpack.c.b16 %v11697, %v11696
    %v11712 = vpack.c.b16 %v11699, %v11698
    %v11713 = vpack.c.b16 %v11701, %v11700
    %v11714 = vpack.c.b16 %v11703, %v11702
    %v11715 = vpack.c.b16 %v11705, %v11704
    %v11716 = vpack.c.b16 %v11707, %v11706
    %v11717 = vpack.c.b16 %v11709, %v11708
    %11726 = vmatpush.bf16.msra.mxu0 %v11717
    %11727 = vmatpush.bf16.msra.mxu0 %v11716
    %11728 = vmatpush.bf16.msra.mxu0 %v11715
    %11729 = vmatpush.bf16.msra.mxu0 %v11714
    %11730 = vmatpush.bf16.msra.mxu0 %v11713
    %11731 = vmatpush.bf16.msra.mxu0 %v11712
    %11732 = vmatpush.bf16.msra.mxu0 %v11711
    %11733 = vmatpush.bf16.msra.mxu0 %v11710
    %11734 = vmatmul.bf16.gmra.mxu0 %v11667
    %v11735 = vpop.f32.mrf.mxu0
    %v11736 = vadd.f32 %v11676, %v11735
    %v11737 = vpop.f32.mrf.mxu0
    %v11738 = vadd.f32 %v11676, %v11737
    %11739 = vmatmul.bf16.gmra.mxu0 %v11668
    %v11740 = vpop.f32.mrf.mxu0
    %v11741 = vadd.f32 %v11676, %v11740
    %v11742 = vpop.f32.mrf.mxu0
    %v11743 = vadd.f32 %v11676, %v11742
    %11744 = vmatmul.bf16.gmra.mxu0 %v11669
    %v11745 = vpop.f32.mrf.mxu0
    %v11746 = vadd.f32 %v11676, %v11745
    %v11747 = vpop.f32.mrf.mxu0
    %v11748 = vadd.f32 %v11676, %v11747
    %11749 = vmatmul.bf16.gmra.mxu0 %v11670
    %v11750 = vpop.f32.mrf.mxu0
    %v11751 = vadd.f32 %v11676, %v11750
    %v11752 = vpop.f32.mrf.mxu0
    %v11753 = vadd.f32 %v11676, %v11752
    %11754 = vmatmul.bf16.gmra.mxu0 %v11671
    %v11755 = vpop.f32.mrf.mxu0
    %v11756 = vadd.f32 %v11676, %v11755
    %v11757 = vpop.f32.mrf.mxu0
    %v11758 = vadd.f32 %v11676, %v11757
    %11759 = vmatmul.bf16.gmra.mxu0 %v11672
    %v11760 = vpop.f32.mrf.mxu0
    %v11761 = vadd.f32 %v11676, %v11760
    %v11762 = vpop.f32.mrf.mxu0
    %v11763 = vadd.f32 %v11676, %v11762
    %11764 = vmatmul.bf16.gmra.mxu0 %v11673
    %v11765 = vpop.f32.mrf.mxu0
    %v11766 = vadd.f32 %v11676, %v11765
    %v11767 = vpop.f32.mrf.mxu0
    %v11768 = vadd.f32 %v11676, %v11767
    %11769 = vmatmul.bf16.gmra.mxu0 %v11674
    %v11770 = vpop.f32.mrf.mxu0
    %v11771 = vadd.f32 %v11676, %v11770
    %v11772 = vpop.f32.mrf.mxu0
    %v11773 = vadd.f32 %v11676, %v11772
    %11774 = vdwg.mxu0
    %v11775 = vld [vmem:[%s3] sm:$0xff]
    %v11776 = vld [vmem:[%s3 + $0x8] sm:$0xff]
    %v11777 = vld [vmem:[%s3 + $0x10] sm:$0xff]
    %v11778 = vld [vmem:[%s3 + $0x18] sm:$0xff]
    %v11779 = vld [vmem:[%s3 + $0x20] sm:$0xff]
    %v11780 = vld [vmem:[%s3 + $0x28] sm:$0xff]
    %v11781 = vld [vmem:[%s3 + $0x30] sm:$0xff]
    %v11782 = vld [vmem:[%s3 + $0x38] sm:$0xff]
    %v11783 = vld [vmem:[%s3 + $0x40] sm:$0xff]
    %v11784 = vld [vmem:[%s3 + $0x48] sm:$0xff]
    %v11785 = vld [vmem:[%s3 + $0x50] sm:$0xff]
    %v11786 = vld [vmem:[%s3 + $0x58] sm:$0xff]
    %v11787 = vld [vmem:[%s3 + $0x60] sm:$0xff]
    %v11788 = vld [vmem:[%s3 + $0x68] sm:$0xff]
    %v11789 = vld [vmem:[%s3 + $0x70] sm:$0xff]
    %v11790 = vld [vmem:[%s3 + $0x78] sm:$0xff]
    %v11791 = vsub.f32 %v11736, %v11775
    %v11792 = vsub.f32 %v11738, %v11776
    %v11793 = vsub.f32 %v11741, %v11777
    %v11794 = vsub.f32 %v11743, %v11778
    %v11795 = vsub.f32 %v11746, %v11779
    %v11796 = vsub.f32 %v11748, %v11780
    %v11797 = vsub.f32 %v11751, %v11781
    %v11798 = vsub.f32 %v11753, %v11782
    %v11799 = vsub.f32 %v11756, %v11783
    %v11800 = vsub.f32 %v11758, %v11784
    %v11801 = vsub.f32 %v11761, %v11785
    %v11802 = vsub.f32 %v11763, %v11786
    %v11803 = vsub.f32 %v11766, %v11787
    %v11804 = vsub.f32 %v11768, %v11788
    %v11805 = vsub.f32 %v11771, %v11789
    %v11806 = vsub.f32 %v11773, %v11790
    %v11807 = vmul.f32 %v11791, %v11791
    %v11808 = vmul.f32 %v11792, %v11792
    %v11809 = vmul.f32 %v11793, %v11793
    %v11810 = vmul.f32 %v11794, %v11794
    %v11811 = vmul.f32 %v11795, %v11795
    %v11812 = vmul.f32 %v11796, %v11796
    %v11813 = vmul.f32 %v11797, %v11797
    %v11814 = vmul.f32 %v11798, %v11798
    %v11815 = vmul.f32 %v11799, %v11799
    %v11816 = vmul.f32 %v11800, %v11800
    %v11817 = vmul.f32 %v11801, %v11801
    %v11818 = vmul.f32 %v11802, %v11802
    %v11819 = vmul.f32 %v11803, %v11803
    %v11820 = vmul.f32 %v11804, %v11804
    %v11821 = vmul.f32 %v11805, %v11805
    %v11822 = vmul.f32 %v11806, %v11806
    %v11823 = vsel %vm246, %v11807, 0.0
    %v11824 = vsel %vm246, %v11808, 0.0
    %v11825 = vadd.f32 %v11823, %v11824
    %v11826 = vsel %vm246, %v11809, 0.0
    %v11827 = vadd.f32 %v11825, %v11826
    %v11828 = vsel %vm246, %v11810, 0.0
    %v11829 = vadd.f32 %v11827, %v11828
    %v11830 = vsel %vm246, %v11811, 0.0
    %v11831 = vadd.f32 %v11829, %v11830
    %v11832 = vsel %vm246, %v11812, 0.0
    %v11833 = vadd.f32 %v11831, %v11832
    %v11834 = vsel %vm246, %v11813, 0.0
    %v11835 = vadd.f32 %v11833, %v11834
    %v11836 = vsel %vm246, %v11814, 0.0
    %v11837 = vadd.f32 %v11835, %v11836
    %v11838 = vsel %vm246, %v11815, 0.0
    %v11839 = vadd.f32 %v11837, %v11838
    %v11840 = vsel %vm246, %v11816, 0.0
    %v11841 = vadd.f32 %v11839, %v11840
    %v11842 = vsel %vm246, %v11817, 0.0
    %v11843 = vadd.f32 %v11841, %v11842
    %v11844 = vsel %vm246, %v11818, 0.0
    %v11845 = vadd.f32 %v11843, %v11844
    %v11846 = vsel %vm246, %v11819, 0.0
    %v11847 = vadd.f32 %v11845, %v11846
    %v11848 = vsel %vm246, %v11820, 0.0
    %v11849 = vadd.f32 %v11847, %v11848
    %v11850 = vsel %vm246, %v11821, 0.0
    %v11851 = vadd.f32 %v11849, %v11850
    %v11852 = vsel %vm246, %v11822, 0.0
    %v11853 = vadd.f32 %v11851, %v11852
    %11854 = vadd.xlane.f32.xlu0 %v11853
    %v11855 = vpop.xlane.xlu0 %11854
    %v11856 = vrot.slane %v11855, 4
    %v11857 = vadd.f32 %v11855, %v11856
    %v11858 = vrot.slane %v11857, 2
    %v11859 = vadd.f32 %v11857, %v11858
    %v11860 = vrot.slane %v11859, 1
    %v11861 = vadd.f32 %v11859, %v11860
    %s11862 = vtos %v11861
    %v11863 = vstv %s11862
    %v11864 = vmul.f32 %v11863, 0.0026041667
    %vm11865 = vcmask 0
    %11866 = vst.msk [vmem:[#allocation14] sm:$0x1] %vm11865, %v11864
    // Predicated region
    $region146: #{_lambda_.1} parent=1 // pred_check
      _
    $region147: #{_lambda_.1} parent=1 // pred_check_branch
      %11868 = sbr.rel (0) target = $region149
    $region148: #{_lambda_.1} parent=1 // pred_region
      %11870 = vsyncadd [#allocation4], 0
      %s11872 = sshll.u32 [#allocation14], 4
      %s11873 = int_to_ptr.vmem [resolvable:$true] %s11872
      %s11874 = sshll.u32 %s59, 4
      %s11875 = int_to_ptr.hbm [resolvable:$true] %s11874
      %11877 = dma.vmem_to_hbm [thread:$0]  %s11873, 16, %s11875, [#allocation4]
    $region149: #{_lambda_.1} parent=1 // pred_fallthru
      _
    // Predicated region
    $region150: #{_lambda_.1} parent=1 // pred_check
      _
    $region151: #{_lambda_.1} parent=1 // pred_check_branch
      %11879 = sbr.rel (0) target = $region153
    $region152: #{_lambda_.1} parent=1 // pred_region
      %11881 = dma.done [#allocation4], 16
    $region153: #{_lambda_.1} parent=1 // pred_fallthru
      _
    %11882 = vsyncpa [#allocation3], 1
    %11883 = vsyncpa [#allocation6], 1
    %11884 = vsyncpa [#allocation9], 1
    %11885 = vsyncpa [#allocation12], 1
    %11886 = vsyncpa [#allocation4], 1

</llo_original>
